<compile_context>
chip_gen: v7x
topology: tpu7x:2x2x1
jax: 0.10.0
libtpu: 0.0.40
codegen_flags: <defaults>
</compile_context>

<pallas_src>
import functools

import jax
import jax.numpy as jnp
from jax.experimental import pallas as pl
from jax.experimental.pallas import tpu as pltpu

# ----------------------------- config (small synthetic shapes) ---------------
VOCAB = 128

# CLIP text encoder (produces pooled_output)
S_CLIP = 8
D_CLIP = 128          # lane-dense feature axis
H_CLIP = 4
MLP_CLIP = 4 * D_CLIP
L_CLIP = 2

# T5 encoder (produces encoder_hidden_states)
S_T5 = 16
D_T5 = 128            # lane-dense feature axis
H_T5 = 4
FFN_T5 = 2 * D_T5
L_T5 = 2
T5_NUM_BUCKETS = 32
T5_MAX_DISTANCE = 128

# ----------------------------- in-kernel building blocks ---------------------


def _layernorm(x, w, b, eps=1e-5):
    # one-pass: var = E[x^2] - mu^2 (halves the cross-lane reductions)
    mu = jnp.mean(x, axis=-1, keepdims=True)
    m2 = jnp.mean(x * x, axis=-1, keepdims=True)
    var = m2 - mu * mu
    return (x - mu) * jax.lax.rsqrt(var + eps) * w + b


def _rmsnorm(x, w, eps=1e-6):
    # T5LayerNorm: no mean subtraction, no bias.
    var = jnp.mean(x * x, axis=-1, keepdims=True)
    return x * jax.lax.rsqrt(var + eps) * w


def _attn(hn, wqkv, wo, bias, num_heads, bqkv=None, bo=None):
    """Batched-head attention.  hn (S, D) f32; wqkv (D, 3D) bf16; wo (D, D) bf16;
    bias broadcastable to (H, S, S) f32 (causal mask for CLIP, rel-pos for T5)."""
    S, D = hn.shape
    H = num_heads
    hd = D // H

    qkv = jnp.dot(hn.astype(jnp.bfloat16), wqkv,
                  preferred_element_type=jnp.float32)          # (S, 3D) f32
    if bqkv is not None:
        qkv = qkv + bqkv

    # (S, D) -> (H, S, hd); head-batch layout for batched MXU matmuls
    q = jnp.transpose(qkv[:, :D].reshape(S, H, hd), (1, 0, 2)).astype(jnp.bfloat16)
    k = jnp.transpose(qkv[:, D:2 * D].reshape(S, H, hd), (1, 0, 2)).astype(jnp.bfloat16)
    v = jnp.transpose(qkv[:, 2 * D:].reshape(S, H, hd), (1, 0, 2)).astype(jnp.bfloat16)

    s = jnp.einsum('hqd,hkd->hqk', q, k,
                   preferred_element_type=jnp.float32) + bias  # (H, S, S)
    s = s - jnp.max(s, axis=-1, keepdims=True)
    p = jnp.exp(s)
    p = p * pl.reciprocal(jnp.sum(p, axis=-1, keepdims=True), approx=True)

    ctx = jnp.einsum('hqk,hkd->hqd', p.astype(jnp.bfloat16), v,
                     preferred_element_type=jnp.float32)       # (H, S, hd)
    ctx = jnp.transpose(ctx, (1, 0, 2)).reshape(S, D)

    out = jnp.dot(ctx.astype(jnp.bfloat16), wo,
                  preferred_element_type=jnp.float32)          # single output proj
    if bo is not None:
        out = out + bo
    return out


def _clip_mlp(hn, w1, b1, w2, b2):
    h = jnp.dot(hn.astype(jnp.bfloat16), w1, preferred_element_type=jnp.float32) + b1
    h = h * jax.nn.sigmoid(1.702 * h)                          # quick-GELU
    return jnp.dot(h.astype(jnp.bfloat16), w2, preferred_element_type=jnp.float32) + b2


def _t5_ffn(hn, wi0, wi1, wo):
    hb = hn.astype(jnp.bfloat16)
    hg = jnp.dot(hb, wi0, preferred_element_type=jnp.float32)
    hg = 0.5 * hg * (1.0 + jnp.tanh(0.7978845608028654 * (hg + 0.044715 * hg * hg * hg)))
    hl = jnp.dot(hb, wi1, preferred_element_type=jnp.float32)
    return jnp.dot((hg * hl).astype(jnp.bfloat16), wo, preferred_element_type=jnp.float32)


# ----------------------------- fused per-encoder kernels ---------------------


def clip_encoder_kernel(x_ref, mask_ref,
                        ln1w_ref, ln1b_ref, wqkv_ref, bqkv_ref, wo_ref, bo_ref,
                        ln2w_ref, ln2b_ref, fc1w_ref, fc1b_ref, fc2w_ref, fc2b_ref,
                        flnw_ref, flnb_ref, o_ref, *, num_heads, num_layers):
    h = x_ref[0]                     # (S, D) f32 residual stream, stays in VMEM
    bias = mask_ref[...]             # (1, S, S) causal mask, broadcast over heads
    for l in range(num_layers):
        hn = _layernorm(h, ln1w_ref[l], ln1b_ref[l])
        h = h + _attn(hn, wqkv_ref[l], wo_ref[l], bias, num_heads,
                      bqkv=bqkv_ref[l], bo=bo_ref[l])
        hn = _layernorm(h, ln2w_ref[l], ln2b_ref[l])
        h = h + _clip_mlp(hn, fc1w_ref[l], fc1b_ref[l], fc2w_ref[l], fc2b_ref[l])
    o_ref[0] = _layernorm(h, flnw_ref[...], flnb_ref[...])


def t5_encoder_kernel(x_ref, bias_ref,
                      ln1w_ref, wqkv_ref, wo_ref,
                      ln2w_ref, wi0_ref, wi1_ref, wof_ref,
                      flnw_ref, o_ref, *, num_heads, num_layers):
    h = x_ref[0]                     # (S, D) f32
    bias = bias_ref[...]             # (H, S, S) relative-position bias
    for l in range(num_layers):
        hn = _rmsnorm(h, ln1w_ref[l])
        h = h + _attn(hn, wqkv_ref[l], wo_ref[l], bias, num_heads)  # T5: no biases/scale
        hn = _rmsnorm(h, ln2w_ref[l])
        h = h + _t5_ffn(hn, wi0_ref[l], wi1_ref[l], wof_ref[l])
    o_ref[0] = _rmsnorm(h, flnw_ref[...])


# ----------------------------- pallas_call wrappers ---------------------------


def _rep_spec(arr):
    """Full-array block replicated across the batch grid (constant index map)."""
    zeros = (0,) * arr.ndim
    return pl.BlockSpec(arr.shape, lambda b, z=zeros: z)


def clip_encoder(x, mask, p):
    B, S, D = x.shape
    weights = (p["ln1_w"], p["ln1_b"], p["wqkv"], p["bqkv"], p["wo"], p["bo"],
               p["ln2_w"], p["ln2_b"], p["fc1_w"], p["fc1_b"], p["fc2_w"], p["fc2_b"],
               p["final_ln_w"], p["final_ln_b"])
    in_specs = ([pl.BlockSpec((1, S, D), lambda b: (b, 0, 0)), _rep_spec(mask)]
                + [_rep_spec(w) for w in weights])
    return pl.pallas_call(
        functools.partial(clip_encoder_kernel, num_heads=H_CLIP, num_layers=L_CLIP),
        out_shape=jax.ShapeDtypeStruct((B, S, D), jnp.float32),
        grid=(B,),
        in_specs=in_specs,
        out_specs=pl.BlockSpec((1, S, D), lambda b: (b, 0, 0)),
        compiler_params=pltpu.CompilerParams(dimension_semantics=("parallel",)),
    )(x, mask, *weights)


def t5_encoder_call(x, bias, p):
    B, S, D = x.shape
    weights = (p["ln1_w"], p["wqkv"], p["wo"],
               p["ln2_w"], p["wi0"], p["wi1"], p["wo_ff"],
               p["final_ln_w"])
    in_specs = ([pl.BlockSpec((1, S, D), lambda b: (b, 0, 0)), _rep_spec(bias)]
                + [_rep_spec(w) for w in weights])
    return pl.pallas_call(
        functools.partial(t5_encoder_kernel, num_heads=H_T5, num_layers=L_T5),
        out_shape=jax.ShapeDtypeStruct((B, S, D), jnp.float32),
        grid=(B,),
        in_specs=in_specs,
        out_specs=pl.BlockSpec((1, S, D), lambda b: (b, 0, 0)),
        compiler_params=pltpu.CompilerParams(dimension_semantics=("parallel",)),
    )(x, bias, *weights)


# ----------------------------- glue: encoders ---------------------------------


def _t5_rel_pos_bias(rel_emb, S):
    """T5 bidirectional relative position bias -> (H, S, S)."""
    ctx = jnp.arange(S)[:, None]
    mem = jnp.arange(S)[None, :]
    rel = mem - ctx
    nb = T5_NUM_BUCKETS // 2
    bucket = (rel > 0).astype(jnp.int32) * nb
    n = jnp.abs(rel)
    max_exact = nb // 2
    is_small = n < max_exact
    n_f = jnp.maximum(n, 1).astype(jnp.float32)
    val_large = max_exact + (jnp.log(n_f / max_exact) /
                             jnp.log(T5_MAX_DISTANCE / max_exact) *
                             (nb - max_exact)).astype(jnp.int32)
    val_large = jnp.minimum(val_large, nb - 1)
    bucket = bucket + jnp.where(is_small, n, val_large)
    bias = rel_emb[bucket]                      # (S, S, H)
    return jnp.transpose(bias, (2, 0, 1))       # (H, S, S)


def clip_text_encoder(p, ids):
    """Returns CLIP pooler_output (B, D_CLIP)."""
    B, S = ids.shape
    # TODO(synk): embedding gather kept in plain JAX (tiny, data-dependent gather).
    x = p["tok_emb"][ids] + p["pos_emb"][None, :S, :]
    causal = jnp.where(jnp.arange(S)[None, :] <= jnp.arange(S)[:, None],
                       0.0, -1e9).astype(jnp.float32)
    mask = causal[None]                                          # (1, S, S), not tiled to H
    h = clip_encoder(x, mask, p)                                 # (B, S, D), final LN applied
    # HF CLIP pooling rule (argmax of ids == EOS); synthetic ids => semantic-only caveat.
    eos_idx = jnp.argmax(ids, axis=-1)
    pooled = h[jnp.arange(B), eos_idx]                           # (B, D)
    return pooled


def t5_encoder(p, ids):
    """Returns T5 last_hidden_state (B, S_T5, D_T5)."""
    B, S = ids.shape
    x = p["tok_emb"][ids]
    bias = _t5_rel_pos_bias(p["rel_emb"], S)                     # (H, S, S)
    return t5_encoder_call(x, bias, p)


def flux_text_forward(params, clip_ids, t5_ids):
    """Equivalent of FluxTextModel.get_hidden_states -> BaseTextOutput fields."""
    pooled_output = clip_text_encoder(params["clip"], clip_ids)
    encoder_hidden_states = t5_encoder(params["t5"], t5_ids)
    return encoder_hidden_states, pooled_output


# ----------------------------- deterministic parameter init -------------------


def init_params(key):
    ks = iter(jax.random.split(key, 64))

    def dense(shape):
        return jax.random.normal(next(ks), shape, jnp.float32) * 0.02

    # ---- CLIP ----
    D, M, L, S = D_CLIP, MLP_CLIP, L_CLIP, S_CLIP
    hd = D // H_CLIP
    q_scale = 1.0 / jnp.sqrt(jnp.float32(hd))
    wq = dense((L, D, D)) * q_scale          # fold 1/sqrt(hd) into q weights once, at init
    wk = dense((L, D, D))
    wv = dense((L, D, D))
    clip = {
        "tok_emb": dense((VOCAB, D)),
        "pos_emb": dense((S, D)),
        "ln1_w": jnp.ones((L, 1, D), jnp.float32),
        "ln1_b": jnp.zeros((L, 1, D), jnp.float32),
        "wqkv": jnp.concatenate([wq, wk, wv], axis=2).astype(jnp.bfloat16),  # (L, D, 3D)
        "bqkv": jnp.zeros((L, 1, 3 * D), jnp.float32),
        "wo": dense((L, D, D)).astype(jnp.bfloat16),
        "bo": jnp.zeros((L, 1, D), jnp.float32),
        "ln2_w": jnp.ones((L, 1, D), jnp.float32),
        "ln2_b": jnp.zeros((L, 1, D), jnp.float32),
        "fc1_w": dense((L, D, M)).astype(jnp.bfloat16),
        "fc1_b": jnp.zeros((L, 1, M), jnp.float32),
        "fc2_w": dense((L, M, D)).astype(jnp.bfloat16),
        "fc2_b": jnp.zeros((L, 1, D), jnp.float32),
        "final_ln_w": jnp.ones((1, D), jnp.float32),
        "final_ln_b": jnp.zeros((1, D), jnp.float32),
    }

    # ---- T5 ----
    D, F, L = D_T5, FFN_T5, L_T5
    wq = dense((L, D, D))                    # T5 attention: no scale, no biases
    wk = dense((L, D, D))
    wv = dense((L, D, D))
    t5 = {
        "tok_emb": dense((VOCAB, D)),
        "rel_emb": dense((T5_NUM_BUCKETS, H_T5)),
        "ln1_w": jnp.ones((L, 1, D), jnp.float32),
        "wqkv": jnp.concatenate([wq, wk, wv], axis=2).astype(jnp.bfloat16),  # (L, D, 3D)
        "wo": dense((L, D, D)).astype(jnp.bfloat16),
        "ln2_w": jnp.ones((L, 1, D), jnp.float32),
        "wi0": dense((L, D, F)).astype(jnp.bfloat16),
        "wi1": dense((L, D, F)).astype(jnp.bfloat16),
        "wo_ff": dense((L, F, D)).astype(jnp.bfloat16),
        "final_ln_w": jnp.ones((1, D), jnp.float32),
    }

    return {"clip": clip, "t5": t5}


# ----------------------------- main -------------------------------------------

if __name__ == "__main__":
    root = jax.random.PRNGKey(0)
    k_params, k_clip_ids, k_t5_ids = jax.random.split(root, 3)

    params = init_params(k_params)

    B = 2
    # synthetic tokenizer output (deterministic) — see TODO(synk) at top of file
    clip_ids = jax.random.randint(k_clip_ids, (B, S_CLIP), 0, VOCAB, dtype=jnp.int32)
    t5_ids = jax.random.randint(k_t5_ids, (B, S_T5), 0, VOCAB, dtype=jnp.int32)

    fwd = jax.jit(flux_text_forward)
    encoder_hidden_states, pooled_output = fwd(params, clip_ids, t5_ids)
    jax.block_until_ready((encoder_hidden_states, pooled_output))

    assert encoder_hidden_states.shape == (B, S_T5, D_T5)
    assert pooled_output.shape == (B, D_CLIP)
    assert bool(jnp.all(jnp.isfinite(encoder_hidden_states)))
    assert bool(jnp.all(jnp.isfinite(pooled_output)))
    print("KERNEL_OK")
</pallas_src>

<mosaic_0001>
module attributes {stable_mosaic.version = 11 : i64} {
  func.func @t5_encoder_kernel(%arg0: i32, %arg1: memref<1x16x128xf32, #tpu.memory_space<vmem>>, %arg2: memref<4x16x16xf32, #tpu.memory_space<vmem>>, %arg3: memref<2x1x128xf32, #tpu.memory_space<vmem>>, %arg4: memref<2x128x384xbf16, #tpu.memory_space<vmem>>, %arg5: memref<2x128x128xbf16, #tpu.memory_space<vmem>>, %arg6: memref<2x1x128xf32, #tpu.memory_space<vmem>>, %arg7: memref<2x128x256xbf16, #tpu.memory_space<vmem>>, %arg8: memref<2x128x256xbf16, #tpu.memory_space<vmem>>, %arg9: memref<2x256x128xbf16, #tpu.memory_space<vmem>>, %arg10: memref<1x128xf32, #tpu.memory_space<vmem>>, %arg11: memref<1x16x128xf32, #tpu.memory_space<vmem>>) attributes {dimension_semantics = [#tpu.dimension_semantics<parallel>], iteration_bounds = array<i64: 2>, scalar_prefetch = 0 : i64, scratch_operands = 0 : i64, tpu.core_type = #tpu.core_type<tc>, window_params = [{transform_indices = @transform_0, window_bounds = array<i64: 1, 16, 128>}, {pipeline_mode = #tpu.pipeline_mode<synchronous>, transform_indices = @transform_1, window_bounds = array<i64: 4, 16, 16>}, {pipeline_mode = #tpu.pipeline_mode<synchronous>, transform_indices = @transform_2, window_bounds = array<i64: 2, 1, 128>}, {pipeline_mode = #tpu.pipeline_mode<synchronous>, transform_indices = @transform_3, window_bounds = array<i64: 2, 128, 384>}, {pipeline_mode = #tpu.pipeline_mode<synchronous>, transform_indices = @transform_4, window_bounds = array<i64: 2, 128, 128>}, {pipeline_mode = #tpu.pipeline_mode<synchronous>, transform_indices = @transform_5, window_bounds = array<i64: 2, 1, 128>}, {pipeline_mode = #tpu.pipeline_mode<synchronous>, transform_indices = @transform_6, window_bounds = array<i64: 2, 128, 256>}, {pipeline_mode = #tpu.pipeline_mode<synchronous>, transform_indices = @transform_7, window_bounds = array<i64: 2, 128, 256>}, {pipeline_mode = #tpu.pipeline_mode<synchronous>, transform_indices = @transform_8, window_bounds = array<i64: 2, 256, 128>}, {pipeline_mode = #tpu.pipeline_mode<synchronous>, transform_indices = @transform_9, window_bounds = array<i64: 1, 128>}, {transform_indices = @transform_10, window_bounds = array<i64: 1, 16, 128>}]} {
    %c0 = arith.constant 0 : index
    %c0_0 = arith.constant 0 : index
    %c0_1 = arith.constant 0 : index
    %0 = vector.load %arg1[%c0, %c0_0, %c0_1] : memref<1x16x128xf32, #tpu.memory_space<vmem>>, vector<1x16x128xf32>
    %1 = vector.shape_cast %0 : vector<1x16x128xf32> to vector<16x128xf32>
    %c0_2 = arith.constant 0 : index
    %c0_3 = arith.constant 0 : index
    %c0_4 = arith.constant 0 : index
    %2 = vector.load %arg2[%c0_2, %c0_3, %c0_4] : memref<4x16x16xf32, #tpu.memory_space<vmem>>, vector<4x16x16xf32>
    %c0_5 = arith.constant 0 : index
    %c0_6 = arith.constant 0 : index
    %c0_7 = arith.constant 0 : index
    %3 = vector.load %arg3[%c0_5, %c0_6, %c0_7] : memref<2x1x128xf32, #tpu.memory_space<vmem>>, vector<1x1x128xf32>
    %4 = vector.shape_cast %3 : vector<1x1x128xf32> to vector<1x128xf32>
    %5 = arith.mulf %1, %1 : vector<16x128xf32>
    %cst = arith.constant dense<0.000000e+00> : vector<16xf32>
    %6 = vector.multi_reduction <add>, %5, %cst [1] : vector<16x128xf32> to vector<16xf32>
    %7 = vector.shape_cast %6 : vector<16xf32> to vector<16x1xf32>
    %cst_8 = arith.constant 1.280000e+02 : f32
    %8 = vector.broadcast %cst_8 : f32 to vector<16x1xf32>
    %9 = arith.divf %7, %8 : vector<16x1xf32>
    %cst_9 = arith.constant 9.99999997E-7 : f32
    %10 = vector.broadcast %cst_9 : f32 to vector<16x1xf32>
    %11 = arith.addf %9, %10 : vector<16x1xf32>
    %12 = math.rsqrt %11 : vector<16x1xf32>
    %13 = vector.broadcast %12 : vector<16x1xf32> to vector<16x128xf32>
    %14 = arith.mulf %1, %13 : vector<16x128xf32>
    %15 = vector.broadcast %4 : vector<1x128xf32> to vector<16x128xf32>
    %16 = arith.mulf %14, %15 : vector<16x128xf32>
    %c0_10 = arith.constant 0 : index
    %c0_11 = arith.constant 0 : index
    %c0_12 = arith.constant 0 : index
    %17 = vector.load %arg4[%c0_10, %c0_11, %c0_12] : memref<2x128x384xbf16, #tpu.memory_space<vmem>>, vector<1x128x384xbf16>
    %18 = vector.shape_cast %17 : vector<1x128x384xbf16> to vector<128x384xbf16>
    %c0_13 = arith.constant 0 : index
    %c0_14 = arith.constant 0 : index
    %c0_15 = arith.constant 0 : index
    %19 = vector.load %arg5[%c0_13, %c0_14, %c0_15] : memref<2x128x128xbf16, #tpu.memory_space<vmem>>, vector<1x128x128xbf16>
    %20 = vector.shape_cast %19 : vector<1x128x128xbf16> to vector<128x128xbf16>
    %21 = arith.truncf %16 : vector<16x128xf32> to vector<16x128xbf16>
    %cst_16 = arith.constant dense<0.000000e+00> : vector<16x384xf32>
    %22 = tpu.matmul %21, %18, %cst_16 {dimension_numbers = #tpu.dot_dimension_numbers<[1], [0], [0], [1], [0, 0, 1, 1], [], []>} : vector<16x128xbf16>, vector<128x384xbf16>, vector<16x384xf32> -> vector<16x384xf32>
    %23 = vector.extract_strided_slice %22 {offsets = [0, 0], sizes = [16, 128], strides = [1, 1]} : vector<16x384xf32> to vector<16x128xf32>
    %24 = vector.shape_cast %23 : vector<16x128xf32> to vector<16x4x32xf32>
    %25 = tpu.transpose %24, [1, 0, 2] : vector<16x4x32xf32> -> vector<4x16x32xf32>
    %26 = arith.truncf %25 : vector<4x16x32xf32> to vector<4x16x32xbf16>
    %27 = vector.extract_strided_slice %22 {offsets = [0, 128], sizes = [16, 128], strides = [1, 1]} : vector<16x384xf32> to vector<16x128xf32>
    %28 = vector.shape_cast %27 : vector<16x128xf32> to vector<16x4x32xf32>
    %29 = tpu.transpose %28, [1, 0, 2] : vector<16x4x32xf32> -> vector<4x16x32xf32>
    %30 = arith.truncf %29 : vector<4x16x32xf32> to vector<4x16x32xbf16>
    %31 = vector.extract_strided_slice %22 {offsets = [0, 256], sizes = [16, 128], strides = [1, 1]} : vector<16x384xf32> to vector<16x128xf32>
    %32 = vector.shape_cast %31 : vector<16x128xf32> to vector<16x4x32xf32>
    %33 = tpu.transpose %32, [1, 0, 2] : vector<16x4x32xf32> -> vector<4x16x32xf32>
    %34 = arith.truncf %33 : vector<4x16x32xf32> to vector<4x16x32xbf16>
    "tpu.trace_start"() <{level = 10 : i32, message = "hqd,hkd->hqk"}> : () -> ()
    %cst_17 = arith.constant dense<0.000000e+00> : vector<4x16x16xf32>
    %35 = tpu.matmul %26, %30, %cst_17 {dimension_numbers = #tpu.dot_dimension_numbers<[2], [2], [1], [1], [0, 0, 0, 1, 1, 1], [0], [0]>} : vector<4x16x32xbf16>, vector<4x16x32xbf16>, vector<4x16x16xf32> -> vector<4x16x16xf32>
    "tpu.trace_stop"() : () -> ()
    %36 = arith.addf %35, %2 : vector<4x16x16xf32>
    %cst_18 = arith.constant dense<0xFF800000> : vector<4x16xf32>
    %37 = vector.multi_reduction <maximumf>, %36, %cst_18 [2] : vector<4x16x16xf32> to vector<4x16xf32>
    %38 = vector.shape_cast %37 : vector<4x16xf32> to vector<4x16x1xf32>
    %39 = vector.broadcast %38 : vector<4x16x1xf32> to vector<4x16x16xf32>
    %40 = arith.subf %36, %39 : vector<4x16x16xf32>
    %41 = math.exp %40 : vector<4x16x16xf32>
    %cst_19 = arith.constant dense<0.000000e+00> : vector<4x16xf32>
    %42 = vector.multi_reduction <add>, %41, %cst_19 [2] : vector<4x16x16xf32> to vector<4x16xf32>
    %43 = vector.shape_cast %42 : vector<4x16xf32> to vector<4x16x1xf32>
    %44 = tpu.reciprocal %43 {approx = true} : vector<4x16x1xf32> -> vector<4x16x1xf32>
    %45 = vector.broadcast %44 : vector<4x16x1xf32> to vector<4x16x16xf32>
    %46 = arith.mulf %41, %45 : vector<4x16x16xf32>
    %47 = arith.truncf %46 : vector<4x16x16xf32> to vector<4x16x16xbf16>
    "tpu.trace_start"() <{level = 10 : i32, message = "hqk,hkd->hqd"}> : () -> ()
    %cst_20 = arith.constant dense<0.000000e+00> : vector<4x16x32xf32>
    %48 = tpu.matmul %47, %34, %cst_20 {dimension_numbers = #tpu.dot_dimension_numbers<[2], [1], [1], [2], [0, 0, 0, 1, 1, 2], [0], [0]>} : vector<4x16x16xbf16>, vector<4x16x32xbf16>, vector<4x16x32xf32> -> vector<4x16x32xf32>
    "tpu.trace_stop"() : () -> ()
    %49 = tpu.transpose %48, [1, 0, 2] : vector<4x16x32xf32> -> vector<16x4x32xf32>
    %50 = vector.shape_cast %49 : vector<16x4x32xf32> to vector<16x128xf32>
    %51 = arith.truncf %50 : vector<16x128xf32> to vector<16x128xbf16>
    %cst_21 = arith.constant dense<0.000000e+00> : vector<16x128xf32>
    %52 = tpu.matmul %51, %20, %cst_21 {dimension_numbers = #tpu.dot_dimension_numbers<[1], [0], [0], [1], [0, 0, 1, 1], [], []>} : vector<16x128xbf16>, vector<128x128xbf16>, vector<16x128xf32> -> vector<16x128xf32>
    %53 = arith.addf %1, %52 : vector<16x128xf32>
    %c0_22 = arith.constant 0 : index
    %c0_23 = arith.constant 0 : index
    %c0_24 = arith.constant 0 : index
    %54 = vector.load %arg6[%c0_22, %c0_23, %c0_24] : memref<2x1x128xf32, #tpu.memory_space<vmem>>, vector<1x1x128xf32>
    %55 = vector.shape_cast %54 : vector<1x1x128xf32> to vector<1x128xf32>
    %56 = arith.mulf %53, %53 : vector<16x128xf32>
    %cst_25 = arith.constant dense<0.000000e+00> : vector<16xf32>
    %57 = vector.multi_reduction <add>, %56, %cst_25 [1] : vector<16x128xf32> to vector<16xf32>
    %58 = vector.shape_cast %57 : vector<16xf32> to vector<16x1xf32>
    %cst_26 = arith.constant 1.280000e+02 : f32
    %59 = vector.broadcast %cst_26 : f32 to vector<16x1xf32>
    %60 = arith.divf %58, %59 : vector<16x1xf32>
    %cst_27 = arith.constant 9.99999997E-7 : f32
    %61 = vector.broadcast %cst_27 : f32 to vector<16x1xf32>
    %62 = arith.addf %60, %61 : vector<16x1xf32>
    %63 = math.rsqrt %62 : vector<16x1xf32>
    %64 = vector.broadcast %63 : vector<16x1xf32> to vector<16x128xf32>
    %65 = arith.mulf %53, %64 : vector<16x128xf32>
    %66 = vector.broadcast %55 : vector<1x128xf32> to vector<16x128xf32>
    %67 = arith.mulf %65, %66 : vector<16x128xf32>
    %c0_28 = arith.constant 0 : index
    %c0_29 = arith.constant 0 : index
    %c0_30 = arith.constant 0 : index
    %68 = vector.load %arg7[%c0_28, %c0_29, %c0_30] : memref<2x128x256xbf16, #tpu.memory_space<vmem>>, vector<1x128x256xbf16>
    %69 = vector.shape_cast %68 : vector<1x128x256xbf16> to vector<128x256xbf16>
    %c0_31 = arith.constant 0 : index
    %c0_32 = arith.constant 0 : index
    %c0_33 = arith.constant 0 : index
    %70 = vector.load %arg8[%c0_31, %c0_32, %c0_33] : memref<2x128x256xbf16, #tpu.memory_space<vmem>>, vector<1x128x256xbf16>
    %71 = vector.shape_cast %70 : vector<1x128x256xbf16> to vector<128x256xbf16>
    %c0_34 = arith.constant 0 : index
    %c0_35 = arith.constant 0 : index
    %c0_36 = arith.constant 0 : index
    %72 = vector.load %arg9[%c0_34, %c0_35, %c0_36] : memref<2x256x128xbf16, #tpu.memory_space<vmem>>, vector<1x256x128xbf16>
    %73 = vector.shape_cast %72 : vector<1x256x128xbf16> to vector<256x128xbf16>
    %74 = arith.truncf %67 : vector<16x128xf32> to vector<16x128xbf16>
    %cst_37 = arith.constant dense<0.000000e+00> : vector<16x256xf32>
    %75 = tpu.matmul %74, %69, %cst_37 {dimension_numbers = #tpu.dot_dimension_numbers<[1], [0], [0], [1], [0, 0, 1, 1], [], []>} : vector<16x128xbf16>, vector<128x256xbf16>, vector<16x256xf32> -> vector<16x256xf32>
    %cst_38 = arith.constant 5.000000e-01 : f32
    %76 = vector.broadcast %cst_38 : f32 to vector<16x256xf32>
    %77 = arith.mulf %76, %75 : vector<16x256xf32>
    %cst_39 = arith.constant 4.471500e-02 : f32
    %78 = vector.broadcast %cst_39 : f32 to vector<16x256xf32>
    %79 = arith.mulf %78, %75 : vector<16x256xf32>
    %80 = arith.mulf %79, %75 : vector<16x256xf32>
    %81 = arith.mulf %80, %75 : vector<16x256xf32>
    %82 = arith.addf %75, %81 : vector<16x256xf32>
    %cst_40 = arith.constant 0.797884583 : f32
    %83 = vector.broadcast %cst_40 : f32 to vector<16x256xf32>
    %84 = arith.mulf %83, %82 : vector<16x256xf32>
    %85 = math.tanh %84 : vector<16x256xf32>
    %cst_41 = arith.constant 1.000000e+00 : f32
    %86 = vector.broadcast %cst_41 : f32 to vector<16x256xf32>
    %87 = arith.addf %86, %85 : vector<16x256xf32>
    %88 = arith.mulf %77, %87 : vector<16x256xf32>
    %cst_42 = arith.constant dense<0.000000e+00> : vector<16x256xf32>
    %89 = tpu.matmul %74, %71, %cst_42 {dimension_numbers = #tpu.dot_dimension_numbers<[1], [0], [0], [1], [0, 0, 1, 1], [], []>} : vector<16x128xbf16>, vector<128x256xbf16>, vector<16x256xf32> -> vector<16x256xf32>
    %90 = arith.mulf %88, %89 : vector<16x256xf32>
    %91 = arith.truncf %90 : vector<16x256xf32> to vector<16x256xbf16>
    %cst_43 = arith.constant dense<0.000000e+00> : vector<16x128xf32>
    %92 = tpu.matmul %91, %73, %cst_43 {dimension_numbers = #tpu.dot_dimension_numbers<[1], [0], [0], [1], [0, 0, 1, 1], [], []>} : vector<16x256xbf16>, vector<256x128xbf16>, vector<16x128xf32> -> vector<16x128xf32>
    %93 = arith.addf %53, %92 : vector<16x128xf32>
    %c1 = arith.constant 1 : index
    %c0_44 = arith.constant 0 : index
    %c0_45 = arith.constant 0 : index
    %94 = vector.load %arg3[%c1, %c0_44, %c0_45] : memref<2x1x128xf32, #tpu.memory_space<vmem>>, vector<1x1x128xf32>
    %95 = vector.shape_cast %94 : vector<1x1x128xf32> to vector<1x128xf32>
    %96 = arith.mulf %93, %93 : vector<16x128xf32>
    %cst_46 = arith.constant dense<0.000000e+00> : vector<16xf32>
    %97 = vector.multi_reduction <add>, %96, %cst_46 [1] : vector<16x128xf32> to vector<16xf32>
    %98 = vector.shape_cast %97 : vector<16xf32> to vector<16x1xf32>
    %cst_47 = arith.constant 1.280000e+02 : f32
    %99 = vector.broadcast %cst_47 : f32 to vector<16x1xf32>
    %100 = arith.divf %98, %99 : vector<16x1xf32>
    %cst_48 = arith.constant 9.99999997E-7 : f32
    %101 = vector.broadcast %cst_48 : f32 to vector<16x1xf32>
    %102 = arith.addf %100, %101 : vector<16x1xf32>
    %103 = math.rsqrt %102 : vector<16x1xf32>
    %104 = vector.broadcast %103 : vector<16x1xf32> to vector<16x128xf32>
    %105 = arith.mulf %93, %104 : vector<16x128xf32>
    %106 = vector.broadcast %95 : vector<1x128xf32> to vector<16x128xf32>
    %107 = arith.mulf %105, %106 : vector<16x128xf32>
    %c1_49 = arith.constant 1 : index
    %c0_50 = arith.constant 0 : index
    %c0_51 = arith.constant 0 : index
    %108 = vector.load %arg4[%c1_49, %c0_50, %c0_51] : memref<2x128x384xbf16, #tpu.memory_space<vmem>>, vector<1x128x384xbf16>
    %109 = vector.shape_cast %108 : vector<1x128x384xbf16> to vector<128x384xbf16>
    %c1_52 = arith.constant 1 : index
    %c0_53 = arith.constant 0 : index
    %c0_54 = arith.constant 0 : index
    %110 = vector.load %arg5[%c1_52, %c0_53, %c0_54] : memref<2x128x128xbf16, #tpu.memory_space<vmem>>, vector<1x128x128xbf16>
    %111 = vector.shape_cast %110 : vector<1x128x128xbf16> to vector<128x128xbf16>
    %112 = arith.truncf %107 : vector<16x128xf32> to vector<16x128xbf16>
    %cst_55 = arith.constant dense<0.000000e+00> : vector<16x384xf32>
    %113 = tpu.matmul %112, %109, %cst_55 {dimension_numbers = #tpu.dot_dimension_numbers<[1], [0], [0], [1], [0, 0, 1, 1], [], []>} : vector<16x128xbf16>, vector<128x384xbf16>, vector<16x384xf32> -> vector<16x384xf32>
    %114 = vector.extract_strided_slice %113 {offsets = [0, 0], sizes = [16, 128], strides = [1, 1]} : vector<16x384xf32> to vector<16x128xf32>
    %115 = vector.shape_cast %114 : vector<16x128xf32> to vector<16x4x32xf32>
    %116 = tpu.transpose %115, [1, 0, 2] : vector<16x4x32xf32> -> vector<4x16x32xf32>
    %117 = arith.truncf %116 : vector<4x16x32xf32> to vector<4x16x32xbf16>
    %118 = vector.extract_strided_slice %113 {offsets = [0, 128], sizes = [16, 128], strides = [1, 1]} : vector<16x384xf32> to vector<16x128xf32>
    %119 = vector.shape_cast %118 : vector<16x128xf32> to vector<16x4x32xf32>
    %120 = tpu.transpose %119, [1, 0, 2] : vector<16x4x32xf32> -> vector<4x16x32xf32>
    %121 = arith.truncf %120 : vector<4x16x32xf32> to vector<4x16x32xbf16>
    %122 = vector.extract_strided_slice %113 {offsets = [0, 256], sizes = [16, 128], strides = [1, 1]} : vector<16x384xf32> to vector<16x128xf32>
    %123 = vector.shape_cast %122 : vector<16x128xf32> to vector<16x4x32xf32>
    %124 = tpu.transpose %123, [1, 0, 2] : vector<16x4x32xf32> -> vector<4x16x32xf32>
    %125 = arith.truncf %124 : vector<4x16x32xf32> to vector<4x16x32xbf16>
    "tpu.trace_start"() <{level = 10 : i32, message = "hqd,hkd->hqk"}> : () -> ()
    %cst_56 = arith.constant dense<0.000000e+00> : vector<4x16x16xf32>
    %126 = tpu.matmul %117, %121, %cst_56 {dimension_numbers = #tpu.dot_dimension_numbers<[2], [2], [1], [1], [0, 0, 0, 1, 1, 1], [0], [0]>} : vector<4x16x32xbf16>, vector<4x16x32xbf16>, vector<4x16x16xf32> -> vector<4x16x16xf32>
    "tpu.trace_stop"() : () -> ()
    %127 = arith.addf %126, %2 : vector<4x16x16xf32>
    %cst_57 = arith.constant dense<0xFF800000> : vector<4x16xf32>
    %128 = vector.multi_reduction <maximumf>, %127, %cst_57 [2] : vector<4x16x16xf32> to vector<4x16xf32>
    %129 = vector.shape_cast %128 : vector<4x16xf32> to vector<4x16x1xf32>
    %130 = vector.broadcast %129 : vector<4x16x1xf32> to vector<4x16x16xf32>
    %131 = arith.subf %127, %130 : vector<4x16x16xf32>
    %132 = math.exp %131 : vector<4x16x16xf32>
    %cst_58 = arith.constant dense<0.000000e+00> : vector<4x16xf32>
    %133 = vector.multi_reduction <add>, %132, %cst_58 [2] : vector<4x16x16xf32> to vector<4x16xf32>
    %134 = vector.shape_cast %133 : vector<4x16xf32> to vector<4x16x1xf32>
    %135 = tpu.reciprocal %134 {approx = true} : vector<4x16x1xf32> -> vector<4x16x1xf32>
    %136 = vector.broadcast %135 : vector<4x16x1xf32> to vector<4x16x16xf32>
    %137 = arith.mulf %132, %136 : vector<4x16x16xf32>
    %138 = arith.truncf %137 : vector<4x16x16xf32> to vector<4x16x16xbf16>
    "tpu.trace_start"() <{level = 10 : i32, message = "hqk,hkd->hqd"}> : () -> ()
    %cst_59 = arith.constant dense<0.000000e+00> : vector<4x16x32xf32>
    %139 = tpu.matmul %138, %125, %cst_59 {dimension_numbers = #tpu.dot_dimension_numbers<[2], [1], [1], [2], [0, 0, 0, 1, 1, 2], [0], [0]>} : vector<4x16x16xbf16>, vector<4x16x32xbf16>, vector<4x16x32xf32> -> vector<4x16x32xf32>
    "tpu.trace_stop"() : () -> ()
    %140 = tpu.transpose %139, [1, 0, 2] : vector<4x16x32xf32> -> vector<16x4x32xf32>
    %141 = vector.shape_cast %140 : vector<16x4x32xf32> to vector<16x128xf32>
    %142 = arith.truncf %141 : vector<16x128xf32> to vector<16x128xbf16>
    %cst_60 = arith.constant dense<0.000000e+00> : vector<16x128xf32>
    %143 = tpu.matmul %142, %111, %cst_60 {dimension_numbers = #tpu.dot_dimension_numbers<[1], [0], [0], [1], [0, 0, 1, 1], [], []>} : vector<16x128xbf16>, vector<128x128xbf16>, vector<16x128xf32> -> vector<16x128xf32>
    %144 = arith.addf %93, %143 : vector<16x128xf32>
    %c1_61 = arith.constant 1 : index
    %c0_62 = arith.constant 0 : index
    %c0_63 = arith.constant 0 : index
    %145 = vector.load %arg6[%c1_61, %c0_62, %c0_63] : memref<2x1x128xf32, #tpu.memory_space<vmem>>, vector<1x1x128xf32>
    %146 = vector.shape_cast %145 : vector<1x1x128xf32> to vector<1x128xf32>
    %147 = arith.mulf %144, %144 : vector<16x128xf32>
    %cst_64 = arith.constant dense<0.000000e+00> : vector<16xf32>
    %148 = vector.multi_reduction <add>, %147, %cst_64 [1] : vector<16x128xf32> to vector<16xf32>
    %149 = vector.shape_cast %148 : vector<16xf32> to vector<16x1xf32>
    %cst_65 = arith.constant 1.280000e+02 : f32
    %150 = vector.broadcast %cst_65 : f32 to vector<16x1xf32>
    %151 = arith.divf %149, %150 : vector<16x1xf32>
    %cst_66 = arith.constant 9.99999997E-7 : f32
    %152 = vector.broadcast %cst_66 : f32 to vector<16x1xf32>
    %153 = arith.addf %151, %152 : vector<16x1xf32>
    %154 = math.rsqrt %153 : vector<16x1xf32>
    %155 = vector.broadcast %154 : vector<16x1xf32> to vector<16x128xf32>
    %156 = arith.mulf %144, %155 : vector<16x128xf32>
    %157 = vector.broadcast %146 : vector<1x128xf32> to vector<16x128xf32>
    %158 = arith.mulf %156, %157 : vector<16x128xf32>
    %c1_67 = arith.constant 1 : index
    %c0_68 = arith.constant 0 : index
    %c0_69 = arith.constant 0 : index
    %159 = vector.load %arg7[%c1_67, %c0_68, %c0_69] : memref<2x128x256xbf16, #tpu.memory_space<vmem>>, vector<1x128x256xbf16>
    %160 = vector.shape_cast %159 : vector<1x128x256xbf16> to vector<128x256xbf16>
    %c1_70 = arith.constant 1 : index
    %c0_71 = arith.constant 0 : index
    %c0_72 = arith.constant 0 : index
    %161 = vector.load %arg8[%c1_70, %c0_71, %c0_72] : memref<2x128x256xbf16, #tpu.memory_space<vmem>>, vector<1x128x256xbf16>
    %162 = vector.shape_cast %161 : vector<1x128x256xbf16> to vector<128x256xbf16>
    %c1_73 = arith.constant 1 : index
    %c0_74 = arith.constant 0 : index
    %c0_75 = arith.constant 0 : index
    %163 = vector.load %arg9[%c1_73, %c0_74, %c0_75] : memref<2x256x128xbf16, #tpu.memory_space<vmem>>, vector<1x256x128xbf16>
    %164 = vector.shape_cast %163 : vector<1x256x128xbf16> to vector<256x128xbf16>
    %165 = arith.truncf %158 : vector<16x128xf32> to vector<16x128xbf16>
    %cst_76 = arith.constant dense<0.000000e+00> : vector<16x256xf32>
    %166 = tpu.matmul %165, %160, %cst_76 {dimension_numbers = #tpu.dot_dimension_numbers<[1], [0], [0], [1], [0, 0, 1, 1], [], []>} : vector<16x128xbf16>, vector<128x256xbf16>, vector<16x256xf32> -> vector<16x256xf32>
    %cst_77 = arith.constant 5.000000e-01 : f32
    %167 = vector.broadcast %cst_77 : f32 to vector<16x256xf32>
    %168 = arith.mulf %167, %166 : vector<16x256xf32>
    %cst_78 = arith.constant 4.471500e-02 : f32
    %169 = vector.broadcast %cst_78 : f32 to vector<16x256xf32>
    %170 = arith.mulf %169, %166 : vector<16x256xf32>
    %171 = arith.mulf %170, %166 : vector<16x256xf32>
    %172 = arith.mulf %171, %166 : vector<16x256xf32>
    %173 = arith.addf %166, %172 : vector<16x256xf32>
    %cst_79 = arith.constant 0.797884583 : f32
    %174 = vector.broadcast %cst_79 : f32 to vector<16x256xf32>
    %175 = arith.mulf %174, %173 : vector<16x256xf32>
    %176 = math.tanh %175 : vector<16x256xf32>
    %cst_80 = arith.constant 1.000000e+00 : f32
    %177 = vector.broadcast %cst_80 : f32 to vector<16x256xf32>
    %178 = arith.addf %177, %176 : vector<16x256xf32>
    %179 = arith.mulf %168, %178 : vector<16x256xf32>
    %cst_81 = arith.constant dense<0.000000e+00> : vector<16x256xf32>
    %180 = tpu.matmul %165, %162, %cst_81 {dimension_numbers = #tpu.dot_dimension_numbers<[1], [0], [0], [1], [0, 0, 1, 1], [], []>} : vector<16x128xbf16>, vector<128x256xbf16>, vector<16x256xf32> -> vector<16x256xf32>
    %181 = arith.mulf %179, %180 : vector<16x256xf32>
    %182 = arith.truncf %181 : vector<16x256xf32> to vector<16x256xbf16>
    %cst_82 = arith.constant dense<0.000000e+00> : vector<16x128xf32>
    %183 = tpu.matmul %182, %164, %cst_82 {dimension_numbers = #tpu.dot_dimension_numbers<[1], [0], [0], [1], [0, 0, 1, 1], [], []>} : vector<16x256xbf16>, vector<256x128xbf16>, vector<16x128xf32> -> vector<16x128xf32>
    %184 = arith.addf %144, %183 : vector<16x128xf32>
    %c0_83 = arith.constant 0 : index
    %c0_84 = arith.constant 0 : index
    %185 = vector.load %arg10[%c0_83, %c0_84] : memref<1x128xf32, #tpu.memory_space<vmem>>, vector<1x128xf32>
    %186 = arith.mulf %184, %184 : vector<16x128xf32>
    %cst_85 = arith.constant dense<0.000000e+00> : vector<16xf32>
    %187 = vector.multi_reduction <add>, %186, %cst_85 [1] : vector<16x128xf32> to vector<16xf32>
    %188 = vector.shape_cast %187 : vector<16xf32> to vector<16x1xf32>
    %cst_86 = arith.constant 1.280000e+02 : f32
    %189 = vector.broadcast %cst_86 : f32 to vector<16x1xf32>
    %190 = arith.divf %188, %189 : vector<16x1xf32>
    %cst_87 = arith.constant 9.99999997E-7 : f32
    %191 = vector.broadcast %cst_87 : f32 to vector<16x1xf32>
    %192 = arith.addf %190, %191 : vector<16x1xf32>
    %193 = math.rsqrt %192 : vector<16x1xf32>
    %194 = vector.broadcast %193 : vector<16x1xf32> to vector<16x128xf32>
    %195 = arith.mulf %184, %194 : vector<16x128xf32>
    %196 = vector.broadcast %185 : vector<1x128xf32> to vector<16x128xf32>
    %197 = arith.mulf %195, %196 : vector<16x128xf32>
    %c0_88 = arith.constant 0 : index
    %c0_89 = arith.constant 0 : index
    %c0_90 = arith.constant 0 : index
    %198 = vector.load %arg11[%c0_88, %c0_89, %c0_90] : memref<1x16x128xf32, #tpu.memory_space<vmem>>, vector<1x16x128xf32>
    %199 = vector.shape_cast %198 : vector<1x16x128xf32> to vector<16x128xf32>
    %200 = vector.shape_cast %197 : vector<16x128xf32> to vector<1x16x128xf32>
    tpu.vector_store %arg11[%c0_88, %c0_89, %c0_90], %200 {strides = array<i32>} : memref<1x16x128xf32, #tpu.memory_space<vmem>>, vector<1x16x128xf32>,
    return
  }
  func.func @transform_0(%arg0: i32) -> (i32, i32, i32) {
    %c0_i32 = arith.constant 0 : i32
    %c0_i32_0 = arith.constant 0 : i32
    %c0_i32_1 = arith.constant 0 : i32
    return %arg0, %c0_i32, %c0_i32_0 : i32, i32, i32
  }
  func.func @transform_1(%arg0: i32) -> (i32, i32, i32) {
    %c0_i32 = arith.constant 0 : i32
    %c0_i32_0 = arith.constant 0 : i32
    %c0_i32_1 = arith.constant 0 : i32
    %c0_i32_2 = arith.constant 0 : i32
    return %c0_i32, %c0_i32_0, %c0_i32_1 : i32, i32, i32
  }
  func.func @transform_2(%arg0: i32) -> (i32, i32, i32) {
    %c0_i32 = arith.constant 0 : i32
    %c0_i32_0 = arith.constant 0 : i32
    %c0_i32_1 = arith.constant 0 : i32
    %c0_i32_2 = arith.constant 0 : i32
    return %c0_i32, %c0_i32_0, %c0_i32_1 : i32, i32, i32
  }
  func.func @transform_3(%arg0: i32) -> (i32, i32, i32) {
    %c0_i32 = arith.constant 0 : i32
    %c0_i32_0 = arith.constant 0 : i32
    %c0_i32_1 = arith.constant 0 : i32
    %c0_i32_2 = arith.constant 0 : i32
    return %c0_i32, %c0_i32_0, %c0_i32_1 : i32, i32, i32
  }
  func.func @transform_4(%arg0: i32) -> (i32, i32, i32) {
    %c0_i32 = arith.constant 0 : i32
    %c0_i32_0 = arith.constant 0 : i32
    %c0_i32_1 = arith.constant 0 : i32
    %c0_i32_2 = arith.constant 0 : i32
    return %c0_i32, %c0_i32_0, %c0_i32_1 : i32, i32, i32
  }
  func.func @transform_5(%arg0: i32) -> (i32, i32, i32) {
    %c0_i32 = arith.constant 0 : i32
    %c0_i32_0 = arith.constant 0 : i32
    %c0_i32_1 = arith.constant 0 : i32
    %c0_i32_2 = arith.constant 0 : i32
    return %c0_i32, %c0_i32_0, %c0_i32_1 : i32, i32, i32
  }
  func.func @transform_6(%arg0: i32) -> (i32, i32, i32) {
    %c0_i32 = arith.constant 0 : i32
    %c0_i32_0 = arith.constant 0 : i32
    %c0_i32_1 = arith.constant 0 : i32
    %c0_i32_2 = arith.constant 0 : i32
    return %c0_i32, %c0_i32_0, %c0_i32_1 : i32, i32, i32
  }
  func.func @transform_7(%arg0: i32) -> (i32, i32, i32) {
    %c0_i32 = arith.constant 0 : i32
    %c0_i32_0 = arith.constant 0 : i32
    %c0_i32_1 = arith.constant 0 : i32
    %c0_i32_2 = arith.constant 0 : i32
    return %c0_i32, %c0_i32_0, %c0_i32_1 : i32, i32, i32
  }
  func.func @transform_8(%arg0: i32) -> (i32, i32, i32) {
    %c0_i32 = arith.constant 0 : i32
    %c0_i32_0 = arith.constant 0 : i32
    %c0_i32_1 = arith.constant 0 : i32
    %c0_i32_2 = arith.constant 0 : i32
    return %c0_i32, %c0_i32_0, %c0_i32_1 : i32, i32, i32
  }
  func.func @transform_9(%arg0: i32) -> (i32, i32) {
    %c0_i32 = arith.constant 0 : i32
    %c0_i32_0 = arith.constant 0 : i32
    %c0_i32_1 = arith.constant 0 : i32
    return %c0_i32, %c0_i32_0 : i32, i32
  }
  func.func @transform_10(%arg0: i32) -> (i32, i32, i32) {
    %c0_i32 = arith.constant 0 : i32
    %c0_i32_0 = arith.constant 0 : i32
    %c0_i32_1 = arith.constant 0 : i32
    return %arg0, %c0_i32, %c0_i32_0 : i32, i32, i32
  }
}

module attributes {stable_mosaic.version = 11 : i64} {
  func.func @clip_encoder_kernel(%arg0: i32, %arg1: memref<1x8x128xf32, #tpu.memory_space<vmem>>, %arg2: memref<1x8x8xf32, #tpu.memory_space<vmem>>, %arg3: memref<2x1x128xf32, #tpu.memory_space<vmem>>, %arg4: memref<2x1x128xf32, #tpu.memory_space<vmem>>, %arg5: memref<2x128x384xbf16, #tpu.memory_space<vmem>>, %arg6: memref<2x1x384xf32, #tpu.memory_space<vmem>>, %arg7: memref<2x128x128xbf16, #tpu.memory_space<vmem>>, %arg8: memref<2x1x128xf32, #tpu.memory_space<vmem>>, %arg9: memref<2x1x128xf32, #tpu.memory_space<vmem>>, %arg10: memref<2x1x128xf32, #tpu.memory_space<vmem>>, %arg11: memref<2x128x512xbf16, #tpu.memory_space<vmem>>, %arg12: memref<2x1x512xf32, #tpu.memory_space<vmem>>, %arg13: memref<2x512x128xbf16, #tpu.memory_space<vmem>>, %arg14: memref<2x1x128xf32, #tpu.memory_space<vmem>>, %arg15: memref<1x128xf32, #tpu.memory_space<vmem>>, %arg16: memref<1x128xf32, #tpu.memory_space<vmem>>, %arg17: memref<1x8x128xf32, #tpu.memory_space<vmem>>) attributes {dimension_semantics = [#tpu.dimension_semantics<parallel>], iteration_bounds = array<i64: 2>, scalar_prefetch = 0 : i64, scratch_operands = 0 : i64, tpu.core_type = #tpu.core_type<tc>, window_params = [{transform_indices = @transform_0, window_bounds = array<i64: 1, 8, 128>}, {pipeline_mode = #tpu.pipeline_mode<synchronous>, transform_indices = @transform_1, window_bounds = array<i64: 1, 8, 8>}, {pipeline_mode = #tpu.pipeline_mode<synchronous>, transform_indices = @transform_2, window_bounds = array<i64: 2, 1, 128>}, {pipeline_mode = #tpu.pipeline_mode<synchronous>, transform_indices = @transform_3, window_bounds = array<i64: 2, 1, 128>}, {pipeline_mode = #tpu.pipeline_mode<synchronous>, transform_indices = @transform_4, window_bounds = array<i64: 2, 128, 384>}, {pipeline_mode = #tpu.pipeline_mode<synchronous>, transform_indices = @transform_5, window_bounds = array<i64: 2, 1, 384>}, {pipeline_mode = #tpu.pipeline_mode<synchronous>, transform_indices = @transform_6, window_bounds = array<i64: 2, 128, 128>}, {pipeline_mode = #tpu.pipeline_mode<synchronous>, transform_indices = @transform_7, window_bounds = array<i64: 2, 1, 128>}, {pipeline_mode = #tpu.pipeline_mode<synchronous>, transform_indices = @transform_8, window_bounds = array<i64: 2, 1, 128>}, {pipeline_mode = #tpu.pipeline_mode<synchronous>, transform_indices = @transform_9, window_bounds = array<i64: 2, 1, 128>}, {pipeline_mode = #tpu.pipeline_mode<synchronous>, transform_indices = @transform_10, window_bounds = array<i64: 2, 128, 512>}, {pipeline_mode = #tpu.pipeline_mode<synchronous>, transform_indices = @transform_11, window_bounds = array<i64: 2, 1, 512>}, {pipeline_mode = #tpu.pipeline_mode<synchronous>, transform_indices = @transform_12, window_bounds = array<i64: 2, 512, 128>}, {pipeline_mode = #tpu.pipeline_mode<synchronous>, transform_indices = @transform_13, window_bounds = array<i64: 2, 1, 128>}, {pipeline_mode = #tpu.pipeline_mode<synchronous>, transform_indices = @transform_14, window_bounds = array<i64: 1, 128>}, {pipeline_mode = #tpu.pipeline_mode<synchronous>, transform_indices = @transform_15, window_bounds = array<i64: 1, 128>}, {transform_indices = @transform_16, window_bounds = array<i64: 1, 8, 128>}]} {
    %c0 = arith.constant 0 : index
    %c0_0 = arith.constant 0 : index
    %c0_1 = arith.constant 0 : index
    %0 = vector.load %arg1[%c0, %c0_0, %c0_1] : memref<1x8x128xf32, #tpu.memory_space<vmem>>, vector<1x8x128xf32>
    %1 = vector.shape_cast %0 : vector<1x8x128xf32> to vector<8x128xf32>
    %c0_2 = arith.constant 0 : index
    %c0_3 = arith.constant 0 : index
    %c0_4 = arith.constant 0 : index
    %2 = vector.load %arg2[%c0_2, %c0_3, %c0_4] : memref<1x8x8xf32, #tpu.memory_space<vmem>>, vector<1x8x8xf32>
    %c0_5 = arith.constant 0 : index
    %c0_6 = arith.constant 0 : index
    %c0_7 = arith.constant 0 : index
    %3 = vector.load %arg3[%c0_5, %c0_6, %c0_7] : memref<2x1x128xf32, #tpu.memory_space<vmem>>, vector<1x1x128xf32>
    %4 = vector.shape_cast %3 : vector<1x1x128xf32> to vector<1x128xf32>
    %c0_8 = arith.constant 0 : index
    %c0_9 = arith.constant 0 : index
    %c0_10 = arith.constant 0 : index
    %5 = vector.load %arg4[%c0_8, %c0_9, %c0_10] : memref<2x1x128xf32, #tpu.memory_space<vmem>>, vector<1x1x128xf32>
    %6 = vector.shape_cast %5 : vector<1x1x128xf32> to vector<1x128xf32>
    %cst = arith.constant dense<0.000000e+00> : vector<8xf32>
    %7 = vector.multi_reduction <add>, %1, %cst [1] : vector<8x128xf32> to vector<8xf32>
    %8 = vector.shape_cast %7 : vector<8xf32> to vector<8x1xf32>
    %cst_11 = arith.constant 1.280000e+02 : f32
    %9 = vector.broadcast %cst_11 : f32 to vector<8x1xf32>
    %10 = arith.divf %8, %9 : vector<8x1xf32>
    %11 = arith.mulf %1, %1 : vector<8x128xf32>
    %cst_12 = arith.constant dense<0.000000e+00> : vector<8xf32>
    %12 = vector.multi_reduction <add>, %11, %cst_12 [1] : vector<8x128xf32> to vector<8xf32>
    %13 = vector.shape_cast %12 : vector<8xf32> to vector<8x1xf32>
    %cst_13 = arith.constant 1.280000e+02 : f32
    %14 = vector.broadcast %cst_13 : f32 to vector<8x1xf32>
    %15 = arith.divf %13, %14 : vector<8x1xf32>
    %16 = arith.mulf %10, %10 : vector<8x1xf32>
    %17 = arith.subf %15, %16 : vector<8x1xf32>
    %18 = vector.broadcast %10 : vector<8x1xf32> to vector<8x128xf32>
    %19 = arith.subf %1, %18 : vector<8x128xf32>
    %cst_14 = arith.constant 9.99999974E-6 : f32
    %20 = vector.broadcast %cst_14 : f32 to vector<8x1xf32>
    %21 = arith.addf %17, %20 : vector<8x1xf32>
    %22 = math.rsqrt %21 : vector<8x1xf32>
    %23 = vector.broadcast %22 : vector<8x1xf32> to vector<8x128xf32>
    %24 = arith.mulf %19, %23 : vector<8x128xf32>
    %25 = vector.broadcast %4 : vector<1x128xf32> to vector<8x128xf32>
    %26 = arith.mulf %24, %25 : vector<8x128xf32>
    %27 = vector.broadcast %6 : vector<1x128xf32> to vector<8x128xf32>
    %28 = arith.addf %26, %27 : vector<8x128xf32>
    %c0_15 = arith.constant 0 : index
    %c0_16 = arith.constant 0 : index
    %c0_17 = arith.constant 0 : index
    %29 = vector.load %arg5[%c0_15, %c0_16, %c0_17] : memref<2x128x384xbf16, #tpu.memory_space<vmem>>, vector<1x128x384xbf16>
    %30 = vector.shape_cast %29 : vector<1x128x384xbf16> to vector<128x384xbf16>
    %c0_18 = arith.constant 0 : index
    %c0_19 = arith.constant 0 : index
    %c0_20 = arith.constant 0 : index
    %31 = vector.load %arg7[%c0_18, %c0_19, %c0_20] : memref<2x128x128xbf16, #tpu.memory_space<vmem>>, vector<1x128x128xbf16>
    %32 = vector.shape_cast %31 : vector<1x128x128xbf16> to vector<128x128xbf16>
    %c0_21 = arith.constant 0 : index
    %c0_22 = arith.constant 0 : index
    %c0_23 = arith.constant 0 : index
    %33 = vector.load %arg6[%c0_21, %c0_22, %c0_23] : memref<2x1x384xf32, #tpu.memory_space<vmem>>, vector<1x1x384xf32>
    %34 = vector.shape_cast %33 : vector<1x1x384xf32> to vector<1x384xf32>
    %c0_24 = arith.constant 0 : index
    %c0_25 = arith.constant 0 : index
    %c0_26 = arith.constant 0 : index
    %35 = vector.load %arg8[%c0_24, %c0_25, %c0_26] : memref<2x1x128xf32, #tpu.memory_space<vmem>>, vector<1x1x128xf32>
    %36 = vector.shape_cast %35 : vector<1x1x128xf32> to vector<1x128xf32>
    %37 = arith.truncf %28 : vector<8x128xf32> to vector<8x128xbf16>
    %cst_27 = arith.constant dense<0.000000e+00> : vector<8x384xf32>
    %38 = tpu.matmul %37, %30, %cst_27 {dimension_numbers = #tpu.dot_dimension_numbers<[1], [0], [0], [1], [0, 0, 1, 1], [], []>} : vector<8x128xbf16>, vector<128x384xbf16>, vector<8x384xf32> -> vector<8x384xf32>
    %39 = vector.broadcast %34 : vector<1x384xf32> to vector<8x384xf32>
    %40 = arith.addf %38, %39 : vector<8x384xf32>
    %41 = vector.extract_strided_slice %40 {offsets = [0, 0], sizes = [8, 128], strides = [1, 1]} : vector<8x384xf32> to vector<8x128xf32>
    %42 = vector.shape_cast %41 : vector<8x128xf32> to vector<8x4x32xf32>
    %43 = tpu.transpose %42, [1, 0, 2] : vector<8x4x32xf32> -> vector<4x8x32xf32>
    %44 = arith.truncf %43 : vector<4x8x32xf32> to vector<4x8x32xbf16>
    %45 = vector.extract_strided_slice %40 {offsets = [0, 128], sizes = [8, 128], strides = [1, 1]} : vector<8x384xf32> to vector<8x128xf32>
    %46 = vector.shape_cast %45 : vector<8x128xf32> to vector<8x4x32xf32>
    %47 = tpu.transpose %46, [1, 0, 2] : vector<8x4x32xf32> -> vector<4x8x32xf32>
    %48 = arith.truncf %47 : vector<4x8x32xf32> to vector<4x8x32xbf16>
    %49 = vector.extract_strided_slice %40 {offsets = [0, 256], sizes = [8, 128], strides = [1, 1]} : vector<8x384xf32> to vector<8x128xf32>
    %50 = vector.shape_cast %49 : vector<8x128xf32> to vector<8x4x32xf32>
    %51 = tpu.transpose %50, [1, 0, 2] : vector<8x4x32xf32> -> vector<4x8x32xf32>
    %52 = arith.truncf %51 : vector<4x8x32xf32> to vector<4x8x32xbf16>
    "tpu.trace_start"() <{level = 10 : i32, message = "hqd,hkd->hqk"}> : () -> ()
    %cst_28 = arith.constant dense<0.000000e+00> : vector<4x8x8xf32>
    %53 = tpu.matmul %44, %48, %cst_28 {dimension_numbers = #tpu.dot_dimension_numbers<[2], [2], [1], [1], [0, 0, 0, 1, 1, 1], [0], [0]>} : vector<4x8x32xbf16>, vector<4x8x32xbf16>, vector<4x8x8xf32> -> vector<4x8x8xf32>
    "tpu.trace_stop"() : () -> ()
    %54 = vector.broadcast %2 : vector<1x8x8xf32> to vector<4x8x8xf32>
    %55 = arith.addf %53, %54 : vector<4x8x8xf32>
    %cst_29 = arith.constant dense<0xFF800000> : vector<4x8xf32>
    %56 = vector.multi_reduction <maximumf>, %55, %cst_29 [2] : vector<4x8x8xf32> to vector<4x8xf32>
    %57 = vector.shape_cast %56 : vector<4x8xf32> to vector<4x8x1xf32>
    %58 = vector.broadcast %57 : vector<4x8x1xf32> to vector<4x8x8xf32>
    %59 = arith.subf %55, %58 : vector<4x8x8xf32>
    %60 = math.exp %59 : vector<4x8x8xf32>
    %cst_30 = arith.constant dense<0.000000e+00> : vector<4x8xf32>
    %61 = vector.multi_reduction <add>, %60, %cst_30 [2] : vector<4x8x8xf32> to vector<4x8xf32>
    %62 = vector.shape_cast %61 : vector<4x8xf32> to vector<4x8x1xf32>
    %63 = tpu.reciprocal %62 {approx = true} : vector<4x8x1xf32> -> vector<4x8x1xf32>
    %64 = vector.broadcast %63 : vector<4x8x1xf32> to vector<4x8x8xf32>
    %65 = arith.mulf %60, %64 : vector<4x8x8xf32>
    %66 = arith.truncf %65 : vector<4x8x8xf32> to vector<4x8x8xbf16>
    "tpu.trace_start"() <{level = 10 : i32, message = "hqk,hkd->hqd"}> : () -> ()
    %cst_31 = arith.constant dense<0.000000e+00> : vector<4x8x32xf32>
    %67 = tpu.matmul %66, %52, %cst_31 {dimension_numbers = #tpu.dot_dimension_numbers<[2], [1], [1], [2], [0, 0, 0, 1, 1, 2], [0], [0]>} : vector<4x8x8xbf16>, vector<4x8x32xbf16>, vector<4x8x32xf32> -> vector<4x8x32xf32>
    "tpu.trace_stop"() : () -> ()
    %68 = tpu.transpose %67, [1, 0, 2] : vector<4x8x32xf32> -> vector<8x4x32xf32>
    %69 = vector.shape_cast %68 : vector<8x4x32xf32> to vector<8x128xf32>
    %70 = arith.truncf %69 : vector<8x128xf32> to vector<8x128xbf16>
    %cst_32 = arith.constant dense<0.000000e+00> : vector<8x128xf32>
    %71 = tpu.matmul %70, %32, %cst_32 {dimension_numbers = #tpu.dot_dimension_numbers<[1], [0], [0], [1], [0, 0, 1, 1], [], []>} : vector<8x128xbf16>, vector<128x128xbf16>, vector<8x128xf32> -> vector<8x128xf32>
    %72 = vector.broadcast %36 : vector<1x128xf32> to vector<8x128xf32>
    %73 = arith.addf %71, %72 : vector<8x128xf32>
    %74 = arith.addf %1, %73 : vector<8x128xf32>
    %c0_33 = arith.constant 0 : index
    %c0_34 = arith.constant 0 : index
    %c0_35 = arith.constant 0 : index
    %75 = vector.load %arg9[%c0_33, %c0_34, %c0_35] : memref<2x1x128xf32, #tpu.memory_space<vmem>>, vector<1x1x128xf32>
    %76 = vector.shape_cast %75 : vector<1x1x128xf32> to vector<1x128xf32>
    %c0_36 = arith.constant 0 : index
    %c0_37 = arith.constant 0 : index
    %c0_38 = arith.constant 0 : index
    %77 = vector.load %arg10[%c0_36, %c0_37, %c0_38] : memref<2x1x128xf32, #tpu.memory_space<vmem>>, vector<1x1x128xf32>
    %78 = vector.shape_cast %77 : vector<1x1x128xf32> to vector<1x128xf32>
    %cst_39 = arith.constant dense<0.000000e+00> : vector<8xf32>
    %79 = vector.multi_reduction <add>, %74, %cst_39 [1] : vector<8x128xf32> to vector<8xf32>
    %80 = vector.shape_cast %79 : vector<8xf32> to vector<8x1xf32>
    %cst_40 = arith.constant 1.280000e+02 : f32
    %81 = vector.broadcast %cst_40 : f32 to vector<8x1xf32>
    %82 = arith.divf %80, %81 : vector<8x1xf32>
    %83 = arith.mulf %74, %74 : vector<8x128xf32>
    %cst_41 = arith.constant dense<0.000000e+00> : vector<8xf32>
    %84 = vector.multi_reduction <add>, %83, %cst_41 [1] : vector<8x128xf32> to vector<8xf32>
    %85 = vector.shape_cast %84 : vector<8xf32> to vector<8x1xf32>
    %cst_42 = arith.constant 1.280000e+02 : f32
    %86 = vector.broadcast %cst_42 : f32 to vector<8x1xf32>
    %87 = arith.divf %85, %86 : vector<8x1xf32>
    %88 = arith.mulf %82, %82 : vector<8x1xf32>
    %89 = arith.subf %87, %88 : vector<8x1xf32>
    %90 = vector.broadcast %82 : vector<8x1xf32> to vector<8x128xf32>
    %91 = arith.subf %74, %90 : vector<8x128xf32>
    %cst_43 = arith.constant 9.99999974E-6 : f32
    %92 = vector.broadcast %cst_43 : f32 to vector<8x1xf32>
    %93 = arith.addf %89, %92 : vector<8x1xf32>
    %94 = math.rsqrt %93 : vector<8x1xf32>
    %95 = vector.broadcast %94 : vector<8x1xf32> to vector<8x128xf32>
    %96 = arith.mulf %91, %95 : vector<8x128xf32>
    %97 = vector.broadcast %76 : vector<1x128xf32> to vector<8x128xf32>
    %98 = arith.mulf %96, %97 : vector<8x128xf32>
    %99 = vector.broadcast %78 : vector<1x128xf32> to vector<8x128xf32>
    %100 = arith.addf %98, %99 : vector<8x128xf32>
    %c0_44 = arith.constant 0 : index
    %c0_45 = arith.constant 0 : index
    %c0_46 = arith.constant 0 : index
    %101 = vector.load %arg11[%c0_44, %c0_45, %c0_46] : memref<2x128x512xbf16, #tpu.memory_space<vmem>>, vector<1x128x512xbf16>
    %102 = vector.shape_cast %101 : vector<1x128x512xbf16> to vector<128x512xbf16>
    %c0_47 = arith.constant 0 : index
    %c0_48 = arith.constant 0 : index
    %c0_49 = arith.constant 0 : index
    %103 = vector.load %arg12[%c0_47, %c0_48, %c0_49] : memref<2x1x512xf32, #tpu.memory_space<vmem>>, vector<1x1x512xf32>
    %104 = vector.shape_cast %103 : vector<1x1x512xf32> to vector<1x512xf32>
    %c0_50 = arith.constant 0 : index
    %c0_51 = arith.constant 0 : index
    %c0_52 = arith.constant 0 : index
    %105 = vector.load %arg13[%c0_50, %c0_51, %c0_52] : memref<2x512x128xbf16, #tpu.memory_space<vmem>>, vector<1x512x128xbf16>
    %106 = vector.shape_cast %105 : vector<1x512x128xbf16> to vector<512x128xbf16>
    %c0_53 = arith.constant 0 : index
    %c0_54 = arith.constant 0 : index
    %c0_55 = arith.constant 0 : index
    %107 = vector.load %arg14[%c0_53, %c0_54, %c0_55] : memref<2x1x128xf32, #tpu.memory_space<vmem>>, vector<1x1x128xf32>
    %108 = vector.shape_cast %107 : vector<1x1x128xf32> to vector<1x128xf32>
    %109 = arith.truncf %100 : vector<8x128xf32> to vector<8x128xbf16>
    %cst_56 = arith.constant dense<0.000000e+00> : vector<8x512xf32>
    %110 = tpu.matmul %109, %102, %cst_56 {dimension_numbers = #tpu.dot_dimension_numbers<[1], [0], [0], [1], [0, 0, 1, 1], [], []>} : vector<8x128xbf16>, vector<128x512xbf16>, vector<8x512xf32> -> vector<8x512xf32>
    %111 = vector.broadcast %104 : vector<1x512xf32> to vector<8x512xf32>
    %112 = arith.addf %110, %111 : vector<8x512xf32>
    %cst_57 = arith.constant 1.702000e+00 : f32
    %113 = vector.broadcast %cst_57 : f32 to vector<8x512xf32>
    %114 = arith.mulf %113, %112 : vector<8x512xf32>
    %115 = arith.negf %114 : vector<8x512xf32>
    %116 = math.exp %115 : vector<8x512xf32>
    %cst_58 = arith.constant 1.000000e+00 : f32
    %117 = vector.broadcast %cst_58 : f32 to vector<8x512xf32>
    %118 = arith.addf %117, %116 : vector<8x512xf32>
    %119 = arith.divf %117, %118 : vector<8x512xf32>
    %120 = arith.mulf %112, %119 : vector<8x512xf32>
    %121 = arith.truncf %120 : vector<8x512xf32> to vector<8x512xbf16>
    %cst_59 = arith.constant dense<0.000000e+00> : vector<8x128xf32>
    %122 = tpu.matmul %121, %106, %cst_59 {dimension_numbers = #tpu.dot_dimension_numbers<[1], [0], [0], [1], [0, 0, 1, 1], [], []>} : vector<8x512xbf16>, vector<512x128xbf16>, vector<8x128xf32> -> vector<8x128xf32>
    %123 = vector.broadcast %108 : vector<1x128xf32> to vector<8x128xf32>
    %124 = arith.addf %122, %123 : vector<8x128xf32>
    %125 = arith.addf %74, %124 : vector<8x128xf32>
    %c1 = arith.constant 1 : index
    %c0_60 = arith.constant 0 : index
    %c0_61 = arith.constant 0 : index
    %126 = vector.load %arg3[%c1, %c0_60, %c0_61] : memref<2x1x128xf32, #tpu.memory_space<vmem>>, vector<1x1x128xf32>
    %127 = vector.shape_cast %126 : vector<1x1x128xf32> to vector<1x128xf32>
    %c1_62 = arith.constant 1 : index
    %c0_63 = arith.constant 0 : index
    %c0_64 = arith.constant 0 : index
    %128 = vector.load %arg4[%c1_62, %c0_63, %c0_64] : memref<2x1x128xf32, #tpu.memory_space<vmem>>, vector<1x1x128xf32>
    %129 = vector.shape_cast %128 : vector<1x1x128xf32> to vector<1x128xf32>
    %cst_65 = arith.constant dense<0.000000e+00> : vector<8xf32>
    %130 = vector.multi_reduction <add>, %125, %cst_65 [1] : vector<8x128xf32> to vector<8xf32>
    %131 = vector.shape_cast %130 : vector<8xf32> to vector<8x1xf32>
    %cst_66 = arith.constant 1.280000e+02 : f32
    %132 = vector.broadcast %cst_66 : f32 to vector<8x1xf32>
    %133 = arith.divf %131, %132 : vector<8x1xf32>
    %134 = arith.mulf %125, %125 : vector<8x128xf32>
    %cst_67 = arith.constant dense<0.000000e+00> : vector<8xf32>
    %135 = vector.multi_reduction <add>, %134, %cst_67 [1] : vector<8x128xf32> to vector<8xf32>
    %136 = vector.shape_cast %135 : vector<8xf32> to vector<8x1xf32>
    %cst_68 = arith.constant 1.280000e+02 : f32
    %137 = vector.broadcast %cst_68 : f32 to vector<8x1xf32>
    %138 = arith.divf %136, %137 : vector<8x1xf32>
    %139 = arith.mulf %133, %133 : vector<8x1xf32>
    %140 = arith.subf %138, %139 : vector<8x1xf32>
    %141 = vector.broadcast %133 : vector<8x1xf32> to vector<8x128xf32>
    %142 = arith.subf %125, %141 : vector<8x128xf32>
    %cst_69 = arith.constant 9.99999974E-6 : f32
    %143 = vector.broadcast %cst_69 : f32 to vector<8x1xf32>
    %144 = arith.addf %140, %143 : vector<8x1xf32>
    %145 = math.rsqrt %144 : vector<8x1xf32>
    %146 = vector.broadcast %145 : vector<8x1xf32> to vector<8x128xf32>
    %147 = arith.mulf %142, %146 : vector<8x128xf32>
    %148 = vector.broadcast %127 : vector<1x128xf32> to vector<8x128xf32>
    %149 = arith.mulf %147, %148 : vector<8x128xf32>
    %150 = vector.broadcast %129 : vector<1x128xf32> to vector<8x128xf32>
    %151 = arith.addf %149, %150 : vector<8x128xf32>
    %c1_70 = arith.constant 1 : index
    %c0_71 = arith.constant 0 : index
    %c0_72 = arith.constant 0 : index
    %152 = vector.load %arg5[%c1_70, %c0_71, %c0_72] : memref<2x128x384xbf16, #tpu.memory_space<vmem>>, vector<1x128x384xbf16>
    %153 = vector.shape_cast %152 : vector<1x128x384xbf16> to vector<128x384xbf16>
    %c1_73 = arith.constant 1 : index
    %c0_74 = arith.constant 0 : index
    %c0_75 = arith.constant 0 : index
    %154 = vector.load %arg7[%c1_73, %c0_74, %c0_75] : memref<2x128x128xbf16, #tpu.memory_space<vmem>>, vector<1x128x128xbf16>
    %155 = vector.shape_cast %154 : vector<1x128x128xbf16> to vector<128x128xbf16>
    %c1_76 = arith.constant 1 : index
    %c0_77 = arith.constant 0 : index
    %c0_78 = arith.constant 0 : index
    %156 = vector.load %arg6[%c1_76, %c0_77, %c0_78] : memref<2x1x384xf32, #tpu.memory_space<vmem>>, vector<1x1x384xf32>
    %157 = vector.shape_cast %156 : vector<1x1x384xf32> to vector<1x384xf32>
    %c1_79 = arith.constant 1 : index
    %c0_80 = arith.constant 0 : index
    %c0_81 = arith.constant 0 : index
    %158 = vector.load %arg8[%c1_79, %c0_80, %c0_81] : memref<2x1x128xf32, #tpu.memory_space<vmem>>, vector<1x1x128xf32>
    %159 = vector.shape_cast %158 : vector<1x1x128xf32> to vector<1x128xf32>
    %160 = arith.truncf %151 : vector<8x128xf32> to vector<8x128xbf16>
    %cst_82 = arith.constant dense<0.000000e+00> : vector<8x384xf32>
    %161 = tpu.matmul %160, %153, %cst_82 {dimension_numbers = #tpu.dot_dimension_numbers<[1], [0], [0], [1], [0, 0, 1, 1], [], []>} : vector<8x128xbf16>, vector<128x384xbf16>, vector<8x384xf32> -> vector<8x384xf32>
    %162 = vector.broadcast %157 : vector<1x384xf32> to vector<8x384xf32>
    %163 = arith.addf %161, %162 : vector<8x384xf32>
    %164 = vector.extract_strided_slice %163 {offsets = [0, 0], sizes = [8, 128], strides = [1, 1]} : vector<8x384xf32> to vector<8x128xf32>
    %165 = vector.shape_cast %164 : vector<8x128xf32> to vector<8x4x32xf32>
    %166 = tpu.transpose %165, [1, 0, 2] : vector<8x4x32xf32> -> vector<4x8x32xf32>
    %167 = arith.truncf %166 : vector<4x8x32xf32> to vector<4x8x32xbf16>
    %168 = vector.extract_strided_slice %163 {offsets = [0, 128], sizes = [8, 128], strides = [1, 1]} : vector<8x384xf32> to vector<8x128xf32>
    %169 = vector.shape_cast %168 : vector<8x128xf32> to vector<8x4x32xf32>
    %170 = tpu.transpose %169, [1, 0, 2] : vector<8x4x32xf32> -> vector<4x8x32xf32>
    %171 = arith.truncf %170 : vector<4x8x32xf32> to vector<4x8x32xbf16>
    %172 = vector.extract_strided_slice %163 {offsets = [0, 256], sizes = [8, 128], strides = [1, 1]} : vector<8x384xf32> to vector<8x128xf32>
    %173 = vector.shape_cast %172 : vector<8x128xf32> to vector<8x4x32xf32>
    %174 = tpu.transpose %173, [1, 0, 2] : vector<8x4x32xf32> -> vector<4x8x32xf32>
    %175 = arith.truncf %174 : vector<4x8x32xf32> to vector<4x8x32xbf16>
    "tpu.trace_start"() <{level = 10 : i32, message = "hqd,hkd->hqk"}> : () -> ()
    %cst_83 = arith.constant dense<0.000000e+00> : vector<4x8x8xf32>
    %176 = tpu.matmul %167, %171, %cst_83 {dimension_numbers = #tpu.dot_dimension_numbers<[2], [2], [1], [1], [0, 0, 0, 1, 1, 1], [0], [0]>} : vector<4x8x32xbf16>, vector<4x8x32xbf16>, vector<4x8x8xf32> -> vector<4x8x8xf32>
    "tpu.trace_stop"() : () -> ()
    %177 = vector.broadcast %2 : vector<1x8x8xf32> to vector<4x8x8xf32>
    %178 = arith.addf %176, %177 : vector<4x8x8xf32>
    %cst_84 = arith.constant dense<0xFF800000> : vector<4x8xf32>
    %179 = vector.multi_reduction <maximumf>, %178, %cst_84 [2] : vector<4x8x8xf32> to vector<4x8xf32>
    %180 = vector.shape_cast %179 : vector<4x8xf32> to vector<4x8x1xf32>
    %181 = vector.broadcast %180 : vector<4x8x1xf32> to vector<4x8x8xf32>
    %182 = arith.subf %178, %181 : vector<4x8x8xf32>
    %183 = math.exp %182 : vector<4x8x8xf32>
    %cst_85 = arith.constant dense<0.000000e+00> : vector<4x8xf32>
    %184 = vector.multi_reduction <add>, %183, %cst_85 [2] : vector<4x8x8xf32> to vector<4x8xf32>
    %185 = vector.shape_cast %184 : vector<4x8xf32> to vector<4x8x1xf32>
    %186 = tpu.reciprocal %185 {approx = true} : vector<4x8x1xf32> -> vector<4x8x1xf32>
    %187 = vector.broadcast %186 : vector<4x8x1xf32> to vector<4x8x8xf32>
    %188 = arith.mulf %183, %187 : vector<4x8x8xf32>
    %189 = arith.truncf %188 : vector<4x8x8xf32> to vector<4x8x8xbf16>
    "tpu.trace_start"() <{level = 10 : i32, message = "hqk,hkd->hqd"}> : () -> ()
    %cst_86 = arith.constant dense<0.000000e+00> : vector<4x8x32xf32>
    %190 = tpu.matmul %189, %175, %cst_86 {dimension_numbers = #tpu.dot_dimension_numbers<[2], [1], [1], [2], [0, 0, 0, 1, 1, 2], [0], [0]>} : vector<4x8x8xbf16>, vector<4x8x32xbf16>, vector<4x8x32xf32> -> vector<4x8x32xf32>
    "tpu.trace_stop"() : () -> ()
    %191 = tpu.transpose %190, [1, 0, 2] : vector<4x8x32xf32> -> vector<8x4x32xf32>
    %192 = vector.shape_cast %191 : vector<8x4x32xf32> to vector<8x128xf32>
    %193 = arith.truncf %192 : vector<8x128xf32> to vector<8x128xbf16>
    %cst_87 = arith.constant dense<0.000000e+00> : vector<8x128xf32>
    %194 = tpu.matmul %193, %155, %cst_87 {dimension_numbers = #tpu.dot_dimension_numbers<[1], [0], [0], [1], [0, 0, 1, 1], [], []>} : vector<8x128xbf16>, vector<128x128xbf16>, vector<8x128xf32> -> vector<8x128xf32>
    %195 = vector.broadcast %159 : vector<1x128xf32> to vector<8x128xf32>
    %196 = arith.addf %194, %195 : vector<8x128xf32>
    %197 = arith.addf %125, %196 : vector<8x128xf32>
    %c1_88 = arith.constant 1 : index
    %c0_89 = arith.constant 0 : index
    %c0_90 = arith.constant 0 : index
    %198 = vector.load %arg9[%c1_88, %c0_89, %c0_90] : memref<2x1x128xf32, #tpu.memory_space<vmem>>, vector<1x1x128xf32>
    %199 = vector.shape_cast %198 : vector<1x1x128xf32> to vector<1x128xf32>
    %c1_91 = arith.constant 1 : index
    %c0_92 = arith.constant 0 : index
    %c0_93 = arith.constant 0 : index
    %200 = vector.load %arg10[%c1_91, %c0_92, %c0_93] : memref<2x1x128xf32, #tpu.memory_space<vmem>>, vector<1x1x128xf32>
    %201 = vector.shape_cast %200 : vector<1x1x128xf32> to vector<1x128xf32>
    %cst_94 = arith.constant dense<0.000000e+00> : vector<8xf32>
    %202 = vector.multi_reduction <add>, %197, %cst_94 [1] : vector<8x128xf32> to vector<8xf32>
    %203 = vector.shape_cast %202 : vector<8xf32> to vector<8x1xf32>
    %cst_95 = arith.constant 1.280000e+02 : f32
    %204 = vector.broadcast %cst_95 : f32 to vector<8x1xf32>
    %205 = arith.divf %203, %204 : vector<8x1xf32>
    %206 = arith.mulf %197, %197 : vector<8x128xf32>
    %cst_96 = arith.constant dense<0.000000e+00> : vector<8xf32>
    %207 = vector.multi_reduction <add>, %206, %cst_96 [1] : vector<8x128xf32> to vector<8xf32>
    %208 = vector.shape_cast %207 : vector<8xf32> to vector<8x1xf32>
    %cst_97 = arith.constant 1.280000e+02 : f32
    %209 = vector.broadcast %cst_97 : f32 to vector<8x1xf32>
    %210 = arith.divf %208, %209 : vector<8x1xf32>
    %211 = arith.mulf %205, %205 : vector<8x1xf32>
    %212 = arith.subf %210, %211 : vector<8x1xf32>
    %213 = vector.broadcast %205 : vector<8x1xf32> to vector<8x128xf32>
    %214 = arith.subf %197, %213 : vector<8x128xf32>
    %cst_98 = arith.constant 9.99999974E-6 : f32
    %215 = vector.broadcast %cst_98 : f32 to vector<8x1xf32>
    %216 = arith.addf %212, %215 : vector<8x1xf32>
    %217 = math.rsqrt %216 : vector<8x1xf32>
    %218 = vector.broadcast %217 : vector<8x1xf32> to vector<8x128xf32>
    %219 = arith.mulf %214, %218 : vector<8x128xf32>
    %220 = vector.broadcast %199 : vector<1x128xf32> to vector<8x128xf32>
    %221 = arith.mulf %219, %220 : vector<8x128xf32>
    %222 = vector.broadcast %201 : vector<1x128xf32> to vector<8x128xf32>
    %223 = arith.addf %221, %222 : vector<8x128xf32>
    %c1_99 = arith.constant 1 : index
    %c0_100 = arith.constant 0 : index
    %c0_101 = arith.constant 0 : index
    %224 = vector.load %arg11[%c1_99, %c0_100, %c0_101] : memref<2x128x512xbf16, #tpu.memory_space<vmem>>, vector<1x128x512xbf16>
    %225 = vector.shape_cast %224 : vector<1x128x512xbf16> to vector<128x512xbf16>
    %c1_102 = arith.constant 1 : index
    %c0_103 = arith.constant 0 : index
    %c0_104 = arith.constant 0 : index
    %226 = vector.load %arg12[%c1_102, %c0_103, %c0_104] : memref<2x1x512xf32, #tpu.memory_space<vmem>>, vector<1x1x512xf32>
    %227 = vector.shape_cast %226 : vector<1x1x512xf32> to vector<1x512xf32>
    %c1_105 = arith.constant 1 : index
    %c0_106 = arith.constant 0 : index
    %c0_107 = arith.constant 0 : index
    %228 = vector.load %arg13[%c1_105, %c0_106, %c0_107] : memref<2x512x128xbf16, #tpu.memory_space<vmem>>, vector<1x512x128xbf16>
    %229 = vector.shape_cast %228 : vector<1x512x128xbf16> to vector<512x128xbf16>
    %c1_108 = arith.constant 1 : index
    %c0_109 = arith.constant 0 : index
    %c0_110 = arith.constant 0 : index
    %230 = vector.load %arg14[%c1_108, %c0_109, %c0_110] : memref<2x1x128xf32, #tpu.memory_space<vmem>>, vector<1x1x128xf32>
    %231 = vector.shape_cast %230 : vector<1x1x128xf32> to vector<1x128xf32>
    %232 = arith.truncf %223 : vector<8x128xf32> to vector<8x128xbf16>
    %cst_111 = arith.constant dense<0.000000e+00> : vector<8x512xf32>
    %233 = tpu.matmul %232, %225, %cst_111 {dimension_numbers = #tpu.dot_dimension_numbers<[1], [0], [0], [1], [0, 0, 1, 1], [], []>} : vector<8x128xbf16>, vector<128x512xbf16>, vector<8x512xf32> -> vector<8x512xf32>
    %234 = vector.broadcast %227 : vector<1x512xf32> to vector<8x512xf32>
    %235 = arith.addf %233, %234 : vector<8x512xf32>
    %cst_112 = arith.constant 1.702000e+00 : f32
    %236 = vector.broadcast %cst_112 : f32 to vector<8x512xf32>
    %237 = arith.mulf %236, %235 : vector<8x512xf32>
    %238 = arith.negf %237 : vector<8x512xf32>
    %239 = math.exp %238 : vector<8x512xf32>
    %cst_113 = arith.constant 1.000000e+00 : f32
    %240 = vector.broadcast %cst_113 : f32 to vector<8x512xf32>
    %241 = arith.addf %240, %239 : vector<8x512xf32>
    %242 = arith.divf %240, %241 : vector<8x512xf32>
    %243 = arith.mulf %235, %242 : vector<8x512xf32>
    %244 = arith.truncf %243 : vector<8x512xf32> to vector<8x512xbf16>
    %cst_114 = arith.constant dense<0.000000e+00> : vector<8x128xf32>
    %245 = tpu.matmul %244, %229, %cst_114 {dimension_numbers = #tpu.dot_dimension_numbers<[1], [0], [0], [1], [0, 0, 1, 1], [], []>} : vector<8x512xbf16>, vector<512x128xbf16>, vector<8x128xf32> -> vector<8x128xf32>
    %246 = vector.broadcast %231 : vector<1x128xf32> to vector<8x128xf32>
    %247 = arith.addf %245, %246 : vector<8x128xf32>
    %248 = arith.addf %197, %247 : vector<8x128xf32>
    %c0_115 = arith.constant 0 : index
    %c0_116 = arith.constant 0 : index
    %249 = vector.load %arg15[%c0_115, %c0_116] : memref<1x128xf32, #tpu.memory_space<vmem>>, vector<1x128xf32>
    %c0_117 = arith.constant 0 : index
    %c0_118 = arith.constant 0 : index
    %250 = vector.load %arg16[%c0_117, %c0_118] : memref<1x128xf32, #tpu.memory_space<vmem>>, vector<1x128xf32>
    %cst_119 = arith.constant dense<0.000000e+00> : vector<8xf32>
    %251 = vector.multi_reduction <add>, %248, %cst_119 [1] : vector<8x128xf32> to vector<8xf32>
    %252 = vector.shape_cast %251 : vector<8xf32> to vector<8x1xf32>
    %cst_120 = arith.constant 1.280000e+02 : f32
    %253 = vector.broadcast %cst_120 : f32 to vector<8x1xf32>
    %254 = arith.divf %252, %253 : vector<8x1xf32>
    %255 = arith.mulf %248, %248 : vector<8x128xf32>
    %cst_121 = arith.constant dense<0.000000e+00> : vector<8xf32>
    %256 = vector.multi_reduction <add>, %255, %cst_121 [1] : vector<8x128xf32> to vector<8xf32>
    %257 = vector.shape_cast %256 : vector<8xf32> to vector<8x1xf32>
    %cst_122 = arith.constant 1.280000e+02 : f32
    %258 = vector.broadcast %cst_122 : f32 to vector<8x1xf32>
    %259 = arith.divf %257, %258 : vector<8x1xf32>
    %260 = arith.mulf %254, %254 : vector<8x1xf32>
    %261 = arith.subf %259, %260 : vector<8x1xf32>
    %262 = vector.broadcast %254 : vector<8x1xf32> to vector<8x128xf32>
    %263 = arith.subf %248, %262 : vector<8x128xf32>
    %cst_123 = arith.constant 9.99999974E-6 : f32
    %264 = vector.broadcast %cst_123 : f32 to vector<8x1xf32>
    %265 = arith.addf %261, %264 : vector<8x1xf32>
    %266 = math.rsqrt %265 : vector<8x1xf32>
    %267 = vector.broadcast %266 : vector<8x1xf32> to vector<8x128xf32>
    %268 = arith.mulf %263, %267 : vector<8x128xf32>
    %269 = vector.broadcast %249 : vector<1x128xf32> to vector<8x128xf32>
    %270 = arith.mulf %268, %269 : vector<8x128xf32>
    %271 = vector.broadcast %250 : vector<1x128xf32> to vector<8x128xf32>
    %272 = arith.addf %270, %271 : vector<8x128xf32>
    %c0_124 = arith.constant 0 : index
    %c0_125 = arith.constant 0 : index
    %c0_126 = arith.constant 0 : index
    %273 = vector.load %arg17[%c0_124, %c0_125, %c0_126] : memref<1x8x128xf32, #tpu.memory_space<vmem>>, vector<1x8x128xf32>
    %274 = vector.shape_cast %273 : vector<1x8x128xf32> to vector<8x128xf32>
    %275 = vector.shape_cast %272 : vector<8x128xf32> to vector<1x8x128xf32>
    tpu.vector_store %arg17[%c0_124, %c0_125, %c0_126], %275 {strides = array<i32>} : memref<1x8x128xf32, #tpu.memory_space<vmem>>, vector<1x8x128xf32>,
    return
  }
  func.func @transform_0(%arg0: i32) -> (i32, i32, i32) {
    %c0_i32 = arith.constant 0 : i32
    %c0_i32_0 = arith.constant 0 : i32
    %c0_i32_1 = arith.constant 0 : i32
    return %arg0, %c0_i32, %c0_i32_0 : i32, i32, i32
  }
  func.func @transform_1(%arg0: i32) -> (i32, i32, i32) {
    %c0_i32 = arith.constant 0 : i32
    %c0_i32_0 = arith.constant 0 : i32
    %c0_i32_1 = arith.constant 0 : i32
    %c0_i32_2 = arith.constant 0 : i32
    return %c0_i32, %c0_i32_0, %c0_i32_1 : i32, i32, i32
  }
  func.func @transform_2(%arg0: i32) -> (i32, i32, i32) {
    %c0_i32 = arith.constant 0 : i32
    %c0_i32_0 = arith.constant 0 : i32
    %c0_i32_1 = arith.constant 0 : i32
    %c0_i32_2 = arith.constant 0 : i32
    return %c0_i32, %c0_i32_0, %c0_i32_1 : i32, i32, i32
  }
  func.func @transform_3(%arg0: i32) -> (i32, i32, i32) {
    %c0_i32 = arith.constant 0 : i32
    %c0_i32_0 = arith.constant 0 : i32
    %c0_i32_1 = arith.constant 0 : i32
    %c0_i32_2 = arith.constant 0 : i32
    return %c0_i32, %c0_i32_0, %c0_i32_1 : i32, i32, i32
  }
  func.func @transform_4(%arg0: i32) -> (i32, i32, i32) {
    %c0_i32 = arith.constant 0 : i32
    %c0_i32_0 = arith.constant 0 : i32
    %c0_i32_1 = arith.constant 0 : i32
    %c0_i32_2 = arith.constant 0 : i32
    return %c0_i32, %c0_i32_0, %c0_i32_1 : i32, i32, i32
  }
  func.func @transform_5(%arg0: i32) -> (i32, i32, i32) {
    %c0_i32 = arith.constant 0 : i32
    %c0_i32_0 = arith.constant 0 : i32
    %c0_i32_1 = arith.constant 0 : i32
    %c0_i32_2 = arith.constant 0 : i32
    return %c0_i32, %c0_i32_0, %c0_i32_1 : i32, i32, i32
  }
  func.func @transform_6(%arg0: i32) -> (i32, i32, i32) {
    %c0_i32 = arith.constant 0 : i32
    %c0_i32_0 = arith.constant 0 : i32
    %c0_i32_1 = arith.constant 0 : i32
    %c0_i32_2 = arith.constant 0 : i32
    return %c0_i32, %c0_i32_0, %c0_i32_1 : i32, i32, i32
  }
  func.func @transform_7(%arg0: i32) -> (i32, i32, i32) {
    %c0_i32 = arith.constant 0 : i32
    %c0_i32_0 = arith.constant 0 : i32
    %c0_i32_1 = arith.constant 0 : i32
    %c0_i32_2 = arith.constant 0 : i32
    return %c0_i32, %c0_i32_0, %c0_i32_1 : i32, i32, i32
  }
  func.func @transform_8(%arg0: i32) -> (i32, i32, i32) {
    %c0_i32 = arith.constant 0 : i32
    %c0_i32_0 = arith.constant 0 : i32
    %c0_i32_1 = arith.constant 0 : i32
    %c0_i32_2 = arith.constant 0 : i32
    return %c0_i32, %c0_i32_0, %c0_i32_1 : i32, i32, i32
  }
  func.func @transform_9(%arg0: i32) -> (i32, i32, i32) {
    %c0_i32 = arith.constant 0 : i32
    %c0_i32_0 = arith.constant 0 : i32
    %c0_i32_1 = arith.constant 0 : i32
    %c0_i32_2 = arith.constant 0 : i32
    return %c0_i32, %c0_i32_0, %c0_i32_1 : i32, i32, i32
  }
  func.func @transform_10(%arg0: i32) -> (i32, i32, i32) {
    %c0_i32 = arith.constant 0 : i32
    %c0_i32_0 = arith.constant 0 : i32
    %c0_i32_1 = arith.constant 0 : i32
    %c0_i32_2 = arith.constant 0 : i32
    return %c0_i32, %c0_i32_0, %c0_i32_1 : i32, i32, i32
  }
  func.func @transform_11(%arg0: i32) -> (i32, i32, i32) {
    %c0_i32 = arith.constant 0 : i32
    %c0_i32_0 = arith.constant 0 : i32
    %c0_i32_1 = arith.constant 0 : i32
    %c0_i32_2 = arith.constant 0 : i32
    return %c0_i32, %c0_i32_0, %c0_i32_1 : i32, i32, i32
  }
  func.func @transform_12(%arg0: i32) -> (i32, i32, i32) {
    %c0_i32 = arith.constant 0 : i32
    %c0_i32_0 = arith.constant 0 : i32
    %c0_i32_1 = arith.constant 0 : i32
    %c0_i32_2 = arith.constant 0 : i32
    return %c0_i32, %c0_i32_0, %c0_i32_1 : i32, i32, i32
  }
  func.func @transform_13(%arg0: i32) -> (i32, i32, i32) {
    %c0_i32 = arith.constant 0 : i32
    %c0_i32_0 = arith.constant 0 : i32
    %c0_i32_1 = arith.constant 0 : i32
    %c0_i32_2 = arith.constant 0 : i32
    return %c0_i32, %c0_i32_0, %c0_i32_1 : i32, i32, i32
  }
  func.func @transform_14(%arg0: i32) -> (i32, i32) {
    %c0_i32 = arith.constant 0 : i32
    %c0_i32_0 = arith.constant 0 : i32
    %c0_i32_1 = arith.constant 0 : i32
    return %c0_i32, %c0_i32_0 : i32, i32
  }
  func.func @transform_15(%arg0: i32) -> (i32, i32) {
    %c0_i32 = arith.constant 0 : i32
    %c0_i32_0 = arith.constant 0 : i32
    %c0_i32_1 = arith.constant 0 : i32
    return %c0_i32, %c0_i32_0 : i32, i32
  }
  func.func @transform_16(%arg0: i32) -> (i32, i32, i32) {
    %c0_i32 = arith.constant 0 : i32
    %c0_i32_0 = arith.constant 0 : i32
    %c0_i32_1 = arith.constant 0 : i32
    return %arg0, %c0_i32, %c0_i32_0 : i32, i32, i32
  }
}

</mosaic_0001>

<llo_original>
// kernel: flux_text_forward.3
$region0: #{flux_text_forward.3}
  #allocation0 [shape = 'u32[]', space=smem, size = 0x4, offset = 0x4, fixed_abs, tag = 'smem constant byte address 0x4 - core index']
  #allocation1 [shape = 'u32[144,128]{1,0:T(1,128)}', space=vmem, size = 0x12000, scoped, tag = 'internal scratch']
  %s0 = inlined_call_operand.vmem [shape: f32[2,16,128], index: 0, kind: input, shape index: {}]
  %s1 = inlined_call_operand.vmem [shape: f32[4,16,16], index: 1, kind: input, shape index: {}]
  %s2 = inlined_call_operand.vmem [shape: f32[2,1,128], index: 2, kind: input, shape index: {}]
  %s3 = inlined_call_operand.vmem [shape: bf16[2,128,384], index: 3, kind: input, shape index: {}]
  %s4 = inlined_call_operand.vmem [shape: bf16[2,128,128], index: 4, kind: input, shape index: {}]
  %s5 = inlined_call_operand.vmem [shape: f32[2,1,128], index: 5, kind: input, shape index: {}]
  %s6 = inlined_call_operand.vmem [shape: bf16[2,128,256], index: 6, kind: input, shape index: {}]
  %s7 = inlined_call_operand.vmem [shape: bf16[2,128,256], index: 7, kind: input, shape index: {}]
  %s8 = inlined_call_operand.vmem [shape: bf16[2,256,128], index: 8, kind: input, shape index: {}]
  %s9 = inlined_call_operand.vmem [shape: f32[1,128], index: 9, kind: input, shape index: {}]
  %s10 = inlined_call_operand.hbm [shape: f32[2,16,128], index: 10, kind: output, shape index: {}]
  %s11 = sld [smem:[#allocation0]]
  $region73: #{flux_text_forward.3} parent=0
    _
  %s13 = ssub.s32 1, %s11
  %s14 = scalar_select 0, %s13, %s11
  $region1: #{flux_text_forward.3} parent=0
    #allocation2 [shape = 'u8[16384]{0}', space=vmem, size = 0x4000, scoped, tag = 'output window, operand 0']
    #allocation3 [shape = 's32[2]{0}', space=sflag, size = 0x8, scoped, tag = 'scoped memory for flux_text_forward.3']
    %15 = vsyncpa [#allocation3], 0
    %s16 = scalar_lea.sflag [#allocation3], 1
    %17 = vsyncpa %s16, 0
    loop: start=0, step=1, limit=4
    $region2: #{flux_text_forward.3} parent=1 // loop_pre_header
      _
    $region3: #{flux_text_forward.3} parent=1 // loop_header
      %s19 = sphi 0, %s23
      %p20 = scmp.ge.s32.totalorder %s19, 4
      %s29 = sphi 0, %s31
      %s32 = sphi 0, %s29
      %s33 = sphi 0, %s32
      %s49 = sphi 0, %s33
      %s53 = sphi 0, %s53
      %s55 = sphi 0, %s53
      %s56 = sphi 0, %s55
      %s70 = sphi 0, %s56
      %s74 = sphi 0, %s74
      %s76 = sphi 0, %s74
      %s77 = sphi 0, %s76
      %s91 = sphi 0, %s77
      %s95 = sphi 0, %s95
      %s97 = sphi 0, %s95
      %s98 = sphi 0, %s97
      %s112 = sphi 0, %s98
      %s116 = sphi 0, %s116
      %s118 = sphi 0, %s116
      %s119 = sphi 0, %s118
      %s133 = sphi 0, %s119
      %s137 = sphi 0, %s137
      %s139 = sphi 0, %s137
      %s140 = sphi 0, %s139
      %s154 = sphi 0, %s140
      %s158 = sphi 0, %s158
      %s160 = sphi 0, %s158
      %s161 = sphi 0, %s160
      %s175 = sphi 0, %s161
      %s179 = sphi 0, %s179
      %s181 = sphi 0, %s179
      %s182 = sphi 0, %s181
      %s196 = sphi 0, %s182
      %s200 = sphi 0, %s200
      %s202 = sphi 0, %s200
      %s203 = sphi 0, %s202
      %s217 = sphi 0, %s203
      %s221 = sphi 0, %s221
      %s223 = sphi 0, %s221
      %s224 = sphi 0, %s223
      %s238 = sphi 0, %s224
      %s244 = sphi 0, %s246
      %s247 = sphi 0, %s244
      %s248 = sphi 0, %s247
      %s264 = sphi 0, %s248
    $region4: #{flux_text_forward.3} parent=1 // loop_header_branch
      %22 = sbr.rel (%p20) target = $region8
    $region5: #{flux_text_forward.3} parent=1 // loop_body
      %s24 = ssub.s32 %s19, 1
      %s25 = ssub.s32 %s19, 2
      %s26 = sadd.s32 %s19, 1
      %s27 = ssub.s32 %s19, %s26
      %p28 = scmp.eq.s32.totalorder %s27, 0
      %s30 = sadd.s32 %s29, 1
      %s31 = scalar_select %p28, %s29, %s30
      %p34 = pneg %p28
      %p35 = scmp.eq.s32.totalorder %s19, 1
      %p36 = por %p34, %p35
      %p37 = scmp.ne.s32.totalorder %s29, %s32
      %p38 = scmp.eq.s32.totalorder %s19, 0
      %p39 = por %p37, %p38
      %p40 = scmp.ne.s32.totalorder %s29, %s32
      %p41 = scmp.eq.s32.totalorder %s24, 1
      %p42 = por %p40, %p41
      %p43 = scmp.ne.s32.totalorder %s32, %s33
      %p44 = scmp.eq.s32.totalorder %s24, 0
      %p45 = por %p43, %p44
      %p46 = scmp.ne.s32.totalorder %s32, %s33
      %p47 = scmp.eq.s32.totalorder %s25, 1
      %p48 = por %p46, %p47
      %p50 = scmp.ne.s32.totalorder %s33, %s49
      %p51 = scmp.eq.s32.totalorder %s25, 0
      %p52 = por %p50, %p51
      %s54 = sadd.s32 %s53, 1
      %p57 = scmp.eq.s32.totalorder %s19, 1
      %p58 = scmp.ne.s32.totalorder %s53, %s55
      %p59 = scmp.eq.s32.totalorder %s19, 0
      %p60 = por %p58, %p59
      %p61 = scmp.ne.s32.totalorder %s53, %s55
      %p62 = scmp.eq.s32.totalorder %s24, 1
      %p63 = por %p61, %p62
      %p64 = scmp.ne.s32.totalorder %s55, %s56
      %p65 = scmp.eq.s32.totalorder %s24, 0
      %p66 = por %p64, %p65
      %p67 = scmp.ne.s32.totalorder %s55, %s56
      %p68 = scmp.eq.s32.totalorder %s25, 1
      %p69 = por %p67, %p68
      %p71 = scmp.ne.s32.totalorder %s56, %s70
      %p72 = scmp.eq.s32.totalorder %s25, 0
      %p73 = por %p71, %p72
      %s75 = sadd.s32 %s74, 1
      %p78 = scmp.eq.s32.totalorder %s19, 1
      %p79 = scmp.ne.s32.totalorder %s74, %s76
      %p80 = scmp.eq.s32.totalorder %s19, 0
      %p81 = por %p79, %p80
      %p82 = scmp.ne.s32.totalorder %s74, %s76
      %p83 = scmp.eq.s32.totalorder %s24, 1
      %p84 = por %p82, %p83
      %p85 = scmp.ne.s32.totalorder %s76, %s77
      %p86 = scmp.eq.s32.totalorder %s24, 0
      %p87 = por %p85, %p86
      %p88 = scmp.ne.s32.totalorder %s76, %s77
      %p89 = scmp.eq.s32.totalorder %s25, 1
      %p90 = por %p88, %p89
      %p92 = scmp.ne.s32.totalorder %s77, %s91
      %p93 = scmp.eq.s32.totalorder %s25, 0
      %p94 = por %p92, %p93
      %s96 = sadd.s32 %s95, 1
      %p99 = scmp.eq.s32.totalorder %s19, 1
      %p100 = scmp.ne.s32.totalorder %s95, %s97
      %p101 = scmp.eq.s32.totalorder %s19, 0
      %p102 = por %p100, %p101
      %p103 = scmp.ne.s32.totalorder %s95, %s97
      %p104 = scmp.eq.s32.totalorder %s24, 1
      %p105 = por %p103, %p104
      %p106 = scmp.ne.s32.totalorder %s97, %s98
      %p107 = scmp.eq.s32.totalorder %s24, 0
      %p108 = por %p106, %p107
      %p109 = scmp.ne.s32.totalorder %s97, %s98
      %p110 = scmp.eq.s32.totalorder %s25, 1
      %p111 = por %p109, %p110
      %p113 = scmp.ne.s32.totalorder %s98, %s112
      %p114 = scmp.eq.s32.totalorder %s25, 0
      %p115 = por %p113, %p114
      %s117 = sadd.s32 %s116, 1
      %p120 = scmp.eq.s32.totalorder %s19, 1
      %p121 = scmp.ne.s32.totalorder %s116, %s118
      %p122 = scmp.eq.s32.totalorder %s19, 0
      %p123 = por %p121, %p122
      %p124 = scmp.ne.s32.totalorder %s116, %s118
      %p125 = scmp.eq.s32.totalorder %s24, 1
      %p126 = por %p124, %p125
      %p127 = scmp.ne.s32.totalorder %s118, %s119
      %p128 = scmp.eq.s32.totalorder %s24, 0
      %p129 = por %p127, %p128
      %p130 = scmp.ne.s32.totalorder %s118, %s119
      %p131 = scmp.eq.s32.totalorder %s25, 1
      %p132 = por %p130, %p131
      %p134 = scmp.ne.s32.totalorder %s119, %s133
      %p135 = scmp.eq.s32.totalorder %s25, 0
      %p136 = por %p134, %p135
      %s138 = sadd.s32 %s137, 1
      %p141 = scmp.eq.s32.totalorder %s19, 1
      %p142 = scmp.ne.s32.totalorder %s137, %s139
      %p143 = scmp.eq.s32.totalorder %s19, 0
      %p144 = por %p142, %p143
      %p145 = scmp.ne.s32.totalorder %s137, %s139
      %p146 = scmp.eq.s32.totalorder %s24, 1
      %p147 = por %p145, %p146
      %p148 = scmp.ne.s32.totalorder %s139, %s140
      %p149 = scmp.eq.s32.totalorder %s24, 0
      %p150 = por %p148, %p149
      %p151 = scmp.ne.s32.totalorder %s139, %s140
      %p152 = scmp.eq.s32.totalorder %s25, 1
      %p153 = por %p151, %p152
      %p155 = scmp.ne.s32.totalorder %s140, %s154
      %p156 = scmp.eq.s32.totalorder %s25, 0
      %p157 = por %p155, %p156
      %s159 = sadd.s32 %s158, 1
      %p162 = scmp.eq.s32.totalorder %s19, 1
      %p163 = scmp.ne.s32.totalorder %s158, %s160
      %p164 = scmp.eq.s32.totalorder %s19, 0
      %p165 = por %p163, %p164
      %p166 = scmp.ne.s32.totalorder %s158, %s160
      %p167 = scmp.eq.s32.totalorder %s24, 1
      %p168 = por %p166, %p167
      %p169 = scmp.ne.s32.totalorder %s160, %s161
      %p170 = scmp.eq.s32.totalorder %s24, 0
      %p171 = por %p169, %p170
      %p172 = scmp.ne.s32.totalorder %s160, %s161
      %p173 = scmp.eq.s32.totalorder %s25, 1
      %p174 = por %p172, %p173
      %p176 = scmp.ne.s32.totalorder %s161, %s175
      %p177 = scmp.eq.s32.totalorder %s25, 0
      %p178 = por %p176, %p177
      %s180 = sadd.s32 %s179, 1
      %p183 = scmp.eq.s32.totalorder %s19, 1
      %p184 = scmp.ne.s32.totalorder %s179, %s181
      %p185 = scmp.eq.s32.totalorder %s19, 0
      %p186 = por %p184, %p185
      %p187 = scmp.ne.s32.totalorder %s179, %s181
      %p188 = scmp.eq.s32.totalorder %s24, 1
      %p189 = por %p187, %p188
      %p190 = scmp.ne.s32.totalorder %s181, %s182
      %p191 = scmp.eq.s32.totalorder %s24, 0
      %p192 = por %p190, %p191
      %p193 = scmp.ne.s32.totalorder %s181, %s182
      %p194 = scmp.eq.s32.totalorder %s25, 1
      %p195 = por %p193, %p194
      %p197 = scmp.ne.s32.totalorder %s182, %s196
      %p198 = scmp.eq.s32.totalorder %s25, 0
      %p199 = por %p197, %p198
      %s201 = sadd.s32 %s200, 1
      %p204 = scmp.eq.s32.totalorder %s19, 1
      %p205 = scmp.ne.s32.totalorder %s200, %s202
      %p206 = scmp.eq.s32.totalorder %s19, 0
      %p207 = por %p205, %p206
      %p208 = scmp.ne.s32.totalorder %s200, %s202
      %p209 = scmp.eq.s32.totalorder %s24, 1
      %p210 = por %p208, %p209
      %p211 = scmp.ne.s32.totalorder %s202, %s203
      %p212 = scmp.eq.s32.totalorder %s24, 0
      %p213 = por %p211, %p212
      %p214 = scmp.ne.s32.totalorder %s202, %s203
      %p215 = scmp.eq.s32.totalorder %s25, 1
      %p216 = por %p214, %p215
      %p218 = scmp.ne.s32.totalorder %s203, %s217
      %p219 = scmp.eq.s32.totalorder %s25, 0
      %p220 = por %p218, %p219
      %s222 = sadd.s32 %s221, 1
      %p225 = scmp.eq.s32.totalorder %s19, 1
      %p226 = scmp.ne.s32.totalorder %s221, %s223
      %p227 = scmp.eq.s32.totalorder %s19, 0
      %p228 = por %p226, %p227
      %p229 = scmp.ne.s32.totalorder %s221, %s223
      %p230 = scmp.eq.s32.totalorder %s24, 1
      %p231 = por %p229, %p230
      %p232 = scmp.ne.s32.totalorder %s223, %s224
      %p233 = scmp.eq.s32.totalorder %s24, 0
      %p234 = por %p232, %p233
      %p235 = scmp.ne.s32.totalorder %s223, %s224
      %p236 = scmp.eq.s32.totalorder %s25, 1
      %p237 = por %p235, %p236
      %p239 = scmp.ne.s32.totalorder %s224, %s238
      %p240 = scmp.eq.s32.totalorder %s25, 0
      %p241 = por %p239, %p240
      %s242 = ssub.s32 %s19, %s26
      %p243 = scmp.eq.s32.totalorder %s242, 0
      %s245 = sadd.s32 %s244, 1
      %s246 = scalar_select %p243, %s244, %s245
      %p249 = pneg %p243
      %p250 = scmp.eq.s32.totalorder %s19, 1
      %p251 = por %p249, %p250
      %p252 = scmp.ne.s32.totalorder %s244, %s247
      %p253 = scmp.eq.s32.totalorder %s19, 0
      %p254 = por %p252, %p253
      %p255 = scmp.ne.s32.totalorder %s244, %s247
      %p256 = scmp.eq.s32.totalorder %s24, 1
      %p257 = por %p255, %p256
      %p258 = scmp.ne.s32.totalorder %s247, %s248
      %p259 = scmp.eq.s32.totalorder %s24, 0
      %p260 = por %p258, %p259
      %p261 = scmp.ne.s32.totalorder %s247, %s248
      %p262 = scmp.eq.s32.totalorder %s25, 1
      %p263 = por %p261, %p262
      %p265 = scmp.ne.s32.totalorder %s248, %s264
      %p266 = scmp.eq.s32.totalorder %s25, 0
      %p267 = por %p265, %p266
      %p268 = scmp.le.s32.totalorder 1, %s19
      %p269 = scmp.lt.s32.totalorder %s19, 3
      %p270 = pnand %p268, %p269
      %p271 = pneg %p270
      // Predicated region
      $region9: #{flux_text_forward.3} parent=5 // pred_check
        _
      $region10: #{flux_text_forward.3} parent=5 // pred_check_branch
        %273 = sbr.rel (%p270) target = $region12
      $region11: #{flux_text_forward.3} parent=5 // pred_region
        %s274 = ssub.s32 %s19, 1
        // Predicated region
        $region13: #{flux_text_forward.3} parent=11 // pred_check
          %p275 = pneg %p66
        $region14: #{flux_text_forward.3} parent=11 // pred_check_branch
          %277 = sbr.rel (%p275) target = $region16
        $region15: #{flux_text_forward.3} parent=11 // pred_region
          _
        $region16: #{flux_text_forward.3} parent=11 // pred_fallthru
          _
        // Predicated region
        $region17: #{flux_text_forward.3} parent=11 // pred_check
          %p278 = pneg %p87
        $region18: #{flux_text_forward.3} parent=11 // pred_check_branch
          %280 = sbr.rel (%p278) target = $region20
        $region19: #{flux_text_forward.3} parent=11 // pred_region
          _
        $region20: #{flux_text_forward.3} parent=11 // pred_fallthru
          _
        // Predicated region
        $region21: #{flux_text_forward.3} parent=11 // pred_check
          %p281 = pneg %p108
        $region22: #{flux_text_forward.3} parent=11 // pred_check_branch
          %283 = sbr.rel (%p281) target = $region24
        $region23: #{flux_text_forward.3} parent=11 // pred_region
          _
        $region24: #{flux_text_forward.3} parent=11 // pred_fallthru
          _
        // Predicated region
        $region25: #{flux_text_forward.3} parent=11 // pred_check
          %p284 = pneg %p129
        $region26: #{flux_text_forward.3} parent=11 // pred_check_branch
          %286 = sbr.rel (%p284) target = $region28
        $region27: #{flux_text_forward.3} parent=11 // pred_region
          _
        $region28: #{flux_text_forward.3} parent=11 // pred_fallthru
          _
        // Predicated region
        $region29: #{flux_text_forward.3} parent=11 // pred_check
          %p287 = pneg %p150
        $region30: #{flux_text_forward.3} parent=11 // pred_check_branch
          %289 = sbr.rel (%p287) target = $region32
        $region31: #{flux_text_forward.3} parent=11 // pred_region
          _
        $region32: #{flux_text_forward.3} parent=11 // pred_fallthru
          _
        // Predicated region
        $region33: #{flux_text_forward.3} parent=11 // pred_check
          %p290 = pneg %p171
        $region34: #{flux_text_forward.3} parent=11 // pred_check_branch
          %292 = sbr.rel (%p290) target = $region36
        $region35: #{flux_text_forward.3} parent=11 // pred_region
          _
        $region36: #{flux_text_forward.3} parent=11 // pred_fallthru
          _
        // Predicated region
        $region37: #{flux_text_forward.3} parent=11 // pred_check
          %p293 = pneg %p192
        $region38: #{flux_text_forward.3} parent=11 // pred_check_branch
          %295 = sbr.rel (%p293) target = $region40
        $region39: #{flux_text_forward.3} parent=11 // pred_region
          _
        $region40: #{flux_text_forward.3} parent=11 // pred_fallthru
          _
        // Predicated region
        $region41: #{flux_text_forward.3} parent=11 // pred_check
          %p296 = pneg %p213
        $region42: #{flux_text_forward.3} parent=11 // pred_check_branch
          %298 = sbr.rel (%p296) target = $region44
        $region43: #{flux_text_forward.3} parent=11 // pred_region
          _
        $region44: #{flux_text_forward.3} parent=11 // pred_fallthru
          _
        // Predicated region
        $region45: #{flux_text_forward.3} parent=11 // pred_check
          %p299 = pneg %p234
        $region46: #{flux_text_forward.3} parent=11 // pred_check_branch
          %301 = sbr.rel (%p299) target = $region48
        $region47: #{flux_text_forward.3} parent=11 // pred_region
          _
        $region48: #{flux_text_forward.3} parent=11 // pred_fallthru
          _
      $region12: #{flux_text_forward.3} parent=5 // pred_fallthru
        _
      %p302 = scmp.lt.s32.totalorder %s19, 2
      // Predicated region
      $region49: #{flux_text_forward.3} parent=5 // pred_check
        %p303 = pneg %p302
      $region50: #{flux_text_forward.3} parent=5 // pred_check_branch
        %305 = sbr.rel (%p303) target = $region52
      $region51: #{flux_text_forward.3} parent=5 // pred_region
        // Predicated region
        $region53: #{flux_text_forward.3} parent=51 // pred_check
          %p306 = pneg %p39
        $region54: #{flux_text_forward.3} parent=51 // pred_check_branch
          %308 = sbr.rel (%p306) target = $region56
        $region55: #{flux_text_forward.3} parent=51 // pred_region
          %p309 = scmp.lt.s32.totalorder %s19, 1
          %s310 = scalar_select %p309, %s19, 1
          %s311 = smul.addr %s310, 2
          %s312 = smul.addr %s311, 8
          %s313 = scalar_lea.vmem %s0, %s312
        $region56: #{flux_text_forward.3} parent=51 // pred_fallthru
          _
      $region52: #{flux_text_forward.3} parent=5 // pred_fallthru
        _
      %p314 = scmp.le.s32.totalorder 1, %s19
      %p315 = scmp.lt.s32.totalorder %s19, 3
      %p316 = pnand %p314, %p315
      %p317 = pneg %p316
      // Predicated region
      $region57: #{flux_text_forward.3} parent=5 // pred_check
        _
      $region58: #{flux_text_forward.3} parent=5 // pred_check_branch
        %319 = sbr.rel (%p316) target = $region60
      $region59: #{flux_text_forward.3} parent=5 // pred_region
        %s320 = ssub.s32 %s19, 1
        %p321 = scmp.lt.s32.totalorder %s24, 1
        %s322 = scalar_select %p321, %s24, 1
        %s323 = smul.addr %s322, 2
        %s324 = smul.addr %s323, 8
        %s325 = scalar_lea.vmem %s0, %s324
        %p326 = pneg %p45
        %p327 = pneg %p42
        %p328 = pneg %p66
        %p329 = pneg %p63
        %p330 = pneg %p87
        %p331 = pneg %p84
        %p332 = pneg %p108
        %p333 = pneg %p105
        %p334 = pneg %p129
        %p335 = pneg %p126
        %p336 = pneg %p150
        %p337 = pneg %p147
        %p338 = pneg %p171
        %p339 = pneg %p168
        %p340 = pneg %p192
        %p341 = pneg %p189
        %p342 = pneg %p213
        %p343 = pneg %p210
        %p344 = pneg %p234
        %p345 = pneg %p231
        %p346 = pneg %p260
        %p347 = pneg %p257
        %s348 = sand.u32 %s247, 1
        %s349 = scalar_lea.sflag [#allocation3], %s348
        %s350 = sand.u32 %s247, 1
        %s351 = smul.addr %s350, 16
        %s352 = scalar_lea.vmem [#allocation2], %s351
        %p353 = scmp.lt.s32.totalorder %s24, 1
        %s354 = scalar_select %p353, %s24, 1
        %s355 = smul.addr %s354, 2
        %s356 = smul.addr %s355, 8
        %s357 = scalar_lea.vmem %s0, %s356
        %v359 = vld [vmem:[%s357] sm:$0xff]
        %v360 = vld [vmem:[%s357 + $0x8] sm:$0xff]
        %v361 = vld [vmem:[%s1] sm:$0xff]
        %v362 = vld [vmem:[%s1 + $0x8] sm:$0xff]
        %v363 = vld [vmem:[%s1 + $0x10] sm:$0xff]
        %v364 = vld [vmem:[%s1 + $0x18] sm:$0xff]
        %v365 = vld [vmem:[%s1 + $0x20] sm:$0xff]
        %v366 = vld [vmem:[%s1 + $0x28] sm:$0xff]
        %v367 = vld [vmem:[%s1 + $0x30] sm:$0xff]
        %v368 = vld [vmem:[%s1 + $0x38] sm:$0xff]
        %v369 = vld [vmem:[%s2] sm:$0x1]
        %v370 = vmul.f32 %v359, %v359
        %v371 = vmul.f32 %v360, %v360
        %372 = vadd.xlane.f32.xlu0 %v370
        %v373 = vpop.xlane.xlu0 %372
        %374 = vadd.xlane.f32.xlu0 %v371
        %v375 = vpop.xlane.xlu0 %374
        %v376 = vrcp.pop 128.0
        %v377 = vmul.f32 %v373, %v376
        %v378 = vmul.f32 %v375, %v376
        %v379 = vadd.f32 %v377, 1e-06
        %v380 = vadd.f32 %v378, 1e-06
        %v381 = vrsqrt.pop %v379
        %v382 = vrsqrt.pop %v380
        %v383 = vmul.f32 %v359, %v381
        %v384 = vmul.f32 %v360, %v382
        %v386 = vlaneseq
        %v387 = vshrl.u32 %v386, 7
        %v388 = vsub.s32 0, %v387
        %v389 = vrot.slane %v369, %v388
        %v391 = vmul.f32 %v383, %v389
        %v392 = vmul.f32 %v384, %v389
        %v393 = vld [vmem:[%s3] sm:$0xff]
        %v394 = vld [vmem:[%s3 + $0x8] sm:$0xf]
        %v395 = vld [vmem:[%s3 + $0xc] sm:$0xff]
        %v396 = vld [vmem:[%s3 + $0x14] sm:$0xf]
        %v397 = vld [vmem:[%s3 + $0x18] sm:$0xff]
        %v398 = vld [vmem:[%s3 + $0x20] sm:$0xf]
        %v399 = vld [vmem:[%s3 + $0x24] sm:$0xff]
        %v400 = vld [vmem:[%s3 + $0x2c] sm:$0xf]
        %v401 = vld [vmem:[%s3 + $0x30] sm:$0xff]
        %v402 = vld [vmem:[%s3 + $0x38] sm:$0xf]
        %v403 = vld [vmem:[%s3 + $0x3c] sm:$0xff]
        %v404 = vld [vmem:[%s3 + $0x44] sm:$0xf]
        %v405 = vld [vmem:[%s3 + $0x48] sm:$0xff]
        %v406 = vld [vmem:[%s3 + $0x50] sm:$0xf]
        %v407 = vld [vmem:[%s3 + $0x54] sm:$0xff]
        %v408 = vld [vmem:[%s3 + $0x5c] sm:$0xf]
        %v409 = vld [vmem:[%s3 + $0x60] sm:$0xff]
        %v410 = vld [vmem:[%s3 + $0x68] sm:$0xf]
        %v411 = vld [vmem:[%s3 + $0x6c] sm:$0xff]
        %v412 = vld [vmem:[%s3 + $0x74] sm:$0xf]
        %v413 = vld [vmem:[%s3 + $0x78] sm:$0xff]
        %v414 = vld [vmem:[%s3 + $0x80] sm:$0xf]
        %v415 = vld [vmem:[%s3 + $0x84] sm:$0xff]
        %v416 = vld [vmem:[%s3 + $0x8c] sm:$0xf]
        %v417 = vld [vmem:[%s3 + $0x90] sm:$0xff]
        %v418 = vld [vmem:[%s3 + $0x98] sm:$0xf]
        %v419 = vld [vmem:[%s3 + $0x9c] sm:$0xff]
        %v420 = vld [vmem:[%s3 + $0xa4] sm:$0xf]
        %v421 = vld [vmem:[%s3 + $0xa8] sm:$0xff]
        %v422 = vld [vmem:[%s3 + $0xb0] sm:$0xf]
        %v423 = vld [vmem:[%s3 + $0xb4] sm:$0xff]
        %v424 = vld [vmem:[%s3 + $0xbc] sm:$0xf]
        %v425 = vld [vmem:[%s4] sm:$0xf]
        %v426 = vld [vmem:[%s4 + $0x4] sm:$0xf]
        %v427 = vld [vmem:[%s4 + $0x8] sm:$0xf]
        %v428 = vld [vmem:[%s4 + $0xc] sm:$0xf]
        %v429 = vld [vmem:[%s4 + $0x10] sm:$0xf]
        %v430 = vld [vmem:[%s4 + $0x14] sm:$0xf]
        %v431 = vld [vmem:[%s4 + $0x18] sm:$0xf]
        %v432 = vld [vmem:[%s4 + $0x1c] sm:$0xf]
        %v433 = vld [vmem:[%s4 + $0x20] sm:$0xf]
        %v434 = vld [vmem:[%s4 + $0x24] sm:$0xf]
        %v435 = vld [vmem:[%s4 + $0x28] sm:$0xf]
        %v436 = vld [vmem:[%s4 + $0x2c] sm:$0xf]
        %v437 = vld [vmem:[%s4 + $0x30] sm:$0xf]
        %v438 = vld [vmem:[%s4 + $0x34] sm:$0xf]
        %v439 = vld [vmem:[%s4 + $0x38] sm:$0xf]
        %v440 = vld [vmem:[%s4 + $0x3c] sm:$0xf]
        %v441 = vpack.c.bf16 %v392, %v391
        %v474 = vunpack.c.l.b16 %v393
        %v475 = vunpack.c.h.b16 %v393
        %v476 = vunpack.c.l.b16 %v394
        %v477 = vunpack.c.l.b16 %v395
        %v478 = vunpack.c.h.b16 %v395
        %v479 = vunpack.c.l.b16 %v396
        %v480 = vunpack.c.l.b16 %v397
        %v481 = vunpack.c.h.b16 %v397
        %v482 = vunpack.c.l.b16 %v398
        %v483 = vunpack.c.l.b16 %v399
        %v484 = vunpack.c.h.b16 %v399
        %v485 = vunpack.c.l.b16 %v400
        %v486 = vunpack.c.l.b16 %v401
        %v487 = vunpack.c.h.b16 %v401
        %v488 = vunpack.c.l.b16 %v402
        %v489 = vunpack.c.l.b16 %v403
        %v490 = vunpack.c.h.b16 %v403
        %v491 = vunpack.c.l.b16 %v404
        %v492 = vunpack.c.l.b16 %v405
        %v493 = vunpack.c.h.b16 %v405
        %v494 = vunpack.c.l.b16 %v406
        %v495 = vunpack.c.l.b16 %v407
        %v496 = vunpack.c.h.b16 %v407
        %v497 = vunpack.c.l.b16 %v408
        %v498 = vunpack.c.l.b16 %v409
        %v499 = vunpack.c.h.b16 %v409
        %v500 = vunpack.c.l.b16 %v410
        %v501 = vunpack.c.l.b16 %v411
        %v502 = vunpack.c.h.b16 %v411
        %v503 = vunpack.c.l.b16 %v412
        %v504 = vunpack.c.l.b16 %v413
        %v505 = vunpack.c.h.b16 %v413
        %v506 = vunpack.c.l.b16 %v414
        %v507 = vunpack.c.l.b16 %v415
        %v508 = vunpack.c.h.b16 %v415
        %v509 = vunpack.c.l.b16 %v416
        %v510 = vunpack.c.l.b16 %v417
        %v511 = vunpack.c.h.b16 %v417
        %v512 = vunpack.c.l.b16 %v418
        %v513 = vunpack.c.l.b16 %v419
        %v514 = vunpack.c.h.b16 %v419
        %v515 = vunpack.c.l.b16 %v420
        %v516 = vunpack.c.l.b16 %v421
        %v517 = vunpack.c.h.b16 %v421
        %v518 = vunpack.c.l.b16 %v422
        %v519 = vunpack.c.l.b16 %v423
        %v520 = vunpack.c.h.b16 %v423
        %v521 = vunpack.c.l.b16 %v424
        %v522 = vpack.c.b16 %v477, %v474
        %v523 = vpack.c.b16 %v478, %v475
        %v524 = vpack.c.b16 %v479, %v476
        %v525 = vpack.c.b16 %v483, %v480
        %v526 = vpack.c.b16 %v484, %v481
        %v527 = vpack.c.b16 %v485, %v482
        %v528 = vpack.c.b16 %v489, %v486
        %v529 = vpack.c.b16 %v490, %v487
        %v530 = vpack.c.b16 %v491, %v488
        %v531 = vpack.c.b16 %v495, %v492
        %v532 = vpack.c.b16 %v496, %v493
        %v533 = vpack.c.b16 %v497, %v494
        %v534 = vpack.c.b16 %v501, %v498
        %v535 = vpack.c.b16 %v502, %v499
        %v536 = vpack.c.b16 %v503, %v500
        %v537 = vpack.c.b16 %v507, %v504
        %v538 = vpack.c.b16 %v508, %v505
        %v539 = vpack.c.b16 %v509, %v506
        %v540 = vpack.c.b16 %v513, %v510
        %v541 = vpack.c.b16 %v514, %v511
        %v542 = vpack.c.b16 %v515, %v512
        %v543 = vpack.c.b16 %v519, %v516
        %v544 = vpack.c.b16 %v520, %v517
        %v545 = vpack.c.b16 %v521, %v518
        %570 = vmatprep.subr.bf16.mxu0 %v523
        %571 = vmatpush1.bf16.msra.mxu0 %v522
        %572 = vmatprep.subr.bf16.mxu0 %v526
        %573 = vmatpush1.bf16.msra.mxu0 %v525
        %574 = vmatprep.subr.bf16.mxu0 %v529
        %575 = vmatpush1.bf16.msra.mxu0 %v528
        %576 = vmatprep.subr.bf16.mxu0 %v532
        %577 = vmatpush1.bf16.msra.mxu0 %v531
        %578 = vmatprep.subr.bf16.mxu0 %v535
        %579 = vmatpush1.bf16.msra.mxu0 %v534
        %580 = vmatprep.subr.bf16.mxu0 %v538
        %581 = vmatpush1.bf16.msra.mxu0 %v537
        %582 = vmatprep.subr.bf16.mxu0 %v541
        %583 = vmatpush1.bf16.msra.mxu0 %v540
        %584 = vmatprep.subr.bf16.mxu0 %v544
        %585 = vmatpush1.bf16.msra.mxu0 %v543
        %586 = vmatprep.subr.bf16.mxu0 0
        %587 = vmatpush1.bf16.msra.mxu0 0
        %588 = vmatprep.subr.bf16.mxu0 0
        %589 = vmatpush1.bf16.msra.mxu0 0
        %590 = vmatprep.subr.bf16.mxu0 0
        %591 = vmatpush1.bf16.msra.mxu0 0
        %592 = vmatprep.subr.bf16.mxu0 0
        %593 = vmatpush1.bf16.msra.mxu0 0
        %594 = vmatprep.subr.bf16.mxu0 0
        %595 = vmatpush1.bf16.msra.mxu0 0
        %596 = vmatprep.subr.bf16.mxu0 0
        %597 = vmatpush1.bf16.msra.mxu0 0
        %598 = vmatprep.subr.bf16.mxu0 0
        %599 = vmatpush1.bf16.msra.mxu0 0
        %600 = vmatprep.subr.bf16.mxu0 0
        %601 = vmatpush1.bf16.msra.mxu0 0
        %602 = vmatprep.mubr.bf16.mxu0 0
        %603 = vmatmul.mubr.bf16.gmra.mrb[0].mxu0 %v441
        %v604 = vpop.f32.mrb[0].mxu0
        %v605 = vadd.f32 0.0, %v604
        %v606 = vpop.f32.mrb[0].mxu0
        %v607 = vadd.f32 0.0, %v606
        %v608 = vpop.f32.mrb[0].mxu0
        %v609 = vadd.f32 0.0, %v608
        %v610 = vpop.f32.mrb[0].mxu0
        %v611 = vadd.f32 0.0, %v610
        %612 = vdwg.mxu0
        %613 = vmatprep.subr.bf16.mxu0 0
        %614 = vmatpush1.bf16.msra.mxu0 %v524
        %615 = vmatprep.subr.bf16.mxu0 0
        %616 = vmatpush1.bf16.msra.mxu0 %v527
        %617 = vmatprep.subr.bf16.mxu0 0
        %618 = vmatpush1.bf16.msra.mxu0 %v530
        %619 = vmatprep.subr.bf16.mxu0 0
        %620 = vmatpush1.bf16.msra.mxu0 %v533
        %621 = vmatprep.subr.bf16.mxu0 0
        %622 = vmatpush1.bf16.msra.mxu0 %v536
        %623 = vmatprep.subr.bf16.mxu0 0
        %624 = vmatpush1.bf16.msra.mxu0 %v539
        %625 = vmatprep.subr.bf16.mxu0 0
        %626 = vmatpush1.bf16.msra.mxu0 %v542
        %627 = vmatprep.subr.bf16.mxu0 0
        %628 = vmatpush1.bf16.msra.mxu0 %v545
        %629 = vmatprep.subr.bf16.mxu0 0
        %630 = vmatpush1.bf16.msra.mxu0 0
        %631 = vmatprep.subr.bf16.mxu0 0
        %632 = vmatpush1.bf16.msra.mxu0 0
        %633 = vmatprep.subr.bf16.mxu0 0
        %634 = vmatpush1.bf16.msra.mxu0 0
        %635 = vmatprep.subr.bf16.mxu0 0
        %636 = vmatpush1.bf16.msra.mxu0 0
        %637 = vmatprep.subr.bf16.mxu0 0
        %638 = vmatpush1.bf16.msra.mxu0 0
        %639 = vmatprep.subr.bf16.mxu0 0
        %640 = vmatpush1.bf16.msra.mxu0 0
        %641 = vmatprep.subr.bf16.mxu0 0
        %642 = vmatpush1.bf16.msra.mxu0 0
        %643 = vmatprep.subr.bf16.mxu0 0
        %644 = vmatpush1.bf16.msra.mxu0 0
        %645 = vmatprep.mubr.bf16.mxu0 0
        %646 = vmatmul.mubr.bf16.gmra.mrb[0].mxu0 %v441
        %v647 = vpop.f32.mrb[0].mxu0
        %v648 = vadd.f32 0.0, %v647
        %v649 = vpop.f32.mrb[0].mxu0
        %v650 = vpop.f32.mrb[0].mxu0
        %v651 = vadd.f32 0.0, %v650
        %v652 = vpop.f32.mrb[0].mxu0
        %653 = vdwg.mxu0
        %656 = vrot.lane.b32.xlu0 %v605, 96
        %v657 = vpop.permute.xlu0 %656
        %658 = vrot.lane.b32.xlu0 %v609, 96
        %v659 = vpop.permute.xlu0 %658
        %662 = vrot.lane.b32.xlu0 %v605, 64
        %v663 = vpop.permute.xlu0 %662
        %664 = vrot.lane.b32.xlu0 %v609, 64
        %v665 = vpop.permute.xlu0 %664
        %668 = vrot.lane.b32.xlu0 %v605, 32
        %v669 = vpop.permute.xlu0 %668
        %670 = vrot.lane.b32.xlu0 %v609, 32
        %v671 = vpop.permute.xlu0 %670
        %v674 = vcombine.low %v605, %v663
        %v675 = vcombine.high %v605, %v663
        %v677 = vunpack.c.l.s4 1983009808
        %v678 = vunpack.c.0.s8 %v677
        %v679 = vlaneseq
        %v680 = vshrl.u32 %v679, 7
        %v681 = vsub.s32 %v678, %v680
        %v682 = vrot.slane %v674, %v681
        %v684 = vunpack.c.l.s4 1983009808
        %v685 = vunpack.c.0.s8 %v684
        %v686 = vlaneseq
        %v687 = vshrl.u32 %v686, 7
        %v688 = vsub.s32 %v685, %v687
        %v689 = vrot.slane %v675, %v688
        %v690 = vcombine.low %v657, %v669
        %v691 = vcombine.high %v657, %v669
        %v693 = vunpack.c.l.s4 1983009808
        %v694 = vunpack.c.0.s8 %v693
        %v695 = vlaneseq
        %v696 = vshrl.u32 %v695, 7
        %v697 = vsub.s32 %v694, %v696
        %v698 = vrot.slane %v690, %v697
        %v700 = vunpack.c.l.s4 1983009808
        %v701 = vunpack.c.0.s8 %v700
        %v702 = vlaneseq
        %v703 = vshrl.u32 %v702, 7
        %v704 = vsub.s32 %v701, %v703
        %v705 = vrot.slane %v691, %v704
        %v706 = vcombine.low %v682, %v698
        %v707 = vcombine.high %v682, %v698
        %v709 = vunpack.c.l.s4 1934713408
        %v710 = vunpack.c.0.s8 %v709
        %v711 = vlaneseq
        %v712 = vshrl.u32 %v711, 7
        %v713 = vsub.s32 %v710, %v712
        %v714 = vrot.slane %v706, %v713
        %v716 = vunpack.c.l.s4 1934713408
        %v717 = vunpack.c.0.s8 %v716
        %v718 = vlaneseq
        %v719 = vshrl.u32 %v718, 7
        %v720 = vsub.s32 %v717, %v719
        %v721 = vrot.slane %v707, %v720
        %v722 = vcombine.low %v689, %v705
        %v723 = vcombine.high %v689, %v705
        %v725 = vunpack.c.l.s4 1934713408
        %v726 = vunpack.c.0.s8 %v725
        %v727 = vlaneseq
        %v728 = vshrl.u32 %v727, 7
        %v729 = vsub.s32 %v726, %v728
        %v730 = vrot.slane %v722, %v729
        %v732 = vunpack.c.l.s4 1934713408
        %v733 = vunpack.c.0.s8 %v732
        %v734 = vlaneseq
        %v735 = vshrl.u32 %v734, 7
        %v736 = vsub.s32 %v733, %v735
        %v737 = vrot.slane %v723, %v736
        %v738 = vcombine.high %v714, 0.0
        %v739 = vcombine.high %v721, 0.0
        %v740 = vcombine.high %v730, 0.0
        %v741 = vcombine.high %v737, 0.0
        %v742 = vcombine.low %v609, %v665
        %v743 = vcombine.high %v609, %v665
        %v745 = vunpack.c.l.s4 1983009808
        %v746 = vunpack.c.0.s8 %v745
        %v747 = vlaneseq
        %v748 = vshrl.u32 %v747, 7
        %v749 = vsub.s32 %v746, %v748
        %v750 = vrot.slane %v742, %v749
        %v752 = vunpack.c.l.s4 1983009808
        %v753 = vunpack.c.0.s8 %v752
        %v754 = vlaneseq
        %v755 = vshrl.u32 %v754, 7
        %v756 = vsub.s32 %v753, %v755
        %v757 = vrot.slane %v743, %v756
        %v758 = vcombine.low %v659, %v671
        %v759 = vcombine.high %v659, %v671
        %v761 = vunpack.c.l.s4 1983009808
        %v762 = vunpack.c.0.s8 %v761
        %v763 = vlaneseq
        %v764 = vshrl.u32 %v763, 7
        %v765 = vsub.s32 %v762, %v764
        %v766 = vrot.slane %v758, %v765
        %v768 = vunpack.c.l.s4 1983009808
        %v769 = vunpack.c.0.s8 %v768
        %v770 = vlaneseq
        %v771 = vshrl.u32 %v770, 7
        %v772 = vsub.s32 %v769, %v771
        %v773 = vrot.slane %v759, %v772
        %v774 = vcombine.low %v750, %v766
        %v775 = vcombine.high %v750, %v766
        %v777 = vunpack.c.l.s4 1934713408
        %v778 = vunpack.c.0.s8 %v777
        %v779 = vlaneseq
        %v780 = vshrl.u32 %v779, 7
        %v781 = vsub.s32 %v778, %v780
        %v782 = vrot.slane %v774, %v781
        %v784 = vunpack.c.l.s4 1934713408
        %v785 = vunpack.c.0.s8 %v784
        %v786 = vlaneseq
        %v787 = vshrl.u32 %v786, 7
        %v788 = vsub.s32 %v785, %v787
        %v789 = vrot.slane %v775, %v788
        %v790 = vcombine.low %v757, %v773
        %v791 = vcombine.high %v757, %v773
        %v793 = vunpack.c.l.s4 1934713408
        %v794 = vunpack.c.0.s8 %v793
        %v795 = vlaneseq
        %v796 = vshrl.u32 %v795, 7
        %v797 = vsub.s32 %v794, %v796
        %v798 = vrot.slane %v790, %v797
        %v800 = vunpack.c.l.s4 1934713408
        %v801 = vunpack.c.0.s8 %v800
        %v802 = vlaneseq
        %v803 = vshrl.u32 %v802, 7
        %v804 = vsub.s32 %v801, %v803
        %v805 = vrot.slane %v791, %v804
        %v806 = vcombine.high %v782, 0.0
        %v807 = vcombine.high %v789, 0.0
        %v808 = vcombine.high %v798, 0.0
        %v809 = vcombine.high %v805, 0.0
        %v810 = vcombine.low %v714, %v721
        %v812 = vunpack.c.l.s4 1983009808
        %v813 = vunpack.c.0.s8 %v812
        %v814 = vlaneseq
        %v815 = vshrl.u32 %v814, 7
        %v816 = vsub.s32 %v813, %v815
        %v817 = vrot.slane %v810, %v816
        %v818 = vcombine.low %v738, %v739
        %v820 = vunpack.c.l.s4 1983009808
        %v821 = vunpack.c.0.s8 %v820
        %v822 = vlaneseq
        %v823 = vshrl.u32 %v822, 7
        %v824 = vsub.s32 %v821, %v823
        %v825 = vrot.slane %v818, %v824
        %v826 = vcombine.low %v730, %v737
        %v828 = vunpack.c.l.s4 1983009808
        %v829 = vunpack.c.0.s8 %v828
        %v830 = vlaneseq
        %v831 = vshrl.u32 %v830, 7
        %v832 = vsub.s32 %v829, %v831
        %v833 = vrot.slane %v826, %v832
        %v834 = vcombine.low %v740, %v741
        %v836 = vunpack.c.l.s4 1983009808
        %v837 = vunpack.c.0.s8 %v836
        %v838 = vlaneseq
        %v839 = vshrl.u32 %v838, 7
        %v840 = vsub.s32 %v837, %v839
        %v841 = vrot.slane %v834, %v840
        %v842 = vcombine.low %v817, %v825
        %v843 = vcombine.high %v817, %v825
        %v845 = vunpack.c.l.s4 1934713408
        %v846 = vunpack.c.0.s8 %v845
        %v847 = vlaneseq
        %v848 = vshrl.u32 %v847, 7
        %v849 = vsub.s32 %v846, %v848
        %v850 = vrot.slane %v842, %v849
        %v852 = vunpack.c.l.s4 1934713408
        %v853 = vunpack.c.0.s8 %v852
        %v854 = vlaneseq
        %v855 = vshrl.u32 %v854, 7
        %v856 = vsub.s32 %v853, %v855
        %v857 = vrot.slane %v843, %v856
        %v858 = vcombine.low %v833, %v841
        %v859 = vcombine.high %v833, %v841
        %v861 = vunpack.c.l.s4 1934713408
        %v862 = vunpack.c.0.s8 %v861
        %v863 = vlaneseq
        %v864 = vshrl.u32 %v863, 7
        %v865 = vsub.s32 %v862, %v864
        %v866 = vrot.slane %v858, %v865
        %v868 = vunpack.c.l.s4 1934713408
        %v869 = vunpack.c.0.s8 %v868
        %v870 = vlaneseq
        %v871 = vshrl.u32 %v870, 7
        %v872 = vsub.s32 %v869, %v871
        %v873 = vrot.slane %v859, %v872
        %v874 = vcombine.low %v850, %v866
        %v875 = vcombine.high %v850, %v866
        %v876 = vcombine.low %v857, %v873
        %v877 = vcombine.high %v857, %v873
        %v878 = vcombine.low %v782, %v789
        %v880 = vunpack.c.l.s4 1983009808
        %v881 = vunpack.c.0.s8 %v880
        %v882 = vlaneseq
        %v883 = vshrl.u32 %v882, 7
        %v884 = vsub.s32 %v881, %v883
        %v885 = vrot.slane %v878, %v884
        %v886 = vcombine.low %v806, %v807
        %v888 = vunpack.c.l.s4 1983009808
        %v889 = vunpack.c.0.s8 %v888
        %v890 = vlaneseq
        %v891 = vshrl.u32 %v890, 7
        %v892 = vsub.s32 %v889, %v891
        %v893 = vrot.slane %v886, %v892
        %v894 = vcombine.low %v798, %v805
        %v896 = vunpack.c.l.s4 1983009808
        %v897 = vunpack.c.0.s8 %v896
        %v898 = vlaneseq
        %v899 = vshrl.u32 %v898, 7
        %v900 = vsub.s32 %v897, %v899
        %v901 = vrot.slane %v894, %v900
        %v902 = vcombine.low %v808, %v809
        %v904 = vunpack.c.l.s4 1983009808
        %v905 = vunpack.c.0.s8 %v904
        %v906 = vlaneseq
        %v907 = vshrl.u32 %v906, 7
        %v908 = vsub.s32 %v905, %v907
        %v909 = vrot.slane %v902, %v908
        %v910 = vcombine.low %v885, %v893
        %v911 = vcombine.high %v885, %v893
        %v913 = vunpack.c.l.s4 1934713408
        %v914 = vunpack.c.0.s8 %v913
        %v915 = vlaneseq
        %v916 = vshrl.u32 %v915, 7
        %v917 = vsub.s32 %v914, %v916
        %v918 = vrot.slane %v910, %v917
        %v920 = vunpack.c.l.s4 1934713408
        %v921 = vunpack.c.0.s8 %v920
        %v922 = vlaneseq
        %v923 = vshrl.u32 %v922, 7
        %v924 = vsub.s32 %v921, %v923
        %v925 = vrot.slane %v911, %v924
        %v926 = vcombine.low %v901, %v909
        %v927 = vcombine.high %v901, %v909
        %v929 = vunpack.c.l.s4 1934713408
        %v930 = vunpack.c.0.s8 %v929
        %v931 = vlaneseq
        %v932 = vshrl.u32 %v931, 7
        %v933 = vsub.s32 %v930, %v932
        %v934 = vrot.slane %v926, %v933
        %v936 = vunpack.c.l.s4 1934713408
        %v937 = vunpack.c.0.s8 %v936
        %v938 = vlaneseq
        %v939 = vshrl.u32 %v938, 7
        %v940 = vsub.s32 %v937, %v939
        %v941 = vrot.slane %v927, %v940
        %v942 = vcombine.low %v918, %v934
        %v943 = vcombine.high %v918, %v934
        %v944 = vcombine.low %v925, %v941
        %v945 = vcombine.high %v925, %v941
        %v946 = vpack.c.bf16 %v942, %v874
        %v947 = vpack.c.bf16 %v943, %v875
        %v948 = vpack.c.bf16 %v944, %v876
        %v949 = vpack.c.bf16 %v945, %v877
        %952 = vrot.lane.b32.xlu0 %v607, 96
        %v953 = vpop.permute.xlu0 %952
        %954 = vrot.lane.b32.xlu0 %v611, 96
        %v955 = vpop.permute.xlu0 %954
        %958 = vrot.lane.b32.xlu0 %v607, 64
        %v959 = vpop.permute.xlu0 %958
        %960 = vrot.lane.b32.xlu0 %v611, 64
        %v961 = vpop.permute.xlu0 %960
        %964 = vrot.lane.b32.xlu0 %v607, 32
        %v965 = vpop.permute.xlu0 %964
        %966 = vrot.lane.b32.xlu0 %v611, 32
        %v967 = vpop.permute.xlu0 %966
        %v970 = vcombine.low %v607, %v959
        %v971 = vcombine.high %v607, %v959
        %v973 = vunpack.c.l.s4 1983009808
        %v974 = vunpack.c.0.s8 %v973
        %v975 = vlaneseq
        %v976 = vshrl.u32 %v975, 7
        %v977 = vsub.s32 %v974, %v976
        %v978 = vrot.slane %v970, %v977
        %v980 = vunpack.c.l.s4 1983009808
        %v981 = vunpack.c.0.s8 %v980
        %v982 = vlaneseq
        %v983 = vshrl.u32 %v982, 7
        %v984 = vsub.s32 %v981, %v983
        %v985 = vrot.slane %v971, %v984
        %v986 = vcombine.low %v953, %v965
        %v987 = vcombine.high %v953, %v965
        %v989 = vunpack.c.l.s4 1983009808
        %v990 = vunpack.c.0.s8 %v989
        %v991 = vlaneseq
        %v992 = vshrl.u32 %v991, 7
        %v993 = vsub.s32 %v990, %v992
        %v994 = vrot.slane %v986, %v993
        %v996 = vunpack.c.l.s4 1983009808
        %v997 = vunpack.c.0.s8 %v996
        %v998 = vlaneseq
        %v999 = vshrl.u32 %v998, 7
        %v1000 = vsub.s32 %v997, %v999
        %v1001 = vrot.slane %v987, %v1000
        %v1002 = vcombine.low %v978, %v994
        %v1003 = vcombine.high %v978, %v994
        %v1005 = vunpack.c.l.s4 1934713408
        %v1006 = vunpack.c.0.s8 %v1005
        %v1007 = vlaneseq
        %v1008 = vshrl.u32 %v1007, 7
        %v1009 = vsub.s32 %v1006, %v1008
        %v1010 = vrot.slane %v1002, %v1009
        %v1012 = vunpack.c.l.s4 1934713408
        %v1013 = vunpack.c.0.s8 %v1012
        %v1014 = vlaneseq
        %v1015 = vshrl.u32 %v1014, 7
        %v1016 = vsub.s32 %v1013, %v1015
        %v1017 = vrot.slane %v1003, %v1016
        %v1018 = vcombine.low %v985, %v1001
        %v1019 = vcombine.high %v985, %v1001
        %v1021 = vunpack.c.l.s4 1934713408
        %v1022 = vunpack.c.0.s8 %v1021
        %v1023 = vlaneseq
        %v1024 = vshrl.u32 %v1023, 7
        %v1025 = vsub.s32 %v1022, %v1024
        %v1026 = vrot.slane %v1018, %v1025
        %v1028 = vunpack.c.l.s4 1934713408
        %v1029 = vunpack.c.0.s8 %v1028
        %v1030 = vlaneseq
        %v1031 = vshrl.u32 %v1030, 7
        %v1032 = vsub.s32 %v1029, %v1031
        %v1033 = vrot.slane %v1019, %v1032
        %v1034 = vcombine.high %v1010, 0.0
        %v1035 = vcombine.high %v1017, 0.0
        %v1036 = vcombine.high %v1026, 0.0
        %v1037 = vcombine.high %v1033, 0.0
        %v1038 = vcombine.low %v611, %v961
        %v1039 = vcombine.high %v611, %v961
        %v1041 = vunpack.c.l.s4 1983009808
        %v1042 = vunpack.c.0.s8 %v1041
        %v1043 = vlaneseq
        %v1044 = vshrl.u32 %v1043, 7
        %v1045 = vsub.s32 %v1042, %v1044
        %v1046 = vrot.slane %v1038, %v1045
        %v1048 = vunpack.c.l.s4 1983009808
        %v1049 = vunpack.c.0.s8 %v1048
        %v1050 = vlaneseq
        %v1051 = vshrl.u32 %v1050, 7
        %v1052 = vsub.s32 %v1049, %v1051
        %v1053 = vrot.slane %v1039, %v1052
        %v1054 = vcombine.low %v955, %v967
        %v1055 = vcombine.high %v955, %v967
        %v1057 = vunpack.c.l.s4 1983009808
        %v1058 = vunpack.c.0.s8 %v1057
        %v1059 = vlaneseq
        %v1060 = vshrl.u32 %v1059, 7
        %v1061 = vsub.s32 %v1058, %v1060
        %v1062 = vrot.slane %v1054, %v1061
        %v1064 = vunpack.c.l.s4 1983009808
        %v1065 = vunpack.c.0.s8 %v1064
        %v1066 = vlaneseq
        %v1067 = vshrl.u32 %v1066, 7
        %v1068 = vsub.s32 %v1065, %v1067
        %v1069 = vrot.slane %v1055, %v1068
        %v1070 = vcombine.low %v1046, %v1062
        %v1071 = vcombine.high %v1046, %v1062
        %v1073 = vunpack.c.l.s4 1934713408
        %v1074 = vunpack.c.0.s8 %v1073
        %v1075 = vlaneseq
        %v1076 = vshrl.u32 %v1075, 7
        %v1077 = vsub.s32 %v1074, %v1076
        %v1078 = vrot.slane %v1070, %v1077
        %v1080 = vunpack.c.l.s4 1934713408
        %v1081 = vunpack.c.0.s8 %v1080
        %v1082 = vlaneseq
        %v1083 = vshrl.u32 %v1082, 7
        %v1084 = vsub.s32 %v1081, %v1083
        %v1085 = vrot.slane %v1071, %v1084
        %v1086 = vcombine.low %v1053, %v1069
        %v1087 = vcombine.high %v1053, %v1069
        %v1089 = vunpack.c.l.s4 1934713408
        %v1090 = vunpack.c.0.s8 %v1089
        %v1091 = vlaneseq
        %v1092 = vshrl.u32 %v1091, 7
        %v1093 = vsub.s32 %v1090, %v1092
        %v1094 = vrot.slane %v1086, %v1093
        %v1096 = vunpack.c.l.s4 1934713408
        %v1097 = vunpack.c.0.s8 %v1096
        %v1098 = vlaneseq
        %v1099 = vshrl.u32 %v1098, 7
        %v1100 = vsub.s32 %v1097, %v1099
        %v1101 = vrot.slane %v1087, %v1100
        %v1102 = vcombine.high %v1078, 0.0
        %v1103 = vcombine.high %v1085, 0.0
        %v1104 = vcombine.high %v1094, 0.0
        %v1105 = vcombine.high %v1101, 0.0
        %v1106 = vcombine.low %v1010, %v1017
        %v1108 = vunpack.c.l.s4 1983009808
        %v1109 = vunpack.c.0.s8 %v1108
        %v1110 = vlaneseq
        %v1111 = vshrl.u32 %v1110, 7
        %v1112 = vsub.s32 %v1109, %v1111
        %v1113 = vrot.slane %v1106, %v1112
        %v1114 = vcombine.low %v1034, %v1035
        %v1116 = vunpack.c.l.s4 1983009808
        %v1117 = vunpack.c.0.s8 %v1116
        %v1118 = vlaneseq
        %v1119 = vshrl.u32 %v1118, 7
        %v1120 = vsub.s32 %v1117, %v1119
        %v1121 = vrot.slane %v1114, %v1120
        %v1122 = vcombine.low %v1026, %v1033
        %v1124 = vunpack.c.l.s4 1983009808
        %v1125 = vunpack.c.0.s8 %v1124
        %v1126 = vlaneseq
        %v1127 = vshrl.u32 %v1126, 7
        %v1128 = vsub.s32 %v1125, %v1127
        %v1129 = vrot.slane %v1122, %v1128
        %v1130 = vcombine.low %v1036, %v1037
        %v1132 = vunpack.c.l.s4 1983009808
        %v1133 = vunpack.c.0.s8 %v1132
        %v1134 = vlaneseq
        %v1135 = vshrl.u32 %v1134, 7
        %v1136 = vsub.s32 %v1133, %v1135
        %v1137 = vrot.slane %v1130, %v1136
        %v1138 = vcombine.low %v1113, %v1121
        %v1139 = vcombine.high %v1113, %v1121
        %v1141 = vunpack.c.l.s4 1934713408
        %v1142 = vunpack.c.0.s8 %v1141
        %v1143 = vlaneseq
        %v1144 = vshrl.u32 %v1143, 7
        %v1145 = vsub.s32 %v1142, %v1144
        %v1146 = vrot.slane %v1138, %v1145
        %v1148 = vunpack.c.l.s4 1934713408
        %v1149 = vunpack.c.0.s8 %v1148
        %v1150 = vlaneseq
        %v1151 = vshrl.u32 %v1150, 7
        %v1152 = vsub.s32 %v1149, %v1151
        %v1153 = vrot.slane %v1139, %v1152
        %v1154 = vcombine.low %v1129, %v1137
        %v1155 = vcombine.high %v1129, %v1137
        %v1157 = vunpack.c.l.s4 1934713408
        %v1158 = vunpack.c.0.s8 %v1157
        %v1159 = vlaneseq
        %v1160 = vshrl.u32 %v1159, 7
        %v1161 = vsub.s32 %v1158, %v1160
        %v1162 = vrot.slane %v1154, %v1161
        %v1164 = vunpack.c.l.s4 1934713408
        %v1165 = vunpack.c.0.s8 %v1164
        %v1166 = vlaneseq
        %v1167 = vshrl.u32 %v1166, 7
        %v1168 = vsub.s32 %v1165, %v1167
        %v1169 = vrot.slane %v1155, %v1168
        %v1170 = vcombine.low %v1146, %v1162
        %v1171 = vcombine.high %v1146, %v1162
        %v1172 = vcombine.low %v1153, %v1169
        %v1173 = vcombine.high %v1153, %v1169
        %v1174 = vcombine.low %v1078, %v1085
        %v1176 = vunpack.c.l.s4 1983009808
        %v1177 = vunpack.c.0.s8 %v1176
        %v1178 = vlaneseq
        %v1179 = vshrl.u32 %v1178, 7
        %v1180 = vsub.s32 %v1177, %v1179
        %v1181 = vrot.slane %v1174, %v1180
        %v1182 = vcombine.low %v1102, %v1103
        %v1184 = vunpack.c.l.s4 1983009808
        %v1185 = vunpack.c.0.s8 %v1184
        %v1186 = vlaneseq
        %v1187 = vshrl.u32 %v1186, 7
        %v1188 = vsub.s32 %v1185, %v1187
        %v1189 = vrot.slane %v1182, %v1188
        %v1190 = vcombine.low %v1094, %v1101
        %v1192 = vunpack.c.l.s4 1983009808
        %v1193 = vunpack.c.0.s8 %v1192
        %v1194 = vlaneseq
        %v1195 = vshrl.u32 %v1194, 7
        %v1196 = vsub.s32 %v1193, %v1195
        %v1197 = vrot.slane %v1190, %v1196
        %v1198 = vcombine.low %v1104, %v1105
        %v1200 = vunpack.c.l.s4 1983009808
        %v1201 = vunpack.c.0.s8 %v1200
        %v1202 = vlaneseq
        %v1203 = vshrl.u32 %v1202, 7
        %v1204 = vsub.s32 %v1201, %v1203
        %v1205 = vrot.slane %v1198, %v1204
        %v1206 = vcombine.low %v1181, %v1189
        %v1207 = vcombine.high %v1181, %v1189
        %v1209 = vunpack.c.l.s4 1934713408
        %v1210 = vunpack.c.0.s8 %v1209
        %v1211 = vlaneseq
        %v1212 = vshrl.u32 %v1211, 7
        %v1213 = vsub.s32 %v1210, %v1212
        %v1214 = vrot.slane %v1206, %v1213
        %v1216 = vunpack.c.l.s4 1934713408
        %v1217 = vunpack.c.0.s8 %v1216
        %v1218 = vlaneseq
        %v1219 = vshrl.u32 %v1218, 7
        %v1220 = vsub.s32 %v1217, %v1219
        %v1221 = vrot.slane %v1207, %v1220
        %v1222 = vcombine.low %v1197, %v1205
        %v1223 = vcombine.high %v1197, %v1205
        %v1225 = vunpack.c.l.s4 1934713408
        %v1226 = vunpack.c.0.s8 %v1225
        %v1227 = vlaneseq
        %v1228 = vshrl.u32 %v1227, 7
        %v1229 = vsub.s32 %v1226, %v1228
        %v1230 = vrot.slane %v1222, %v1229
        %v1232 = vunpack.c.l.s4 1934713408
        %v1233 = vunpack.c.0.s8 %v1232
        %v1234 = vlaneseq
        %v1235 = vshrl.u32 %v1234, 7
        %v1236 = vsub.s32 %v1233, %v1235
        %v1237 = vrot.slane %v1223, %v1236
        %v1238 = vcombine.low %v1214, %v1230
        %v1239 = vcombine.high %v1214, %v1230
        %v1240 = vcombine.low %v1221, %v1237
        %v1241 = vcombine.high %v1221, %v1237
        %v1242 = vpack.c.bf16 %v1238, %v1170
        %v1243 = vpack.c.bf16 %v1239, %v1171
        %v1244 = vpack.c.bf16 %v1240, %v1172
        %v1245 = vpack.c.bf16 %v1241, %v1173
        %1248 = vrot.lane.b32.xlu0 %v648, 96
        %v1249 = vpop.permute.xlu0 %1248
        %1250 = vrot.lane.b32.xlu0 %v651, 96
        %v1251 = vpop.permute.xlu0 %1250
        %1254 = vrot.lane.b32.xlu0 %v648, 64
        %v1255 = vpop.permute.xlu0 %1254
        %1256 = vrot.lane.b32.xlu0 %v651, 64
        %v1257 = vpop.permute.xlu0 %1256
        %1260 = vrot.lane.b32.xlu0 %v648, 32
        %v1261 = vpop.permute.xlu0 %1260
        %1262 = vrot.lane.b32.xlu0 %v651, 32
        %v1263 = vpop.permute.xlu0 %1262
        %v1266 = vcombine.low %v648, %v1255
        %v1267 = vcombine.high %v648, %v1255
        %v1269 = vunpack.c.l.s4 1983009808
        %v1270 = vunpack.c.0.s8 %v1269
        %v1271 = vlaneseq
        %v1272 = vshrl.u32 %v1271, 7
        %v1273 = vsub.s32 %v1270, %v1272
        %v1274 = vrot.slane %v1266, %v1273
        %v1276 = vunpack.c.l.s4 1983009808
        %v1277 = vunpack.c.0.s8 %v1276
        %v1278 = vlaneseq
        %v1279 = vshrl.u32 %v1278, 7
        %v1280 = vsub.s32 %v1277, %v1279
        %v1281 = vrot.slane %v1267, %v1280
        %v1282 = vcombine.low %v1249, %v1261
        %v1283 = vcombine.high %v1249, %v1261
        %v1285 = vunpack.c.l.s4 1983009808
        %v1286 = vunpack.c.0.s8 %v1285
        %v1287 = vlaneseq
        %v1288 = vshrl.u32 %v1287, 7
        %v1289 = vsub.s32 %v1286, %v1288
        %v1290 = vrot.slane %v1282, %v1289
        %v1292 = vunpack.c.l.s4 1983009808
        %v1293 = vunpack.c.0.s8 %v1292
        %v1294 = vlaneseq
        %v1295 = vshrl.u32 %v1294, 7
        %v1296 = vsub.s32 %v1293, %v1295
        %v1297 = vrot.slane %v1283, %v1296
        %v1298 = vcombine.low %v1274, %v1290
        %v1299 = vcombine.high %v1274, %v1290
        %v1301 = vunpack.c.l.s4 1934713408
        %v1302 = vunpack.c.0.s8 %v1301
        %v1303 = vlaneseq
        %v1304 = vshrl.u32 %v1303, 7
        %v1305 = vsub.s32 %v1302, %v1304
        %v1306 = vrot.slane %v1298, %v1305
        %v1308 = vunpack.c.l.s4 1934713408
        %v1309 = vunpack.c.0.s8 %v1308
        %v1310 = vlaneseq
        %v1311 = vshrl.u32 %v1310, 7
        %v1312 = vsub.s32 %v1309, %v1311
        %v1313 = vrot.slane %v1299, %v1312
        %v1314 = vcombine.low %v1281, %v1297
        %v1315 = vcombine.high %v1281, %v1297
        %v1317 = vunpack.c.l.s4 1934713408
        %v1318 = vunpack.c.0.s8 %v1317
        %v1319 = vlaneseq
        %v1320 = vshrl.u32 %v1319, 7
        %v1321 = vsub.s32 %v1318, %v1320
        %v1322 = vrot.slane %v1314, %v1321
        %v1324 = vunpack.c.l.s4 1934713408
        %v1325 = vunpack.c.0.s8 %v1324
        %v1326 = vlaneseq
        %v1327 = vshrl.u32 %v1326, 7
        %v1328 = vsub.s32 %v1325, %v1327
        %v1329 = vrot.slane %v1315, %v1328
        %v1330 = vcombine.high %v1306, 0.0
        %v1331 = vcombine.high %v1313, 0.0
        %v1332 = vcombine.high %v1322, 0.0
        %v1333 = vcombine.high %v1329, 0.0
        %v1334 = vcombine.low %v651, %v1257
        %v1335 = vcombine.high %v651, %v1257
        %v1337 = vunpack.c.l.s4 1983009808
        %v1338 = vunpack.c.0.s8 %v1337
        %v1339 = vlaneseq
        %v1340 = vshrl.u32 %v1339, 7
        %v1341 = vsub.s32 %v1338, %v1340
        %v1342 = vrot.slane %v1334, %v1341
        %v1344 = vunpack.c.l.s4 1983009808
        %v1345 = vunpack.c.0.s8 %v1344
        %v1346 = vlaneseq
        %v1347 = vshrl.u32 %v1346, 7
        %v1348 = vsub.s32 %v1345, %v1347
        %v1349 = vrot.slane %v1335, %v1348
        %v1350 = vcombine.low %v1251, %v1263
        %v1351 = vcombine.high %v1251, %v1263
        %v1353 = vunpack.c.l.s4 1983009808
        %v1354 = vunpack.c.0.s8 %v1353
        %v1355 = vlaneseq
        %v1356 = vshrl.u32 %v1355, 7
        %v1357 = vsub.s32 %v1354, %v1356
        %v1358 = vrot.slane %v1350, %v1357
        %v1360 = vunpack.c.l.s4 1983009808
        %v1361 = vunpack.c.0.s8 %v1360
        %v1362 = vlaneseq
        %v1363 = vshrl.u32 %v1362, 7
        %v1364 = vsub.s32 %v1361, %v1363
        %v1365 = vrot.slane %v1351, %v1364
        %v1366 = vcombine.low %v1342, %v1358
        %v1367 = vcombine.high %v1342, %v1358
        %v1369 = vunpack.c.l.s4 1934713408
        %v1370 = vunpack.c.0.s8 %v1369
        %v1371 = vlaneseq
        %v1372 = vshrl.u32 %v1371, 7
        %v1373 = vsub.s32 %v1370, %v1372
        %v1374 = vrot.slane %v1366, %v1373
        %v1376 = vunpack.c.l.s4 1934713408
        %v1377 = vunpack.c.0.s8 %v1376
        %v1378 = vlaneseq
        %v1379 = vshrl.u32 %v1378, 7
        %v1380 = vsub.s32 %v1377, %v1379
        %v1381 = vrot.slane %v1367, %v1380
        %v1382 = vcombine.low %v1349, %v1365
        %v1383 = vcombine.high %v1349, %v1365
        %v1385 = vunpack.c.l.s4 1934713408
        %v1386 = vunpack.c.0.s8 %v1385
        %v1387 = vlaneseq
        %v1388 = vshrl.u32 %v1387, 7
        %v1389 = vsub.s32 %v1386, %v1388
        %v1390 = vrot.slane %v1382, %v1389
        %v1392 = vunpack.c.l.s4 1934713408
        %v1393 = vunpack.c.0.s8 %v1392
        %v1394 = vlaneseq
        %v1395 = vshrl.u32 %v1394, 7
        %v1396 = vsub.s32 %v1393, %v1395
        %v1397 = vrot.slane %v1383, %v1396
        %v1398 = vcombine.high %v1374, 0.0
        %v1399 = vcombine.high %v1381, 0.0
        %v1400 = vcombine.high %v1390, 0.0
        %v1401 = vcombine.high %v1397, 0.0
        %v1402 = vcombine.low %v1306, %v1313
        %v1404 = vunpack.c.l.s4 1983009808
        %v1405 = vunpack.c.0.s8 %v1404
        %v1406 = vlaneseq
        %v1407 = vshrl.u32 %v1406, 7
        %v1408 = vsub.s32 %v1405, %v1407
        %v1409 = vrot.slane %v1402, %v1408
        %v1410 = vcombine.low %v1330, %v1331
        %v1412 = vunpack.c.l.s4 1983009808
        %v1413 = vunpack.c.0.s8 %v1412
        %v1414 = vlaneseq
        %v1415 = vshrl.u32 %v1414, 7
        %v1416 = vsub.s32 %v1413, %v1415
        %v1417 = vrot.slane %v1410, %v1416
        %v1418 = vcombine.low %v1322, %v1329
        %v1420 = vunpack.c.l.s4 1983009808
        %v1421 = vunpack.c.0.s8 %v1420
        %v1422 = vlaneseq
        %v1423 = vshrl.u32 %v1422, 7
        %v1424 = vsub.s32 %v1421, %v1423
        %v1425 = vrot.slane %v1418, %v1424
        %v1426 = vcombine.low %v1332, %v1333
        %v1428 = vunpack.c.l.s4 1983009808
        %v1429 = vunpack.c.0.s8 %v1428
        %v1430 = vlaneseq
        %v1431 = vshrl.u32 %v1430, 7
        %v1432 = vsub.s32 %v1429, %v1431
        %v1433 = vrot.slane %v1426, %v1432
        %v1434 = vcombine.low %v1409, %v1417
        %v1435 = vcombine.high %v1409, %v1417
        %v1437 = vunpack.c.l.s4 1934713408
        %v1438 = vunpack.c.0.s8 %v1437
        %v1439 = vlaneseq
        %v1440 = vshrl.u32 %v1439, 7
        %v1441 = vsub.s32 %v1438, %v1440
        %v1442 = vrot.slane %v1434, %v1441
        %v1444 = vunpack.c.l.s4 1934713408
        %v1445 = vunpack.c.0.s8 %v1444
        %v1446 = vlaneseq
        %v1447 = vshrl.u32 %v1446, 7
        %v1448 = vsub.s32 %v1445, %v1447
        %v1449 = vrot.slane %v1435, %v1448
        %v1450 = vcombine.low %v1425, %v1433
        %v1451 = vcombine.high %v1425, %v1433
        %v1453 = vunpack.c.l.s4 1934713408
        %v1454 = vunpack.c.0.s8 %v1453
        %v1455 = vlaneseq
        %v1456 = vshrl.u32 %v1455, 7
        %v1457 = vsub.s32 %v1454, %v1456
        %v1458 = vrot.slane %v1450, %v1457
        %v1460 = vunpack.c.l.s4 1934713408
        %v1461 = vunpack.c.0.s8 %v1460
        %v1462 = vlaneseq
        %v1463 = vshrl.u32 %v1462, 7
        %v1464 = vsub.s32 %v1461, %v1463
        %v1465 = vrot.slane %v1451, %v1464
        %v1466 = vcombine.low %v1442, %v1458
        %v1467 = vcombine.high %v1442, %v1458
        %v1468 = vcombine.low %v1449, %v1465
        %v1469 = vcombine.high %v1449, %v1465
        %v1470 = vcombine.low %v1374, %v1381
        %v1472 = vunpack.c.l.s4 1983009808
        %v1473 = vunpack.c.0.s8 %v1472
        %v1474 = vlaneseq
        %v1475 = vshrl.u32 %v1474, 7
        %v1476 = vsub.s32 %v1473, %v1475
        %v1477 = vrot.slane %v1470, %v1476
        %v1478 = vcombine.low %v1398, %v1399
        %v1480 = vunpack.c.l.s4 1983009808
        %v1481 = vunpack.c.0.s8 %v1480
        %v1482 = vlaneseq
        %v1483 = vshrl.u32 %v1482, 7
        %v1484 = vsub.s32 %v1481, %v1483
        %v1485 = vrot.slane %v1478, %v1484
        %v1486 = vcombine.low %v1390, %v1397
        %v1488 = vunpack.c.l.s4 1983009808
        %v1489 = vunpack.c.0.s8 %v1488
        %v1490 = vlaneseq
        %v1491 = vshrl.u32 %v1490, 7
        %v1492 = vsub.s32 %v1489, %v1491
        %v1493 = vrot.slane %v1486, %v1492
        %v1494 = vcombine.low %v1400, %v1401
        %v1496 = vunpack.c.l.s4 1983009808
        %v1497 = vunpack.c.0.s8 %v1496
        %v1498 = vlaneseq
        %v1499 = vshrl.u32 %v1498, 7
        %v1500 = vsub.s32 %v1497, %v1499
        %v1501 = vrot.slane %v1494, %v1500
        %v1502 = vcombine.low %v1477, %v1485
        %v1503 = vcombine.high %v1477, %v1485
        %v1505 = vunpack.c.l.s4 1934713408
        %v1506 = vunpack.c.0.s8 %v1505
        %v1507 = vlaneseq
        %v1508 = vshrl.u32 %v1507, 7
        %v1509 = vsub.s32 %v1506, %v1508
        %v1510 = vrot.slane %v1502, %v1509
        %v1512 = vunpack.c.l.s4 1934713408
        %v1513 = vunpack.c.0.s8 %v1512
        %v1514 = vlaneseq
        %v1515 = vshrl.u32 %v1514, 7
        %v1516 = vsub.s32 %v1513, %v1515
        %v1517 = vrot.slane %v1503, %v1516
        %v1518 = vcombine.low %v1493, %v1501
        %v1519 = vcombine.high %v1493, %v1501
        %v1521 = vunpack.c.l.s4 1934713408
        %v1522 = vunpack.c.0.s8 %v1521
        %v1523 = vlaneseq
        %v1524 = vshrl.u32 %v1523, 7
        %v1525 = vsub.s32 %v1522, %v1524
        %v1526 = vrot.slane %v1518, %v1525
        %v1528 = vunpack.c.l.s4 1934713408
        %v1529 = vunpack.c.0.s8 %v1528
        %v1530 = vlaneseq
        %v1531 = vshrl.u32 %v1530, 7
        %v1532 = vsub.s32 %v1529, %v1531
        %v1533 = vrot.slane %v1519, %v1532
        %v1534 = vcombine.low %v1510, %v1526
        %v1535 = vcombine.high %v1510, %v1526
        %v1536 = vcombine.low %v1517, %v1533
        %v1537 = vcombine.high %v1517, %v1533
        %v1538 = vpack.c.bf16 %v1534, %v1466
        %v1539 = vpack.c.bf16 %v1535, %v1467
        %v1540 = vpack.c.bf16 %v1536, %v1468
        %v1541 = vpack.c.bf16 %v1537, %v1469
        %vm1542 = vcmask 261120
        %v1544 = vsel %vm1542, %v946, 0
        %v1547 = vsel %vm1542, %v1242, 0
        %1549 = vmatprep.subr.bf16.mxu0 0
        %1550 = vmatpush1.bf16.xpose.msra.mxu0 %v1547
        %1551 = vmatprep.subr.bf16.mxu0 0
        %1552 = vmatpush1.bf16.xpose.msra.mxu0 0
        %1553 = vmatprep.subr.bf16.mxu0 0
        %1554 = vmatpush1.bf16.xpose.msra.mxu0 0
        %1555 = vmatprep.subr.bf16.mxu0 0
        %1556 = vmatpush1.bf16.xpose.msra.mxu0 0
        %1557 = vmatprep.subr.bf16.mxu0 0
        %1558 = vmatpush1.bf16.xpose.msra.mxu0 0
        %1559 = vmatprep.subr.bf16.mxu0 0
        %1560 = vmatpush1.bf16.xpose.msra.mxu0 0
        %1561 = vmatprep.subr.bf16.mxu0 0
        %1562 = vmatpush1.bf16.xpose.msra.mxu0 0
        %1563 = vmatprep.subr.bf16.mxu0 0
        %1564 = vmatpush1.bf16.xpose.msra.mxu0 0
        %1565 = vmatprep.subr.bf16.mxu0 0
        %1566 = vmatpush1.bf16.xpose.msra.mxu0 0
        %1567 = vmatprep.subr.bf16.mxu0 0
        %1568 = vmatpush1.bf16.xpose.msra.mxu0 0
        %1569 = vmatprep.subr.bf16.mxu0 0
        %1570 = vmatpush1.bf16.xpose.msra.mxu0 0
        %1571 = vmatprep.subr.bf16.mxu0 0
        %1572 = vmatpush1.bf16.xpose.msra.mxu0 0
        %1573 = vmatprep.subr.bf16.mxu0 0
        %1574 = vmatpush1.bf16.xpose.msra.mxu0 0
        %1575 = vmatprep.subr.bf16.mxu0 0
        %1576 = vmatpush1.bf16.xpose.msra.mxu0 0
        %1577 = vmatprep.subr.bf16.mxu0 0
        %1578 = vmatpush1.bf16.xpose.msra.mxu0 0
        %1579 = vmatprep.subr.bf16.mxu0 0
        %1580 = vmatpush1.bf16.xpose.msra.mxu0 0
        %1581 = vmatprep.mubr.bf16.mxu0 0
        %1582 = vmatmul.mubr.bf16.gmra.mrb[0].mxu0 %v1544
        %v1583 = vpop.f32.mrb[0].mxu0
        %v1584 = vadd.f32 %v361, %v1583
        %v1585 = vpop.f32.mrb[0].mxu0
        %v1586 = vpop.f32.mrb[0].mxu0
        %v1587 = vadd.f32 %v362, %v1586
        %v1588 = vpop.f32.mrb[0].mxu0
        %1589 = vdwg.mxu0
        %v1591 = vsel %vm1542, %v947, 0
        %v1594 = vsel %vm1542, %v1243, 0
        %1596 = vmatprep.subr.bf16.mxu0 0
        %1597 = vmatpush1.bf16.xpose.msra.mxu0 %v1594
        %1598 = vmatprep.subr.bf16.mxu0 0
        %1599 = vmatpush1.bf16.xpose.msra.mxu0 0
        %1600 = vmatprep.subr.bf16.mxu0 0
        %1601 = vmatpush1.bf16.xpose.msra.mxu0 0
        %1602 = vmatprep.subr.bf16.mxu0 0
        %1603 = vmatpush1.bf16.xpose.msra.mxu0 0
        %1604 = vmatprep.subr.bf16.mxu0 0
        %1605 = vmatpush1.bf16.xpose.msra.mxu0 0
        %1606 = vmatprep.subr.bf16.mxu0 0
        %1607 = vmatpush1.bf16.xpose.msra.mxu0 0
        %1608 = vmatprep.subr.bf16.mxu0 0
        %1609 = vmatpush1.bf16.xpose.msra.mxu0 0
        %1610 = vmatprep.subr.bf16.mxu0 0
        %1611 = vmatpush1.bf16.xpose.msra.mxu0 0
        %1612 = vmatprep.subr.bf16.mxu0 0
        %1613 = vmatpush1.bf16.xpose.msra.mxu0 0
        %1614 = vmatprep.subr.bf16.mxu0 0
        %1615 = vmatpush1.bf16.xpose.msra.mxu0 0
        %1616 = vmatprep.subr.bf16.mxu0 0
        %1617 = vmatpush1.bf16.xpose.msra.mxu0 0
        %1618 = vmatprep.subr.bf16.mxu0 0
        %1619 = vmatpush1.bf16.xpose.msra.mxu0 0
        %1620 = vmatprep.subr.bf16.mxu0 0
        %1621 = vmatpush1.bf16.xpose.msra.mxu0 0
        %1622 = vmatprep.subr.bf16.mxu0 0
        %1623 = vmatpush1.bf16.xpose.msra.mxu0 0
        %1624 = vmatprep.subr.bf16.mxu0 0
        %1625 = vmatpush1.bf16.xpose.msra.mxu0 0
        %1626 = vmatprep.subr.bf16.mxu0 0
        %1627 = vmatpush1.bf16.xpose.msra.mxu0 0
        %1628 = vmatprep.mubr.bf16.mxu0 0
        %1629 = vmatmul.mubr.bf16.gmra.mrb[0].mxu0 %v1591
        %v1630 = vpop.f32.mrb[0].mxu0
        %v1631 = vadd.f32 %v363, %v1630
        %v1632 = vpop.f32.mrb[0].mxu0
        %v1633 = vpop.f32.mrb[0].mxu0
        %v1634 = vadd.f32 %v364, %v1633
        %v1635 = vpop.f32.mrb[0].mxu0
        %1636 = vdwg.mxu0
        %v1638 = vsel %vm1542, %v948, 0
        %v1641 = vsel %vm1542, %v1244, 0
        %1643 = vmatprep.subr.bf16.mxu0 0
        %1644 = vmatpush1.bf16.xpose.msra.mxu0 %v1641
        %1645 = vmatprep.subr.bf16.mxu0 0
        %1646 = vmatpush1.bf16.xpose.msra.mxu0 0
        %1647 = vmatprep.subr.bf16.mxu0 0
        %1648 = vmatpush1.bf16.xpose.msra.mxu0 0
        %1649 = vmatprep.subr.bf16.mxu0 0
        %1650 = vmatpush1.bf16.xpose.msra.mxu0 0
        %1651 = vmatprep.subr.bf16.mxu0 0
        %1652 = vmatpush1.bf16.xpose.msra.mxu0 0
        %1653 = vmatprep.subr.bf16.mxu0 0
        %1654 = vmatpush1.bf16.xpose.msra.mxu0 0
        %1655 = vmatprep.subr.bf16.mxu0 0
        %1656 = vmatpush1.bf16.xpose.msra.mxu0 0
        %1657 = vmatprep.subr.bf16.mxu0 0
        %1658 = vmatpush1.bf16.xpose.msra.mxu0 0
        %1659 = vmatprep.subr.bf16.mxu0 0
        %1660 = vmatpush1.bf16.xpose.msra.mxu0 0
        %1661 = vmatprep.subr.bf16.mxu0 0
        %1662 = vmatpush1.bf16.xpose.msra.mxu0 0
        %1663 = vmatprep.subr.bf16.mxu0 0
        %1664 = vmatpush1.bf16.xpose.msra.mxu0 0
        %1665 = vmatprep.subr.bf16.mxu0 0
        %1666 = vmatpush1.bf16.xpose.msra.mxu0 0
        %1667 = vmatprep.subr.bf16.mxu0 0
        %1668 = vmatpush1.bf16.xpose.msra.mxu0 0
        %1669 = vmatprep.subr.bf16.mxu0 0
        %1670 = vmatpush1.bf16.xpose.msra.mxu0 0
        %1671 = vmatprep.subr.bf16.mxu0 0
        %1672 = vmatpush1.bf16.xpose.msra.mxu0 0
        %1673 = vmatprep.subr.bf16.mxu0 0
        %1674 = vmatpush1.bf16.xpose.msra.mxu0 0
        %1675 = vmatprep.mubr.bf16.mxu0 0
        %1676 = vmatmul.mubr.bf16.gmra.mrb[0].mxu0 %v1638
        %v1677 = vpop.f32.mrb[0].mxu0
        %v1678 = vadd.f32 %v365, %v1677
        %v1679 = vpop.f32.mrb[0].mxu0
        %v1680 = vpop.f32.mrb[0].mxu0
        %v1681 = vadd.f32 %v366, %v1680
        %v1682 = vpop.f32.mrb[0].mxu0
        %1683 = vdwg.mxu0
        %v1685 = vsel %vm1542, %v949, 0
        %v1688 = vsel %vm1542, %v1245, 0
        %1690 = vmatprep.subr.bf16.mxu0 0
        %1691 = vmatpush1.bf16.xpose.msra.mxu0 %v1688
        %1692 = vmatprep.subr.bf16.mxu0 0
        %1693 = vmatpush1.bf16.xpose.msra.mxu0 0
        %1694 = vmatprep.subr.bf16.mxu0 0
        %1695 = vmatpush1.bf16.xpose.msra.mxu0 0
        %1696 = vmatprep.subr.bf16.mxu0 0
        %1697 = vmatpush1.bf16.xpose.msra.mxu0 0
        %1698 = vmatprep.subr.bf16.mxu0 0
        %1699 = vmatpush1.bf16.xpose.msra.mxu0 0
        %1700 = vmatprep.subr.bf16.mxu0 0
        %1701 = vmatpush1.bf16.xpose.msra.mxu0 0
        %1702 = vmatprep.subr.bf16.mxu0 0
        %1703 = vmatpush1.bf16.xpose.msra.mxu0 0
        %1704 = vmatprep.subr.bf16.mxu0 0
        %1705 = vmatpush1.bf16.xpose.msra.mxu0 0
        %1706 = vmatprep.subr.bf16.mxu0 0
        %1707 = vmatpush1.bf16.xpose.msra.mxu0 0
        %1708 = vmatprep.subr.bf16.mxu0 0
        %1709 = vmatpush1.bf16.xpose.msra.mxu0 0
        %1710 = vmatprep.subr.bf16.mxu0 0
        %1711 = vmatpush1.bf16.xpose.msra.mxu0 0
        %1712 = vmatprep.subr.bf16.mxu0 0
        %1713 = vmatpush1.bf16.xpose.msra.mxu0 0
        %1714 = vmatprep.subr.bf16.mxu0 0
        %1715 = vmatpush1.bf16.xpose.msra.mxu0 0
        %1716 = vmatprep.subr.bf16.mxu0 0
        %1717 = vmatpush1.bf16.xpose.msra.mxu0 0
        %1718 = vmatprep.subr.bf16.mxu0 0
        %1719 = vmatpush1.bf16.xpose.msra.mxu0 0
        %1720 = vmatprep.subr.bf16.mxu0 0
        %1721 = vmatpush1.bf16.xpose.msra.mxu0 0
        %1722 = vmatprep.mubr.bf16.mxu0 0
        %1723 = vmatmul.mubr.bf16.gmra.mrb[0].mxu0 %v1685
        %v1724 = vpop.f32.mrb[0].mxu0
        %v1725 = vadd.f32 %v367, %v1724
        %v1726 = vpop.f32.mrb[0].mxu0
        %v1727 = vpop.f32.mrb[0].mxu0
        %v1728 = vadd.f32 %v368, %v1727
        %v1729 = vpop.f32.mrb[0].mxu0
        %1730 = vdwg.mxu0
        %vm1731 = vcmask 130048
        %v1732 = vsel %vm1731, %v1584, -inf
        %1733 = vmax.xlane.f32.xlu0 %v1732
        %v1734 = vpop.xlane.xlu0 %1733
        %v1735 = vsel %vm1731, %v1587, -inf
        %1736 = vmax.xlane.f32.xlu0 %v1735
        %v1737 = vpop.xlane.xlu0 %1736
        %v1738 = vsel %vm1731, %v1631, -inf
        %1739 = vmax.xlane.f32.xlu0 %v1738
        %v1740 = vpop.xlane.xlu0 %1739
        %v1741 = vsel %vm1731, %v1634, -inf
        %1742 = vmax.xlane.f32.xlu0 %v1741
        %v1743 = vpop.xlane.xlu0 %1742
        %v1744 = vsel %vm1731, %v1678, -inf
        %1745 = vmax.xlane.f32.xlu0 %v1744
        %v1746 = vpop.xlane.xlu0 %1745
        %v1747 = vsel %vm1731, %v1681, -inf
        %1748 = vmax.xlane.f32.xlu0 %v1747
        %v1749 = vpop.xlane.xlu0 %1748
        %v1750 = vsel %vm1731, %v1725, -inf
        %1751 = vmax.xlane.f32.xlu0 %v1750
        %v1752 = vpop.xlane.xlu0 %1751
        %v1753 = vsel %vm1731, %v1728, -inf
        %1754 = vmax.xlane.f32.xlu0 %v1753
        %v1755 = vpop.xlane.xlu0 %1754
        %v1756 = vsub.f32 %v1584, %v1734
        %v1757 = vsub.f32 %v1587, %v1737
        %v1758 = vsub.f32 %v1631, %v1740
        %v1759 = vsub.f32 %v1634, %v1743
        %v1760 = vsub.f32 %v1678, %v1746
        %v1761 = vsub.f32 %v1681, %v1749
        %v1762 = vsub.f32 %v1725, %v1752
        %v1763 = vsub.f32 %v1728, %v1755
        %v1764 = vmul.f32 %v1756, 1.442695
        %v1765 = vpow.pop %v1764
        %v1766 = vmul.f32 %v1757, 1.442695
        %v1767 = vpow.pop %v1766
        %v1768 = vmul.f32 %v1758, 1.442695
        %v1769 = vpow.pop %v1768
        %v1770 = vmul.f32 %v1759, 1.442695
        %v1771 = vpow.pop %v1770
        %v1772 = vmul.f32 %v1760, 1.442695
        %v1773 = vpow.pop %v1772
        %v1774 = vmul.f32 %v1761, 1.442695
        %v1775 = vpow.pop %v1774
        %v1776 = vmul.f32 %v1762, 1.442695
        %v1777 = vpow.pop %v1776
        %v1778 = vmul.f32 %v1763, 1.442695
        %v1779 = vpow.pop %v1778
        %v1780 = vsel %vm1731, %v1765, 0.0
        %1781 = vadd.xlane.f32.xlu0 %v1780
        %v1782 = vpop.xlane.xlu0 %1781
        %v1783 = vsel %vm1731, %v1767, 0.0
        %1784 = vadd.xlane.f32.xlu0 %v1783
        %v1785 = vpop.xlane.xlu0 %1784
        %v1786 = vsel %vm1731, %v1769, 0.0
        %1787 = vadd.xlane.f32.xlu0 %v1786
        %v1788 = vpop.xlane.xlu0 %1787
        %v1789 = vsel %vm1731, %v1771, 0.0
        %1790 = vadd.xlane.f32.xlu0 %v1789
        %v1791 = vpop.xlane.xlu0 %1790
        %v1792 = vsel %vm1731, %v1773, 0.0
        %1793 = vadd.xlane.f32.xlu0 %v1792
        %v1794 = vpop.xlane.xlu0 %1793
        %v1795 = vsel %vm1731, %v1775, 0.0
        %1796 = vadd.xlane.f32.xlu0 %v1795
        %v1797 = vpop.xlane.xlu0 %1796
        %v1798 = vsel %vm1731, %v1777, 0.0
        %1799 = vadd.xlane.f32.xlu0 %v1798
        %v1800 = vpop.xlane.xlu0 %1799
        %v1801 = vsel %vm1731, %v1779, 0.0
        %1802 = vadd.xlane.f32.xlu0 %v1801
        %v1803 = vpop.xlane.xlu0 %1802
        %v1804 = vrcp.pop %v1782
        %v1805 = vrcp.pop %v1785
        %v1806 = vrcp.pop %v1788
        %v1807 = vrcp.pop %v1791
        %v1808 = vrcp.pop %v1794
        %v1809 = vrcp.pop %v1797
        %v1810 = vrcp.pop %v1800
        %v1811 = vrcp.pop %v1803
        %v1812 = vmul.f32 %v1765, %v1804
        %v1813 = vmul.f32 %v1767, %v1805
        %v1814 = vmul.f32 %v1769, %v1806
        %v1815 = vmul.f32 %v1771, %v1807
        %v1816 = vmul.f32 %v1773, %v1808
        %v1817 = vmul.f32 %v1775, %v1809
        %v1818 = vmul.f32 %v1777, %v1810
        %v1819 = vmul.f32 %v1779, %v1811
        %v1820 = vpack.c.bf16 %v1813, %v1812
        %v1821 = vpack.c.bf16 %v1815, %v1814
        %v1822 = vpack.c.bf16 %v1817, %v1816
        %v1823 = vpack.c.bf16 %v1819, %v1818
        %v1825 = vsel %vm1731, %v1820, 0
        %1827 = vmatprep.subr.bf16.mxu0 0
        %1828 = vmatpush1.bf16.msra.mxu0 %v1538
        %1829 = vmatprep.subr.bf16.mxu0 0
        %1830 = vmatpush1.bf16.msra.mxu0 0
        %1831 = vmatprep.subr.bf16.mxu0 0
        %1832 = vmatpush1.bf16.msra.mxu0 0
        %1833 = vmatprep.subr.bf16.mxu0 0
        %1834 = vmatpush1.bf16.msra.mxu0 0
        %1835 = vmatprep.subr.bf16.mxu0 0
        %1836 = vmatpush1.bf16.msra.mxu0 0
        %1837 = vmatprep.subr.bf16.mxu0 0
        %1838 = vmatpush1.bf16.msra.mxu0 0
        %1839 = vmatprep.subr.bf16.mxu0 0
        %1840 = vmatpush1.bf16.msra.mxu0 0
        %1841 = vmatprep.subr.bf16.mxu0 0
        %1842 = vmatpush1.bf16.msra.mxu0 0
        %1843 = vmatprep.subr.bf16.mxu0 0
        %1844 = vmatpush1.bf16.msra.mxu0 0
        %1845 = vmatprep.subr.bf16.mxu0 0
        %1846 = vmatpush1.bf16.msra.mxu0 0
        %1847 = vmatprep.subr.bf16.mxu0 0
        %1848 = vmatpush1.bf16.msra.mxu0 0
        %1849 = vmatprep.subr.bf16.mxu0 0
        %1850 = vmatpush1.bf16.msra.mxu0 0
        %1851 = vmatprep.subr.bf16.mxu0 0
        %1852 = vmatpush1.bf16.msra.mxu0 0
        %1853 = vmatprep.subr.bf16.mxu0 0
        %1854 = vmatpush1.bf16.msra.mxu0 0
        %1855 = vmatprep.subr.bf16.mxu0 0
        %1856 = vmatpush1.bf16.msra.mxu0 0
        %1857 = vmatprep.subr.bf16.mxu0 0
        %1858 = vmatpush1.bf16.msra.mxu0 0
        %1859 = vmatprep.mubr.bf16.mxu0 0
        %1860 = vmatmul.mubr.bf16.gmra.mrb[0].mxu0 %v1825
        %v1861 = vpop.f32.mrb[0].mxu0
        %v1862 = vadd.f32 0.0, %v1861
        %v1863 = vpop.f32.mrb[0].mxu0
        %v1864 = vpop.f32.mrb[0].mxu0
        %v1865 = vadd.f32 0.0, %v1864
        %v1866 = vpop.f32.mrb[0].mxu0
        %1867 = vdwg.mxu0
        %v1869 = vsel %vm1731, %v1821, 0
        %1871 = vmatprep.subr.bf16.mxu0 0
        %1872 = vmatpush1.bf16.msra.mxu0 %v1539
        %1873 = vmatprep.subr.bf16.mxu0 0
        %1874 = vmatpush1.bf16.msra.mxu0 0
        %1875 = vmatprep.subr.bf16.mxu0 0
        %1876 = vmatpush1.bf16.msra.mxu0 0
        %1877 = vmatprep.subr.bf16.mxu0 0
        %1878 = vmatpush1.bf16.msra.mxu0 0
        %1879 = vmatprep.subr.bf16.mxu0 0
        %1880 = vmatpush1.bf16.msra.mxu0 0
        %1881 = vmatprep.subr.bf16.mxu0 0
        %1882 = vmatpush1.bf16.msra.mxu0 0
        %1883 = vmatprep.subr.bf16.mxu0 0
        %1884 = vmatpush1.bf16.msra.mxu0 0
        %1885 = vmatprep.subr.bf16.mxu0 0
        %1886 = vmatpush1.bf16.msra.mxu0 0
        %1887 = vmatprep.subr.bf16.mxu0 0
        %1888 = vmatpush1.bf16.msra.mxu0 0
        %1889 = vmatprep.subr.bf16.mxu0 0
        %1890 = vmatpush1.bf16.msra.mxu0 0
        %1891 = vmatprep.subr.bf16.mxu0 0
        %1892 = vmatpush1.bf16.msra.mxu0 0
        %1893 = vmatprep.subr.bf16.mxu0 0
        %1894 = vmatpush1.bf16.msra.mxu0 0
        %1895 = vmatprep.subr.bf16.mxu0 0
        %1896 = vmatpush1.bf16.msra.mxu0 0
        %1897 = vmatprep.subr.bf16.mxu0 0
        %1898 = vmatpush1.bf16.msra.mxu0 0
        %1899 = vmatprep.subr.bf16.mxu0 0
        %1900 = vmatpush1.bf16.msra.mxu0 0
        %1901 = vmatprep.subr.bf16.mxu0 0
        %1902 = vmatpush1.bf16.msra.mxu0 0
        %1903 = vmatprep.mubr.bf16.mxu0 0
        %1904 = vmatmul.mubr.bf16.gmra.mrb[0].mxu0 %v1869
        %v1905 = vpop.f32.mrb[0].mxu0
        %v1906 = vadd.f32 0.0, %v1905
        %v1907 = vpop.f32.mrb[0].mxu0
        %v1908 = vpop.f32.mrb[0].mxu0
        %v1909 = vadd.f32 0.0, %v1908
        %v1910 = vpop.f32.mrb[0].mxu0
        %1911 = vdwg.mxu0
        %v1913 = vsel %vm1731, %v1822, 0
        %1915 = vmatprep.subr.bf16.mxu0 0
        %1916 = vmatpush1.bf16.msra.mxu0 %v1540
        %1917 = vmatprep.subr.bf16.mxu0 0
        %1918 = vmatpush1.bf16.msra.mxu0 0
        %1919 = vmatprep.subr.bf16.mxu0 0
        %1920 = vmatpush1.bf16.msra.mxu0 0
        %1921 = vmatprep.subr.bf16.mxu0 0
        %1922 = vmatpush1.bf16.msra.mxu0 0
        %1923 = vmatprep.subr.bf16.mxu0 0
        %1924 = vmatpush1.bf16.msra.mxu0 0
        %1925 = vmatprep.subr.bf16.mxu0 0
        %1926 = vmatpush1.bf16.msra.mxu0 0
        %1927 = vmatprep.subr.bf16.mxu0 0
        %1928 = vmatpush1.bf16.msra.mxu0 0
        %1929 = vmatprep.subr.bf16.mxu0 0
        %1930 = vmatpush1.bf16.msra.mxu0 0
        %1931 = vmatprep.subr.bf16.mxu0 0
        %1932 = vmatpush1.bf16.msra.mxu0 0
        %1933 = vmatprep.subr.bf16.mxu0 0
        %1934 = vmatpush1.bf16.msra.mxu0 0
        %1935 = vmatprep.subr.bf16.mxu0 0
        %1936 = vmatpush1.bf16.msra.mxu0 0
        %1937 = vmatprep.subr.bf16.mxu0 0
        %1938 = vmatpush1.bf16.msra.mxu0 0
        %1939 = vmatprep.subr.bf16.mxu0 0
        %1940 = vmatpush1.bf16.msra.mxu0 0
        %1941 = vmatprep.subr.bf16.mxu0 0
        %1942 = vmatpush1.bf16.msra.mxu0 0
        %1943 = vmatprep.subr.bf16.mxu0 0
        %1944 = vmatpush1.bf16.msra.mxu0 0
        %1945 = vmatprep.subr.bf16.mxu0 0
        %1946 = vmatpush1.bf16.msra.mxu0 0
        %1947 = vmatprep.mubr.bf16.mxu0 0
        %1948 = vmatmul.mubr.bf16.gmra.mrb[0].mxu0 %v1913
        %v1949 = vpop.f32.mrb[0].mxu0
        %v1950 = vadd.f32 0.0, %v1949
        %v1951 = vpop.f32.mrb[0].mxu0
        %v1952 = vpop.f32.mrb[0].mxu0
        %v1953 = vadd.f32 0.0, %v1952
        %v1954 = vpop.f32.mrb[0].mxu0
        %1955 = vdwg.mxu0
        %v1957 = vsel %vm1731, %v1823, 0
        %1959 = vmatprep.subr.bf16.mxu0 0
        %1960 = vmatpush1.bf16.msra.mxu0 %v1541
        %1961 = vmatprep.subr.bf16.mxu0 0
        %1962 = vmatpush1.bf16.msra.mxu0 0
        %1963 = vmatprep.subr.bf16.mxu0 0
        %1964 = vmatpush1.bf16.msra.mxu0 0
        %1965 = vmatprep.subr.bf16.mxu0 0
        %1966 = vmatpush1.bf16.msra.mxu0 0
        %1967 = vmatprep.subr.bf16.mxu0 0
        %1968 = vmatpush1.bf16.msra.mxu0 0
        %1969 = vmatprep.subr.bf16.mxu0 0
        %1970 = vmatpush1.bf16.msra.mxu0 0
        %1971 = vmatprep.subr.bf16.mxu0 0
        %1972 = vmatpush1.bf16.msra.mxu0 0
        %1973 = vmatprep.subr.bf16.mxu0 0
        %1974 = vmatpush1.bf16.msra.mxu0 0
        %1975 = vmatprep.subr.bf16.mxu0 0
        %1976 = vmatpush1.bf16.msra.mxu0 0
        %1977 = vmatprep.subr.bf16.mxu0 0
        %1978 = vmatpush1.bf16.msra.mxu0 0
        %1979 = vmatprep.subr.bf16.mxu0 0
        %1980 = vmatpush1.bf16.msra.mxu0 0
        %1981 = vmatprep.subr.bf16.mxu0 0
        %1982 = vmatpush1.bf16.msra.mxu0 0
        %1983 = vmatprep.subr.bf16.mxu0 0
        %1984 = vmatpush1.bf16.msra.mxu0 0
        %1985 = vmatprep.subr.bf16.mxu0 0
        %1986 = vmatpush1.bf16.msra.mxu0 0
        %1987 = vmatprep.subr.bf16.mxu0 0
        %1988 = vmatpush1.bf16.msra.mxu0 0
        %1989 = vmatprep.subr.bf16.mxu0 0
        %1990 = vmatpush1.bf16.msra.mxu0 0
        %1991 = vmatprep.mubr.bf16.mxu0 0
        %1992 = vmatmul.mubr.bf16.gmra.mrb[0].mxu0 %v1957
        %v1993 = vpop.f32.mrb[0].mxu0
        %v1994 = vadd.f32 0.0, %v1993
        %v1995 = vpop.f32.mrb[0].mxu0
        %v1996 = vpop.f32.mrb[0].mxu0
        %v1997 = vadd.f32 0.0, %v1996
        %v1998 = vpop.f32.mrb[0].mxu0
        %1999 = vdwg.mxu0
        %v2000 = vcombine.low %v1862, %v1950
        %v2001 = vcombine.high %v1862, %v1950
        %v2003 = vunpack.c.l.s4 1983009808
        %v2004 = vunpack.c.0.s8 %v2003
        %v2005 = vlaneseq
        %v2006 = vshrl.u32 %v2005, 7
        %v2007 = vsub.s32 %v2004, %v2006
        %v2008 = vrot.slane %v2000, %v2007
        %v2010 = vunpack.c.l.s4 1983009808
        %v2011 = vunpack.c.0.s8 %v2010
        %v2012 = vlaneseq
        %v2013 = vshrl.u32 %v2012, 7
        %v2014 = vsub.s32 %v2011, %v2013
        %v2015 = vrot.slane %v2001, %v2014
        %v2016 = vcombine.low %v1906, %v1994
        %v2017 = vcombine.high %v1906, %v1994
        %v2019 = vunpack.c.l.s4 1983009808
        %v2020 = vunpack.c.0.s8 %v2019
        %v2021 = vlaneseq
        %v2022 = vshrl.u32 %v2021, 7
        %v2023 = vsub.s32 %v2020, %v2022
        %v2024 = vrot.slane %v2016, %v2023
        %v2026 = vunpack.c.l.s4 1983009808
        %v2027 = vunpack.c.0.s8 %v2026
        %v2028 = vlaneseq
        %v2029 = vshrl.u32 %v2028, 7
        %v2030 = vsub.s32 %v2027, %v2029
        %v2031 = vrot.slane %v2017, %v2030
        %v2032 = vcombine.low %v2008, %v2024
        %v2033 = vcombine.high %v2008, %v2024
        %v2035 = vunpack.c.l.s4 1934713408
        %v2036 = vunpack.c.0.s8 %v2035
        %v2037 = vlaneseq
        %v2038 = vshrl.u32 %v2037, 7
        %v2039 = vsub.s32 %v2036, %v2038
        %v2040 = vrot.slane %v2032, %v2039
        %v2042 = vunpack.c.l.s4 1934713408
        %v2043 = vunpack.c.0.s8 %v2042
        %v2044 = vlaneseq
        %v2045 = vshrl.u32 %v2044, 7
        %v2046 = vsub.s32 %v2043, %v2045
        %v2047 = vrot.slane %v2033, %v2046
        %v2048 = vcombine.low %v2015, %v2031
        %v2049 = vcombine.high %v2015, %v2031
        %v2051 = vunpack.c.l.s4 1934713408
        %v2052 = vunpack.c.0.s8 %v2051
        %v2053 = vlaneseq
        %v2054 = vshrl.u32 %v2053, 7
        %v2055 = vsub.s32 %v2052, %v2054
        %v2056 = vrot.slane %v2048, %v2055
        %v2058 = vunpack.c.l.s4 1934713408
        %v2059 = vunpack.c.0.s8 %v2058
        %v2060 = vlaneseq
        %v2061 = vshrl.u32 %v2060, 7
        %v2062 = vsub.s32 %v2059, %v2061
        %v2063 = vrot.slane %v2049, %v2062
        %v2064 = vcombine.high %v2040, 0.0
        %v2065 = vcombine.high %v2047, 0.0
        %v2066 = vcombine.high %v2056, 0.0
        %v2067 = vcombine.high %v2063, 0.0
        %v2068 = vcombine.low %v1865, %v1953
        %v2069 = vcombine.high %v1865, %v1953
        %v2071 = vunpack.c.l.s4 1983009808
        %v2072 = vunpack.c.0.s8 %v2071
        %v2073 = vlaneseq
        %v2074 = vshrl.u32 %v2073, 7
        %v2075 = vsub.s32 %v2072, %v2074
        %v2076 = vrot.slane %v2068, %v2075
        %v2078 = vunpack.c.l.s4 1983009808
        %v2079 = vunpack.c.0.s8 %v2078
        %v2080 = vlaneseq
        %v2081 = vshrl.u32 %v2080, 7
        %v2082 = vsub.s32 %v2079, %v2081
        %v2083 = vrot.slane %v2069, %v2082
        %v2084 = vcombine.low %v1909, %v1997
        %v2085 = vcombine.high %v1909, %v1997
        %v2087 = vunpack.c.l.s4 1983009808
        %v2088 = vunpack.c.0.s8 %v2087
        %v2089 = vlaneseq
        %v2090 = vshrl.u32 %v2089, 7
        %v2091 = vsub.s32 %v2088, %v2090
        %v2092 = vrot.slane %v2084, %v2091
        %v2094 = vunpack.c.l.s4 1983009808
        %v2095 = vunpack.c.0.s8 %v2094
        %v2096 = vlaneseq
        %v2097 = vshrl.u32 %v2096, 7
        %v2098 = vsub.s32 %v2095, %v2097
        %v2099 = vrot.slane %v2085, %v2098
        %v2100 = vcombine.low %v2076, %v2092
        %v2101 = vcombine.high %v2076, %v2092
        %v2103 = vunpack.c.l.s4 1934713408
        %v2104 = vunpack.c.0.s8 %v2103
        %v2105 = vlaneseq
        %v2106 = vshrl.u32 %v2105, 7
        %v2107 = vsub.s32 %v2104, %v2106
        %v2108 = vrot.slane %v2100, %v2107
        %v2110 = vunpack.c.l.s4 1934713408
        %v2111 = vunpack.c.0.s8 %v2110
        %v2112 = vlaneseq
        %v2113 = vshrl.u32 %v2112, 7
        %v2114 = vsub.s32 %v2111, %v2113
        %v2115 = vrot.slane %v2101, %v2114
        %v2116 = vcombine.low %v2083, %v2099
        %v2117 = vcombine.high %v2083, %v2099
        %v2119 = vunpack.c.l.s4 1934713408
        %v2120 = vunpack.c.0.s8 %v2119
        %v2121 = vlaneseq
        %v2122 = vshrl.u32 %v2121, 7
        %v2123 = vsub.s32 %v2120, %v2122
        %v2124 = vrot.slane %v2116, %v2123
        %v2126 = vunpack.c.l.s4 1934713408
        %v2127 = vunpack.c.0.s8 %v2126
        %v2128 = vlaneseq
        %v2129 = vshrl.u32 %v2128, 7
        %v2130 = vsub.s32 %v2127, %v2129
        %v2131 = vrot.slane %v2117, %v2130
        %v2132 = vcombine.high %v2108, 0.0
        %v2133 = vcombine.high %v2115, 0.0
        %v2134 = vcombine.high %v2124, 0.0
        %v2135 = vcombine.high %v2131, 0.0
        %v2136 = vcombine.low %v2040, %v2047
        %v2138 = vunpack.c.l.s4 1983009808
        %v2139 = vunpack.c.0.s8 %v2138
        %v2140 = vlaneseq
        %v2141 = vshrl.u32 %v2140, 7
        %v2142 = vsub.s32 %v2139, %v2141
        %v2143 = vrot.slane %v2136, %v2142
        %v2144 = vcombine.low %v2064, %v2065
        %v2146 = vunpack.c.l.s4 1983009808
        %v2147 = vunpack.c.0.s8 %v2146
        %v2148 = vlaneseq
        %v2149 = vshrl.u32 %v2148, 7
        %v2150 = vsub.s32 %v2147, %v2149
        %v2151 = vrot.slane %v2144, %v2150
        %v2152 = vcombine.low %v2056, %v2063
        %v2154 = vunpack.c.l.s4 1983009808
        %v2155 = vunpack.c.0.s8 %v2154
        %v2156 = vlaneseq
        %v2157 = vshrl.u32 %v2156, 7
        %v2158 = vsub.s32 %v2155, %v2157
        %v2159 = vrot.slane %v2152, %v2158
        %v2160 = vcombine.low %v2066, %v2067
        %v2162 = vunpack.c.l.s4 1983009808
        %v2163 = vunpack.c.0.s8 %v2162
        %v2164 = vlaneseq
        %v2165 = vshrl.u32 %v2164, 7
        %v2166 = vsub.s32 %v2163, %v2165
        %v2167 = vrot.slane %v2160, %v2166
        %v2168 = vcombine.low %v2143, %v2151
        %v2169 = vcombine.high %v2143, %v2151
        %v2171 = vunpack.c.l.s4 1934713408
        %v2172 = vunpack.c.0.s8 %v2171
        %v2173 = vlaneseq
        %v2174 = vshrl.u32 %v2173, 7
        %v2175 = vsub.s32 %v2172, %v2174
        %v2176 = vrot.slane %v2168, %v2175
        %v2178 = vunpack.c.l.s4 1934713408
        %v2179 = vunpack.c.0.s8 %v2178
        %v2180 = vlaneseq
        %v2181 = vshrl.u32 %v2180, 7
        %v2182 = vsub.s32 %v2179, %v2181
        %v2183 = vrot.slane %v2169, %v2182
        %v2184 = vcombine.low %v2159, %v2167
        %v2185 = vcombine.high %v2159, %v2167
        %v2187 = vunpack.c.l.s4 1934713408
        %v2188 = vunpack.c.0.s8 %v2187
        %v2189 = vlaneseq
        %v2190 = vshrl.u32 %v2189, 7
        %v2191 = vsub.s32 %v2188, %v2190
        %v2192 = vrot.slane %v2184, %v2191
        %v2194 = vunpack.c.l.s4 1934713408
        %v2195 = vunpack.c.0.s8 %v2194
        %v2196 = vlaneseq
        %v2197 = vshrl.u32 %v2196, 7
        %v2198 = vsub.s32 %v2195, %v2197
        %v2199 = vrot.slane %v2185, %v2198
        %v2200 = vcombine.low %v2176, %v2192
        %v2201 = vcombine.high %v2176, %v2192
        %v2202 = vcombine.low %v2183, %v2199
        %v2203 = vcombine.high %v2183, %v2199
        %v2204 = vcombine.low %v2108, %v2115
        %v2206 = vunpack.c.l.s4 1983009808
        %v2207 = vunpack.c.0.s8 %v2206
        %v2208 = vlaneseq
        %v2209 = vshrl.u32 %v2208, 7
        %v2210 = vsub.s32 %v2207, %v2209
        %v2211 = vrot.slane %v2204, %v2210
        %v2212 = vcombine.low %v2132, %v2133
        %v2214 = vunpack.c.l.s4 1983009808
        %v2215 = vunpack.c.0.s8 %v2214
        %v2216 = vlaneseq
        %v2217 = vshrl.u32 %v2216, 7
        %v2218 = vsub.s32 %v2215, %v2217
        %v2219 = vrot.slane %v2212, %v2218
        %v2220 = vcombine.low %v2124, %v2131
        %v2222 = vunpack.c.l.s4 1983009808
        %v2223 = vunpack.c.0.s8 %v2222
        %v2224 = vlaneseq
        %v2225 = vshrl.u32 %v2224, 7
        %v2226 = vsub.s32 %v2223, %v2225
        %v2227 = vrot.slane %v2220, %v2226
        %v2228 = vcombine.low %v2134, %v2135
        %v2230 = vunpack.c.l.s4 1983009808
        %v2231 = vunpack.c.0.s8 %v2230
        %v2232 = vlaneseq
        %v2233 = vshrl.u32 %v2232, 7
        %v2234 = vsub.s32 %v2231, %v2233
        %v2235 = vrot.slane %v2228, %v2234
        %v2236 = vcombine.low %v2211, %v2219
        %v2237 = vcombine.high %v2211, %v2219
        %v2239 = vunpack.c.l.s4 1934713408
        %v2240 = vunpack.c.0.s8 %v2239
        %v2241 = vlaneseq
        %v2242 = vshrl.u32 %v2241, 7
        %v2243 = vsub.s32 %v2240, %v2242
        %v2244 = vrot.slane %v2236, %v2243
        %v2246 = vunpack.c.l.s4 1934713408
        %v2247 = vunpack.c.0.s8 %v2246
        %v2248 = vlaneseq
        %v2249 = vshrl.u32 %v2248, 7
        %v2250 = vsub.s32 %v2247, %v2249
        %v2251 = vrot.slane %v2237, %v2250
        %v2252 = vcombine.low %v2227, %v2235
        %v2253 = vcombine.high %v2227, %v2235
        %v2255 = vunpack.c.l.s4 1934713408
        %v2256 = vunpack.c.0.s8 %v2255
        %v2257 = vlaneseq
        %v2258 = vshrl.u32 %v2257, 7
        %v2259 = vsub.s32 %v2256, %v2258
        %v2260 = vrot.slane %v2252, %v2259
        %v2262 = vunpack.c.l.s4 1934713408
        %v2263 = vunpack.c.0.s8 %v2262
        %v2264 = vlaneseq
        %v2265 = vshrl.u32 %v2264, 7
        %v2266 = vsub.s32 %v2263, %v2265
        %v2267 = vrot.slane %v2253, %v2266
        %v2268 = vcombine.low %v2244, %v2260
        %v2269 = vcombine.high %v2244, %v2260
        %v2270 = vcombine.low %v2251, %v2267
        %v2271 = vcombine.high %v2251, %v2267
        %2274 = vrot.lane.b32.xlu0 %v2201, 32
        %v2275 = vpop.permute.xlu0 %2274
        %2276 = vrot.lane.b32.xlu0 %v2269, 32
        %v2277 = vpop.permute.xlu0 %2276
        %2282 = vrot.lane.b32.xlu0 %v2202, 64
        %v2283 = vpop.permute.xlu0 %2282
        %2284 = vrot.lane.b32.xlu0 %v2270, 64
        %v2285 = vpop.permute.xlu0 %2284
        %2290 = vrot.lane.b32.xlu0 %v2203, 96
        %v2291 = vpop.permute.xlu0 %2290
        %2292 = vrot.lane.b32.xlu0 %v2271, 96
        %v2293 = vpop.permute.xlu0 %2292
        %v2296 = vsel %vm1542, %v2200, %v2275
        %v2297 = vsel %vm1542, %v2268, %v2277
        %vm2298 = vcmask 523264
        %v2299 = vsel %vm2298, %v2296, %v2283
        %v2300 = vsel %vm2298, %v2297, %v2285
        %vm2301 = vcmask 785408
        %v2302 = vsel %vm2301, %v2299, %v2291
        %v2303 = vsel %vm2301, %v2300, %v2293
        %v2304 = vpack.c.bf16 %v2303, %v2302
        %v2321 = vunpack.c.l.b16 %v425
        %v2322 = vunpack.c.l.b16 %v426
        %v2323 = vunpack.c.l.b16 %v427
        %v2324 = vunpack.c.l.b16 %v428
        %v2325 = vunpack.c.l.b16 %v429
        %v2326 = vunpack.c.l.b16 %v430
        %v2327 = vunpack.c.l.b16 %v431
        %v2328 = vunpack.c.l.b16 %v432
        %v2329 = vunpack.c.l.b16 %v433
        %v2330 = vunpack.c.l.b16 %v434
        %v2331 = vunpack.c.l.b16 %v435
        %v2332 = vunpack.c.l.b16 %v436
        %v2333 = vunpack.c.l.b16 %v437
        %v2334 = vunpack.c.l.b16 %v438
        %v2335 = vunpack.c.l.b16 %v439
        %v2336 = vunpack.c.l.b16 %v440
        %v2337 = vpack.c.b16 %v2322, %v2321
        %v2338 = vpack.c.b16 %v2324, %v2323
        %v2339 = vpack.c.b16 %v2326, %v2325
        %v2340 = vpack.c.b16 %v2328, %v2327
        %v2341 = vpack.c.b16 %v2330, %v2329
        %v2342 = vpack.c.b16 %v2332, %v2331
        %v2343 = vpack.c.b16 %v2334, %v2333
        %v2344 = vpack.c.b16 %v2336, %v2335
        %2353 = vmatprep.subr.bf16.mxu0 0
        %2354 = vmatpush1.bf16.msra.mxu0 %v2337
        %2355 = vmatprep.subr.bf16.mxu0 0
        %2356 = vmatpush1.bf16.msra.mxu0 %v2338
        %2357 = vmatprep.subr.bf16.mxu0 0
        %2358 = vmatpush1.bf16.msra.mxu0 %v2339
        %2359 = vmatprep.subr.bf16.mxu0 0
        %2360 = vmatpush1.bf16.msra.mxu0 %v2340
        %2361 = vmatprep.subr.bf16.mxu0 0
        %2362 = vmatpush1.bf16.msra.mxu0 %v2341
        %2363 = vmatprep.subr.bf16.mxu0 0
        %2364 = vmatpush1.bf16.msra.mxu0 %v2342
        %2365 = vmatprep.subr.bf16.mxu0 0
        %2366 = vmatpush1.bf16.msra.mxu0 %v2343
        %2367 = vmatprep.subr.bf16.mxu0 0
        %2368 = vmatpush1.bf16.msra.mxu0 %v2344
        %2369 = vmatprep.subr.bf16.mxu0 0
        %2370 = vmatpush1.bf16.msra.mxu0 0
        %2371 = vmatprep.subr.bf16.mxu0 0
        %2372 = vmatpush1.bf16.msra.mxu0 0
        %2373 = vmatprep.subr.bf16.mxu0 0
        %2374 = vmatpush1.bf16.msra.mxu0 0
        %2375 = vmatprep.subr.bf16.mxu0 0
        %2376 = vmatpush1.bf16.msra.mxu0 0
        %2377 = vmatprep.subr.bf16.mxu0 0
        %2378 = vmatpush1.bf16.msra.mxu0 0
        %2379 = vmatprep.subr.bf16.mxu0 0
        %2380 = vmatpush1.bf16.msra.mxu0 0
        %2381 = vmatprep.subr.bf16.mxu0 0
        %2382 = vmatpush1.bf16.msra.mxu0 0
        %2383 = vmatprep.subr.bf16.mxu0 0
        %2384 = vmatpush1.bf16.msra.mxu0 0
        %2385 = vmatprep.mubr.bf16.mxu0 0
        %2386 = vmatmul.mubr.bf16.gmra.mrb[0].mxu0 %v2304
        %v2387 = vpop.f32.mrb[0].mxu0
        %v2388 = vadd.f32 0.0, %v2387
        %v2389 = vpop.f32.mrb[0].mxu0
        %v2390 = vpop.f32.mrb[0].mxu0
        %v2391 = vadd.f32 0.0, %v2390
        %v2392 = vpop.f32.mrb[0].mxu0
        %2393 = vdwg.mxu0
        %v2394 = vadd.f32 %v359, %v2388
        %v2395 = vadd.f32 %v360, %v2391
        %v2396 = vld [vmem:[%s5] sm:$0x1]
        %v2397 = vmul.f32 %v2394, %v2394
        %v2398 = vmul.f32 %v2395, %v2395
        %2399 = vadd.xlane.f32.xlu0 %v2397
        %v2400 = vpop.xlane.xlu0 %2399
        %2401 = vadd.xlane.f32.xlu0 %v2398
        %v2402 = vpop.xlane.xlu0 %2401
        %v2403 = vmul.f32 %v2400, %v376
        %v2404 = vmul.f32 %v2402, %v376
        %v2405 = vadd.f32 %v2403, 1e-06
        %v2406 = vadd.f32 %v2404, 1e-06
        %v2407 = vrsqrt.pop %v2405
        %v2408 = vrsqrt.pop %v2406
        %v2409 = vmul.f32 %v2394, %v2407
        %v2410 = vmul.f32 %v2395, %v2408
        %v2412 = vlaneseq
        %v2413 = vshrl.u32 %v2412, 7
        %v2414 = vsub.s32 0, %v2413
        %v2415 = vrot.slane %v2396, %v2414
        %v2417 = vmul.f32 %v2409, %v2415
        %v2418 = vmul.f32 %v2410, %v2415
        %v2419 = vld [vmem:[%s6] sm:$0xff]
        %v2420 = vld [vmem:[%s6 + $0x8] sm:$0xff]
        %v2421 = vld [vmem:[%s6 + $0x10] sm:$0xff]
        %v2422 = vld [vmem:[%s6 + $0x18] sm:$0xff]
        %v2423 = vld [vmem:[%s6 + $0x20] sm:$0xff]
        %v2424 = vld [vmem:[%s6 + $0x28] sm:$0xff]
        %v2425 = vld [vmem:[%s6 + $0x30] sm:$0xff]
        %v2426 = vld [vmem:[%s6 + $0x38] sm:$0xff]
        %v2427 = vld [vmem:[%s6 + $0x40] sm:$0xff]
        %v2428 = vld [vmem:[%s6 + $0x48] sm:$0xff]
        %v2429 = vld [vmem:[%s6 + $0x50] sm:$0xff]
        %v2430 = vld [vmem:[%s6 + $0x58] sm:$0xff]
        %v2431 = vld [vmem:[%s6 + $0x60] sm:$0xff]
        %v2432 = vld [vmem:[%s6 + $0x68] sm:$0xff]
        %v2433 = vld [vmem:[%s6 + $0x70] sm:$0xff]
        %v2434 = vld [vmem:[%s6 + $0x78] sm:$0xff]
        %v2435 = vld [vmem:[%s7] sm:$0xff]
        %v2436 = vld [vmem:[%s7 + $0x8] sm:$0xff]
        %v2437 = vld [vmem:[%s7 + $0x10] sm:$0xff]
        %v2438 = vld [vmem:[%s7 + $0x18] sm:$0xff]
        %v2439 = vld [vmem:[%s7 + $0x20] sm:$0xff]
        %v2440 = vld [vmem:[%s7 + $0x28] sm:$0xff]
        %v2441 = vld [vmem:[%s7 + $0x30] sm:$0xff]
        %v2442 = vld [vmem:[%s7 + $0x38] sm:$0xff]
        %v2443 = vld [vmem:[%s7 + $0x40] sm:$0xff]
        %v2444 = vld [vmem:[%s7 + $0x48] sm:$0xff]
        %v2445 = vld [vmem:[%s7 + $0x50] sm:$0xff]
        %v2446 = vld [vmem:[%s7 + $0x58] sm:$0xff]
        %v2447 = vld [vmem:[%s7 + $0x60] sm:$0xff]
        %v2448 = vld [vmem:[%s7 + $0x68] sm:$0xff]
        %v2449 = vld [vmem:[%s7 + $0x70] sm:$0xff]
        %v2450 = vld [vmem:[%s7 + $0x78] sm:$0xff]
        %v2451 = vld [vmem:[%s8] sm:$0xf]
        %v2452 = vld [vmem:[%s8 + $0x4] sm:$0xf]
        %v2453 = vld [vmem:[%s8 + $0x8] sm:$0xf]
        %v2454 = vld [vmem:[%s8 + $0xc] sm:$0xf]
        %v2455 = vld [vmem:[%s8 + $0x10] sm:$0xf]
        %v2456 = vld [vmem:[%s8 + $0x14] sm:$0xf]
        %v2457 = vld [vmem:[%s8 + $0x18] sm:$0xf]
        %v2458 = vld [vmem:[%s8 + $0x1c] sm:$0xf]
        %v2459 = vld [vmem:[%s8 + $0x20] sm:$0xf]
        %v2460 = vld [vmem:[%s8 + $0x24] sm:$0xf]
        %v2461 = vld [vmem:[%s8 + $0x28] sm:$0xf]
        %v2462 = vld [vmem:[%s8 + $0x2c] sm:$0xf]
        %v2463 = vld [vmem:[%s8 + $0x30] sm:$0xf]
        %v2464 = vld [vmem:[%s8 + $0x34] sm:$0xf]
        %v2465 = vld [vmem:[%s8 + $0x38] sm:$0xf]
        %v2466 = vld [vmem:[%s8 + $0x3c] sm:$0xf]
        %v2467 = vld [vmem:[%s8 + $0x40] sm:$0xf]
        %v2468 = vld [vmem:[%s8 + $0x44] sm:$0xf]
        %v2469 = vld [vmem:[%s8 + $0x48] sm:$0xf]
        %v2470 = vld [vmem:[%s8 + $0x4c] sm:$0xf]
        %v2471 = vld [vmem:[%s8 + $0x50] sm:$0xf]
        %v2472 = vld [vmem:[%s8 + $0x54] sm:$0xf]
        %v2473 = vld [vmem:[%s8 + $0x58] sm:$0xf]
        %v2474 = vld [vmem:[%s8 + $0x5c] sm:$0xf]
        %v2475 = vld [vmem:[%s8 + $0x60] sm:$0xf]
        %v2476 = vld [vmem:[%s8 + $0x64] sm:$0xf]
        %v2477 = vld [vmem:[%s8 + $0x68] sm:$0xf]
        %v2478 = vld [vmem:[%s8 + $0x6c] sm:$0xf]
        %v2479 = vld [vmem:[%s8 + $0x70] sm:$0xf]
        %v2480 = vld [vmem:[%s8 + $0x74] sm:$0xf]
        %v2481 = vld [vmem:[%s8 + $0x78] sm:$0xf]
        %v2482 = vld [vmem:[%s8 + $0x7c] sm:$0xf]
        %v2483 = vpack.c.bf16 %v2418, %v2417
        %v2500 = vunpack.c.l.b16 %v2419
        %v2501 = vunpack.c.h.b16 %v2419
        %v2502 = vunpack.c.l.b16 %v2420
        %v2503 = vunpack.c.h.b16 %v2420
        %v2504 = vunpack.c.l.b16 %v2421
        %v2505 = vunpack.c.h.b16 %v2421
        %v2506 = vunpack.c.l.b16 %v2422
        %v2507 = vunpack.c.h.b16 %v2422
        %v2508 = vunpack.c.l.b16 %v2423
        %v2509 = vunpack.c.h.b16 %v2423
        %v2510 = vunpack.c.l.b16 %v2424
        %v2511 = vunpack.c.h.b16 %v2424
        %v2512 = vunpack.c.l.b16 %v2425
        %v2513 = vunpack.c.h.b16 %v2425
        %v2514 = vunpack.c.l.b16 %v2426
        %v2515 = vunpack.c.h.b16 %v2426
        %v2516 = vunpack.c.l.b16 %v2427
        %v2517 = vunpack.c.h.b16 %v2427
        %v2518 = vunpack.c.l.b16 %v2428
        %v2519 = vunpack.c.h.b16 %v2428
        %v2520 = vunpack.c.l.b16 %v2429
        %v2521 = vunpack.c.h.b16 %v2429
        %v2522 = vunpack.c.l.b16 %v2430
        %v2523 = vunpack.c.h.b16 %v2430
        %v2524 = vunpack.c.l.b16 %v2431
        %v2525 = vunpack.c.h.b16 %v2431
        %v2526 = vunpack.c.l.b16 %v2432
        %v2527 = vunpack.c.h.b16 %v2432
        %v2528 = vunpack.c.l.b16 %v2433
        %v2529 = vunpack.c.h.b16 %v2433
        %v2530 = vunpack.c.l.b16 %v2434
        %v2531 = vunpack.c.h.b16 %v2434
        %v2532 = vpack.c.b16 %v2502, %v2500
        %v2533 = vpack.c.b16 %v2503, %v2501
        %v2534 = vpack.c.b16 %v2506, %v2504
        %v2535 = vpack.c.b16 %v2507, %v2505
        %v2536 = vpack.c.b16 %v2510, %v2508
        %v2537 = vpack.c.b16 %v2511, %v2509
        %v2538 = vpack.c.b16 %v2514, %v2512
        %v2539 = vpack.c.b16 %v2515, %v2513
        %v2540 = vpack.c.b16 %v2518, %v2516
        %v2541 = vpack.c.b16 %v2519, %v2517
        %v2542 = vpack.c.b16 %v2522, %v2520
        %v2543 = vpack.c.b16 %v2523, %v2521
        %v2544 = vpack.c.b16 %v2526, %v2524
        %v2545 = vpack.c.b16 %v2527, %v2525
        %v2546 = vpack.c.b16 %v2530, %v2528
        %v2547 = vpack.c.b16 %v2531, %v2529
        %2564 = vmatprep.subr.bf16.mxu0 %v2533
        %2565 = vmatpush1.bf16.msra.mxu0 %v2532
        %2566 = vmatprep.subr.bf16.mxu0 %v2535
        %2567 = vmatpush1.bf16.msra.mxu0 %v2534
        %2568 = vmatprep.subr.bf16.mxu0 %v2537
        %2569 = vmatpush1.bf16.msra.mxu0 %v2536
        %2570 = vmatprep.subr.bf16.mxu0 %v2539
        %2571 = vmatpush1.bf16.msra.mxu0 %v2538
        %2572 = vmatprep.subr.bf16.mxu0 %v2541
        %2573 = vmatpush1.bf16.msra.mxu0 %v2540
        %2574 = vmatprep.subr.bf16.mxu0 %v2543
        %2575 = vmatpush1.bf16.msra.mxu0 %v2542
        %2576 = vmatprep.subr.bf16.mxu0 %v2545
        %2577 = vmatpush1.bf16.msra.mxu0 %v2544
        %2578 = vmatprep.subr.bf16.mxu0 %v2547
        %2579 = vmatpush1.bf16.msra.mxu0 %v2546
        %2580 = vmatprep.subr.bf16.mxu0 0
        %2581 = vmatpush1.bf16.msra.mxu0 0
        %2582 = vmatprep.subr.bf16.mxu0 0
        %2583 = vmatpush1.bf16.msra.mxu0 0
        %2584 = vmatprep.subr.bf16.mxu0 0
        %2585 = vmatpush1.bf16.msra.mxu0 0
        %2586 = vmatprep.subr.bf16.mxu0 0
        %2587 = vmatpush1.bf16.msra.mxu0 0
        %2588 = vmatprep.subr.bf16.mxu0 0
        %2589 = vmatpush1.bf16.msra.mxu0 0
        %2590 = vmatprep.subr.bf16.mxu0 0
        %2591 = vmatpush1.bf16.msra.mxu0 0
        %2592 = vmatprep.subr.bf16.mxu0 0
        %2593 = vmatpush1.bf16.msra.mxu0 0
        %2594 = vmatprep.subr.bf16.mxu0 0
        %2595 = vmatpush1.bf16.msra.mxu0 0
        %2596 = vmatprep.mubr.bf16.mxu0 0
        %2597 = vmatmul.mubr.bf16.gmra.mrb[0].mxu0 %v2483
        %v2598 = vpop.f32.mrb[0].mxu0
        %v2599 = vadd.f32 0.0, %v2598
        %v2600 = vpop.f32.mrb[0].mxu0
        %v2601 = vadd.f32 0.0, %v2600
        %v2602 = vpop.f32.mrb[0].mxu0
        %v2603 = vadd.f32 0.0, %v2602
        %v2604 = vpop.f32.mrb[0].mxu0
        %v2605 = vadd.f32 0.0, %v2604
        %2606 = vdwg.mxu0
        %v2607 = vmul.f32 %v2599, 0.5
        %v2608 = vmul.f32 %v2601, 0.5
        %v2609 = vmul.f32 %v2603, 0.5
        %v2610 = vmul.f32 %v2605, 0.5
        %v2611 = vmul.f32 %v2599, 0.044715
        %v2612 = vmul.f32 %v2601, 0.044715
        %v2613 = vmul.f32 %v2603, 0.044715
        %v2614 = vmul.f32 %v2605, 0.044715
        %v2615 = vmul.f32 %v2611, %v2599
        %v2616 = vmul.f32 %v2612, %v2601
        %v2617 = vmul.f32 %v2613, %v2603
        %v2618 = vmul.f32 %v2614, %v2605
        %v2619 = vmul.f32 %v2615, %v2599
        %v2620 = vmul.f32 %v2616, %v2601
        %v2621 = vmul.f32 %v2617, %v2603
        %v2622 = vmul.f32 %v2618, %v2605
        %v2623 = vadd.f32 %v2599, %v2619
        %v2624 = vadd.f32 %v2601, %v2620
        %v2625 = vadd.f32 %v2603, %v2621
        %v2626 = vadd.f32 %v2605, %v2622
        %v2627 = vmul.f32 %v2623, 0.7978846
        %v2628 = vmul.f32 %v2624, 0.7978846
        %v2629 = vmul.f32 %v2625, 0.7978846
        %v2630 = vmul.f32 %v2626, 0.7978846
        %v2631 = vtanh.pop %v2627
        %v2632 = vtanh.pop %v2628
        %v2633 = vtanh.pop %v2629
        %v2634 = vtanh.pop %v2630
        %v2635 = vadd.f32 %v2631, 1.0
        %v2636 = vadd.f32 %v2632, 1.0
        %v2637 = vadd.f32 %v2633, 1.0
        %v2638 = vadd.f32 %v2634, 1.0
        %v2639 = vmul.f32 %v2607, %v2635
        %v2640 = vmul.f32 %v2608, %v2636
        %v2641 = vmul.f32 %v2609, %v2637
        %v2642 = vmul.f32 %v2610, %v2638
        %v2659 = vunpack.c.l.b16 %v2435
        %v2660 = vunpack.c.h.b16 %v2435
        %v2661 = vunpack.c.l.b16 %v2436
        %v2662 = vunpack.c.h.b16 %v2436
        %v2663 = vunpack.c.l.b16 %v2437
        %v2664 = vunpack.c.h.b16 %v2437
        %v2665 = vunpack.c.l.b16 %v2438
        %v2666 = vunpack.c.h.b16 %v2438
        %v2667 = vunpack.c.l.b16 %v2439
        %v2668 = vunpack.c.h.b16 %v2439
        %v2669 = vunpack.c.l.b16 %v2440
        %v2670 = vunpack.c.h.b16 %v2440
        %v2671 = vunpack.c.l.b16 %v2441
        %v2672 = vunpack.c.h.b16 %v2441
        %v2673 = vunpack.c.l.b16 %v2442
        %v2674 = vunpack.c.h.b16 %v2442
        %v2675 = vunpack.c.l.b16 %v2443
        %v2676 = vunpack.c.h.b16 %v2443
        %v2677 = vunpack.c.l.b16 %v2444
        %v2678 = vunpack.c.h.b16 %v2444
        %v2679 = vunpack.c.l.b16 %v2445
        %v2680 = vunpack.c.h.b16 %v2445
        %v2681 = vunpack.c.l.b16 %v2446
        %v2682 = vunpack.c.h.b16 %v2446
        %v2683 = vunpack.c.l.b16 %v2447
        %v2684 = vunpack.c.h.b16 %v2447
        %v2685 = vunpack.c.l.b16 %v2448
        %v2686 = vunpack.c.h.b16 %v2448
        %v2687 = vunpack.c.l.b16 %v2449
        %v2688 = vunpack.c.h.b16 %v2449
        %v2689 = vunpack.c.l.b16 %v2450
        %v2690 = vunpack.c.h.b16 %v2450
        %v2691 = vpack.c.b16 %v2661, %v2659
        %v2692 = vpack.c.b16 %v2662, %v2660
        %v2693 = vpack.c.b16 %v2665, %v2663
        %v2694 = vpack.c.b16 %v2666, %v2664
        %v2695 = vpack.c.b16 %v2669, %v2667
        %v2696 = vpack.c.b16 %v2670, %v2668
        %v2697 = vpack.c.b16 %v2673, %v2671
        %v2698 = vpack.c.b16 %v2674, %v2672
        %v2699 = vpack.c.b16 %v2677, %v2675
        %v2700 = vpack.c.b16 %v2678, %v2676
        %v2701 = vpack.c.b16 %v2681, %v2679
        %v2702 = vpack.c.b16 %v2682, %v2680
        %v2703 = vpack.c.b16 %v2685, %v2683
        %v2704 = vpack.c.b16 %v2686, %v2684
        %v2705 = vpack.c.b16 %v2689, %v2687
        %v2706 = vpack.c.b16 %v2690, %v2688
        %2723 = vmatprep.subr.bf16.mxu0 %v2692
        %2724 = vmatpush1.bf16.msra.mxu0 %v2691
        %2725 = vmatprep.subr.bf16.mxu0 %v2694
        %2726 = vmatpush1.bf16.msra.mxu0 %v2693
        %2727 = vmatprep.subr.bf16.mxu0 %v2696
        %2728 = vmatpush1.bf16.msra.mxu0 %v2695
        %2729 = vmatprep.subr.bf16.mxu0 %v2698
        %2730 = vmatpush1.bf16.msra.mxu0 %v2697
        %2731 = vmatprep.subr.bf16.mxu0 %v2700
        %2732 = vmatpush1.bf16.msra.mxu0 %v2699
        %2733 = vmatprep.subr.bf16.mxu0 %v2702
        %2734 = vmatpush1.bf16.msra.mxu0 %v2701
        %2735 = vmatprep.subr.bf16.mxu0 %v2704
        %2736 = vmatpush1.bf16.msra.mxu0 %v2703
        %2737 = vmatprep.subr.bf16.mxu0 %v2706
        %2738 = vmatpush1.bf16.msra.mxu0 %v2705
        %2739 = vmatprep.subr.bf16.mxu0 0
        %2740 = vmatpush1.bf16.msra.mxu0 0
        %2741 = vmatprep.subr.bf16.mxu0 0
        %2742 = vmatpush1.bf16.msra.mxu0 0
        %2743 = vmatprep.subr.bf16.mxu0 0
        %2744 = vmatpush1.bf16.msra.mxu0 0
        %2745 = vmatprep.subr.bf16.mxu0 0
        %2746 = vmatpush1.bf16.msra.mxu0 0
        %2747 = vmatprep.subr.bf16.mxu0 0
        %2748 = vmatpush1.bf16.msra.mxu0 0
        %2749 = vmatprep.subr.bf16.mxu0 0
        %2750 = vmatpush1.bf16.msra.mxu0 0
        %2751 = vmatprep.subr.bf16.mxu0 0
        %2752 = vmatpush1.bf16.msra.mxu0 0
        %2753 = vmatprep.subr.bf16.mxu0 0
        %2754 = vmatpush1.bf16.msra.mxu0 0
        %2755 = vmatprep.mubr.bf16.mxu0 0
        %2756 = vmatmul.mubr.bf16.gmra.mrb[0].mxu0 %v2483
        %v2757 = vpop.f32.mrb[0].mxu0
        %v2758 = vadd.f32 0.0, %v2757
        %v2759 = vpop.f32.mrb[0].mxu0
        %v2760 = vadd.f32 0.0, %v2759
        %v2761 = vpop.f32.mrb[0].mxu0
        %v2762 = vadd.f32 0.0, %v2761
        %v2763 = vpop.f32.mrb[0].mxu0
        %v2764 = vadd.f32 0.0, %v2763
        %2765 = vdwg.mxu0
        %v2766 = vmul.f32 %v2639, %v2758
        %v2767 = vmul.f32 %v2640, %v2760
        %v2768 = vmul.f32 %v2641, %v2762
        %v2769 = vmul.f32 %v2642, %v2764
        %v2770 = vpack.c.bf16 %v2768, %v2766
        %v2771 = vpack.c.bf16 %v2769, %v2767
        %v2804 = vunpack.c.l.b16 %v2451
        %v2805 = vunpack.c.l.b16 %v2452
        %v2806 = vunpack.c.l.b16 %v2453
        %v2807 = vunpack.c.l.b16 %v2454
        %v2808 = vunpack.c.l.b16 %v2455
        %v2809 = vunpack.c.l.b16 %v2456
        %v2810 = vunpack.c.l.b16 %v2457
        %v2811 = vunpack.c.l.b16 %v2458
        %v2812 = vunpack.c.l.b16 %v2459
        %v2813 = vunpack.c.l.b16 %v2460
        %v2814 = vunpack.c.l.b16 %v2461
        %v2815 = vunpack.c.l.b16 %v2462
        %v2816 = vunpack.c.l.b16 %v2463
        %v2817 = vunpack.c.l.b16 %v2464
        %v2818 = vunpack.c.l.b16 %v2465
        %v2819 = vunpack.c.l.b16 %v2466
        %v2820 = vunpack.c.l.b16 %v2467
        %v2821 = vunpack.c.l.b16 %v2468
        %v2822 = vunpack.c.l.b16 %v2469
        %v2823 = vunpack.c.l.b16 %v2470
        %v2824 = vunpack.c.l.b16 %v2471
        %v2825 = vunpack.c.l.b16 %v2472
        %v2826 = vunpack.c.l.b16 %v2473
        %v2827 = vunpack.c.l.b16 %v2474
        %v2828 = vunpack.c.l.b16 %v2475
        %v2829 = vunpack.c.l.b16 %v2476
        %v2830 = vunpack.c.l.b16 %v2477
        %v2831 = vunpack.c.l.b16 %v2478
        %v2832 = vunpack.c.l.b16 %v2479
        %v2833 = vunpack.c.l.b16 %v2480
        %v2834 = vunpack.c.l.b16 %v2481
        %v2835 = vunpack.c.l.b16 %v2482
        %v2836 = vpack.c.b16 %v2805, %v2804
        %v2837 = vpack.c.b16 %v2807, %v2806
        %v2838 = vpack.c.b16 %v2809, %v2808
        %v2839 = vpack.c.b16 %v2811, %v2810
        %v2840 = vpack.c.b16 %v2813, %v2812
        %v2841 = vpack.c.b16 %v2815, %v2814
        %v2842 = vpack.c.b16 %v2817, %v2816
        %v2843 = vpack.c.b16 %v2819, %v2818
        %v2844 = vpack.c.b16 %v2821, %v2820
        %v2845 = vpack.c.b16 %v2823, %v2822
        %v2846 = vpack.c.b16 %v2825, %v2824
        %v2847 = vpack.c.b16 %v2827, %v2826
        %v2848 = vpack.c.b16 %v2829, %v2828
        %v2849 = vpack.c.b16 %v2831, %v2830
        %v2850 = vpack.c.b16 %v2833, %v2832
        %v2851 = vpack.c.b16 %v2835, %v2834
        %2868 = vmatprep.subr.bf16.mxu0 0
        %2869 = vmatpush1.bf16.msra.mxu0 %v2836
        %2870 = vmatprep.subr.bf16.mxu0 0
        %2871 = vmatpush1.bf16.msra.mxu0 %v2837
        %2872 = vmatprep.subr.bf16.mxu0 0
        %2873 = vmatpush1.bf16.msra.mxu0 %v2838
        %2874 = vmatprep.subr.bf16.mxu0 0
        %2875 = vmatpush1.bf16.msra.mxu0 %v2839
        %2876 = vmatprep.subr.bf16.mxu0 0
        %2877 = vmatpush1.bf16.msra.mxu0 %v2840
        %2878 = vmatprep.subr.bf16.mxu0 0
        %2879 = vmatpush1.bf16.msra.mxu0 %v2841
        %2880 = vmatprep.subr.bf16.mxu0 0
        %2881 = vmatpush1.bf16.msra.mxu0 %v2842
        %2882 = vmatprep.subr.bf16.mxu0 0
        %2883 = vmatpush1.bf16.msra.mxu0 %v2843
        %2884 = vmatprep.subr.bf16.mxu0 0
        %2885 = vmatpush1.bf16.msra.mxu0 %v2844
        %2886 = vmatprep.subr.bf16.mxu0 0
        %2887 = vmatpush1.bf16.msra.mxu0 %v2845
        %2888 = vmatprep.subr.bf16.mxu0 0
        %2889 = vmatpush1.bf16.msra.mxu0 %v2846
        %2890 = vmatprep.subr.bf16.mxu0 0
        %2891 = vmatpush1.bf16.msra.mxu0 %v2847
        %2892 = vmatprep.subr.bf16.mxu0 0
        %2893 = vmatpush1.bf16.msra.mxu0 %v2848
        %2894 = vmatprep.subr.bf16.mxu0 0
        %2895 = vmatpush1.bf16.msra.mxu0 %v2849
        %2896 = vmatprep.subr.bf16.mxu0 0
        %2897 = vmatpush1.bf16.msra.mxu0 %v2850
        %2898 = vmatprep.subr.bf16.mxu0 0
        %2899 = vmatpush1.bf16.msra.mxu0 %v2851
        %2900 = vmatprep.mubr.bf16.mxu0 %v2771
        %2901 = vmatmul.mubr.bf16.gmra.mrb[0].mxu0 %v2770
        %v2902 = vpop.f32.mrb[0].mxu0
        %v2903 = vadd.f32 0.0, %v2902
        %v2904 = vpop.f32.mrb[0].mxu0
        %v2905 = vpop.f32.mrb[0].mxu0
        %v2906 = vadd.f32 0.0, %v2905
        %v2907 = vpop.f32.mrb[0].mxu0
        %2908 = vdwg.mxu0
        %v2909 = vadd.f32 %v2394, %v2903
        %v2910 = vadd.f32 %v2395, %v2906
        %s2911 = scalar_lea.vmem %s2, 1
        %v2912 = vld [vmem:[%s2911] sm:$0x1]
        %v2913 = vmul.f32 %v2909, %v2909
        %v2914 = vmul.f32 %v2910, %v2910
        %2915 = vadd.xlane.f32.xlu0 %v2913
        %v2916 = vpop.xlane.xlu0 %2915
        %2917 = vadd.xlane.f32.xlu0 %v2914
        %v2918 = vpop.xlane.xlu0 %2917
        %v2919 = vmul.f32 %v2916, %v376
        %v2920 = vmul.f32 %v2918, %v376
        %v2921 = vadd.f32 %v2919, 1e-06
        %v2922 = vadd.f32 %v2920, 1e-06
        %v2923 = vrsqrt.pop %v2921
        %v2924 = vrsqrt.pop %v2922
        %v2925 = vmul.f32 %v2909, %v2923
        %v2926 = vmul.f32 %v2910, %v2924
        %v2928 = vlaneseq
        %v2929 = vshrl.u32 %v2928, 7
        %v2930 = vsub.s32 0, %v2929
        %v2931 = vrot.slane %v2912, %v2930
        %v2933 = vmul.f32 %v2925, %v2931
        %v2934 = vmul.f32 %v2926, %v2931
        %s2935 = scalar_lea.vmem %s3, 192
        %v2936 = vld [vmem:[%s2935] sm:$0xff]
        %v2937 = vld [vmem:[%s2935 + $0x8] sm:$0xf]
        %v2938 = vld [vmem:[%s2935 + $0xc] sm:$0xff]
        %v2939 = vld [vmem:[%s2935 + $0x14] sm:$0xf]
        %v2940 = vld [vmem:[%s2935 + $0x18] sm:$0xff]
        %v2941 = vld [vmem:[%s2935 + $0x20] sm:$0xf]
        %v2942 = vld [vmem:[%s2935 + $0x24] sm:$0xff]
        %v2943 = vld [vmem:[%s2935 + $0x2c] sm:$0xf]
        %v2944 = vld [vmem:[%s2935 + $0x30] sm:$0xff]
        %v2945 = vld [vmem:[%s2935 + $0x38] sm:$0xf]
        %v2946 = vld [vmem:[%s2935 + $0x3c] sm:$0xff]
        %v2947 = vld [vmem:[%s2935 + $0x44] sm:$0xf]
        %v2948 = vld [vmem:[%s2935 + $0x48] sm:$0xff]
        %v2949 = vld [vmem:[%s2935 + $0x50] sm:$0xf]
        %v2950 = vld [vmem:[%s2935 + $0x54] sm:$0xff]
        %v2951 = vld [vmem:[%s2935 + $0x5c] sm:$0xf]
        %v2952 = vld [vmem:[%s2935 + $0x60] sm:$0xff]
        %v2953 = vld [vmem:[%s2935 + $0x68] sm:$0xf]
        %v2954 = vld [vmem:[%s2935 + $0x6c] sm:$0xff]
        %v2955 = vld [vmem:[%s2935 + $0x74] sm:$0xf]
        %v2956 = vld [vmem:[%s2935 + $0x78] sm:$0xff]
        %v2957 = vld [vmem:[%s2935 + $0x80] sm:$0xf]
        %v2958 = vld [vmem:[%s2935 + $0x84] sm:$0xff]
        %v2959 = vld [vmem:[%s2935 + $0x8c] sm:$0xf]
        %v2960 = vld [vmem:[%s2935 + $0x90] sm:$0xff]
        %v2961 = vld [vmem:[%s2935 + $0x98] sm:$0xf]
        %v2962 = vld [vmem:[%s2935 + $0x9c] sm:$0xff]
        %v2963 = vld [vmem:[%s2935 + $0xa4] sm:$0xf]
        %v2964 = vld [vmem:[%s2935 + $0xa8] sm:$0xff]
        %v2965 = vld [vmem:[%s2935 + $0xb0] sm:$0xf]
        %v2966 = vld [vmem:[%s2935 + $0xb4] sm:$0xff]
        %v2967 = vld [vmem:[%s2935 + $0xbc] sm:$0xf]
        %s2968 = scalar_lea.vmem %s4, 64
        %v2969 = vld [vmem:[%s2968] sm:$0xf]
        %v2970 = vld [vmem:[%s2968 + $0x4] sm:$0xf]
        %v2971 = vld [vmem:[%s2968 + $0x8] sm:$0xf]
        %v2972 = vld [vmem:[%s2968 + $0xc] sm:$0xf]
        %v2973 = vld [vmem:[%s2968 + $0x10] sm:$0xf]
        %v2974 = vld [vmem:[%s2968 + $0x14] sm:$0xf]
        %v2975 = vld [vmem:[%s2968 + $0x18] sm:$0xf]
        %v2976 = vld [vmem:[%s2968 + $0x1c] sm:$0xf]
        %v2977 = vld [vmem:[%s2968 + $0x20] sm:$0xf]
        %v2978 = vld [vmem:[%s2968 + $0x24] sm:$0xf]
        %v2979 = vld [vmem:[%s2968 + $0x28] sm:$0xf]
        %v2980 = vld [vmem:[%s2968 + $0x2c] sm:$0xf]
        %v2981 = vld [vmem:[%s2968 + $0x30] sm:$0xf]
        %v2982 = vld [vmem:[%s2968 + $0x34] sm:$0xf]
        %v2983 = vld [vmem:[%s2968 + $0x38] sm:$0xf]
        %v2984 = vld [vmem:[%s2968 + $0x3c] sm:$0xf]
        %v2985 = vpack.c.bf16 %v2934, %v2933
        %v3018 = vunpack.c.l.b16 %v2936
        %v3019 = vunpack.c.h.b16 %v2936
        %v3020 = vunpack.c.l.b16 %v2937
        %v3021 = vunpack.c.l.b16 %v2938
        %v3022 = vunpack.c.h.b16 %v2938
        %v3023 = vunpack.c.l.b16 %v2939
        %v3024 = vunpack.c.l.b16 %v2940
        %v3025 = vunpack.c.h.b16 %v2940
        %v3026 = vunpack.c.l.b16 %v2941
        %v3027 = vunpack.c.l.b16 %v2942
        %v3028 = vunpack.c.h.b16 %v2942
        %v3029 = vunpack.c.l.b16 %v2943
        %v3030 = vunpack.c.l.b16 %v2944
        %v3031 = vunpack.c.h.b16 %v2944
        %v3032 = vunpack.c.l.b16 %v2945
        %v3033 = vunpack.c.l.b16 %v2946
        %v3034 = vunpack.c.h.b16 %v2946
        %v3035 = vunpack.c.l.b16 %v2947
        %v3036 = vunpack.c.l.b16 %v2948
        %v3037 = vunpack.c.h.b16 %v2948
        %v3038 = vunpack.c.l.b16 %v2949
        %v3039 = vunpack.c.l.b16 %v2950
        %v3040 = vunpack.c.h.b16 %v2950
        %v3041 = vunpack.c.l.b16 %v2951
        %v3042 = vunpack.c.l.b16 %v2952
        %v3043 = vunpack.c.h.b16 %v2952
        %v3044 = vunpack.c.l.b16 %v2953
        %v3045 = vunpack.c.l.b16 %v2954
        %v3046 = vunpack.c.h.b16 %v2954
        %v3047 = vunpack.c.l.b16 %v2955
        %v3048 = vunpack.c.l.b16 %v2956
        %v3049 = vunpack.c.h.b16 %v2956
        %v3050 = vunpack.c.l.b16 %v2957
        %v3051 = vunpack.c.l.b16 %v2958
        %v3052 = vunpack.c.h.b16 %v2958
        %v3053 = vunpack.c.l.b16 %v2959
        %v3054 = vunpack.c.l.b16 %v2960
        %v3055 = vunpack.c.h.b16 %v2960
        %v3056 = vunpack.c.l.b16 %v2961
        %v3057 = vunpack.c.l.b16 %v2962
        %v3058 = vunpack.c.h.b16 %v2962
        %v3059 = vunpack.c.l.b16 %v2963
        %v3060 = vunpack.c.l.b16 %v2964
        %v3061 = vunpack.c.h.b16 %v2964
        %v3062 = vunpack.c.l.b16 %v2965
        %v3063 = vunpack.c.l.b16 %v2966
        %v3064 = vunpack.c.h.b16 %v2966
        %v3065 = vunpack.c.l.b16 %v2967
        %v3066 = vpack.c.b16 %v3021, %v3018
        %v3067 = vpack.c.b16 %v3022, %v3019
        %v3068 = vpack.c.b16 %v3023, %v3020
        %v3069 = vpack.c.b16 %v3027, %v3024
        %v3070 = vpack.c.b16 %v3028, %v3025
        %v3071 = vpack.c.b16 %v3029, %v3026
        %v3072 = vpack.c.b16 %v3033, %v3030
        %v3073 = vpack.c.b16 %v3034, %v3031
        %v3074 = vpack.c.b16 %v3035, %v3032
        %v3075 = vpack.c.b16 %v3039, %v3036
        %v3076 = vpack.c.b16 %v3040, %v3037
        %v3077 = vpack.c.b16 %v3041, %v3038
        %v3078 = vpack.c.b16 %v3045, %v3042
        %v3079 = vpack.c.b16 %v3046, %v3043
        %v3080 = vpack.c.b16 %v3047, %v3044
        %v3081 = vpack.c.b16 %v3051, %v3048
        %v3082 = vpack.c.b16 %v3052, %v3049
        %v3083 = vpack.c.b16 %v3053, %v3050
        %v3084 = vpack.c.b16 %v3057, %v3054
        %v3085 = vpack.c.b16 %v3058, %v3055
        %v3086 = vpack.c.b16 %v3059, %v3056
        %v3087 = vpack.c.b16 %v3063, %v3060
        %v3088 = vpack.c.b16 %v3064, %v3061
        %v3089 = vpack.c.b16 %v3065, %v3062
        %3114 = vmatprep.subr.bf16.mxu0 %v3067
        %3115 = vmatpush1.bf16.msra.mxu0 %v3066
        %3116 = vmatprep.subr.bf16.mxu0 %v3070
        %3117 = vmatpush1.bf16.msra.mxu0 %v3069
        %3118 = vmatprep.subr.bf16.mxu0 %v3073
        %3119 = vmatpush1.bf16.msra.mxu0 %v3072
        %3120 = vmatprep.subr.bf16.mxu0 %v3076
        %3121 = vmatpush1.bf16.msra.mxu0 %v3075
        %3122 = vmatprep.subr.bf16.mxu0 %v3079
        %3123 = vmatpush1.bf16.msra.mxu0 %v3078
        %3124 = vmatprep.subr.bf16.mxu0 %v3082
        %3125 = vmatpush1.bf16.msra.mxu0 %v3081
        %3126 = vmatprep.subr.bf16.mxu0 %v3085
        %3127 = vmatpush1.bf16.msra.mxu0 %v3084
        %3128 = vmatprep.subr.bf16.mxu0 %v3088
        %3129 = vmatpush1.bf16.msra.mxu0 %v3087
        %3130 = vmatprep.subr.bf16.mxu0 0
        %3131 = vmatpush1.bf16.msra.mxu0 0
        %3132 = vmatprep.subr.bf16.mxu0 0
        %3133 = vmatpush1.bf16.msra.mxu0 0
        %3134 = vmatprep.subr.bf16.mxu0 0
        %3135 = vmatpush1.bf16.msra.mxu0 0
        %3136 = vmatprep.subr.bf16.mxu0 0
        %3137 = vmatpush1.bf16.msra.mxu0 0
        %3138 = vmatprep.subr.bf16.mxu0 0
        %3139 = vmatpush1.bf16.msra.mxu0 0
        %3140 = vmatprep.subr.bf16.mxu0 0
        %3141 = vmatpush1.bf16.msra.mxu0 0
        %3142 = vmatprep.subr.bf16.mxu0 0
        %3143 = vmatpush1.bf16.msra.mxu0 0
        %3144 = vmatprep.subr.bf16.mxu0 0
        %3145 = vmatpush1.bf16.msra.mxu0 0
        %3146 = vmatprep.mubr.bf16.mxu0 0
        %3147 = vmatmul.mubr.bf16.gmra.mrb[0].mxu0 %v2985
        %v3148 = vpop.f32.mrb[0].mxu0
        %v3149 = vadd.f32 0.0, %v3148
        %v3150 = vpop.f32.mrb[0].mxu0
        %v3151 = vadd.f32 0.0, %v3150
        %v3152 = vpop.f32.mrb[0].mxu0
        %v3153 = vadd.f32 0.0, %v3152
        %v3154 = vpop.f32.mrb[0].mxu0
        %v3155 = vadd.f32 0.0, %v3154
        %3156 = vdwg.mxu0
        %3157 = vmatprep.subr.bf16.mxu0 0
        %3158 = vmatpush1.bf16.msra.mxu0 %v3068
        %3159 = vmatprep.subr.bf16.mxu0 0
        %3160 = vmatpush1.bf16.msra.mxu0 %v3071
        %3161 = vmatprep.subr.bf16.mxu0 0
        %3162 = vmatpush1.bf16.msra.mxu0 %v3074
        %3163 = vmatprep.subr.bf16.mxu0 0
        %3164 = vmatpush1.bf16.msra.mxu0 %v3077
        %3165 = vmatprep.subr.bf16.mxu0 0
        %3166 = vmatpush1.bf16.msra.mxu0 %v3080
        %3167 = vmatprep.subr.bf16.mxu0 0
        %3168 = vmatpush1.bf16.msra.mxu0 %v3083
        %3169 = vmatprep.subr.bf16.mxu0 0
        %3170 = vmatpush1.bf16.msra.mxu0 %v3086
        %3171 = vmatprep.subr.bf16.mxu0 0
        %3172 = vmatpush1.bf16.msra.mxu0 %v3089
        %3173 = vmatprep.subr.bf16.mxu0 0
        %3174 = vmatpush1.bf16.msra.mxu0 0
        %3175 = vmatprep.subr.bf16.mxu0 0
        %3176 = vmatpush1.bf16.msra.mxu0 0
        %3177 = vmatprep.subr.bf16.mxu0 0
        %3178 = vmatpush1.bf16.msra.mxu0 0
        %3179 = vmatprep.subr.bf16.mxu0 0
        %3180 = vmatpush1.bf16.msra.mxu0 0
        %3181 = vmatprep.subr.bf16.mxu0 0
        %3182 = vmatpush1.bf16.msra.mxu0 0
        %3183 = vmatprep.subr.bf16.mxu0 0
        %3184 = vmatpush1.bf16.msra.mxu0 0
        %3185 = vmatprep.subr.bf16.mxu0 0
        %3186 = vmatpush1.bf16.msra.mxu0 0
        %3187 = vmatprep.subr.bf16.mxu0 0
        %3188 = vmatpush1.bf16.msra.mxu0 0
        %3189 = vmatprep.mubr.bf16.mxu0 0
        %3190 = vmatmul.mubr.bf16.gmra.mrb[0].mxu0 %v2985
        %v3191 = vpop.f32.mrb[0].mxu0
        %v3192 = vadd.f32 0.0, %v3191
        %v3193 = vpop.f32.mrb[0].mxu0
        %v3194 = vpop.f32.mrb[0].mxu0
        %v3195 = vadd.f32 0.0, %v3194
        %v3196 = vpop.f32.mrb[0].mxu0
        %3197 = vdwg.mxu0
        %3200 = vrot.lane.b32.xlu0 %v3149, 96
        %v3201 = vpop.permute.xlu0 %3200
        %3202 = vrot.lane.b32.xlu0 %v3153, 96
        %v3203 = vpop.permute.xlu0 %3202
        %3206 = vrot.lane.b32.xlu0 %v3149, 64
        %v3207 = vpop.permute.xlu0 %3206
        %3208 = vrot.lane.b32.xlu0 %v3153, 64
        %v3209 = vpop.permute.xlu0 %3208
        %3212 = vrot.lane.b32.xlu0 %v3149, 32
        %v3213 = vpop.permute.xlu0 %3212
        %3214 = vrot.lane.b32.xlu0 %v3153, 32
        %v3215 = vpop.permute.xlu0 %3214
        %v3218 = vcombine.low %v3149, %v3207
        %v3219 = vcombine.high %v3149, %v3207
        %v3221 = vunpack.c.l.s4 1983009808
        %v3222 = vunpack.c.0.s8 %v3221
        %v3223 = vlaneseq
        %v3224 = vshrl.u32 %v3223, 7
        %v3225 = vsub.s32 %v3222, %v3224
        %v3226 = vrot.slane %v3218, %v3225
        %v3228 = vunpack.c.l.s4 1983009808
        %v3229 = vunpack.c.0.s8 %v3228
        %v3230 = vlaneseq
        %v3231 = vshrl.u32 %v3230, 7
        %v3232 = vsub.s32 %v3229, %v3231
        %v3233 = vrot.slane %v3219, %v3232
        %v3234 = vcombine.low %v3201, %v3213
        %v3235 = vcombine.high %v3201, %v3213
        %v3237 = vunpack.c.l.s4 1983009808
        %v3238 = vunpack.c.0.s8 %v3237
        %v3239 = vlaneseq
        %v3240 = vshrl.u32 %v3239, 7
        %v3241 = vsub.s32 %v3238, %v3240
        %v3242 = vrot.slane %v3234, %v3241
        %v3244 = vunpack.c.l.s4 1983009808
        %v3245 = vunpack.c.0.s8 %v3244
        %v3246 = vlaneseq
        %v3247 = vshrl.u32 %v3246, 7
        %v3248 = vsub.s32 %v3245, %v3247
        %v3249 = vrot.slane %v3235, %v3248
        %v3250 = vcombine.low %v3226, %v3242
        %v3251 = vcombine.high %v3226, %v3242
        %v3253 = vunpack.c.l.s4 1934713408
        %v3254 = vunpack.c.0.s8 %v3253
        %v3255 = vlaneseq
        %v3256 = vshrl.u32 %v3255, 7
        %v3257 = vsub.s32 %v3254, %v3256
        %v3258 = vrot.slane %v3250, %v3257
        %v3260 = vunpack.c.l.s4 1934713408
        %v3261 = vunpack.c.0.s8 %v3260
        %v3262 = vlaneseq
        %v3263 = vshrl.u32 %v3262, 7
        %v3264 = vsub.s32 %v3261, %v3263
        %v3265 = vrot.slane %v3251, %v3264
        %v3266 = vcombine.low %v3233, %v3249
        %v3267 = vcombine.high %v3233, %v3249
        %v3269 = vunpack.c.l.s4 1934713408
        %v3270 = vunpack.c.0.s8 %v3269
        %v3271 = vlaneseq
        %v3272 = vshrl.u32 %v3271, 7
        %v3273 = vsub.s32 %v3270, %v3272
        %v3274 = vrot.slane %v3266, %v3273
        %v3276 = vunpack.c.l.s4 1934713408
        %v3277 = vunpack.c.0.s8 %v3276
        %v3278 = vlaneseq
        %v3279 = vshrl.u32 %v3278, 7
        %v3280 = vsub.s32 %v3277, %v3279
        %v3281 = vrot.slane %v3267, %v3280
        %v3282 = vcombine.high %v3258, 0.0
        %v3283 = vcombine.high %v3265, 0.0
        %v3284 = vcombine.high %v3274, 0.0
        %v3285 = vcombine.high %v3281, 0.0
        %v3286 = vcombine.low %v3153, %v3209
        %v3287 = vcombine.high %v3153, %v3209
        %v3289 = vunpack.c.l.s4 1983009808
        %v3290 = vunpack.c.0.s8 %v3289
        %v3291 = vlaneseq
        %v3292 = vshrl.u32 %v3291, 7
        %v3293 = vsub.s32 %v3290, %v3292
        %v3294 = vrot.slane %v3286, %v3293
        %v3296 = vunpack.c.l.s4 1983009808
        %v3297 = vunpack.c.0.s8 %v3296
        %v3298 = vlaneseq
        %v3299 = vshrl.u32 %v3298, 7
        %v3300 = vsub.s32 %v3297, %v3299
        %v3301 = vrot.slane %v3287, %v3300
        %v3302 = vcombine.low %v3203, %v3215
        %v3303 = vcombine.high %v3203, %v3215
        %v3305 = vunpack.c.l.s4 1983009808
        %v3306 = vunpack.c.0.s8 %v3305
        %v3307 = vlaneseq
        %v3308 = vshrl.u32 %v3307, 7
        %v3309 = vsub.s32 %v3306, %v3308
        %v3310 = vrot.slane %v3302, %v3309
        %v3312 = vunpack.c.l.s4 1983009808
        %v3313 = vunpack.c.0.s8 %v3312
        %v3314 = vlaneseq
        %v3315 = vshrl.u32 %v3314, 7
        %v3316 = vsub.s32 %v3313, %v3315
        %v3317 = vrot.slane %v3303, %v3316
        %v3318 = vcombine.low %v3294, %v3310
        %v3319 = vcombine.high %v3294, %v3310
        %v3321 = vunpack.c.l.s4 1934713408
        %v3322 = vunpack.c.0.s8 %v3321
        %v3323 = vlaneseq
        %v3324 = vshrl.u32 %v3323, 7
        %v3325 = vsub.s32 %v3322, %v3324
        %v3326 = vrot.slane %v3318, %v3325
        %v3328 = vunpack.c.l.s4 1934713408
        %v3329 = vunpack.c.0.s8 %v3328
        %v3330 = vlaneseq
        %v3331 = vshrl.u32 %v3330, 7
        %v3332 = vsub.s32 %v3329, %v3331
        %v3333 = vrot.slane %v3319, %v3332
        %v3334 = vcombine.low %v3301, %v3317
        %v3335 = vcombine.high %v3301, %v3317
        %v3337 = vunpack.c.l.s4 1934713408
        %v3338 = vunpack.c.0.s8 %v3337
        %v3339 = vlaneseq
        %v3340 = vshrl.u32 %v3339, 7
        %v3341 = vsub.s32 %v3338, %v3340
        %v3342 = vrot.slane %v3334, %v3341
        %v3344 = vunpack.c.l.s4 1934713408
        %v3345 = vunpack.c.0.s8 %v3344
        %v3346 = vlaneseq
        %v3347 = vshrl.u32 %v3346, 7
        %v3348 = vsub.s32 %v3345, %v3347
        %v3349 = vrot.slane %v3335, %v3348
        %v3350 = vcombine.high %v3326, 0.0
        %v3351 = vcombine.high %v3333, 0.0
        %v3352 = vcombine.high %v3342, 0.0
        %v3353 = vcombine.high %v3349, 0.0
        %v3354 = vcombine.low %v3258, %v3265
        %v3356 = vunpack.c.l.s4 1983009808
        %v3357 = vunpack.c.0.s8 %v3356
        %v3358 = vlaneseq
        %v3359 = vshrl.u32 %v3358, 7
        %v3360 = vsub.s32 %v3357, %v3359
        %v3361 = vrot.slane %v3354, %v3360
        %v3362 = vcombine.low %v3282, %v3283
        %v3364 = vunpack.c.l.s4 1983009808
        %v3365 = vunpack.c.0.s8 %v3364
        %v3366 = vlaneseq
        %v3367 = vshrl.u32 %v3366, 7
        %v3368 = vsub.s32 %v3365, %v3367
        %v3369 = vrot.slane %v3362, %v3368
        %v3370 = vcombine.low %v3274, %v3281
        %v3372 = vunpack.c.l.s4 1983009808
        %v3373 = vunpack.c.0.s8 %v3372
        %v3374 = vlaneseq
        %v3375 = vshrl.u32 %v3374, 7
        %v3376 = vsub.s32 %v3373, %v3375
        %v3377 = vrot.slane %v3370, %v3376
        %v3378 = vcombine.low %v3284, %v3285
        %v3380 = vunpack.c.l.s4 1983009808
        %v3381 = vunpack.c.0.s8 %v3380
        %v3382 = vlaneseq
        %v3383 = vshrl.u32 %v3382, 7
        %v3384 = vsub.s32 %v3381, %v3383
        %v3385 = vrot.slane %v3378, %v3384
        %v3386 = vcombine.low %v3361, %v3369
        %v3387 = vcombine.high %v3361, %v3369
        %v3389 = vunpack.c.l.s4 1934713408
        %v3390 = vunpack.c.0.s8 %v3389
        %v3391 = vlaneseq
        %v3392 = vshrl.u32 %v3391, 7
        %v3393 = vsub.s32 %v3390, %v3392
        %v3394 = vrot.slane %v3386, %v3393
        %v3396 = vunpack.c.l.s4 1934713408
        %v3397 = vunpack.c.0.s8 %v3396
        %v3398 = vlaneseq
        %v3399 = vshrl.u32 %v3398, 7
        %v3400 = vsub.s32 %v3397, %v3399
        %v3401 = vrot.slane %v3387, %v3400
        %v3402 = vcombine.low %v3377, %v3385
        %v3403 = vcombine.high %v3377, %v3385
        %v3405 = vunpack.c.l.s4 1934713408
        %v3406 = vunpack.c.0.s8 %v3405
        %v3407 = vlaneseq
        %v3408 = vshrl.u32 %v3407, 7
        %v3409 = vsub.s32 %v3406, %v3408
        %v3410 = vrot.slane %v3402, %v3409
        %v3412 = vunpack.c.l.s4 1934713408
        %v3413 = vunpack.c.0.s8 %v3412
        %v3414 = vlaneseq
        %v3415 = vshrl.u32 %v3414, 7
        %v3416 = vsub.s32 %v3413, %v3415
        %v3417 = vrot.slane %v3403, %v3416
        %v3418 = vcombine.low %v3394, %v3410
        %v3419 = vcombine.high %v3394, %v3410
        %v3420 = vcombine.low %v3401, %v3417
        %v3421 = vcombine.high %v3401, %v3417
        %v3422 = vcombine.low %v3326, %v3333
        %v3424 = vunpack.c.l.s4 1983009808
        %v3425 = vunpack.c.0.s8 %v3424
        %v3426 = vlaneseq
        %v3427 = vshrl.u32 %v3426, 7
        %v3428 = vsub.s32 %v3425, %v3427
        %v3429 = vrot.slane %v3422, %v3428
        %v3430 = vcombine.low %v3350, %v3351
        %v3432 = vunpack.c.l.s4 1983009808
        %v3433 = vunpack.c.0.s8 %v3432
        %v3434 = vlaneseq
        %v3435 = vshrl.u32 %v3434, 7
        %v3436 = vsub.s32 %v3433, %v3435
        %v3437 = vrot.slane %v3430, %v3436
        %v3438 = vcombine.low %v3342, %v3349
        %v3440 = vunpack.c.l.s4 1983009808
        %v3441 = vunpack.c.0.s8 %v3440
        %v3442 = vlaneseq
        %v3443 = vshrl.u32 %v3442, 7
        %v3444 = vsub.s32 %v3441, %v3443
        %v3445 = vrot.slane %v3438, %v3444
        %v3446 = vcombine.low %v3352, %v3353
        %v3448 = vunpack.c.l.s4 1983009808
        %v3449 = vunpack.c.0.s8 %v3448
        %v3450 = vlaneseq
        %v3451 = vshrl.u32 %v3450, 7
        %v3452 = vsub.s32 %v3449, %v3451
        %v3453 = vrot.slane %v3446, %v3452
        %v3454 = vcombine.low %v3429, %v3437
        %v3455 = vcombine.high %v3429, %v3437
        %v3457 = vunpack.c.l.s4 1934713408
        %v3458 = vunpack.c.0.s8 %v3457
        %v3459 = vlaneseq
        %v3460 = vshrl.u32 %v3459, 7
        %v3461 = vsub.s32 %v3458, %v3460
        %v3462 = vrot.slane %v3454, %v3461
        %v3464 = vunpack.c.l.s4 1934713408
        %v3465 = vunpack.c.0.s8 %v3464
        %v3466 = vlaneseq
        %v3467 = vshrl.u32 %v3466, 7
        %v3468 = vsub.s32 %v3465, %v3467
        %v3469 = vrot.slane %v3455, %v3468
        %v3470 = vcombine.low %v3445, %v3453
        %v3471 = vcombine.high %v3445, %v3453
        %v3473 = vunpack.c.l.s4 1934713408
        %v3474 = vunpack.c.0.s8 %v3473
        %v3475 = vlaneseq
        %v3476 = vshrl.u32 %v3475, 7
        %v3477 = vsub.s32 %v3474, %v3476
        %v3478 = vrot.slane %v3470, %v3477
        %v3480 = vunpack.c.l.s4 1934713408
        %v3481 = vunpack.c.0.s8 %v3480
        %v3482 = vlaneseq
        %v3483 = vshrl.u32 %v3482, 7
        %v3484 = vsub.s32 %v3481, %v3483
        %v3485 = vrot.slane %v3471, %v3484
        %v3486 = vcombine.low %v3462, %v3478
        %v3487 = vcombine.high %v3462, %v3478
        %v3488 = vcombine.low %v3469, %v3485
        %v3489 = vcombine.high %v3469, %v3485
        %v3490 = vpack.c.bf16 %v3486, %v3418
        %v3491 = vpack.c.bf16 %v3487, %v3419
        %v3492 = vpack.c.bf16 %v3488, %v3420
        %v3493 = vpack.c.bf16 %v3489, %v3421
        %3496 = vrot.lane.b32.xlu0 %v3151, 96
        %v3497 = vpop.permute.xlu0 %3496
        %3498 = vrot.lane.b32.xlu0 %v3155, 96
        %v3499 = vpop.permute.xlu0 %3498
        %3502 = vrot.lane.b32.xlu0 %v3151, 64
        %v3503 = vpop.permute.xlu0 %3502
        %3504 = vrot.lane.b32.xlu0 %v3155, 64
        %v3505 = vpop.permute.xlu0 %3504
        %3508 = vrot.lane.b32.xlu0 %v3151, 32
        %v3509 = vpop.permute.xlu0 %3508
        %3510 = vrot.lane.b32.xlu0 %v3155, 32
        %v3511 = vpop.permute.xlu0 %3510
        %v3514 = vcombine.low %v3151, %v3503
        %v3515 = vcombine.high %v3151, %v3503
        %v3517 = vunpack.c.l.s4 1983009808
        %v3518 = vunpack.c.0.s8 %v3517
        %v3519 = vlaneseq
        %v3520 = vshrl.u32 %v3519, 7
        %v3521 = vsub.s32 %v3518, %v3520
        %v3522 = vrot.slane %v3514, %v3521
        %v3524 = vunpack.c.l.s4 1983009808
        %v3525 = vunpack.c.0.s8 %v3524
        %v3526 = vlaneseq
        %v3527 = vshrl.u32 %v3526, 7
        %v3528 = vsub.s32 %v3525, %v3527
        %v3529 = vrot.slane %v3515, %v3528
        %v3530 = vcombine.low %v3497, %v3509
        %v3531 = vcombine.high %v3497, %v3509
        %v3533 = vunpack.c.l.s4 1983009808
        %v3534 = vunpack.c.0.s8 %v3533
        %v3535 = vlaneseq
        %v3536 = vshrl.u32 %v3535, 7
        %v3537 = vsub.s32 %v3534, %v3536
        %v3538 = vrot.slane %v3530, %v3537
        %v3540 = vunpack.c.l.s4 1983009808
        %v3541 = vunpack.c.0.s8 %v3540
        %v3542 = vlaneseq
        %v3543 = vshrl.u32 %v3542, 7
        %v3544 = vsub.s32 %v3541, %v3543
        %v3545 = vrot.slane %v3531, %v3544
        %v3546 = vcombine.low %v3522, %v3538
        %v3547 = vcombine.high %v3522, %v3538
        %v3549 = vunpack.c.l.s4 1934713408
        %v3550 = vunpack.c.0.s8 %v3549
        %v3551 = vlaneseq
        %v3552 = vshrl.u32 %v3551, 7
        %v3553 = vsub.s32 %v3550, %v3552
        %v3554 = vrot.slane %v3546, %v3553
        %v3556 = vunpack.c.l.s4 1934713408
        %v3557 = vunpack.c.0.s8 %v3556
        %v3558 = vlaneseq
        %v3559 = vshrl.u32 %v3558, 7
        %v3560 = vsub.s32 %v3557, %v3559
        %v3561 = vrot.slane %v3547, %v3560
        %v3562 = vcombine.low %v3529, %v3545
        %v3563 = vcombine.high %v3529, %v3545
        %v3565 = vunpack.c.l.s4 1934713408
        %v3566 = vunpack.c.0.s8 %v3565
        %v3567 = vlaneseq
        %v3568 = vshrl.u32 %v3567, 7
        %v3569 = vsub.s32 %v3566, %v3568
        %v3570 = vrot.slane %v3562, %v3569
        %v3572 = vunpack.c.l.s4 1934713408
        %v3573 = vunpack.c.0.s8 %v3572
        %v3574 = vlaneseq
        %v3575 = vshrl.u32 %v3574, 7
        %v3576 = vsub.s32 %v3573, %v3575
        %v3577 = vrot.slane %v3563, %v3576
        %v3578 = vcombine.high %v3554, 0.0
        %v3579 = vcombine.high %v3561, 0.0
        %v3580 = vcombine.high %v3570, 0.0
        %v3581 = vcombine.high %v3577, 0.0
        %v3582 = vcombine.low %v3155, %v3505
        %v3583 = vcombine.high %v3155, %v3505
        %v3585 = vunpack.c.l.s4 1983009808
        %v3586 = vunpack.c.0.s8 %v3585
        %v3587 = vlaneseq
        %v3588 = vshrl.u32 %v3587, 7
        %v3589 = vsub.s32 %v3586, %v3588
        %v3590 = vrot.slane %v3582, %v3589
        %v3592 = vunpack.c.l.s4 1983009808
        %v3593 = vunpack.c.0.s8 %v3592
        %v3594 = vlaneseq
        %v3595 = vshrl.u32 %v3594, 7
        %v3596 = vsub.s32 %v3593, %v3595
        %v3597 = vrot.slane %v3583, %v3596
        %v3598 = vcombine.low %v3499, %v3511
        %v3599 = vcombine.high %v3499, %v3511
        %v3601 = vunpack.c.l.s4 1983009808
        %v3602 = vunpack.c.0.s8 %v3601
        %v3603 = vlaneseq
        %v3604 = vshrl.u32 %v3603, 7
        %v3605 = vsub.s32 %v3602, %v3604
        %v3606 = vrot.slane %v3598, %v3605
        %v3608 = vunpack.c.l.s4 1983009808
        %v3609 = vunpack.c.0.s8 %v3608
        %v3610 = vlaneseq
        %v3611 = vshrl.u32 %v3610, 7
        %v3612 = vsub.s32 %v3609, %v3611
        %v3613 = vrot.slane %v3599, %v3612
        %v3614 = vcombine.low %v3590, %v3606
        %v3615 = vcombine.high %v3590, %v3606
        %v3617 = vunpack.c.l.s4 1934713408
        %v3618 = vunpack.c.0.s8 %v3617
        %v3619 = vlaneseq
        %v3620 = vshrl.u32 %v3619, 7
        %v3621 = vsub.s32 %v3618, %v3620
        %v3622 = vrot.slane %v3614, %v3621
        %v3624 = vunpack.c.l.s4 1934713408
        %v3625 = vunpack.c.0.s8 %v3624
        %v3626 = vlaneseq
        %v3627 = vshrl.u32 %v3626, 7
        %v3628 = vsub.s32 %v3625, %v3627
        %v3629 = vrot.slane %v3615, %v3628
        %v3630 = vcombine.low %v3597, %v3613
        %v3631 = vcombine.high %v3597, %v3613
        %v3633 = vunpack.c.l.s4 1934713408
        %v3634 = vunpack.c.0.s8 %v3633
        %v3635 = vlaneseq
        %v3636 = vshrl.u32 %v3635, 7
        %v3637 = vsub.s32 %v3634, %v3636
        %v3638 = vrot.slane %v3630, %v3637
        %v3640 = vunpack.c.l.s4 1934713408
        %v3641 = vunpack.c.0.s8 %v3640
        %v3642 = vlaneseq
        %v3643 = vshrl.u32 %v3642, 7
        %v3644 = vsub.s32 %v3641, %v3643
        %v3645 = vrot.slane %v3631, %v3644
        %v3646 = vcombine.high %v3622, 0.0
        %v3647 = vcombine.high %v3629, 0.0
        %v3648 = vcombine.high %v3638, 0.0
        %v3649 = vcombine.high %v3645, 0.0
        %v3650 = vcombine.low %v3554, %v3561
        %v3652 = vunpack.c.l.s4 1983009808
        %v3653 = vunpack.c.0.s8 %v3652
        %v3654 = vlaneseq
        %v3655 = vshrl.u32 %v3654, 7
        %v3656 = vsub.s32 %v3653, %v3655
        %v3657 = vrot.slane %v3650, %v3656
        %v3658 = vcombine.low %v3578, %v3579
        %v3660 = vunpack.c.l.s4 1983009808
        %v3661 = vunpack.c.0.s8 %v3660
        %v3662 = vlaneseq
        %v3663 = vshrl.u32 %v3662, 7
        %v3664 = vsub.s32 %v3661, %v3663
        %v3665 = vrot.slane %v3658, %v3664
        %v3666 = vcombine.low %v3570, %v3577
        %v3668 = vunpack.c.l.s4 1983009808
        %v3669 = vunpack.c.0.s8 %v3668
        %v3670 = vlaneseq
        %v3671 = vshrl.u32 %v3670, 7
        %v3672 = vsub.s32 %v3669, %v3671
        %v3673 = vrot.slane %v3666, %v3672
        %v3674 = vcombine.low %v3580, %v3581
        %v3676 = vunpack.c.l.s4 1983009808
        %v3677 = vunpack.c.0.s8 %v3676
        %v3678 = vlaneseq
        %v3679 = vshrl.u32 %v3678, 7
        %v3680 = vsub.s32 %v3677, %v3679
        %v3681 = vrot.slane %v3674, %v3680
        %v3682 = vcombine.low %v3657, %v3665
        %v3683 = vcombine.high %v3657, %v3665
        %v3685 = vunpack.c.l.s4 1934713408
        %v3686 = vunpack.c.0.s8 %v3685
        %v3687 = vlaneseq
        %v3688 = vshrl.u32 %v3687, 7
        %v3689 = vsub.s32 %v3686, %v3688
        %v3690 = vrot.slane %v3682, %v3689
        %v3692 = vunpack.c.l.s4 1934713408
        %v3693 = vunpack.c.0.s8 %v3692
        %v3694 = vlaneseq
        %v3695 = vshrl.u32 %v3694, 7
        %v3696 = vsub.s32 %v3693, %v3695
        %v3697 = vrot.slane %v3683, %v3696
        %v3698 = vcombine.low %v3673, %v3681
        %v3699 = vcombine.high %v3673, %v3681
        %v3701 = vunpack.c.l.s4 1934713408
        %v3702 = vunpack.c.0.s8 %v3701
        %v3703 = vlaneseq
        %v3704 = vshrl.u32 %v3703, 7
        %v3705 = vsub.s32 %v3702, %v3704
        %v3706 = vrot.slane %v3698, %v3705
        %v3708 = vunpack.c.l.s4 1934713408
        %v3709 = vunpack.c.0.s8 %v3708
        %v3710 = vlaneseq
        %v3711 = vshrl.u32 %v3710, 7
        %v3712 = vsub.s32 %v3709, %v3711
        %v3713 = vrot.slane %v3699, %v3712
        %v3714 = vcombine.low %v3690, %v3706
        %v3715 = vcombine.high %v3690, %v3706
        %v3716 = vcombine.low %v3697, %v3713
        %v3717 = vcombine.high %v3697, %v3713
        %v3718 = vcombine.low %v3622, %v3629
        %v3720 = vunpack.c.l.s4 1983009808
        %v3721 = vunpack.c.0.s8 %v3720
        %v3722 = vlaneseq
        %v3723 = vshrl.u32 %v3722, 7
        %v3724 = vsub.s32 %v3721, %v3723
        %v3725 = vrot.slane %v3718, %v3724
        %v3726 = vcombine.low %v3646, %v3647
        %v3728 = vunpack.c.l.s4 1983009808
        %v3729 = vunpack.c.0.s8 %v3728
        %v3730 = vlaneseq
        %v3731 = vshrl.u32 %v3730, 7
        %v3732 = vsub.s32 %v3729, %v3731
        %v3733 = vrot.slane %v3726, %v3732
        %v3734 = vcombine.low %v3638, %v3645
        %v3736 = vunpack.c.l.s4 1983009808
        %v3737 = vunpack.c.0.s8 %v3736
        %v3738 = vlaneseq
        %v3739 = vshrl.u32 %v3738, 7
        %v3740 = vsub.s32 %v3737, %v3739
        %v3741 = vrot.slane %v3734, %v3740
        %v3742 = vcombine.low %v3648, %v3649
        %v3744 = vunpack.c.l.s4 1983009808
        %v3745 = vunpack.c.0.s8 %v3744
        %v3746 = vlaneseq
        %v3747 = vshrl.u32 %v3746, 7
        %v3748 = vsub.s32 %v3745, %v3747
        %v3749 = vrot.slane %v3742, %v3748
        %v3750 = vcombine.low %v3725, %v3733
        %v3751 = vcombine.high %v3725, %v3733
        %v3753 = vunpack.c.l.s4 1934713408
        %v3754 = vunpack.c.0.s8 %v3753
        %v3755 = vlaneseq
        %v3756 = vshrl.u32 %v3755, 7
        %v3757 = vsub.s32 %v3754, %v3756
        %v3758 = vrot.slane %v3750, %v3757
        %v3760 = vunpack.c.l.s4 1934713408
        %v3761 = vunpack.c.0.s8 %v3760
        %v3762 = vlaneseq
        %v3763 = vshrl.u32 %v3762, 7
        %v3764 = vsub.s32 %v3761, %v3763
        %v3765 = vrot.slane %v3751, %v3764
        %v3766 = vcombine.low %v3741, %v3749
        %v3767 = vcombine.high %v3741, %v3749
        %v3769 = vunpack.c.l.s4 1934713408
        %v3770 = vunpack.c.0.s8 %v3769
        %v3771 = vlaneseq
        %v3772 = vshrl.u32 %v3771, 7
        %v3773 = vsub.s32 %v3770, %v3772
        %v3774 = vrot.slane %v3766, %v3773
        %v3776 = vunpack.c.l.s4 1934713408
        %v3777 = vunpack.c.0.s8 %v3776
        %v3778 = vlaneseq
        %v3779 = vshrl.u32 %v3778, 7
        %v3780 = vsub.s32 %v3777, %v3779
        %v3781 = vrot.slane %v3767, %v3780
        %v3782 = vcombine.low %v3758, %v3774
        %v3783 = vcombine.high %v3758, %v3774
        %v3784 = vcombine.low %v3765, %v3781
        %v3785 = vcombine.high %v3765, %v3781
        %v3786 = vpack.c.bf16 %v3782, %v3714
        %v3787 = vpack.c.bf16 %v3783, %v3715
        %v3788 = vpack.c.bf16 %v3784, %v3716
        %v3789 = vpack.c.bf16 %v3785, %v3717
        %3792 = vrot.lane.b32.xlu0 %v3192, 96
        %v3793 = vpop.permute.xlu0 %3792
        %3794 = vrot.lane.b32.xlu0 %v3195, 96
        %v3795 = vpop.permute.xlu0 %3794
        %3798 = vrot.lane.b32.xlu0 %v3192, 64
        %v3799 = vpop.permute.xlu0 %3798
        %3800 = vrot.lane.b32.xlu0 %v3195, 64
        %v3801 = vpop.permute.xlu0 %3800
        %3804 = vrot.lane.b32.xlu0 %v3192, 32
        %v3805 = vpop.permute.xlu0 %3804
        %3806 = vrot.lane.b32.xlu0 %v3195, 32
        %v3807 = vpop.permute.xlu0 %3806
        %v3810 = vcombine.low %v3192, %v3799
        %v3811 = vcombine.high %v3192, %v3799
        %v3813 = vunpack.c.l.s4 1983009808
        %v3814 = vunpack.c.0.s8 %v3813
        %v3815 = vlaneseq
        %v3816 = vshrl.u32 %v3815, 7
        %v3817 = vsub.s32 %v3814, %v3816
        %v3818 = vrot.slane %v3810, %v3817
        %v3820 = vunpack.c.l.s4 1983009808
        %v3821 = vunpack.c.0.s8 %v3820
        %v3822 = vlaneseq
        %v3823 = vshrl.u32 %v3822, 7
        %v3824 = vsub.s32 %v3821, %v3823
        %v3825 = vrot.slane %v3811, %v3824
        %v3826 = vcombine.low %v3793, %v3805
        %v3827 = vcombine.high %v3793, %v3805
        %v3829 = vunpack.c.l.s4 1983009808
        %v3830 = vunpack.c.0.s8 %v3829
        %v3831 = vlaneseq
        %v3832 = vshrl.u32 %v3831, 7
        %v3833 = vsub.s32 %v3830, %v3832
        %v3834 = vrot.slane %v3826, %v3833
        %v3836 = vunpack.c.l.s4 1983009808
        %v3837 = vunpack.c.0.s8 %v3836
        %v3838 = vlaneseq
        %v3839 = vshrl.u32 %v3838, 7
        %v3840 = vsub.s32 %v3837, %v3839
        %v3841 = vrot.slane %v3827, %v3840
        %v3842 = vcombine.low %v3818, %v3834
        %v3843 = vcombine.high %v3818, %v3834
        %v3845 = vunpack.c.l.s4 1934713408
        %v3846 = vunpack.c.0.s8 %v3845
        %v3847 = vlaneseq
        %v3848 = vshrl.u32 %v3847, 7
        %v3849 = vsub.s32 %v3846, %v3848
        %v3850 = vrot.slane %v3842, %v3849
        %v3852 = vunpack.c.l.s4 1934713408
        %v3853 = vunpack.c.0.s8 %v3852
        %v3854 = vlaneseq
        %v3855 = vshrl.u32 %v3854, 7
        %v3856 = vsub.s32 %v3853, %v3855
        %v3857 = vrot.slane %v3843, %v3856
        %v3858 = vcombine.low %v3825, %v3841
        %v3859 = vcombine.high %v3825, %v3841
        %v3861 = vunpack.c.l.s4 1934713408
        %v3862 = vunpack.c.0.s8 %v3861
        %v3863 = vlaneseq
        %v3864 = vshrl.u32 %v3863, 7
        %v3865 = vsub.s32 %v3862, %v3864
        %v3866 = vrot.slane %v3858, %v3865
        %v3868 = vunpack.c.l.s4 1934713408
        %v3869 = vunpack.c.0.s8 %v3868
        %v3870 = vlaneseq
        %v3871 = vshrl.u32 %v3870, 7
        %v3872 = vsub.s32 %v3869, %v3871
        %v3873 = vrot.slane %v3859, %v3872
        %v3874 = vcombine.high %v3850, 0.0
        %v3875 = vcombine.high %v3857, 0.0
        %v3876 = vcombine.high %v3866, 0.0
        %v3877 = vcombine.high %v3873, 0.0
        %v3878 = vcombine.low %v3195, %v3801
        %v3879 = vcombine.high %v3195, %v3801
        %v3881 = vunpack.c.l.s4 1983009808
        %v3882 = vunpack.c.0.s8 %v3881
        %v3883 = vlaneseq
        %v3884 = vshrl.u32 %v3883, 7
        %v3885 = vsub.s32 %v3882, %v3884
        %v3886 = vrot.slane %v3878, %v3885
        %v3888 = vunpack.c.l.s4 1983009808
        %v3889 = vunpack.c.0.s8 %v3888
        %v3890 = vlaneseq
        %v3891 = vshrl.u32 %v3890, 7
        %v3892 = vsub.s32 %v3889, %v3891
        %v3893 = vrot.slane %v3879, %v3892
        %v3894 = vcombine.low %v3795, %v3807
        %v3895 = vcombine.high %v3795, %v3807
        %v3897 = vunpack.c.l.s4 1983009808
        %v3898 = vunpack.c.0.s8 %v3897
        %v3899 = vlaneseq
        %v3900 = vshrl.u32 %v3899, 7
        %v3901 = vsub.s32 %v3898, %v3900
        %v3902 = vrot.slane %v3894, %v3901
        %v3904 = vunpack.c.l.s4 1983009808
        %v3905 = vunpack.c.0.s8 %v3904
        %v3906 = vlaneseq
        %v3907 = vshrl.u32 %v3906, 7
        %v3908 = vsub.s32 %v3905, %v3907
        %v3909 = vrot.slane %v3895, %v3908
        %v3910 = vcombine.low %v3886, %v3902
        %v3911 = vcombine.high %v3886, %v3902
        %v3913 = vunpack.c.l.s4 1934713408
        %v3914 = vunpack.c.0.s8 %v3913
        %v3915 = vlaneseq
        %v3916 = vshrl.u32 %v3915, 7
        %v3917 = vsub.s32 %v3914, %v3916
        %v3918 = vrot.slane %v3910, %v3917
        %v3920 = vunpack.c.l.s4 1934713408
        %v3921 = vunpack.c.0.s8 %v3920
        %v3922 = vlaneseq
        %v3923 = vshrl.u32 %v3922, 7
        %v3924 = vsub.s32 %v3921, %v3923
        %v3925 = vrot.slane %v3911, %v3924
        %v3926 = vcombine.low %v3893, %v3909
        %v3927 = vcombine.high %v3893, %v3909
        %v3929 = vunpack.c.l.s4 1934713408
        %v3930 = vunpack.c.0.s8 %v3929
        %v3931 = vlaneseq
        %v3932 = vshrl.u32 %v3931, 7
        %v3933 = vsub.s32 %v3930, %v3932
        %v3934 = vrot.slane %v3926, %v3933
        %v3936 = vunpack.c.l.s4 1934713408
        %v3937 = vunpack.c.0.s8 %v3936
        %v3938 = vlaneseq
        %v3939 = vshrl.u32 %v3938, 7
        %v3940 = vsub.s32 %v3937, %v3939
        %v3941 = vrot.slane %v3927, %v3940
        %v3942 = vcombine.high %v3918, 0.0
        %v3943 = vcombine.high %v3925, 0.0
        %v3944 = vcombine.high %v3934, 0.0
        %v3945 = vcombine.high %v3941, 0.0
        %v3946 = vcombine.low %v3850, %v3857
        %v3948 = vunpack.c.l.s4 1983009808
        %v3949 = vunpack.c.0.s8 %v3948
        %v3950 = vlaneseq
        %v3951 = vshrl.u32 %v3950, 7
        %v3952 = vsub.s32 %v3949, %v3951
        %v3953 = vrot.slane %v3946, %v3952
        %v3954 = vcombine.low %v3874, %v3875
        %v3956 = vunpack.c.l.s4 1983009808
        %v3957 = vunpack.c.0.s8 %v3956
        %v3958 = vlaneseq
        %v3959 = vshrl.u32 %v3958, 7
        %v3960 = vsub.s32 %v3957, %v3959
        %v3961 = vrot.slane %v3954, %v3960
        %v3962 = vcombine.low %v3866, %v3873
        %v3964 = vunpack.c.l.s4 1983009808
        %v3965 = vunpack.c.0.s8 %v3964
        %v3966 = vlaneseq
        %v3967 = vshrl.u32 %v3966, 7
        %v3968 = vsub.s32 %v3965, %v3967
        %v3969 = vrot.slane %v3962, %v3968
        %v3970 = vcombine.low %v3876, %v3877
        %v3972 = vunpack.c.l.s4 1983009808
        %v3973 = vunpack.c.0.s8 %v3972
        %v3974 = vlaneseq
        %v3975 = vshrl.u32 %v3974, 7
        %v3976 = vsub.s32 %v3973, %v3975
        %v3977 = vrot.slane %v3970, %v3976
        %v3978 = vcombine.low %v3953, %v3961
        %v3979 = vcombine.high %v3953, %v3961
        %v3981 = vunpack.c.l.s4 1934713408
        %v3982 = vunpack.c.0.s8 %v3981
        %v3983 = vlaneseq
        %v3984 = vshrl.u32 %v3983, 7
        %v3985 = vsub.s32 %v3982, %v3984
        %v3986 = vrot.slane %v3978, %v3985
        %v3988 = vunpack.c.l.s4 1934713408
        %v3989 = vunpack.c.0.s8 %v3988
        %v3990 = vlaneseq
        %v3991 = vshrl.u32 %v3990, 7
        %v3992 = vsub.s32 %v3989, %v3991
        %v3993 = vrot.slane %v3979, %v3992
        %v3994 = vcombine.low %v3969, %v3977
        %v3995 = vcombine.high %v3969, %v3977
        %v3997 = vunpack.c.l.s4 1934713408
        %v3998 = vunpack.c.0.s8 %v3997
        %v3999 = vlaneseq
        %v4000 = vshrl.u32 %v3999, 7
        %v4001 = vsub.s32 %v3998, %v4000
        %v4002 = vrot.slane %v3994, %v4001
        %v4004 = vunpack.c.l.s4 1934713408
        %v4005 = vunpack.c.0.s8 %v4004
        %v4006 = vlaneseq
        %v4007 = vshrl.u32 %v4006, 7
        %v4008 = vsub.s32 %v4005, %v4007
        %v4009 = vrot.slane %v3995, %v4008
        %v4010 = vcombine.low %v3986, %v4002
        %v4011 = vcombine.high %v3986, %v4002
        %v4012 = vcombine.low %v3993, %v4009
        %v4013 = vcombine.high %v3993, %v4009
        %v4014 = vcombine.low %v3918, %v3925
        %v4016 = vunpack.c.l.s4 1983009808
        %v4017 = vunpack.c.0.s8 %v4016
        %v4018 = vlaneseq
        %v4019 = vshrl.u32 %v4018, 7
        %v4020 = vsub.s32 %v4017, %v4019
        %v4021 = vrot.slane %v4014, %v4020
        %v4022 = vcombine.low %v3942, %v3943
        %v4024 = vunpack.c.l.s4 1983009808
        %v4025 = vunpack.c.0.s8 %v4024
        %v4026 = vlaneseq
        %v4027 = vshrl.u32 %v4026, 7
        %v4028 = vsub.s32 %v4025, %v4027
        %v4029 = vrot.slane %v4022, %v4028
        %v4030 = vcombine.low %v3934, %v3941
        %v4032 = vunpack.c.l.s4 1983009808
        %v4033 = vunpack.c.0.s8 %v4032
        %v4034 = vlaneseq
        %v4035 = vshrl.u32 %v4034, 7
        %v4036 = vsub.s32 %v4033, %v4035
        %v4037 = vrot.slane %v4030, %v4036
        %v4038 = vcombine.low %v3944, %v3945
        %v4040 = vunpack.c.l.s4 1983009808
        %v4041 = vunpack.c.0.s8 %v4040
        %v4042 = vlaneseq
        %v4043 = vshrl.u32 %v4042, 7
        %v4044 = vsub.s32 %v4041, %v4043
        %v4045 = vrot.slane %v4038, %v4044
        %v4046 = vcombine.low %v4021, %v4029
        %v4047 = vcombine.high %v4021, %v4029
        %v4049 = vunpack.c.l.s4 1934713408
        %v4050 = vunpack.c.0.s8 %v4049
        %v4051 = vlaneseq
        %v4052 = vshrl.u32 %v4051, 7
        %v4053 = vsub.s32 %v4050, %v4052
        %v4054 = vrot.slane %v4046, %v4053
        %v4056 = vunpack.c.l.s4 1934713408
        %v4057 = vunpack.c.0.s8 %v4056
        %v4058 = vlaneseq
        %v4059 = vshrl.u32 %v4058, 7
        %v4060 = vsub.s32 %v4057, %v4059
        %v4061 = vrot.slane %v4047, %v4060
        %v4062 = vcombine.low %v4037, %v4045
        %v4063 = vcombine.high %v4037, %v4045
        %v4065 = vunpack.c.l.s4 1934713408
        %v4066 = vunpack.c.0.s8 %v4065
        %v4067 = vlaneseq
        %v4068 = vshrl.u32 %v4067, 7
        %v4069 = vsub.s32 %v4066, %v4068
        %v4070 = vrot.slane %v4062, %v4069
        %v4072 = vunpack.c.l.s4 1934713408
        %v4073 = vunpack.c.0.s8 %v4072
        %v4074 = vlaneseq
        %v4075 = vshrl.u32 %v4074, 7
        %v4076 = vsub.s32 %v4073, %v4075
        %v4077 = vrot.slane %v4063, %v4076
        %v4078 = vcombine.low %v4054, %v4070
        %v4079 = vcombine.high %v4054, %v4070
        %v4080 = vcombine.low %v4061, %v4077
        %v4081 = vcombine.high %v4061, %v4077
        %v4082 = vpack.c.bf16 %v4078, %v4010
        %v4083 = vpack.c.bf16 %v4079, %v4011
        %v4084 = vpack.c.bf16 %v4080, %v4012
        %v4085 = vpack.c.bf16 %v4081, %v4013
        %v4087 = vsel %vm1542, %v3490, 0
        %v4090 = vsel %vm1542, %v3786, 0
        %4092 = vmatprep.subr.bf16.mxu0 0
        %4093 = vmatpush1.bf16.xpose.msra.mxu0 %v4090
        %4094 = vmatprep.subr.bf16.mxu0 0
        %4095 = vmatpush1.bf16.xpose.msra.mxu0 0
        %4096 = vmatprep.subr.bf16.mxu0 0
        %4097 = vmatpush1.bf16.xpose.msra.mxu0 0
        %4098 = vmatprep.subr.bf16.mxu0 0
        %4099 = vmatpush1.bf16.xpose.msra.mxu0 0
        %4100 = vmatprep.subr.bf16.mxu0 0
        %4101 = vmatpush1.bf16.xpose.msra.mxu0 0
        %4102 = vmatprep.subr.bf16.mxu0 0
        %4103 = vmatpush1.bf16.xpose.msra.mxu0 0
        %4104 = vmatprep.subr.bf16.mxu0 0
        %4105 = vmatpush1.bf16.xpose.msra.mxu0 0
        %4106 = vmatprep.subr.bf16.mxu0 0
        %4107 = vmatpush1.bf16.xpose.msra.mxu0 0
        %4108 = vmatprep.subr.bf16.mxu0 0
        %4109 = vmatpush1.bf16.xpose.msra.mxu0 0
        %4110 = vmatprep.subr.bf16.mxu0 0
        %4111 = vmatpush1.bf16.xpose.msra.mxu0 0
        %4112 = vmatprep.subr.bf16.mxu0 0
        %4113 = vmatpush1.bf16.xpose.msra.mxu0 0
        %4114 = vmatprep.subr.bf16.mxu0 0
        %4115 = vmatpush1.bf16.xpose.msra.mxu0 0
        %4116 = vmatprep.subr.bf16.mxu0 0
        %4117 = vmatpush1.bf16.xpose.msra.mxu0 0
        %4118 = vmatprep.subr.bf16.mxu0 0
        %4119 = vmatpush1.bf16.xpose.msra.mxu0 0
        %4120 = vmatprep.subr.bf16.mxu0 0
        %4121 = vmatpush1.bf16.xpose.msra.mxu0 0
        %4122 = vmatprep.subr.bf16.mxu0 0
        %4123 = vmatpush1.bf16.xpose.msra.mxu0 0
        %4124 = vmatprep.mubr.bf16.mxu0 0
        %4125 = vmatmul.mubr.bf16.gmra.mrb[0].mxu0 %v4087
        %v4126 = vpop.f32.mrb[0].mxu0
        %v4127 = vadd.f32 %v361, %v4126
        %v4128 = vpop.f32.mrb[0].mxu0
        %v4129 = vpop.f32.mrb[0].mxu0
        %v4130 = vadd.f32 %v362, %v4129
        %v4131 = vpop.f32.mrb[0].mxu0
        %4132 = vdwg.mxu0
        %v4134 = vsel %vm1542, %v3491, 0
        %v4137 = vsel %vm1542, %v3787, 0
        %4139 = vmatprep.subr.bf16.mxu0 0
        %4140 = vmatpush1.bf16.xpose.msra.mxu0 %v4137
        %4141 = vmatprep.subr.bf16.mxu0 0
        %4142 = vmatpush1.bf16.xpose.msra.mxu0 0
        %4143 = vmatprep.subr.bf16.mxu0 0
        %4144 = vmatpush1.bf16.xpose.msra.mxu0 0
        %4145 = vmatprep.subr.bf16.mxu0 0
        %4146 = vmatpush1.bf16.xpose.msra.mxu0 0
        %4147 = vmatprep.subr.bf16.mxu0 0
        %4148 = vmatpush1.bf16.xpose.msra.mxu0 0
        %4149 = vmatprep.subr.bf16.mxu0 0
        %4150 = vmatpush1.bf16.xpose.msra.mxu0 0
        %4151 = vmatprep.subr.bf16.mxu0 0
        %4152 = vmatpush1.bf16.xpose.msra.mxu0 0
        %4153 = vmatprep.subr.bf16.mxu0 0
        %4154 = vmatpush1.bf16.xpose.msra.mxu0 0
        %4155 = vmatprep.subr.bf16.mxu0 0
        %4156 = vmatpush1.bf16.xpose.msra.mxu0 0
        %4157 = vmatprep.subr.bf16.mxu0 0
        %4158 = vmatpush1.bf16.xpose.msra.mxu0 0
        %4159 = vmatprep.subr.bf16.mxu0 0
        %4160 = vmatpush1.bf16.xpose.msra.mxu0 0
        %4161 = vmatprep.subr.bf16.mxu0 0
        %4162 = vmatpush1.bf16.xpose.msra.mxu0 0
        %4163 = vmatprep.subr.bf16.mxu0 0
        %4164 = vmatpush1.bf16.xpose.msra.mxu0 0
        %4165 = vmatprep.subr.bf16.mxu0 0
        %4166 = vmatpush1.bf16.xpose.msra.mxu0 0
        %4167 = vmatprep.subr.bf16.mxu0 0
        %4168 = vmatpush1.bf16.xpose.msra.mxu0 0
        %4169 = vmatprep.subr.bf16.mxu0 0
        %4170 = vmatpush1.bf16.xpose.msra.mxu0 0
        %4171 = vmatprep.mubr.bf16.mxu0 0
        %4172 = vmatmul.mubr.bf16.gmra.mrb[0].mxu0 %v4134
        %v4173 = vpop.f32.mrb[0].mxu0
        %v4174 = vadd.f32 %v363, %v4173
        %v4175 = vpop.f32.mrb[0].mxu0
        %v4176 = vpop.f32.mrb[0].mxu0
        %v4177 = vadd.f32 %v364, %v4176
        %v4178 = vpop.f32.mrb[0].mxu0
        %4179 = vdwg.mxu0
        %v4181 = vsel %vm1542, %v3492, 0
        %v4184 = vsel %vm1542, %v3788, 0
        %4186 = vmatprep.subr.bf16.mxu0 0
        %4187 = vmatpush1.bf16.xpose.msra.mxu0 %v4184
        %4188 = vmatprep.subr.bf16.mxu0 0
        %4189 = vmatpush1.bf16.xpose.msra.mxu0 0
        %4190 = vmatprep.subr.bf16.mxu0 0
        %4191 = vmatpush1.bf16.xpose.msra.mxu0 0
        %4192 = vmatprep.subr.bf16.mxu0 0
        %4193 = vmatpush1.bf16.xpose.msra.mxu0 0
        %4194 = vmatprep.subr.bf16.mxu0 0
        %4195 = vmatpush1.bf16.xpose.msra.mxu0 0
        %4196 = vmatprep.subr.bf16.mxu0 0
        %4197 = vmatpush1.bf16.xpose.msra.mxu0 0
        %4198 = vmatprep.subr.bf16.mxu0 0
        %4199 = vmatpush1.bf16.xpose.msra.mxu0 0
        %4200 = vmatprep.subr.bf16.mxu0 0
        %4201 = vmatpush1.bf16.xpose.msra.mxu0 0
        %4202 = vmatprep.subr.bf16.mxu0 0
        %4203 = vmatpush1.bf16.xpose.msra.mxu0 0
        %4204 = vmatprep.subr.bf16.mxu0 0
        %4205 = vmatpush1.bf16.xpose.msra.mxu0 0
        %4206 = vmatprep.subr.bf16.mxu0 0
        %4207 = vmatpush1.bf16.xpose.msra.mxu0 0
        %4208 = vmatprep.subr.bf16.mxu0 0
        %4209 = vmatpush1.bf16.xpose.msra.mxu0 0
        %4210 = vmatprep.subr.bf16.mxu0 0
        %4211 = vmatpush1.bf16.xpose.msra.mxu0 0
        %4212 = vmatprep.subr.bf16.mxu0 0
        %4213 = vmatpush1.bf16.xpose.msra.mxu0 0
        %4214 = vmatprep.subr.bf16.mxu0 0
        %4215 = vmatpush1.bf16.xpose.msra.mxu0 0
        %4216 = vmatprep.subr.bf16.mxu0 0
        %4217 = vmatpush1.bf16.xpose.msra.mxu0 0
        %4218 = vmatprep.mubr.bf16.mxu0 0
        %4219 = vmatmul.mubr.bf16.gmra.mrb[0].mxu0 %v4181
        %v4220 = vpop.f32.mrb[0].mxu0
        %v4221 = vadd.f32 %v365, %v4220
        %v4222 = vpop.f32.mrb[0].mxu0
        %v4223 = vpop.f32.mrb[0].mxu0
        %v4224 = vadd.f32 %v366, %v4223
        %v4225 = vpop.f32.mrb[0].mxu0
        %4226 = vdwg.mxu0
        %v4228 = vsel %vm1542, %v3493, 0
        %v4231 = vsel %vm1542, %v3789, 0
        %4233 = vmatprep.subr.bf16.mxu0 0
        %4234 = vmatpush1.bf16.xpose.msra.mxu0 %v4231
        %4235 = vmatprep.subr.bf16.mxu0 0
        %4236 = vmatpush1.bf16.xpose.msra.mxu0 0
        %4237 = vmatprep.subr.bf16.mxu0 0
        %4238 = vmatpush1.bf16.xpose.msra.mxu0 0
        %4239 = vmatprep.subr.bf16.mxu0 0
        %4240 = vmatpush1.bf16.xpose.msra.mxu0 0
        %4241 = vmatprep.subr.bf16.mxu0 0
        %4242 = vmatpush1.bf16.xpose.msra.mxu0 0
        %4243 = vmatprep.subr.bf16.mxu0 0
        %4244 = vmatpush1.bf16.xpose.msra.mxu0 0
        %4245 = vmatprep.subr.bf16.mxu0 0
        %4246 = vmatpush1.bf16.xpose.msra.mxu0 0
        %4247 = vmatprep.subr.bf16.mxu0 0
        %4248 = vmatpush1.bf16.xpose.msra.mxu0 0
        %4249 = vmatprep.subr.bf16.mxu0 0
        %4250 = vmatpush1.bf16.xpose.msra.mxu0 0
        %4251 = vmatprep.subr.bf16.mxu0 0
        %4252 = vmatpush1.bf16.xpose.msra.mxu0 0
        %4253 = vmatprep.subr.bf16.mxu0 0
        %4254 = vmatpush1.bf16.xpose.msra.mxu0 0
        %4255 = vmatprep.subr.bf16.mxu0 0
        %4256 = vmatpush1.bf16.xpose.msra.mxu0 0
        %4257 = vmatprep.subr.bf16.mxu0 0
        %4258 = vmatpush1.bf16.xpose.msra.mxu0 0
        %4259 = vmatprep.subr.bf16.mxu0 0
        %4260 = vmatpush1.bf16.xpose.msra.mxu0 0
        %4261 = vmatprep.subr.bf16.mxu0 0
        %4262 = vmatpush1.bf16.xpose.msra.mxu0 0
        %4263 = vmatprep.subr.bf16.mxu0 0
        %4264 = vmatpush1.bf16.xpose.msra.mxu0 0
        %4265 = vmatprep.mubr.bf16.mxu0 0
        %4266 = vmatmul.mubr.bf16.gmra.mrb[0].mxu0 %v4228
        %v4267 = vpop.f32.mrb[0].mxu0
        %v4268 = vadd.f32 %v367, %v4267
        %v4269 = vpop.f32.mrb[0].mxu0
        %v4270 = vpop.f32.mrb[0].mxu0
        %v4271 = vadd.f32 %v368, %v4270
        %v4272 = vpop.f32.mrb[0].mxu0
        %4273 = vdwg.mxu0
        %v4274 = vsel %vm1731, %v4127, -inf
        %4275 = vmax.xlane.f32.xlu0 %v4274
        %v4276 = vpop.xlane.xlu0 %4275
        %v4277 = vsel %vm1731, %v4130, -inf
        %4278 = vmax.xlane.f32.xlu0 %v4277
        %v4279 = vpop.xlane.xlu0 %4278
        %v4280 = vsel %vm1731, %v4174, -inf
        %4281 = vmax.xlane.f32.xlu0 %v4280
        %v4282 = vpop.xlane.xlu0 %4281
        %v4283 = vsel %vm1731, %v4177, -inf
        %4284 = vmax.xlane.f32.xlu0 %v4283
        %v4285 = vpop.xlane.xlu0 %4284
        %v4286 = vsel %vm1731, %v4221, -inf
        %4287 = vmax.xlane.f32.xlu0 %v4286
        %v4288 = vpop.xlane.xlu0 %4287
        %v4289 = vsel %vm1731, %v4224, -inf
        %4290 = vmax.xlane.f32.xlu0 %v4289
        %v4291 = vpop.xlane.xlu0 %4290
        %v4292 = vsel %vm1731, %v4268, -inf
        %4293 = vmax.xlane.f32.xlu0 %v4292
        %v4294 = vpop.xlane.xlu0 %4293
        %v4295 = vsel %vm1731, %v4271, -inf
        %4296 = vmax.xlane.f32.xlu0 %v4295
        %v4297 = vpop.xlane.xlu0 %4296
        %v4298 = vsub.f32 %v4127, %v4276
        %v4299 = vsub.f32 %v4130, %v4279
        %v4300 = vsub.f32 %v4174, %v4282
        %v4301 = vsub.f32 %v4177, %v4285
        %v4302 = vsub.f32 %v4221, %v4288
        %v4303 = vsub.f32 %v4224, %v4291
        %v4304 = vsub.f32 %v4268, %v4294
        %v4305 = vsub.f32 %v4271, %v4297
        %v4306 = vmul.f32 %v4298, 1.442695
        %v4307 = vpow.pop %v4306
        %v4308 = vmul.f32 %v4299, 1.442695
        %v4309 = vpow.pop %v4308
        %v4310 = vmul.f32 %v4300, 1.442695
        %v4311 = vpow.pop %v4310
        %v4312 = vmul.f32 %v4301, 1.442695
        %v4313 = vpow.pop %v4312
        %v4314 = vmul.f32 %v4302, 1.442695
        %v4315 = vpow.pop %v4314
        %v4316 = vmul.f32 %v4303, 1.442695
        %v4317 = vpow.pop %v4316
        %v4318 = vmul.f32 %v4304, 1.442695
        %v4319 = vpow.pop %v4318
        %v4320 = vmul.f32 %v4305, 1.442695
        %v4321 = vpow.pop %v4320
        %v4322 = vsel %vm1731, %v4307, 0.0
        %4323 = vadd.xlane.f32.xlu0 %v4322
        %v4324 = vpop.xlane.xlu0 %4323
        %v4325 = vsel %vm1731, %v4309, 0.0
        %4326 = vadd.xlane.f32.xlu0 %v4325
        %v4327 = vpop.xlane.xlu0 %4326
        %v4328 = vsel %vm1731, %v4311, 0.0
        %4329 = vadd.xlane.f32.xlu0 %v4328
        %v4330 = vpop.xlane.xlu0 %4329
        %v4331 = vsel %vm1731, %v4313, 0.0
        %4332 = vadd.xlane.f32.xlu0 %v4331
        %v4333 = vpop.xlane.xlu0 %4332
        %v4334 = vsel %vm1731, %v4315, 0.0
        %4335 = vadd.xlane.f32.xlu0 %v4334
        %v4336 = vpop.xlane.xlu0 %4335
        %v4337 = vsel %vm1731, %v4317, 0.0
        %4338 = vadd.xlane.f32.xlu0 %v4337
        %v4339 = vpop.xlane.xlu0 %4338
        %v4340 = vsel %vm1731, %v4319, 0.0
        %4341 = vadd.xlane.f32.xlu0 %v4340
        %v4342 = vpop.xlane.xlu0 %4341
        %v4343 = vsel %vm1731, %v4321, 0.0
        %4344 = vadd.xlane.f32.xlu0 %v4343
        %v4345 = vpop.xlane.xlu0 %4344
        %v4346 = vrcp.pop %v4324
        %v4347 = vrcp.pop %v4327
        %v4348 = vrcp.pop %v4330
        %v4349 = vrcp.pop %v4333
        %v4350 = vrcp.pop %v4336
        %v4351 = vrcp.pop %v4339
        %v4352 = vrcp.pop %v4342
        %v4353 = vrcp.pop %v4345
        %v4354 = vmul.f32 %v4307, %v4346
        %v4355 = vmul.f32 %v4309, %v4347
        %v4356 = vmul.f32 %v4311, %v4348
        %v4357 = vmul.f32 %v4313, %v4349
        %v4358 = vmul.f32 %v4315, %v4350
        %v4359 = vmul.f32 %v4317, %v4351
        %v4360 = vmul.f32 %v4319, %v4352
        %v4361 = vmul.f32 %v4321, %v4353
        %v4362 = vpack.c.bf16 %v4355, %v4354
        %v4363 = vpack.c.bf16 %v4357, %v4356
        %v4364 = vpack.c.bf16 %v4359, %v4358
        %v4365 = vpack.c.bf16 %v4361, %v4360
        %v4367 = vsel %vm1731, %v4362, 0
        %4369 = vmatprep.subr.bf16.mxu0 0
        %4370 = vmatpush1.bf16.msra.mxu0 %v4082
        %4371 = vmatprep.subr.bf16.mxu0 0
        %4372 = vmatpush1.bf16.msra.mxu0 0
        %4373 = vmatprep.subr.bf16.mxu0 0
        %4374 = vmatpush1.bf16.msra.mxu0 0
        %4375 = vmatprep.subr.bf16.mxu0 0
        %4376 = vmatpush1.bf16.msra.mxu0 0
        %4377 = vmatprep.subr.bf16.mxu0 0
        %4378 = vmatpush1.bf16.msra.mxu0 0
        %4379 = vmatprep.subr.bf16.mxu0 0
        %4380 = vmatpush1.bf16.msra.mxu0 0
        %4381 = vmatprep.subr.bf16.mxu0 0
        %4382 = vmatpush1.bf16.msra.mxu0 0
        %4383 = vmatprep.subr.bf16.mxu0 0
        %4384 = vmatpush1.bf16.msra.mxu0 0
        %4385 = vmatprep.subr.bf16.mxu0 0
        %4386 = vmatpush1.bf16.msra.mxu0 0
        %4387 = vmatprep.subr.bf16.mxu0 0
        %4388 = vmatpush1.bf16.msra.mxu0 0
        %4389 = vmatprep.subr.bf16.mxu0 0
        %4390 = vmatpush1.bf16.msra.mxu0 0
        %4391 = vmatprep.subr.bf16.mxu0 0
        %4392 = vmatpush1.bf16.msra.mxu0 0
        %4393 = vmatprep.subr.bf16.mxu0 0
        %4394 = vmatpush1.bf16.msra.mxu0 0
        %4395 = vmatprep.subr.bf16.mxu0 0
        %4396 = vmatpush1.bf16.msra.mxu0 0
        %4397 = vmatprep.subr.bf16.mxu0 0
        %4398 = vmatpush1.bf16.msra.mxu0 0
        %4399 = vmatprep.subr.bf16.mxu0 0
        %4400 = vmatpush1.bf16.msra.mxu0 0
        %4401 = vmatprep.mubr.bf16.mxu0 0
        %4402 = vmatmul.mubr.bf16.gmra.mrb[0].mxu0 %v4367
        %v4403 = vpop.f32.mrb[0].mxu0
        %v4404 = vadd.f32 0.0, %v4403
        %v4405 = vpop.f32.mrb[0].mxu0
        %v4406 = vpop.f32.mrb[0].mxu0
        %v4407 = vadd.f32 0.0, %v4406
        %v4408 = vpop.f32.mrb[0].mxu0
        %4409 = vdwg.mxu0
        %v4411 = vsel %vm1731, %v4363, 0
        %4413 = vmatprep.subr.bf16.mxu0 0
        %4414 = vmatpush1.bf16.msra.mxu0 %v4083
        %4415 = vmatprep.subr.bf16.mxu0 0
        %4416 = vmatpush1.bf16.msra.mxu0 0
        %4417 = vmatprep.subr.bf16.mxu0 0
        %4418 = vmatpush1.bf16.msra.mxu0 0
        %4419 = vmatprep.subr.bf16.mxu0 0
        %4420 = vmatpush1.bf16.msra.mxu0 0
        %4421 = vmatprep.subr.bf16.mxu0 0
        %4422 = vmatpush1.bf16.msra.mxu0 0
        %4423 = vmatprep.subr.bf16.mxu0 0
        %4424 = vmatpush1.bf16.msra.mxu0 0
        %4425 = vmatprep.subr.bf16.mxu0 0
        %4426 = vmatpush1.bf16.msra.mxu0 0
        %4427 = vmatprep.subr.bf16.mxu0 0
        %4428 = vmatpush1.bf16.msra.mxu0 0
        %4429 = vmatprep.subr.bf16.mxu0 0
        %4430 = vmatpush1.bf16.msra.mxu0 0
        %4431 = vmatprep.subr.bf16.mxu0 0
        %4432 = vmatpush1.bf16.msra.mxu0 0
        %4433 = vmatprep.subr.bf16.mxu0 0
        %4434 = vmatpush1.bf16.msra.mxu0 0
        %4435 = vmatprep.subr.bf16.mxu0 0
        %4436 = vmatpush1.bf16.msra.mxu0 0
        %4437 = vmatprep.subr.bf16.mxu0 0
        %4438 = vmatpush1.bf16.msra.mxu0 0
        %4439 = vmatprep.subr.bf16.mxu0 0
        %4440 = vmatpush1.bf16.msra.mxu0 0
        %4441 = vmatprep.subr.bf16.mxu0 0
        %4442 = vmatpush1.bf16.msra.mxu0 0
        %4443 = vmatprep.subr.bf16.mxu0 0
        %4444 = vmatpush1.bf16.msra.mxu0 0
        %4445 = vmatprep.mubr.bf16.mxu0 0
        %4446 = vmatmul.mubr.bf16.gmra.mrb[0].mxu0 %v4411
        %v4447 = vpop.f32.mrb[0].mxu0
        %v4448 = vadd.f32 0.0, %v4447
        %v4449 = vpop.f32.mrb[0].mxu0
        %v4450 = vpop.f32.mrb[0].mxu0
        %v4451 = vadd.f32 0.0, %v4450
        %v4452 = vpop.f32.mrb[0].mxu0
        %4453 = vdwg.mxu0
        %v4455 = vsel %vm1731, %v4364, 0
        %4457 = vmatprep.subr.bf16.mxu0 0
        %4458 = vmatpush1.bf16.msra.mxu0 %v4084
        %4459 = vmatprep.subr.bf16.mxu0 0
        %4460 = vmatpush1.bf16.msra.mxu0 0
        %4461 = vmatprep.subr.bf16.mxu0 0
        %4462 = vmatpush1.bf16.msra.mxu0 0
        %4463 = vmatprep.subr.bf16.mxu0 0
        %4464 = vmatpush1.bf16.msra.mxu0 0
        %4465 = vmatprep.subr.bf16.mxu0 0
        %4466 = vmatpush1.bf16.msra.mxu0 0
        %4467 = vmatprep.subr.bf16.mxu0 0
        %4468 = vmatpush1.bf16.msra.mxu0 0
        %4469 = vmatprep.subr.bf16.mxu0 0
        %4470 = vmatpush1.bf16.msra.mxu0 0
        %4471 = vmatprep.subr.bf16.mxu0 0
        %4472 = vmatpush1.bf16.msra.mxu0 0
        %4473 = vmatprep.subr.bf16.mxu0 0
        %4474 = vmatpush1.bf16.msra.mxu0 0
        %4475 = vmatprep.subr.bf16.mxu0 0
        %4476 = vmatpush1.bf16.msra.mxu0 0
        %4477 = vmatprep.subr.bf16.mxu0 0
        %4478 = vmatpush1.bf16.msra.mxu0 0
        %4479 = vmatprep.subr.bf16.mxu0 0
        %4480 = vmatpush1.bf16.msra.mxu0 0
        %4481 = vmatprep.subr.bf16.mxu0 0
        %4482 = vmatpush1.bf16.msra.mxu0 0
        %4483 = vmatprep.subr.bf16.mxu0 0
        %4484 = vmatpush1.bf16.msra.mxu0 0
        %4485 = vmatprep.subr.bf16.mxu0 0
        %4486 = vmatpush1.bf16.msra.mxu0 0
        %4487 = vmatprep.subr.bf16.mxu0 0
        %4488 = vmatpush1.bf16.msra.mxu0 0
        %4489 = vmatprep.mubr.bf16.mxu0 0
        %4490 = vmatmul.mubr.bf16.gmra.mrb[0].mxu0 %v4455
        %v4491 = vpop.f32.mrb[0].mxu0
        %v4492 = vadd.f32 0.0, %v4491
        %v4493 = vpop.f32.mrb[0].mxu0
        %v4494 = vpop.f32.mrb[0].mxu0
        %v4495 = vadd.f32 0.0, %v4494
        %v4496 = vpop.f32.mrb[0].mxu0
        %4497 = vdwg.mxu0
        %v4499 = vsel %vm1731, %v4365, 0
        %4501 = vmatprep.subr.bf16.mxu0 0
        %4502 = vmatpush1.bf16.msra.mxu0 %v4085
        %4503 = vmatprep.subr.bf16.mxu0 0
        %4504 = vmatpush1.bf16.msra.mxu0 0
        %4505 = vmatprep.subr.bf16.mxu0 0
        %4506 = vmatpush1.bf16.msra.mxu0 0
        %4507 = vmatprep.subr.bf16.mxu0 0
        %4508 = vmatpush1.bf16.msra.mxu0 0
        %4509 = vmatprep.subr.bf16.mxu0 0
        %4510 = vmatpush1.bf16.msra.mxu0 0
        %4511 = vmatprep.subr.bf16.mxu0 0
        %4512 = vmatpush1.bf16.msra.mxu0 0
        %4513 = vmatprep.subr.bf16.mxu0 0
        %4514 = vmatpush1.bf16.msra.mxu0 0
        %4515 = vmatprep.subr.bf16.mxu0 0
        %4516 = vmatpush1.bf16.msra.mxu0 0
        %4517 = vmatprep.subr.bf16.mxu0 0
        %4518 = vmatpush1.bf16.msra.mxu0 0
        %4519 = vmatprep.subr.bf16.mxu0 0
        %4520 = vmatpush1.bf16.msra.mxu0 0
        %4521 = vmatprep.subr.bf16.mxu0 0
        %4522 = vmatpush1.bf16.msra.mxu0 0
        %4523 = vmatprep.subr.bf16.mxu0 0
        %4524 = vmatpush1.bf16.msra.mxu0 0
        %4525 = vmatprep.subr.bf16.mxu0 0
        %4526 = vmatpush1.bf16.msra.mxu0 0
        %4527 = vmatprep.subr.bf16.mxu0 0
        %4528 = vmatpush1.bf16.msra.mxu0 0
        %4529 = vmatprep.subr.bf16.mxu0 0
        %4530 = vmatpush1.bf16.msra.mxu0 0
        %4531 = vmatprep.subr.bf16.mxu0 0
        %4532 = vmatpush1.bf16.msra.mxu0 0
        %4533 = vmatprep.mubr.bf16.mxu0 0
        %4534 = vmatmul.mubr.bf16.gmra.mrb[0].mxu0 %v4499
        %v4535 = vpop.f32.mrb[0].mxu0
        %v4536 = vadd.f32 0.0, %v4535
        %v4537 = vpop.f32.mrb[0].mxu0
        %v4538 = vpop.f32.mrb[0].mxu0
        %v4539 = vadd.f32 0.0, %v4538
        %v4540 = vpop.f32.mrb[0].mxu0
        %4541 = vdwg.mxu0
        %v4542 = vcombine.low %v4404, %v4492
        %v4543 = vcombine.high %v4404, %v4492
        %v4545 = vunpack.c.l.s4 1983009808
        %v4546 = vunpack.c.0.s8 %v4545
        %v4547 = vlaneseq
        %v4548 = vshrl.u32 %v4547, 7
        %v4549 = vsub.s32 %v4546, %v4548
        %v4550 = vrot.slane %v4542, %v4549
        %v4552 = vunpack.c.l.s4 1983009808
        %v4553 = vunpack.c.0.s8 %v4552
        %v4554 = vlaneseq
        %v4555 = vshrl.u32 %v4554, 7
        %v4556 = vsub.s32 %v4553, %v4555
        %v4557 = vrot.slane %v4543, %v4556
        %v4558 = vcombine.low %v4448, %v4536
        %v4559 = vcombine.high %v4448, %v4536
        %v4561 = vunpack.c.l.s4 1983009808
        %v4562 = vunpack.c.0.s8 %v4561
        %v4563 = vlaneseq
        %v4564 = vshrl.u32 %v4563, 7
        %v4565 = vsub.s32 %v4562, %v4564
        %v4566 = vrot.slane %v4558, %v4565
        %v4568 = vunpack.c.l.s4 1983009808
        %v4569 = vunpack.c.0.s8 %v4568
        %v4570 = vlaneseq
        %v4571 = vshrl.u32 %v4570, 7
        %v4572 = vsub.s32 %v4569, %v4571
        %v4573 = vrot.slane %v4559, %v4572
        %v4574 = vcombine.low %v4550, %v4566
        %v4575 = vcombine.high %v4550, %v4566
        %v4577 = vunpack.c.l.s4 1934713408
        %v4578 = vunpack.c.0.s8 %v4577
        %v4579 = vlaneseq
        %v4580 = vshrl.u32 %v4579, 7
        %v4581 = vsub.s32 %v4578, %v4580
        %v4582 = vrot.slane %v4574, %v4581
        %v4584 = vunpack.c.l.s4 1934713408
        %v4585 = vunpack.c.0.s8 %v4584
        %v4586 = vlaneseq
        %v4587 = vshrl.u32 %v4586, 7
        %v4588 = vsub.s32 %v4585, %v4587
        %v4589 = vrot.slane %v4575, %v4588
        %v4590 = vcombine.low %v4557, %v4573
        %v4591 = vcombine.high %v4557, %v4573
        %v4593 = vunpack.c.l.s4 1934713408
        %v4594 = vunpack.c.0.s8 %v4593
        %v4595 = vlaneseq
        %v4596 = vshrl.u32 %v4595, 7
        %v4597 = vsub.s32 %v4594, %v4596
        %v4598 = vrot.slane %v4590, %v4597
        %v4600 = vunpack.c.l.s4 1934713408
        %v4601 = vunpack.c.0.s8 %v4600
        %v4602 = vlaneseq
        %v4603 = vshrl.u32 %v4602, 7
        %v4604 = vsub.s32 %v4601, %v4603
        %v4605 = vrot.slane %v4591, %v4604
        %v4606 = vcombine.high %v4582, 0.0
        %v4607 = vcombine.high %v4589, 0.0
        %v4608 = vcombine.high %v4598, 0.0
        %v4609 = vcombine.high %v4605, 0.0
        %v4610 = vcombine.low %v4407, %v4495
        %v4611 = vcombine.high %v4407, %v4495
        %v4613 = vunpack.c.l.s4 1983009808
        %v4614 = vunpack.c.0.s8 %v4613
        %v4615 = vlaneseq
        %v4616 = vshrl.u32 %v4615, 7
        %v4617 = vsub.s32 %v4614, %v4616
        %v4618 = vrot.slane %v4610, %v4617
        %v4620 = vunpack.c.l.s4 1983009808
        %v4621 = vunpack.c.0.s8 %v4620
        %v4622 = vlaneseq
        %v4623 = vshrl.u32 %v4622, 7
        %v4624 = vsub.s32 %v4621, %v4623
        %v4625 = vrot.slane %v4611, %v4624
        %v4626 = vcombine.low %v4451, %v4539
        %v4627 = vcombine.high %v4451, %v4539
        %v4629 = vunpack.c.l.s4 1983009808
        %v4630 = vunpack.c.0.s8 %v4629
        %v4631 = vlaneseq
        %v4632 = vshrl.u32 %v4631, 7
        %v4633 = vsub.s32 %v4630, %v4632
        %v4634 = vrot.slane %v4626, %v4633
        %v4636 = vunpack.c.l.s4 1983009808
        %v4637 = vunpack.c.0.s8 %v4636
        %v4638 = vlaneseq
        %v4639 = vshrl.u32 %v4638, 7
        %v4640 = vsub.s32 %v4637, %v4639
        %v4641 = vrot.slane %v4627, %v4640
        %v4642 = vcombine.low %v4618, %v4634
        %v4643 = vcombine.high %v4618, %v4634
        %v4645 = vunpack.c.l.s4 1934713408
        %v4646 = vunpack.c.0.s8 %v4645
        %v4647 = vlaneseq
        %v4648 = vshrl.u32 %v4647, 7
        %v4649 = vsub.s32 %v4646, %v4648
        %v4650 = vrot.slane %v4642, %v4649
        %v4652 = vunpack.c.l.s4 1934713408
        %v4653 = vunpack.c.0.s8 %v4652
        %v4654 = vlaneseq
        %v4655 = vshrl.u32 %v4654, 7
        %v4656 = vsub.s32 %v4653, %v4655
        %v4657 = vrot.slane %v4643, %v4656
        %v4658 = vcombine.low %v4625, %v4641
        %v4659 = vcombine.high %v4625, %v4641
        %v4661 = vunpack.c.l.s4 1934713408
        %v4662 = vunpack.c.0.s8 %v4661
        %v4663 = vlaneseq
        %v4664 = vshrl.u32 %v4663, 7
        %v4665 = vsub.s32 %v4662, %v4664
        %v4666 = vrot.slane %v4658, %v4665
        %v4668 = vunpack.c.l.s4 1934713408
        %v4669 = vunpack.c.0.s8 %v4668
        %v4670 = vlaneseq
        %v4671 = vshrl.u32 %v4670, 7
        %v4672 = vsub.s32 %v4669, %v4671
        %v4673 = vrot.slane %v4659, %v4672
        %v4674 = vcombine.high %v4650, 0.0
        %v4675 = vcombine.high %v4657, 0.0
        %v4676 = vcombine.high %v4666, 0.0
        %v4677 = vcombine.high %v4673, 0.0
        %v4678 = vcombine.low %v4582, %v4589
        %v4680 = vunpack.c.l.s4 1983009808
        %v4681 = vunpack.c.0.s8 %v4680
        %v4682 = vlaneseq
        %v4683 = vshrl.u32 %v4682, 7
        %v4684 = vsub.s32 %v4681, %v4683
        %v4685 = vrot.slane %v4678, %v4684
        %v4686 = vcombine.low %v4606, %v4607
        %v4688 = vunpack.c.l.s4 1983009808
        %v4689 = vunpack.c.0.s8 %v4688
        %v4690 = vlaneseq
        %v4691 = vshrl.u32 %v4690, 7
        %v4692 = vsub.s32 %v4689, %v4691
        %v4693 = vrot.slane %v4686, %v4692
        %v4694 = vcombine.low %v4598, %v4605
        %v4696 = vunpack.c.l.s4 1983009808
        %v4697 = vunpack.c.0.s8 %v4696
        %v4698 = vlaneseq
        %v4699 = vshrl.u32 %v4698, 7
        %v4700 = vsub.s32 %v4697, %v4699
        %v4701 = vrot.slane %v4694, %v4700
        %v4702 = vcombine.low %v4608, %v4609
        %v4704 = vunpack.c.l.s4 1983009808
        %v4705 = vunpack.c.0.s8 %v4704
        %v4706 = vlaneseq
        %v4707 = vshrl.u32 %v4706, 7
        %v4708 = vsub.s32 %v4705, %v4707
        %v4709 = vrot.slane %v4702, %v4708
        %v4710 = vcombine.low %v4685, %v4693
        %v4711 = vcombine.high %v4685, %v4693
        %v4713 = vunpack.c.l.s4 1934713408
        %v4714 = vunpack.c.0.s8 %v4713
        %v4715 = vlaneseq
        %v4716 = vshrl.u32 %v4715, 7
        %v4717 = vsub.s32 %v4714, %v4716
        %v4718 = vrot.slane %v4710, %v4717
        %v4720 = vunpack.c.l.s4 1934713408
        %v4721 = vunpack.c.0.s8 %v4720
        %v4722 = vlaneseq
        %v4723 = vshrl.u32 %v4722, 7
        %v4724 = vsub.s32 %v4721, %v4723
        %v4725 = vrot.slane %v4711, %v4724
        %v4726 = vcombine.low %v4701, %v4709
        %v4727 = vcombine.high %v4701, %v4709
        %v4729 = vunpack.c.l.s4 1934713408
        %v4730 = vunpack.c.0.s8 %v4729
        %v4731 = vlaneseq
        %v4732 = vshrl.u32 %v4731, 7
        %v4733 = vsub.s32 %v4730, %v4732
        %v4734 = vrot.slane %v4726, %v4733
        %v4736 = vunpack.c.l.s4 1934713408
        %v4737 = vunpack.c.0.s8 %v4736
        %v4738 = vlaneseq
        %v4739 = vshrl.u32 %v4738, 7
        %v4740 = vsub.s32 %v4737, %v4739
        %v4741 = vrot.slane %v4727, %v4740
        %v4742 = vcombine.low %v4718, %v4734
        %v4743 = vcombine.high %v4718, %v4734
        %v4744 = vcombine.low %v4725, %v4741
        %v4745 = vcombine.high %v4725, %v4741
        %v4746 = vcombine.low %v4650, %v4657
        %v4748 = vunpack.c.l.s4 1983009808
        %v4749 = vunpack.c.0.s8 %v4748
        %v4750 = vlaneseq
        %v4751 = vshrl.u32 %v4750, 7
        %v4752 = vsub.s32 %v4749, %v4751
        %v4753 = vrot.slane %v4746, %v4752
        %v4754 = vcombine.low %v4674, %v4675
        %v4756 = vunpack.c.l.s4 1983009808
        %v4757 = vunpack.c.0.s8 %v4756
        %v4758 = vlaneseq
        %v4759 = vshrl.u32 %v4758, 7
        %v4760 = vsub.s32 %v4757, %v4759
        %v4761 = vrot.slane %v4754, %v4760
        %v4762 = vcombine.low %v4666, %v4673
        %v4764 = vunpack.c.l.s4 1983009808
        %v4765 = vunpack.c.0.s8 %v4764
        %v4766 = vlaneseq
        %v4767 = vshrl.u32 %v4766, 7
        %v4768 = vsub.s32 %v4765, %v4767
        %v4769 = vrot.slane %v4762, %v4768
        %v4770 = vcombine.low %v4676, %v4677
        %v4772 = vunpack.c.l.s4 1983009808
        %v4773 = vunpack.c.0.s8 %v4772
        %v4774 = vlaneseq
        %v4775 = vshrl.u32 %v4774, 7
        %v4776 = vsub.s32 %v4773, %v4775
        %v4777 = vrot.slane %v4770, %v4776
        %v4778 = vcombine.low %v4753, %v4761
        %v4779 = vcombine.high %v4753, %v4761
        %v4781 = vunpack.c.l.s4 1934713408
        %v4782 = vunpack.c.0.s8 %v4781
        %v4783 = vlaneseq
        %v4784 = vshrl.u32 %v4783, 7
        %v4785 = vsub.s32 %v4782, %v4784
        %v4786 = vrot.slane %v4778, %v4785
        %v4788 = vunpack.c.l.s4 1934713408
        %v4789 = vunpack.c.0.s8 %v4788
        %v4790 = vlaneseq
        %v4791 = vshrl.u32 %v4790, 7
        %v4792 = vsub.s32 %v4789, %v4791
        %v4793 = vrot.slane %v4779, %v4792
        %v4794 = vcombine.low %v4769, %v4777
        %v4795 = vcombine.high %v4769, %v4777
        %v4797 = vunpack.c.l.s4 1934713408
        %v4798 = vunpack.c.0.s8 %v4797
        %v4799 = vlaneseq
        %v4800 = vshrl.u32 %v4799, 7
        %v4801 = vsub.s32 %v4798, %v4800
        %v4802 = vrot.slane %v4794, %v4801
        %v4804 = vunpack.c.l.s4 1934713408
        %v4805 = vunpack.c.0.s8 %v4804
        %v4806 = vlaneseq
        %v4807 = vshrl.u32 %v4806, 7
        %v4808 = vsub.s32 %v4805, %v4807
        %v4809 = vrot.slane %v4795, %v4808
        %v4810 = vcombine.low %v4786, %v4802
        %v4811 = vcombine.high %v4786, %v4802
        %v4812 = vcombine.low %v4793, %v4809
        %v4813 = vcombine.high %v4793, %v4809
        %4816 = vrot.lane.b32.xlu0 %v4743, 32
        %v4817 = vpop.permute.xlu0 %4816
        %4818 = vrot.lane.b32.xlu0 %v4811, 32
        %v4819 = vpop.permute.xlu0 %4818
        %4824 = vrot.lane.b32.xlu0 %v4744, 64
        %v4825 = vpop.permute.xlu0 %4824
        %4826 = vrot.lane.b32.xlu0 %v4812, 64
        %v4827 = vpop.permute.xlu0 %4826
        %4832 = vrot.lane.b32.xlu0 %v4745, 96
        %v4833 = vpop.permute.xlu0 %4832
        %4834 = vrot.lane.b32.xlu0 %v4813, 96
        %v4835 = vpop.permute.xlu0 %4834
        %v4838 = vsel %vm1542, %v4742, %v4817
        %v4839 = vsel %vm1542, %v4810, %v4819
        %v4840 = vsel %vm2298, %v4838, %v4825
        %v4841 = vsel %vm2298, %v4839, %v4827
        %v4842 = vsel %vm2301, %v4840, %v4833
        %v4843 = vsel %vm2301, %v4841, %v4835
        %v4844 = vpack.c.bf16 %v4843, %v4842
        %v4861 = vunpack.c.l.b16 %v2969
        %v4862 = vunpack.c.l.b16 %v2970
        %v4863 = vunpack.c.l.b16 %v2971
        %v4864 = vunpack.c.l.b16 %v2972
        %v4865 = vunpack.c.l.b16 %v2973
        %v4866 = vunpack.c.l.b16 %v2974
        %v4867 = vunpack.c.l.b16 %v2975
        %v4868 = vunpack.c.l.b16 %v2976
        %v4869 = vunpack.c.l.b16 %v2977
        %v4870 = vunpack.c.l.b16 %v2978
        %v4871 = vunpack.c.l.b16 %v2979
        %v4872 = vunpack.c.l.b16 %v2980
        %v4873 = vunpack.c.l.b16 %v2981
        %v4874 = vunpack.c.l.b16 %v2982
        %v4875 = vunpack.c.l.b16 %v2983
        %v4876 = vunpack.c.l.b16 %v2984
        %v4877 = vpack.c.b16 %v4862, %v4861
        %v4878 = vpack.c.b16 %v4864, %v4863
        %v4879 = vpack.c.b16 %v4866, %v4865
        %v4880 = vpack.c.b16 %v4868, %v4867
        %v4881 = vpack.c.b16 %v4870, %v4869
        %v4882 = vpack.c.b16 %v4872, %v4871
        %v4883 = vpack.c.b16 %v4874, %v4873
        %v4884 = vpack.c.b16 %v4876, %v4875
        %4893 = vmatprep.subr.bf16.mxu0 0
        %4894 = vmatpush1.bf16.msra.mxu0 %v4877
        %4895 = vmatprep.subr.bf16.mxu0 0
        %4896 = vmatpush1.bf16.msra.mxu0 %v4878
        %4897 = vmatprep.subr.bf16.mxu0 0
        %4898 = vmatpush1.bf16.msra.mxu0 %v4879
        %4899 = vmatprep.subr.bf16.mxu0 0
        %4900 = vmatpush1.bf16.msra.mxu0 %v4880
        %4901 = vmatprep.subr.bf16.mxu0 0
        %4902 = vmatpush1.bf16.msra.mxu0 %v4881
        %4903 = vmatprep.subr.bf16.mxu0 0
        %4904 = vmatpush1.bf16.msra.mxu0 %v4882
        %4905 = vmatprep.subr.bf16.mxu0 0
        %4906 = vmatpush1.bf16.msra.mxu0 %v4883
        %4907 = vmatprep.subr.bf16.mxu0 0
        %4908 = vmatpush1.bf16.msra.mxu0 %v4884
        %4909 = vmatprep.subr.bf16.mxu0 0
        %4910 = vmatpush1.bf16.msra.mxu0 0
        %4911 = vmatprep.subr.bf16.mxu0 0
        %4912 = vmatpush1.bf16.msra.mxu0 0
        %4913 = vmatprep.subr.bf16.mxu0 0
        %4914 = vmatpush1.bf16.msra.mxu0 0
        %4915 = vmatprep.subr.bf16.mxu0 0
        %4916 = vmatpush1.bf16.msra.mxu0 0
        %4917 = vmatprep.subr.bf16.mxu0 0
        %4918 = vmatpush1.bf16.msra.mxu0 0
        %4919 = vmatprep.subr.bf16.mxu0 0
        %4920 = vmatpush1.bf16.msra.mxu0 0
        %4921 = vmatprep.subr.bf16.mxu0 0
        %4922 = vmatpush1.bf16.msra.mxu0 0
        %4923 = vmatprep.subr.bf16.mxu0 0
        %4924 = vmatpush1.bf16.msra.mxu0 0
        %4925 = vmatprep.mubr.bf16.mxu0 0
        %4926 = vmatmul.mubr.bf16.gmra.mrb[0].mxu0 %v4844
        %v4927 = vpop.f32.mrb[0].mxu0
        %v4928 = vadd.f32 0.0, %v4927
        %v4929 = vpop.f32.mrb[0].mxu0
        %v4930 = vpop.f32.mrb[0].mxu0
        %v4931 = vadd.f32 0.0, %v4930
        %v4932 = vpop.f32.mrb[0].mxu0
        %4933 = vdwg.mxu0
        %v4934 = vadd.f32 %v2909, %v4928
        %v4935 = vadd.f32 %v2910, %v4931
        %s4936 = scalar_lea.vmem %s5, 1
        %v4937 = vld [vmem:[%s4936] sm:$0x1]
        %v4938 = vmul.f32 %v4934, %v4934
        %v4939 = vmul.f32 %v4935, %v4935
        %4940 = vadd.xlane.f32.xlu0 %v4938
        %v4941 = vpop.xlane.xlu0 %4940
        %4942 = vadd.xlane.f32.xlu0 %v4939
        %v4943 = vpop.xlane.xlu0 %4942
        %v4944 = vmul.f32 %v4941, %v376
        %v4945 = vmul.f32 %v4943, %v376
        %v4946 = vadd.f32 %v4944, 1e-06
        %v4947 = vadd.f32 %v4945, 1e-06
        %v4948 = vrsqrt.pop %v4946
        %v4949 = vrsqrt.pop %v4947
        %v4950 = vmul.f32 %v4934, %v4948
        %v4951 = vmul.f32 %v4935, %v4949
        %v4953 = vlaneseq
        %v4954 = vshrl.u32 %v4953, 7
        %v4955 = vsub.s32 0, %v4954
        %v4956 = vrot.slane %v4937, %v4955
        %v4958 = vmul.f32 %v4950, %v4956
        %v4959 = vmul.f32 %v4951, %v4956
        %s4960 = scalar_lea.vmem %s6, 128
        %v4961 = vld [vmem:[%s4960] sm:$0xff]
        %v4962 = vld [vmem:[%s4960 + $0x8] sm:$0xff]
        %v4963 = vld [vmem:[%s4960 + $0x10] sm:$0xff]
        %v4964 = vld [vmem:[%s4960 + $0x18] sm:$0xff]
        %v4965 = vld [vmem:[%s4960 + $0x20] sm:$0xff]
        %v4966 = vld [vmem:[%s4960 + $0x28] sm:$0xff]
        %v4967 = vld [vmem:[%s4960 + $0x30] sm:$0xff]
        %v4968 = vld [vmem:[%s4960 + $0x38] sm:$0xff]
        %v4969 = vld [vmem:[%s4960 + $0x40] sm:$0xff]
        %v4970 = vld [vmem:[%s4960 + $0x48] sm:$0xff]
        %v4971 = vld [vmem:[%s4960 + $0x50] sm:$0xff]
        %v4972 = vld [vmem:[%s4960 + $0x58] sm:$0xff]
        %v4973 = vld [vmem:[%s4960 + $0x60] sm:$0xff]
        %v4974 = vld [vmem:[%s4960 + $0x68] sm:$0xff]
        %v4975 = vld [vmem:[%s4960 + $0x70] sm:$0xff]
        %v4976 = vld [vmem:[%s4960 + $0x78] sm:$0xff]
        %s4977 = scalar_lea.vmem %s7, 128
        %v4978 = vld [vmem:[%s4977] sm:$0xff]
        %v4979 = vld [vmem:[%s4977 + $0x8] sm:$0xff]
        %v4980 = vld [vmem:[%s4977 + $0x10] sm:$0xff]
        %v4981 = vld [vmem:[%s4977 + $0x18] sm:$0xff]
        %v4982 = vld [vmem:[%s4977 + $0x20] sm:$0xff]
        %v4983 = vld [vmem:[%s4977 + $0x28] sm:$0xff]
        %v4984 = vld [vmem:[%s4977 + $0x30] sm:$0xff]
        %v4985 = vld [vmem:[%s4977 + $0x38] sm:$0xff]
        %v4986 = vld [vmem:[%s4977 + $0x40] sm:$0xff]
        %v4987 = vld [vmem:[%s4977 + $0x48] sm:$0xff]
        %v4988 = vld [vmem:[%s4977 + $0x50] sm:$0xff]
        %v4989 = vld [vmem:[%s4977 + $0x58] sm:$0xff]
        %v4990 = vld [vmem:[%s4977 + $0x60] sm:$0xff]
        %v4991 = vld [vmem:[%s4977 + $0x68] sm:$0xff]
        %v4992 = vld [vmem:[%s4977 + $0x70] sm:$0xff]
        %v4993 = vld [vmem:[%s4977 + $0x78] sm:$0xff]
        %s4994 = scalar_lea.vmem %s8, 128
        %v4995 = vld [vmem:[%s4994] sm:$0xf]
        %v4996 = vld [vmem:[%s4994 + $0x4] sm:$0xf]
        %v4997 = vld [vmem:[%s4994 + $0x8] sm:$0xf]
        %v4998 = vld [vmem:[%s4994 + $0xc] sm:$0xf]
        %v4999 = vld [vmem:[%s4994 + $0x10] sm:$0xf]
        %v5000 = vld [vmem:[%s4994 + $0x14] sm:$0xf]
        %v5001 = vld [vmem:[%s4994 + $0x18] sm:$0xf]
        %v5002 = vld [vmem:[%s4994 + $0x1c] sm:$0xf]
        %v5003 = vld [vmem:[%s4994 + $0x20] sm:$0xf]
        %v5004 = vld [vmem:[%s4994 + $0x24] sm:$0xf]
        %v5005 = vld [vmem:[%s4994 + $0x28] sm:$0xf]
        %v5006 = vld [vmem:[%s4994 + $0x2c] sm:$0xf]
        %v5007 = vld [vmem:[%s4994 + $0x30] sm:$0xf]
        %v5008 = vld [vmem:[%s4994 + $0x34] sm:$0xf]
        %v5009 = vld [vmem:[%s4994 + $0x38] sm:$0xf]
        %v5010 = vld [vmem:[%s4994 + $0x3c] sm:$0xf]
        %v5011 = vld [vmem:[%s4994 + $0x40] sm:$0xf]
        %v5012 = vld [vmem:[%s4994 + $0x44] sm:$0xf]
        %v5013 = vld [vmem:[%s4994 + $0x48] sm:$0xf]
        %v5014 = vld [vmem:[%s4994 + $0x4c] sm:$0xf]
        %v5015 = vld [vmem:[%s4994 + $0x50] sm:$0xf]
        %v5016 = vld [vmem:[%s4994 + $0x54] sm:$0xf]
        %v5017 = vld [vmem:[%s4994 + $0x58] sm:$0xf]
        %v5018 = vld [vmem:[%s4994 + $0x5c] sm:$0xf]
        %v5019 = vld [vmem:[%s4994 + $0x60] sm:$0xf]
        %v5020 = vld [vmem:[%s4994 + $0x64] sm:$0xf]
        %v5021 = vld [vmem:[%s4994 + $0x68] sm:$0xf]
        %v5022 = vld [vmem:[%s4994 + $0x6c] sm:$0xf]
        %v5023 = vld [vmem:[%s4994 + $0x70] sm:$0xf]
        %v5024 = vld [vmem:[%s4994 + $0x74] sm:$0xf]
        %v5025 = vld [vmem:[%s4994 + $0x78] sm:$0xf]
        %v5026 = vld [vmem:[%s4994 + $0x7c] sm:$0xf]
        %v5027 = vpack.c.bf16 %v4959, %v4958
        %v5044 = vunpack.c.l.b16 %v4961
        %v5045 = vunpack.c.h.b16 %v4961
        %v5046 = vunpack.c.l.b16 %v4962
        %v5047 = vunpack.c.h.b16 %v4962
        %v5048 = vunpack.c.l.b16 %v4963
        %v5049 = vunpack.c.h.b16 %v4963
        %v5050 = vunpack.c.l.b16 %v4964
        %v5051 = vunpack.c.h.b16 %v4964
        %v5052 = vunpack.c.l.b16 %v4965
        %v5053 = vunpack.c.h.b16 %v4965
        %v5054 = vunpack.c.l.b16 %v4966
        %v5055 = vunpack.c.h.b16 %v4966
        %v5056 = vunpack.c.l.b16 %v4967
        %v5057 = vunpack.c.h.b16 %v4967
        %v5058 = vunpack.c.l.b16 %v4968
        %v5059 = vunpack.c.h.b16 %v4968
        %v5060 = vunpack.c.l.b16 %v4969
        %v5061 = vunpack.c.h.b16 %v4969
        %v5062 = vunpack.c.l.b16 %v4970
        %v5063 = vunpack.c.h.b16 %v4970
        %v5064 = vunpack.c.l.b16 %v4971
        %v5065 = vunpack.c.h.b16 %v4971
        %v5066 = vunpack.c.l.b16 %v4972
        %v5067 = vunpack.c.h.b16 %v4972
        %v5068 = vunpack.c.l.b16 %v4973
        %v5069 = vunpack.c.h.b16 %v4973
        %v5070 = vunpack.c.l.b16 %v4974
        %v5071 = vunpack.c.h.b16 %v4974
        %v5072 = vunpack.c.l.b16 %v4975
        %v5073 = vunpack.c.h.b16 %v4975
        %v5074 = vunpack.c.l.b16 %v4976
        %v5075 = vunpack.c.h.b16 %v4976
        %v5076 = vpack.c.b16 %v5046, %v5044
        %v5077 = vpack.c.b16 %v5047, %v5045
        %v5078 = vpack.c.b16 %v5050, %v5048
        %v5079 = vpack.c.b16 %v5051, %v5049
        %v5080 = vpack.c.b16 %v5054, %v5052
        %v5081 = vpack.c.b16 %v5055, %v5053
        %v5082 = vpack.c.b16 %v5058, %v5056
        %v5083 = vpack.c.b16 %v5059, %v5057
        %v5084 = vpack.c.b16 %v5062, %v5060
        %v5085 = vpack.c.b16 %v5063, %v5061
        %v5086 = vpack.c.b16 %v5066, %v5064
        %v5087 = vpack.c.b16 %v5067, %v5065
        %v5088 = vpack.c.b16 %v5070, %v5068
        %v5089 = vpack.c.b16 %v5071, %v5069
        %v5090 = vpack.c.b16 %v5074, %v5072
        %v5091 = vpack.c.b16 %v5075, %v5073
        %5108 = vmatprep.subr.bf16.mxu0 %v5077
        %5109 = vmatpush1.bf16.msra.mxu0 %v5076
        %5110 = vmatprep.subr.bf16.mxu0 %v5079
        %5111 = vmatpush1.bf16.msra.mxu0 %v5078
        %5112 = vmatprep.subr.bf16.mxu0 %v5081
        %5113 = vmatpush1.bf16.msra.mxu0 %v5080
        %5114 = vmatprep.subr.bf16.mxu0 %v5083
        %5115 = vmatpush1.bf16.msra.mxu0 %v5082
        %5116 = vmatprep.subr.bf16.mxu0 %v5085
        %5117 = vmatpush1.bf16.msra.mxu0 %v5084
        %5118 = vmatprep.subr.bf16.mxu0 %v5087
        %5119 = vmatpush1.bf16.msra.mxu0 %v5086
        %5120 = vmatprep.subr.bf16.mxu0 %v5089
        %5121 = vmatpush1.bf16.msra.mxu0 %v5088
        %5122 = vmatprep.subr.bf16.mxu0 %v5091
        %5123 = vmatpush1.bf16.msra.mxu0 %v5090
        %5124 = vmatprep.subr.bf16.mxu0 0
        %5125 = vmatpush1.bf16.msra.mxu0 0
        %5126 = vmatprep.subr.bf16.mxu0 0
        %5127 = vmatpush1.bf16.msra.mxu0 0
        %5128 = vmatprep.subr.bf16.mxu0 0
        %5129 = vmatpush1.bf16.msra.mxu0 0
        %5130 = vmatprep.subr.bf16.mxu0 0
        %5131 = vmatpush1.bf16.msra.mxu0 0
        %5132 = vmatprep.subr.bf16.mxu0 0
        %5133 = vmatpush1.bf16.msra.mxu0 0
        %5134 = vmatprep.subr.bf16.mxu0 0
        %5135 = vmatpush1.bf16.msra.mxu0 0
        %5136 = vmatprep.subr.bf16.mxu0 0
        %5137 = vmatpush1.bf16.msra.mxu0 0
        %5138 = vmatprep.subr.bf16.mxu0 0
        %5139 = vmatpush1.bf16.msra.mxu0 0
        %5140 = vmatprep.mubr.bf16.mxu0 0
        %5141 = vmatmul.mubr.bf16.gmra.mrb[0].mxu0 %v5027
        %v5142 = vpop.f32.mrb[0].mxu0
        %v5143 = vadd.f32 0.0, %v5142
        %v5144 = vpop.f32.mrb[0].mxu0
        %v5145 = vadd.f32 0.0, %v5144
        %v5146 = vpop.f32.mrb[0].mxu0
        %v5147 = vadd.f32 0.0, %v5146
        %v5148 = vpop.f32.mrb[0].mxu0
        %v5149 = vadd.f32 0.0, %v5148
        %5150 = vdwg.mxu0
        %v5151 = vmul.f32 %v5143, 0.5
        %v5152 = vmul.f32 %v5145, 0.5
        %v5153 = vmul.f32 %v5147, 0.5
        %v5154 = vmul.f32 %v5149, 0.5
        %v5155 = vmul.f32 %v5143, 0.044715
        %v5156 = vmul.f32 %v5145, 0.044715
        %v5157 = vmul.f32 %v5147, 0.044715
        %v5158 = vmul.f32 %v5149, 0.044715
        %v5159 = vmul.f32 %v5155, %v5143
        %v5160 = vmul.f32 %v5156, %v5145
        %v5161 = vmul.f32 %v5157, %v5147
        %v5162 = vmul.f32 %v5158, %v5149
        %v5163 = vmul.f32 %v5159, %v5143
        %v5164 = vmul.f32 %v5160, %v5145
        %v5165 = vmul.f32 %v5161, %v5147
        %v5166 = vmul.f32 %v5162, %v5149
        %v5167 = vadd.f32 %v5143, %v5163
        %v5168 = vadd.f32 %v5145, %v5164
        %v5169 = vadd.f32 %v5147, %v5165
        %v5170 = vadd.f32 %v5149, %v5166
        %v5171 = vmul.f32 %v5167, 0.7978846
        %v5172 = vmul.f32 %v5168, 0.7978846
        %v5173 = vmul.f32 %v5169, 0.7978846
        %v5174 = vmul.f32 %v5170, 0.7978846
        %v5175 = vtanh.pop %v5171
        %v5176 = vtanh.pop %v5172
        %v5177 = vtanh.pop %v5173
        %v5178 = vtanh.pop %v5174
        %v5179 = vadd.f32 %v5175, 1.0
        %v5180 = vadd.f32 %v5176, 1.0
        %v5181 = vadd.f32 %v5177, 1.0
        %v5182 = vadd.f32 %v5178, 1.0
        %v5183 = vmul.f32 %v5151, %v5179
        %v5184 = vmul.f32 %v5152, %v5180
        %v5185 = vmul.f32 %v5153, %v5181
        %v5186 = vmul.f32 %v5154, %v5182
        %v5203 = vunpack.c.l.b16 %v4978
        %v5204 = vunpack.c.h.b16 %v4978
        %v5205 = vunpack.c.l.b16 %v4979
        %v5206 = vunpack.c.h.b16 %v4979
        %v5207 = vunpack.c.l.b16 %v4980
        %v5208 = vunpack.c.h.b16 %v4980
        %v5209 = vunpack.c.l.b16 %v4981
        %v5210 = vunpack.c.h.b16 %v4981
        %v5211 = vunpack.c.l.b16 %v4982
        %v5212 = vunpack.c.h.b16 %v4982
        %v5213 = vunpack.c.l.b16 %v4983
        %v5214 = vunpack.c.h.b16 %v4983
        %v5215 = vunpack.c.l.b16 %v4984
        %v5216 = vunpack.c.h.b16 %v4984
        %v5217 = vunpack.c.l.b16 %v4985
        %v5218 = vunpack.c.h.b16 %v4985
        %v5219 = vunpack.c.l.b16 %v4986
        %v5220 = vunpack.c.h.b16 %v4986
        %v5221 = vunpack.c.l.b16 %v4987
        %v5222 = vunpack.c.h.b16 %v4987
        %v5223 = vunpack.c.l.b16 %v4988
        %v5224 = vunpack.c.h.b16 %v4988
        %v5225 = vunpack.c.l.b16 %v4989
        %v5226 = vunpack.c.h.b16 %v4989
        %v5227 = vunpack.c.l.b16 %v4990
        %v5228 = vunpack.c.h.b16 %v4990
        %v5229 = vunpack.c.l.b16 %v4991
        %v5230 = vunpack.c.h.b16 %v4991
        %v5231 = vunpack.c.l.b16 %v4992
        %v5232 = vunpack.c.h.b16 %v4992
        %v5233 = vunpack.c.l.b16 %v4993
        %v5234 = vunpack.c.h.b16 %v4993
        %v5235 = vpack.c.b16 %v5205, %v5203
        %v5236 = vpack.c.b16 %v5206, %v5204
        %v5237 = vpack.c.b16 %v5209, %v5207
        %v5238 = vpack.c.b16 %v5210, %v5208
        %v5239 = vpack.c.b16 %v5213, %v5211
        %v5240 = vpack.c.b16 %v5214, %v5212
        %v5241 = vpack.c.b16 %v5217, %v5215
        %v5242 = vpack.c.b16 %v5218, %v5216
        %v5243 = vpack.c.b16 %v5221, %v5219
        %v5244 = vpack.c.b16 %v5222, %v5220
        %v5245 = vpack.c.b16 %v5225, %v5223
        %v5246 = vpack.c.b16 %v5226, %v5224
        %v5247 = vpack.c.b16 %v5229, %v5227
        %v5248 = vpack.c.b16 %v5230, %v5228
        %v5249 = vpack.c.b16 %v5233, %v5231
        %v5250 = vpack.c.b16 %v5234, %v5232
        %5267 = vmatprep.subr.bf16.mxu0 %v5236
        %5268 = vmatpush1.bf16.msra.mxu0 %v5235
        %5269 = vmatprep.subr.bf16.mxu0 %v5238
        %5270 = vmatpush1.bf16.msra.mxu0 %v5237
        %5271 = vmatprep.subr.bf16.mxu0 %v5240
        %5272 = vmatpush1.bf16.msra.mxu0 %v5239
        %5273 = vmatprep.subr.bf16.mxu0 %v5242
        %5274 = vmatpush1.bf16.msra.mxu0 %v5241
        %5275 = vmatprep.subr.bf16.mxu0 %v5244
        %5276 = vmatpush1.bf16.msra.mxu0 %v5243
        %5277 = vmatprep.subr.bf16.mxu0 %v5246
        %5278 = vmatpush1.bf16.msra.mxu0 %v5245
        %5279 = vmatprep.subr.bf16.mxu0 %v5248
        %5280 = vmatpush1.bf16.msra.mxu0 %v5247
        %5281 = vmatprep.subr.bf16.mxu0 %v5250
        %5282 = vmatpush1.bf16.msra.mxu0 %v5249
        %5283 = vmatprep.subr.bf16.mxu0 0
        %5284 = vmatpush1.bf16.msra.mxu0 0
        %5285 = vmatprep.subr.bf16.mxu0 0
        %5286 = vmatpush1.bf16.msra.mxu0 0
        %5287 = vmatprep.subr.bf16.mxu0 0
        %5288 = vmatpush1.bf16.msra.mxu0 0
        %5289 = vmatprep.subr.bf16.mxu0 0
        %5290 = vmatpush1.bf16.msra.mxu0 0
        %5291 = vmatprep.subr.bf16.mxu0 0
        %5292 = vmatpush1.bf16.msra.mxu0 0
        %5293 = vmatprep.subr.bf16.mxu0 0
        %5294 = vmatpush1.bf16.msra.mxu0 0
        %5295 = vmatprep.subr.bf16.mxu0 0
        %5296 = vmatpush1.bf16.msra.mxu0 0
        %5297 = vmatprep.subr.bf16.mxu0 0
        %5298 = vmatpush1.bf16.msra.mxu0 0
        %5299 = vmatprep.mubr.bf16.mxu0 0
        %5300 = vmatmul.mubr.bf16.gmra.mrb[0].mxu0 %v5027
        %v5301 = vpop.f32.mrb[0].mxu0
        %v5302 = vadd.f32 0.0, %v5301
        %v5303 = vpop.f32.mrb[0].mxu0
        %v5304 = vadd.f32 0.0, %v5303
        %v5305 = vpop.f32.mrb[0].mxu0
        %v5306 = vadd.f32 0.0, %v5305
        %v5307 = vpop.f32.mrb[0].mxu0
        %v5308 = vadd.f32 0.0, %v5307
        %5309 = vdwg.mxu0
        %v5310 = vmul.f32 %v5183, %v5302
        %v5311 = vmul.f32 %v5184, %v5304
        %v5312 = vmul.f32 %v5185, %v5306
        %v5313 = vmul.f32 %v5186, %v5308
        %v5314 = vpack.c.bf16 %v5312, %v5310
        %v5315 = vpack.c.bf16 %v5313, %v5311
        %v5348 = vunpack.c.l.b16 %v4995
        %v5349 = vunpack.c.l.b16 %v4996
        %v5350 = vunpack.c.l.b16 %v4997
        %v5351 = vunpack.c.l.b16 %v4998
        %v5352 = vunpack.c.l.b16 %v4999
        %v5353 = vunpack.c.l.b16 %v5000
        %v5354 = vunpack.c.l.b16 %v5001
        %v5355 = vunpack.c.l.b16 %v5002
        %v5356 = vunpack.c.l.b16 %v5003
        %v5357 = vunpack.c.l.b16 %v5004
        %v5358 = vunpack.c.l.b16 %v5005
        %v5359 = vunpack.c.l.b16 %v5006
        %v5360 = vunpack.c.l.b16 %v5007
        %v5361 = vunpack.c.l.b16 %v5008
        %v5362 = vunpack.c.l.b16 %v5009
        %v5363 = vunpack.c.l.b16 %v5010
        %v5364 = vunpack.c.l.b16 %v5011
        %v5365 = vunpack.c.l.b16 %v5012
        %v5366 = vunpack.c.l.b16 %v5013
        %v5367 = vunpack.c.l.b16 %v5014
        %v5368 = vunpack.c.l.b16 %v5015
        %v5369 = vunpack.c.l.b16 %v5016
        %v5370 = vunpack.c.l.b16 %v5017
        %v5371 = vunpack.c.l.b16 %v5018
        %v5372 = vunpack.c.l.b16 %v5019
        %v5373 = vunpack.c.l.b16 %v5020
        %v5374 = vunpack.c.l.b16 %v5021
        %v5375 = vunpack.c.l.b16 %v5022
        %v5376 = vunpack.c.l.b16 %v5023
        %v5377 = vunpack.c.l.b16 %v5024
        %v5378 = vunpack.c.l.b16 %v5025
        %v5379 = vunpack.c.l.b16 %v5026
        %v5380 = vpack.c.b16 %v5349, %v5348
        %v5381 = vpack.c.b16 %v5351, %v5350
        %v5382 = vpack.c.b16 %v5353, %v5352
        %v5383 = vpack.c.b16 %v5355, %v5354
        %v5384 = vpack.c.b16 %v5357, %v5356
        %v5385 = vpack.c.b16 %v5359, %v5358
        %v5386 = vpack.c.b16 %v5361, %v5360
        %v5387 = vpack.c.b16 %v5363, %v5362
        %v5388 = vpack.c.b16 %v5365, %v5364
        %v5389 = vpack.c.b16 %v5367, %v5366
        %v5390 = vpack.c.b16 %v5369, %v5368
        %v5391 = vpack.c.b16 %v5371, %v5370
        %v5392 = vpack.c.b16 %v5373, %v5372
        %v5393 = vpack.c.b16 %v5375, %v5374
        %v5394 = vpack.c.b16 %v5377, %v5376
        %v5395 = vpack.c.b16 %v5379, %v5378
        %5412 = vmatprep.subr.bf16.mxu0 0
        %5413 = vmatpush1.bf16.msra.mxu0 %v5380
        %5414 = vmatprep.subr.bf16.mxu0 0
        %5415 = vmatpush1.bf16.msra.mxu0 %v5381
        %5416 = vmatprep.subr.bf16.mxu0 0
        %5417 = vmatpush1.bf16.msra.mxu0 %v5382
        %5418 = vmatprep.subr.bf16.mxu0 0
        %5419 = vmatpush1.bf16.msra.mxu0 %v5383
        %5420 = vmatprep.subr.bf16.mxu0 0
        %5421 = vmatpush1.bf16.msra.mxu0 %v5384
        %5422 = vmatprep.subr.bf16.mxu0 0
        %5423 = vmatpush1.bf16.msra.mxu0 %v5385
        %5424 = vmatprep.subr.bf16.mxu0 0
        %5425 = vmatpush1.bf16.msra.mxu0 %v5386
        %5426 = vmatprep.subr.bf16.mxu0 0
        %5427 = vmatpush1.bf16.msra.mxu0 %v5387
        %5428 = vmatprep.subr.bf16.mxu0 0
        %5429 = vmatpush1.bf16.msra.mxu0 %v5388
        %5430 = vmatprep.subr.bf16.mxu0 0
        %5431 = vmatpush1.bf16.msra.mxu0 %v5389
        %5432 = vmatprep.subr.bf16.mxu0 0
        %5433 = vmatpush1.bf16.msra.mxu0 %v5390
        %5434 = vmatprep.subr.bf16.mxu0 0
        %5435 = vmatpush1.bf16.msra.mxu0 %v5391
        %5436 = vmatprep.subr.bf16.mxu0 0
        %5437 = vmatpush1.bf16.msra.mxu0 %v5392
        %5438 = vmatprep.subr.bf16.mxu0 0
        %5439 = vmatpush1.bf16.msra.mxu0 %v5393
        %5440 = vmatprep.subr.bf16.mxu0 0
        %5441 = vmatpush1.bf16.msra.mxu0 %v5394
        %5442 = vmatprep.subr.bf16.mxu0 0
        %5443 = vmatpush1.bf16.msra.mxu0 %v5395
        %5444 = vmatprep.mubr.bf16.mxu0 %v5315
        %5445 = vmatmul.mubr.bf16.gmra.mrb[0].mxu0 %v5314
        %v5446 = vpop.f32.mrb[0].mxu0
        %v5447 = vadd.f32 0.0, %v5446
        %v5448 = vpop.f32.mrb[0].mxu0
        %v5449 = vpop.f32.mrb[0].mxu0
        %v5450 = vadd.f32 0.0, %v5449
        %v5451 = vpop.f32.mrb[0].mxu0
        %5452 = vdwg.mxu0
        %v5453 = vadd.f32 %v4934, %v5447
        %v5454 = vadd.f32 %v4935, %v5450
        %v5455 = vld [vmem:[%s9] sm:$0x1]
        %v5456 = vmul.f32 %v5453, %v5453
        %v5457 = vmul.f32 %v5454, %v5454
        %5458 = vadd.xlane.f32.xlu0 %v5456
        %v5459 = vpop.xlane.xlu0 %5458
        %5460 = vadd.xlane.f32.xlu0 %v5457
        %v5461 = vpop.xlane.xlu0 %5460
        %v5462 = vmul.f32 %v5459, %v376
        %v5463 = vmul.f32 %v5461, %v376
        %v5464 = vadd.f32 %v5462, 1e-06
        %v5465 = vadd.f32 %v5463, 1e-06
        %v5466 = vrsqrt.pop %v5464
        %v5467 = vrsqrt.pop %v5465
        %v5468 = vmul.f32 %v5453, %v5466
        %v5469 = vmul.f32 %v5454, %v5467
        %v5471 = vlaneseq
        %v5472 = vshrl.u32 %v5471, 7
        %v5473 = vsub.s32 0, %v5472
        %v5474 = vrot.slane %v5455, %v5473
        %v5476 = vmul.f32 %v5468, %v5474
        %v5477 = vmul.f32 %v5469, %v5474
        %5478 = vst [vmem:[%s352] sm:$0xff] %v5476
        %5479 = vst [vmem:[%s352 + $0x8] sm:$0xff] %v5477
        %s5480 = sand.u32 %s247, 1
        %s5481 = scalar_lea.sflag [#allocation3], %s5480
        %s5482 = sand.u32 %s247, 1
        %s5483 = smul.addr %s5482, 16
        %s5484 = scalar_lea.vmem [#allocation2], %s5483
        // Predicated region
        $region61: #{flux_text_forward.3} parent=59 // pred_check
          %p5485 = pneg %p257
        $region62: #{flux_text_forward.3} parent=59 // pred_check_branch
          %5487 = sbr.rel (%p5485) target = $region64
        $region63: #{flux_text_forward.3} parent=59 // pred_region
          %s5489 = ssub.s32 256, 256
          %5490 = vsyncadd %s5481, %s5489
          %s5491 = smul.addr %s24, 2
          %s5492 = smul.addr %s5491, 128
          %s5493 = scalar_lea.hbm %s10, %s5492
          %s5494 = sshll.u32 %s5484, 4
          %s5495 = int_to_ptr.vmem [resolvable:$true] %s5494
          %5500 = dma.vmem_to_hbm [thread:$0]  %s5495, 256, %s5493, %s5481, 128, 128, 8
        $region64: #{flux_text_forward.3} parent=59 // pred_fallthru
          _
      $region60: #{flux_text_forward.3} parent=5 // pred_fallthru
        _
      %p5501 = scmp.le.s32.totalorder 2, %s19
      // Predicated region
      $region65: #{flux_text_forward.3} parent=5 // pred_check
        %p5502 = pneg %p5501
      $region66: #{flux_text_forward.3} parent=5 // pred_check_branch
        %5504 = sbr.rel (%p5502) target = $region68
      $region67: #{flux_text_forward.3} parent=5 // pred_region
        %s5505 = ssub.s32 %s19, 2
        // Predicated region
        $region69: #{flux_text_forward.3} parent=67 // pred_check
          %p5506 = pneg %p263
        $region70: #{flux_text_forward.3} parent=67 // pred_check_branch
          %5508 = sbr.rel (%p5506) target = $region72
        $region71: #{flux_text_forward.3} parent=67 // pred_region
          %s5509 = sand.u32 %s248, 1
          %s5510 = scalar_lea.sflag [#allocation3], %s5509
          %s5511 = sand.u32 %s248, 1
          %s5512 = smul.addr %s5511, 16
          %s5513 = scalar_lea.vmem [#allocation2], %s5512
          %5514 = dma.done %s5510, 256
        $region72: #{flux_text_forward.3} parent=67 // pred_fallthru
          _
      $region68: #{flux_text_forward.3} parent=5 // pred_fallthru
        _
    $region6: #{flux_text_forward.3} parent=1 // loop_footer
      %s23 = sadd.s32 1, %s19
    $region7: #{flux_text_forward.3} parent=1 // loop_footer_branch
      %18 = sbr.rel target = $region3
    $region8: #{flux_text_forward.3} parent=1 // loop_exit
      _
    %5515 = vsyncpa [#allocation3], 1
    %s5516 = scalar_lea.sflag [#allocation3], 1
    %5517 = vsyncpa %s5516, 1

// kernel: flux_text_forward.2
$region0: #{flux_text_forward.2}
  #allocation0 [shape = 'u32[]', space=smem, size = 0x4, offset = 0x4, fixed_abs, tag = 'smem constant byte address 0x4 - core index']
  #allocation1 [shape = 'u32[144,128]{1,0:T(1,128)}', space=vmem, size = 0x12000, scoped, tag = 'internal scratch']
  %s0 = inlined_call_operand.vmem [shape: f32[2,8,128], index: 0, kind: input, shape index: {}]
  %s1 = inlined_call_operand.vmem [shape: f32[1,8,8], index: 1, kind: input, shape index: {}]
  %s2 = inlined_call_operand.vmem [shape: f32[2,1,128], index: 2, kind: input, shape index: {}]
  %s3 = inlined_call_operand.vmem [shape: f32[2,1,128], index: 3, kind: input, shape index: {}]
  %s4 = inlined_call_operand.vmem [shape: bf16[2,128,384], index: 4, kind: input, shape index: {}]
  %s5 = inlined_call_operand.vmem [shape: f32[2,1,384], index: 5, kind: input, shape index: {}]
  %s6 = inlined_call_operand.vmem [shape: bf16[2,128,128], index: 6, kind: input, shape index: {}]
  %s7 = inlined_call_operand.vmem [shape: f32[2,1,128], index: 7, kind: input, shape index: {}]
  %s8 = inlined_call_operand.vmem [shape: f32[2,1,128], index: 8, kind: input, shape index: {}]
  %s9 = inlined_call_operand.vmem [shape: f32[2,1,128], index: 9, kind: input, shape index: {}]
  %s10 = inlined_call_operand.vmem [shape: bf16[2,128,512], index: 10, kind: input, shape index: {}]
  %s11 = inlined_call_operand.vmem [shape: f32[2,1,512], index: 11, kind: input, shape index: {}]
  %s12 = inlined_call_operand.vmem [shape: bf16[2,512,128], index: 12, kind: input, shape index: {}]
  %s13 = inlined_call_operand.vmem [shape: f32[2,1,128], index: 13, kind: input, shape index: {}]
  %s14 = inlined_call_operand.vmem [shape: f32[1,128], index: 14, kind: input, shape index: {}]
  %s15 = inlined_call_operand.vmem [shape: f32[1,128], index: 15, kind: input, shape index: {}]
  %s16 = inlined_call_operand.vmem [shape: f32[2,8,128], index: 16, kind: output, shape index: {}]
  %s17 = sld [smem:[#allocation0]]
  $region97: #{flux_text_forward.2} parent=0
    _
  %s19 = ssub.s32 1, %s17
  %s20 = scalar_select 0, %s19, %s17
  loop: start=0, step=1, limit=4
  $region2: #{flux_text_forward.2} parent=0 // loop_pre_header
    _
  $region3: #{flux_text_forward.2} parent=0 // loop_header
    %s22 = sphi 0, %s26
    %p23 = scmp.ge.s32.totalorder %s22, 4
    %s32 = sphi 0, %s34
    %s35 = sphi 0, %s32
    %s36 = sphi 0, %s35
    %s52 = sphi 0, %s36
    %s56 = sphi 0, %s56
    %s58 = sphi 0, %s56
    %s59 = sphi 0, %s58
    %s73 = sphi 0, %s59
    %s77 = sphi 0, %s77
    %s79 = sphi 0, %s77
    %s80 = sphi 0, %s79
    %s94 = sphi 0, %s80
    %s98 = sphi 0, %s98
    %s100 = sphi 0, %s98
    %s101 = sphi 0, %s100
    %s115 = sphi 0, %s101
    %s119 = sphi 0, %s119
    %s121 = sphi 0, %s119
    %s122 = sphi 0, %s121
    %s136 = sphi 0, %s122
    %s140 = sphi 0, %s140
    %s142 = sphi 0, %s140
    %s143 = sphi 0, %s142
    %s157 = sphi 0, %s143
    %s161 = sphi 0, %s161
    %s163 = sphi 0, %s161
    %s164 = sphi 0, %s163
    %s178 = sphi 0, %s164
    %s182 = sphi 0, %s182
    %s184 = sphi 0, %s182
    %s185 = sphi 0, %s184
    %s199 = sphi 0, %s185
    %s203 = sphi 0, %s203
    %s205 = sphi 0, %s203
    %s206 = sphi 0, %s205
    %s220 = sphi 0, %s206
    %s224 = sphi 0, %s224
    %s226 = sphi 0, %s224
    %s227 = sphi 0, %s226
    %s241 = sphi 0, %s227
    %s245 = sphi 0, %s245
    %s247 = sphi 0, %s245
    %s248 = sphi 0, %s247
    %s262 = sphi 0, %s248
    %s266 = sphi 0, %s266
    %s268 = sphi 0, %s266
    %s269 = sphi 0, %s268
    %s283 = sphi 0, %s269
    %s287 = sphi 0, %s287
    %s289 = sphi 0, %s287
    %s290 = sphi 0, %s289
    %s304 = sphi 0, %s290
    %s308 = sphi 0, %s308
    %s310 = sphi 0, %s308
    %s311 = sphi 0, %s310
    %s325 = sphi 0, %s311
    %s329 = sphi 0, %s329
    %s331 = sphi 0, %s329
    %s332 = sphi 0, %s331
    %s346 = sphi 0, %s332
    %s350 = sphi 0, %s350
    %s352 = sphi 0, %s350
    %s353 = sphi 0, %s352
    %s367 = sphi 0, %s353
    %s373 = sphi 0, %s375
    %s376 = sphi 0, %s373
    %s377 = sphi 0, %s376
    %s393 = sphi 0, %s377
  $region4: #{flux_text_forward.2} parent=0 // loop_header_branch
    %25 = sbr.rel (%p23) target = $region8
  $region5: #{flux_text_forward.2} parent=0 // loop_body
    %s27 = ssub.s32 %s22, 1
    %s28 = ssub.s32 %s22, 2
    %s29 = sadd.s32 %s22, 1
    %s30 = ssub.s32 %s22, %s29
    %p31 = scmp.eq.s32.totalorder %s30, 0
    %s33 = sadd.s32 %s32, 1
    %s34 = scalar_select %p31, %s32, %s33
    %p37 = pneg %p31
    %p38 = scmp.eq.s32.totalorder %s22, 1
    %p39 = por %p37, %p38
    %p40 = scmp.ne.s32.totalorder %s32, %s35
    %p41 = scmp.eq.s32.totalorder %s22, 0
    %p42 = por %p40, %p41
    %p43 = scmp.ne.s32.totalorder %s32, %s35
    %p44 = scmp.eq.s32.totalorder %s27, 1
    %p45 = por %p43, %p44
    %p46 = scmp.ne.s32.totalorder %s35, %s36
    %p47 = scmp.eq.s32.totalorder %s27, 0
    %p48 = por %p46, %p47
    %p49 = scmp.ne.s32.totalorder %s35, %s36
    %p50 = scmp.eq.s32.totalorder %s28, 1
    %p51 = por %p49, %p50
    %p53 = scmp.ne.s32.totalorder %s36, %s52
    %p54 = scmp.eq.s32.totalorder %s28, 0
    %p55 = por %p53, %p54
    %s57 = sadd.s32 %s56, 1
    %p60 = scmp.eq.s32.totalorder %s22, 1
    %p61 = scmp.ne.s32.totalorder %s56, %s58
    %p62 = scmp.eq.s32.totalorder %s22, 0
    %p63 = por %p61, %p62
    %p64 = scmp.ne.s32.totalorder %s56, %s58
    %p65 = scmp.eq.s32.totalorder %s27, 1
    %p66 = por %p64, %p65
    %p67 = scmp.ne.s32.totalorder %s58, %s59
    %p68 = scmp.eq.s32.totalorder %s27, 0
    %p69 = por %p67, %p68
    %p70 = scmp.ne.s32.totalorder %s58, %s59
    %p71 = scmp.eq.s32.totalorder %s28, 1
    %p72 = por %p70, %p71
    %p74 = scmp.ne.s32.totalorder %s59, %s73
    %p75 = scmp.eq.s32.totalorder %s28, 0
    %p76 = por %p74, %p75
    %s78 = sadd.s32 %s77, 1
    %p81 = scmp.eq.s32.totalorder %s22, 1
    %p82 = scmp.ne.s32.totalorder %s77, %s79
    %p83 = scmp.eq.s32.totalorder %s22, 0
    %p84 = por %p82, %p83
    %p85 = scmp.ne.s32.totalorder %s77, %s79
    %p86 = scmp.eq.s32.totalorder %s27, 1
    %p87 = por %p85, %p86
    %p88 = scmp.ne.s32.totalorder %s79, %s80
    %p89 = scmp.eq.s32.totalorder %s27, 0
    %p90 = por %p88, %p89
    %p91 = scmp.ne.s32.totalorder %s79, %s80
    %p92 = scmp.eq.s32.totalorder %s28, 1
    %p93 = por %p91, %p92
    %p95 = scmp.ne.s32.totalorder %s80, %s94
    %p96 = scmp.eq.s32.totalorder %s28, 0
    %p97 = por %p95, %p96
    %s99 = sadd.s32 %s98, 1
    %p102 = scmp.eq.s32.totalorder %s22, 1
    %p103 = scmp.ne.s32.totalorder %s98, %s100
    %p104 = scmp.eq.s32.totalorder %s22, 0
    %p105 = por %p103, %p104
    %p106 = scmp.ne.s32.totalorder %s98, %s100
    %p107 = scmp.eq.s32.totalorder %s27, 1
    %p108 = por %p106, %p107
    %p109 = scmp.ne.s32.totalorder %s100, %s101
    %p110 = scmp.eq.s32.totalorder %s27, 0
    %p111 = por %p109, %p110
    %p112 = scmp.ne.s32.totalorder %s100, %s101
    %p113 = scmp.eq.s32.totalorder %s28, 1
    %p114 = por %p112, %p113
    %p116 = scmp.ne.s32.totalorder %s101, %s115
    %p117 = scmp.eq.s32.totalorder %s28, 0
    %p118 = por %p116, %p117
    %s120 = sadd.s32 %s119, 1
    %p123 = scmp.eq.s32.totalorder %s22, 1
    %p124 = scmp.ne.s32.totalorder %s119, %s121
    %p125 = scmp.eq.s32.totalorder %s22, 0
    %p126 = por %p124, %p125
    %p127 = scmp.ne.s32.totalorder %s119, %s121
    %p128 = scmp.eq.s32.totalorder %s27, 1
    %p129 = por %p127, %p128
    %p130 = scmp.ne.s32.totalorder %s121, %s122
    %p131 = scmp.eq.s32.totalorder %s27, 0
    %p132 = por %p130, %p131
    %p133 = scmp.ne.s32.totalorder %s121, %s122
    %p134 = scmp.eq.s32.totalorder %s28, 1
    %p135 = por %p133, %p134
    %p137 = scmp.ne.s32.totalorder %s122, %s136
    %p138 = scmp.eq.s32.totalorder %s28, 0
    %p139 = por %p137, %p138
    %s141 = sadd.s32 %s140, 1
    %p144 = scmp.eq.s32.totalorder %s22, 1
    %p145 = scmp.ne.s32.totalorder %s140, %s142
    %p146 = scmp.eq.s32.totalorder %s22, 0
    %p147 = por %p145, %p146
    %p148 = scmp.ne.s32.totalorder %s140, %s142
    %p149 = scmp.eq.s32.totalorder %s27, 1
    %p150 = por %p148, %p149
    %p151 = scmp.ne.s32.totalorder %s142, %s143
    %p152 = scmp.eq.s32.totalorder %s27, 0
    %p153 = por %p151, %p152
    %p154 = scmp.ne.s32.totalorder %s142, %s143
    %p155 = scmp.eq.s32.totalorder %s28, 1
    %p156 = por %p154, %p155
    %p158 = scmp.ne.s32.totalorder %s143, %s157
    %p159 = scmp.eq.s32.totalorder %s28, 0
    %p160 = por %p158, %p159
    %s162 = sadd.s32 %s161, 1
    %p165 = scmp.eq.s32.totalorder %s22, 1
    %p166 = scmp.ne.s32.totalorder %s161, %s163
    %p167 = scmp.eq.s32.totalorder %s22, 0
    %p168 = por %p166, %p167
    %p169 = scmp.ne.s32.totalorder %s161, %s163
    %p170 = scmp.eq.s32.totalorder %s27, 1
    %p171 = por %p169, %p170
    %p172 = scmp.ne.s32.totalorder %s163, %s164
    %p173 = scmp.eq.s32.totalorder %s27, 0
    %p174 = por %p172, %p173
    %p175 = scmp.ne.s32.totalorder %s163, %s164
    %p176 = scmp.eq.s32.totalorder %s28, 1
    %p177 = por %p175, %p176
    %p179 = scmp.ne.s32.totalorder %s164, %s178
    %p180 = scmp.eq.s32.totalorder %s28, 0
    %p181 = por %p179, %p180
    %s183 = sadd.s32 %s182, 1
    %p186 = scmp.eq.s32.totalorder %s22, 1
    %p187 = scmp.ne.s32.totalorder %s182, %s184
    %p188 = scmp.eq.s32.totalorder %s22, 0
    %p189 = por %p187, %p188
    %p190 = scmp.ne.s32.totalorder %s182, %s184
    %p191 = scmp.eq.s32.totalorder %s27, 1
    %p192 = por %p190, %p191
    %p193 = scmp.ne.s32.totalorder %s184, %s185
    %p194 = scmp.eq.s32.totalorder %s27, 0
    %p195 = por %p193, %p194
    %p196 = scmp.ne.s32.totalorder %s184, %s185
    %p197 = scmp.eq.s32.totalorder %s28, 1
    %p198 = por %p196, %p197
    %p200 = scmp.ne.s32.totalorder %s185, %s199
    %p201 = scmp.eq.s32.totalorder %s28, 0
    %p202 = por %p200, %p201
    %s204 = sadd.s32 %s203, 1
    %p207 = scmp.eq.s32.totalorder %s22, 1
    %p208 = scmp.ne.s32.totalorder %s203, %s205
    %p209 = scmp.eq.s32.totalorder %s22, 0
    %p210 = por %p208, %p209
    %p211 = scmp.ne.s32.totalorder %s203, %s205
    %p212 = scmp.eq.s32.totalorder %s27, 1
    %p213 = por %p211, %p212
    %p214 = scmp.ne.s32.totalorder %s205, %s206
    %p215 = scmp.eq.s32.totalorder %s27, 0
    %p216 = por %p214, %p215
    %p217 = scmp.ne.s32.totalorder %s205, %s206
    %p218 = scmp.eq.s32.totalorder %s28, 1
    %p219 = por %p217, %p218
    %p221 = scmp.ne.s32.totalorder %s206, %s220
    %p222 = scmp.eq.s32.totalorder %s28, 0
    %p223 = por %p221, %p222
    %s225 = sadd.s32 %s224, 1
    %p228 = scmp.eq.s32.totalorder %s22, 1
    %p229 = scmp.ne.s32.totalorder %s224, %s226
    %p230 = scmp.eq.s32.totalorder %s22, 0
    %p231 = por %p229, %p230
    %p232 = scmp.ne.s32.totalorder %s224, %s226
    %p233 = scmp.eq.s32.totalorder %s27, 1
    %p234 = por %p232, %p233
    %p235 = scmp.ne.s32.totalorder %s226, %s227
    %p236 = scmp.eq.s32.totalorder %s27, 0
    %p237 = por %p235, %p236
    %p238 = scmp.ne.s32.totalorder %s226, %s227
    %p239 = scmp.eq.s32.totalorder %s28, 1
    %p240 = por %p238, %p239
    %p242 = scmp.ne.s32.totalorder %s227, %s241
    %p243 = scmp.eq.s32.totalorder %s28, 0
    %p244 = por %p242, %p243
    %s246 = sadd.s32 %s245, 1
    %p249 = scmp.eq.s32.totalorder %s22, 1
    %p250 = scmp.ne.s32.totalorder %s245, %s247
    %p251 = scmp.eq.s32.totalorder %s22, 0
    %p252 = por %p250, %p251
    %p253 = scmp.ne.s32.totalorder %s245, %s247
    %p254 = scmp.eq.s32.totalorder %s27, 1
    %p255 = por %p253, %p254
    %p256 = scmp.ne.s32.totalorder %s247, %s248
    %p257 = scmp.eq.s32.totalorder %s27, 0
    %p258 = por %p256, %p257
    %p259 = scmp.ne.s32.totalorder %s247, %s248
    %p260 = scmp.eq.s32.totalorder %s28, 1
    %p261 = por %p259, %p260
    %p263 = scmp.ne.s32.totalorder %s248, %s262
    %p264 = scmp.eq.s32.totalorder %s28, 0
    %p265 = por %p263, %p264
    %s267 = sadd.s32 %s266, 1
    %p270 = scmp.eq.s32.totalorder %s22, 1
    %p271 = scmp.ne.s32.totalorder %s266, %s268
    %p272 = scmp.eq.s32.totalorder %s22, 0
    %p273 = por %p271, %p272
    %p274 = scmp.ne.s32.totalorder %s266, %s268
    %p275 = scmp.eq.s32.totalorder %s27, 1
    %p276 = por %p274, %p275
    %p277 = scmp.ne.s32.totalorder %s268, %s269
    %p278 = scmp.eq.s32.totalorder %s27, 0
    %p279 = por %p277, %p278
    %p280 = scmp.ne.s32.totalorder %s268, %s269
    %p281 = scmp.eq.s32.totalorder %s28, 1
    %p282 = por %p280, %p281
    %p284 = scmp.ne.s32.totalorder %s269, %s283
    %p285 = scmp.eq.s32.totalorder %s28, 0
    %p286 = por %p284, %p285
    %s288 = sadd.s32 %s287, 1
    %p291 = scmp.eq.s32.totalorder %s22, 1
    %p292 = scmp.ne.s32.totalorder %s287, %s289
    %p293 = scmp.eq.s32.totalorder %s22, 0
    %p294 = por %p292, %p293
    %p295 = scmp.ne.s32.totalorder %s287, %s289
    %p296 = scmp.eq.s32.totalorder %s27, 1
    %p297 = por %p295, %p296
    %p298 = scmp.ne.s32.totalorder %s289, %s290
    %p299 = scmp.eq.s32.totalorder %s27, 0
    %p300 = por %p298, %p299
    %p301 = scmp.ne.s32.totalorder %s289, %s290
    %p302 = scmp.eq.s32.totalorder %s28, 1
    %p303 = por %p301, %p302
    %p305 = scmp.ne.s32.totalorder %s290, %s304
    %p306 = scmp.eq.s32.totalorder %s28, 0
    %p307 = por %p305, %p306
    %s309 = sadd.s32 %s308, 1
    %p312 = scmp.eq.s32.totalorder %s22, 1
    %p313 = scmp.ne.s32.totalorder %s308, %s310
    %p314 = scmp.eq.s32.totalorder %s22, 0
    %p315 = por %p313, %p314
    %p316 = scmp.ne.s32.totalorder %s308, %s310
    %p317 = scmp.eq.s32.totalorder %s27, 1
    %p318 = por %p316, %p317
    %p319 = scmp.ne.s32.totalorder %s310, %s311
    %p320 = scmp.eq.s32.totalorder %s27, 0
    %p321 = por %p319, %p320
    %p322 = scmp.ne.s32.totalorder %s310, %s311
    %p323 = scmp.eq.s32.totalorder %s28, 1
    %p324 = por %p322, %p323
    %p326 = scmp.ne.s32.totalorder %s311, %s325
    %p327 = scmp.eq.s32.totalorder %s28, 0
    %p328 = por %p326, %p327
    %s330 = sadd.s32 %s329, 1
    %p333 = scmp.eq.s32.totalorder %s22, 1
    %p334 = scmp.ne.s32.totalorder %s329, %s331
    %p335 = scmp.eq.s32.totalorder %s22, 0
    %p336 = por %p334, %p335
    %p337 = scmp.ne.s32.totalorder %s329, %s331
    %p338 = scmp.eq.s32.totalorder %s27, 1
    %p339 = por %p337, %p338
    %p340 = scmp.ne.s32.totalorder %s331, %s332
    %p341 = scmp.eq.s32.totalorder %s27, 0
    %p342 = por %p340, %p341
    %p343 = scmp.ne.s32.totalorder %s331, %s332
    %p344 = scmp.eq.s32.totalorder %s28, 1
    %p345 = por %p343, %p344
    %p347 = scmp.ne.s32.totalorder %s332, %s346
    %p348 = scmp.eq.s32.totalorder %s28, 0
    %p349 = por %p347, %p348
    %s351 = sadd.s32 %s350, 1
    %p354 = scmp.eq.s32.totalorder %s22, 1
    %p355 = scmp.ne.s32.totalorder %s350, %s352
    %p356 = scmp.eq.s32.totalorder %s22, 0
    %p357 = por %p355, %p356
    %p358 = scmp.ne.s32.totalorder %s350, %s352
    %p359 = scmp.eq.s32.totalorder %s27, 1
    %p360 = por %p358, %p359
    %p361 = scmp.ne.s32.totalorder %s352, %s353
    %p362 = scmp.eq.s32.totalorder %s27, 0
    %p363 = por %p361, %p362
    %p364 = scmp.ne.s32.totalorder %s352, %s353
    %p365 = scmp.eq.s32.totalorder %s28, 1
    %p366 = por %p364, %p365
    %p368 = scmp.ne.s32.totalorder %s353, %s367
    %p369 = scmp.eq.s32.totalorder %s28, 0
    %p370 = por %p368, %p369
    %s371 = ssub.s32 %s22, %s29
    %p372 = scmp.eq.s32.totalorder %s371, 0
    %s374 = sadd.s32 %s373, 1
    %s375 = scalar_select %p372, %s373, %s374
    %p378 = pneg %p372
    %p379 = scmp.eq.s32.totalorder %s22, 1
    %p380 = por %p378, %p379
    %p381 = scmp.ne.s32.totalorder %s373, %s376
    %p382 = scmp.eq.s32.totalorder %s22, 0
    %p383 = por %p381, %p382
    %p384 = scmp.ne.s32.totalorder %s373, %s376
    %p385 = scmp.eq.s32.totalorder %s27, 1
    %p386 = por %p384, %p385
    %p387 = scmp.ne.s32.totalorder %s376, %s377
    %p388 = scmp.eq.s32.totalorder %s27, 0
    %p389 = por %p387, %p388
    %p390 = scmp.ne.s32.totalorder %s376, %s377
    %p391 = scmp.eq.s32.totalorder %s28, 1
    %p392 = por %p390, %p391
    %p394 = scmp.ne.s32.totalorder %s377, %s393
    %p395 = scmp.eq.s32.totalorder %s28, 0
    %p396 = por %p394, %p395
    %p397 = scmp.le.s32.totalorder 1, %s22
    %p398 = scmp.lt.s32.totalorder %s22, 3
    %p399 = pnand %p397, %p398
    %p400 = pneg %p399
    // Predicated region
    $region9: #{flux_text_forward.2} parent=5 // pred_check
      _
    $region10: #{flux_text_forward.2} parent=5 // pred_check_branch
      %402 = sbr.rel (%p399) target = $region12
    $region11: #{flux_text_forward.2} parent=5 // pred_region
      %s403 = ssub.s32 %s22, 1
      // Predicated region
      $region13: #{flux_text_forward.2} parent=11 // pred_check
        %p404 = pneg %p69
      $region14: #{flux_text_forward.2} parent=11 // pred_check_branch
        %406 = sbr.rel (%p404) target = $region16
      $region15: #{flux_text_forward.2} parent=11 // pred_region
        _
      $region16: #{flux_text_forward.2} parent=11 // pred_fallthru
        _
      // Predicated region
      $region17: #{flux_text_forward.2} parent=11 // pred_check
        %p407 = pneg %p90
      $region18: #{flux_text_forward.2} parent=11 // pred_check_branch
        %409 = sbr.rel (%p407) target = $region20
      $region19: #{flux_text_forward.2} parent=11 // pred_region
        _
      $region20: #{flux_text_forward.2} parent=11 // pred_fallthru
        _
      // Predicated region
      $region21: #{flux_text_forward.2} parent=11 // pred_check
        %p410 = pneg %p111
      $region22: #{flux_text_forward.2} parent=11 // pred_check_branch
        %412 = sbr.rel (%p410) target = $region24
      $region23: #{flux_text_forward.2} parent=11 // pred_region
        _
      $region24: #{flux_text_forward.2} parent=11 // pred_fallthru
        _
      // Predicated region
      $region25: #{flux_text_forward.2} parent=11 // pred_check
        %p413 = pneg %p132
      $region26: #{flux_text_forward.2} parent=11 // pred_check_branch
        %415 = sbr.rel (%p413) target = $region28
      $region27: #{flux_text_forward.2} parent=11 // pred_region
        _
      $region28: #{flux_text_forward.2} parent=11 // pred_fallthru
        _
      // Predicated region
      $region29: #{flux_text_forward.2} parent=11 // pred_check
        %p416 = pneg %p153
      $region30: #{flux_text_forward.2} parent=11 // pred_check_branch
        %418 = sbr.rel (%p416) target = $region32
      $region31: #{flux_text_forward.2} parent=11 // pred_region
        _
      $region32: #{flux_text_forward.2} parent=11 // pred_fallthru
        _
      // Predicated region
      $region33: #{flux_text_forward.2} parent=11 // pred_check
        %p419 = pneg %p174
      $region34: #{flux_text_forward.2} parent=11 // pred_check_branch
        %421 = sbr.rel (%p419) target = $region36
      $region35: #{flux_text_forward.2} parent=11 // pred_region
        _
      $region36: #{flux_text_forward.2} parent=11 // pred_fallthru
        _
      // Predicated region
      $region37: #{flux_text_forward.2} parent=11 // pred_check
        %p422 = pneg %p195
      $region38: #{flux_text_forward.2} parent=11 // pred_check_branch
        %424 = sbr.rel (%p422) target = $region40
      $region39: #{flux_text_forward.2} parent=11 // pred_region
        _
      $region40: #{flux_text_forward.2} parent=11 // pred_fallthru
        _
      // Predicated region
      $region41: #{flux_text_forward.2} parent=11 // pred_check
        %p425 = pneg %p216
      $region42: #{flux_text_forward.2} parent=11 // pred_check_branch
        %427 = sbr.rel (%p425) target = $region44
      $region43: #{flux_text_forward.2} parent=11 // pred_region
        _
      $region44: #{flux_text_forward.2} parent=11 // pred_fallthru
        _
      // Predicated region
      $region45: #{flux_text_forward.2} parent=11 // pred_check
        %p428 = pneg %p237
      $region46: #{flux_text_forward.2} parent=11 // pred_check_branch
        %430 = sbr.rel (%p428) target = $region48
      $region47: #{flux_text_forward.2} parent=11 // pred_region
        _
      $region48: #{flux_text_forward.2} parent=11 // pred_fallthru
        _
      // Predicated region
      $region49: #{flux_text_forward.2} parent=11 // pred_check
        %p431 = pneg %p258
      $region50: #{flux_text_forward.2} parent=11 // pred_check_branch
        %433 = sbr.rel (%p431) target = $region52
      $region51: #{flux_text_forward.2} parent=11 // pred_region
        _
      $region52: #{flux_text_forward.2} parent=11 // pred_fallthru
        _
      // Predicated region
      $region53: #{flux_text_forward.2} parent=11 // pred_check
        %p434 = pneg %p279
      $region54: #{flux_text_forward.2} parent=11 // pred_check_branch
        %436 = sbr.rel (%p434) target = $region56
      $region55: #{flux_text_forward.2} parent=11 // pred_region
        _
      $region56: #{flux_text_forward.2} parent=11 // pred_fallthru
        _
      // Predicated region
      $region57: #{flux_text_forward.2} parent=11 // pred_check
        %p437 = pneg %p300
      $region58: #{flux_text_forward.2} parent=11 // pred_check_branch
        %439 = sbr.rel (%p437) target = $region60
      $region59: #{flux_text_forward.2} parent=11 // pred_region
        _
      $region60: #{flux_text_forward.2} parent=11 // pred_fallthru
        _
      // Predicated region
      $region61: #{flux_text_forward.2} parent=11 // pred_check
        %p440 = pneg %p321
      $region62: #{flux_text_forward.2} parent=11 // pred_check_branch
        %442 = sbr.rel (%p440) target = $region64
      $region63: #{flux_text_forward.2} parent=11 // pred_region
        _
      $region64: #{flux_text_forward.2} parent=11 // pred_fallthru
        _
      // Predicated region
      $region65: #{flux_text_forward.2} parent=11 // pred_check
        %p443 = pneg %p342
      $region66: #{flux_text_forward.2} parent=11 // pred_check_branch
        %445 = sbr.rel (%p443) target = $region68
      $region67: #{flux_text_forward.2} parent=11 // pred_region
        _
      $region68: #{flux_text_forward.2} parent=11 // pred_fallthru
        _
      // Predicated region
      $region69: #{flux_text_forward.2} parent=11 // pred_check
        %p446 = pneg %p363
      $region70: #{flux_text_forward.2} parent=11 // pred_check_branch
        %448 = sbr.rel (%p446) target = $region72
      $region71: #{flux_text_forward.2} parent=11 // pred_region
        _
      $region72: #{flux_text_forward.2} parent=11 // pred_fallthru
        _
    $region12: #{flux_text_forward.2} parent=5 // pred_fallthru
      _
    %p449 = scmp.lt.s32.totalorder %s22, 2
    // Predicated region
    $region73: #{flux_text_forward.2} parent=5 // pred_check
      %p450 = pneg %p449
    $region74: #{flux_text_forward.2} parent=5 // pred_check_branch
      %452 = sbr.rel (%p450) target = $region76
    $region75: #{flux_text_forward.2} parent=5 // pred_region
      // Predicated region
      $region77: #{flux_text_forward.2} parent=75 // pred_check
        %p453 = pneg %p42
      $region78: #{flux_text_forward.2} parent=75 // pred_check_branch
        %455 = sbr.rel (%p453) target = $region80
      $region79: #{flux_text_forward.2} parent=75 // pred_region
        %p456 = scmp.lt.s32.totalorder %s22, 1
        %s457 = scalar_select %p456, %s22, 1
        %s458 = smul.addr %s457, 8
        %s459 = scalar_lea.vmem %s0, %s458
      $region80: #{flux_text_forward.2} parent=75 // pred_fallthru
        _
    $region76: #{flux_text_forward.2} parent=5 // pred_fallthru
      _
    %p460 = scmp.le.s32.totalorder 1, %s22
    %p461 = scmp.lt.s32.totalorder %s22, 3
    %p462 = pnand %p460, %p461
    %p463 = pneg %p462
    // Predicated region
    $region81: #{flux_text_forward.2} parent=5 // pred_check
      _
    $region82: #{flux_text_forward.2} parent=5 // pred_check_branch
      %465 = sbr.rel (%p462) target = $region84
    $region83: #{flux_text_forward.2} parent=5 // pred_region
      %s466 = ssub.s32 %s22, 1
      %p467 = scmp.lt.s32.totalorder %s27, 1
      %s468 = scalar_select %p467, %s27, 1
      %s469 = smul.addr %s468, 8
      %s470 = scalar_lea.vmem %s0, %s469
      %p471 = pneg %p48
      %p472 = pneg %p45
      %p473 = pneg %p69
      %p474 = pneg %p66
      %p475 = pneg %p90
      %p476 = pneg %p87
      %p477 = pneg %p111
      %p478 = pneg %p108
      %p479 = pneg %p132
      %p480 = pneg %p129
      %p481 = pneg %p153
      %p482 = pneg %p150
      %p483 = pneg %p174
      %p484 = pneg %p171
      %p485 = pneg %p195
      %p486 = pneg %p192
      %p487 = pneg %p216
      %p488 = pneg %p213
      %p489 = pneg %p237
      %p490 = pneg %p234
      %p491 = pneg %p258
      %p492 = pneg %p255
      %p493 = pneg %p279
      %p494 = pneg %p276
      %p495 = pneg %p300
      %p496 = pneg %p297
      %p497 = pneg %p321
      %p498 = pneg %p318
      %p499 = pneg %p342
      %p500 = pneg %p339
      %p501 = pneg %p363
      %p502 = pneg %p360
      %p503 = pneg %p389
      %p504 = pneg %p386
      %p505 = scmp.lt.s32.totalorder %s27, 1
      %s506 = scalar_select %p505, %s27, 1
      %s507 = smul.addr %s506, 8
      %s508 = scalar_lea.vmem %s16, %s507
      %p509 = scmp.lt.s32.totalorder %s27, 1
      %s510 = scalar_select %p509, %s27, 1
      %s511 = smul.addr %s510, 8
      %s512 = scalar_lea.vmem %s0, %s511
      %p513 = scmp.lt.s32.totalorder %s27, 1
      %s514 = scalar_select %p513, %s27, 1
      %s515 = smul.addr %s514, 8
      %s516 = scalar_lea.vmem %s16, %s515
      %v518 = vld [vmem:[%s512] sm:$0xff]
      %v519 = vld [vmem:[%s1] sm:$0xff]
      %v520 = vld [vmem:[%s2] sm:$0x1]
      %v521 = vld [vmem:[%s3] sm:$0x1]
      %522 = vadd.xlane.f32.xlu0 %v518
      %v523 = vpop.xlane.xlu0 %522
      %v524 = vrcp.pop 128.0
      %v525 = vmul.f32 %v523, %v524
      %v526 = vmul.f32 %v518, %v518
      %527 = vadd.xlane.f32.xlu0 %v526
      %v528 = vpop.xlane.xlu0 %527
      %v529 = vmul.f32 %v528, %v524
      %v530 = vmul.f32 %v525, %v525
      %v531 = vsub.f32 %v529, %v530
      %v532 = vsub.f32 %v518, %v525
      %v533 = vadd.f32 %v531, 1e-05
      %v534 = vrsqrt.pop %v533
      %v535 = vmul.f32 %v532, %v534
      %v537 = vlaneseq
      %v538 = vshrl.u32 %v537, 7
      %v539 = vsub.s32 0, %v538
      %v540 = vrot.slane %v520, %v539
      %v542 = vmul.f32 %v535, %v540
      %v544 = vlaneseq
      %v545 = vshrl.u32 %v544, 7
      %v546 = vsub.s32 0, %v545
      %v547 = vrot.slane %v521, %v546
      %v549 = vadd.f32 %v542, %v547
      %v550 = vld [vmem:[%s4] sm:$0xff]
      %v551 = vld [vmem:[%s4 + $0x8] sm:$0xf]
      %v552 = vld [vmem:[%s4 + $0xc] sm:$0xff]
      %v553 = vld [vmem:[%s4 + $0x14] sm:$0xf]
      %v554 = vld [vmem:[%s4 + $0x18] sm:$0xff]
      %v555 = vld [vmem:[%s4 + $0x20] sm:$0xf]
      %v556 = vld [vmem:[%s4 + $0x24] sm:$0xff]
      %v557 = vld [vmem:[%s4 + $0x2c] sm:$0xf]
      %v558 = vld [vmem:[%s4 + $0x30] sm:$0xff]
      %v559 = vld [vmem:[%s4 + $0x38] sm:$0xf]
      %v560 = vld [vmem:[%s4 + $0x3c] sm:$0xff]
      %v561 = vld [vmem:[%s4 + $0x44] sm:$0xf]
      %v562 = vld [vmem:[%s4 + $0x48] sm:$0xff]
      %v563 = vld [vmem:[%s4 + $0x50] sm:$0xf]
      %v564 = vld [vmem:[%s4 + $0x54] sm:$0xff]
      %v565 = vld [vmem:[%s4 + $0x5c] sm:$0xf]
      %v566 = vld [vmem:[%s4 + $0x60] sm:$0xff]
      %v567 = vld [vmem:[%s4 + $0x68] sm:$0xf]
      %v568 = vld [vmem:[%s4 + $0x6c] sm:$0xff]
      %v569 = vld [vmem:[%s4 + $0x74] sm:$0xf]
      %v570 = vld [vmem:[%s4 + $0x78] sm:$0xff]
      %v571 = vld [vmem:[%s4 + $0x80] sm:$0xf]
      %v572 = vld [vmem:[%s4 + $0x84] sm:$0xff]
      %v573 = vld [vmem:[%s4 + $0x8c] sm:$0xf]
      %v574 = vld [vmem:[%s4 + $0x90] sm:$0xff]
      %v575 = vld [vmem:[%s4 + $0x98] sm:$0xf]
      %v576 = vld [vmem:[%s4 + $0x9c] sm:$0xff]
      %v577 = vld [vmem:[%s4 + $0xa4] sm:$0xf]
      %v578 = vld [vmem:[%s4 + $0xa8] sm:$0xff]
      %v579 = vld [vmem:[%s4 + $0xb0] sm:$0xf]
      %v580 = vld [vmem:[%s4 + $0xb4] sm:$0xff]
      %v581 = vld [vmem:[%s4 + $0xbc] sm:$0xf]
      %v582 = vld [vmem:[%s6] sm:$0xf]
      %v583 = vld [vmem:[%s6 + $0x4] sm:$0xf]
      %v584 = vld [vmem:[%s6 + $0x8] sm:$0xf]
      %v585 = vld [vmem:[%s6 + $0xc] sm:$0xf]
      %v586 = vld [vmem:[%s6 + $0x10] sm:$0xf]
      %v587 = vld [vmem:[%s6 + $0x14] sm:$0xf]
      %v588 = vld [vmem:[%s6 + $0x18] sm:$0xf]
      %v589 = vld [vmem:[%s6 + $0x1c] sm:$0xf]
      %v590 = vld [vmem:[%s6 + $0x20] sm:$0xf]
      %v591 = vld [vmem:[%s6 + $0x24] sm:$0xf]
      %v592 = vld [vmem:[%s6 + $0x28] sm:$0xf]
      %v593 = vld [vmem:[%s6 + $0x2c] sm:$0xf]
      %v594 = vld [vmem:[%s6 + $0x30] sm:$0xf]
      %v595 = vld [vmem:[%s6 + $0x34] sm:$0xf]
      %v596 = vld [vmem:[%s6 + $0x38] sm:$0xf]
      %v597 = vld [vmem:[%s6 + $0x3c] sm:$0xf]
      %v598 = vld [vmem:[%s5] sm:$0x7]
      %v599 = vld [vmem:[%s7] sm:$0x1]
      %v600 = vpack.c.bf16 %v549, %v549
      %v602 = vlaneseq
      %v603 = vshrl.u32 %v602, 7
      %v604 = vsub.s32 0, %v603
      %v605 = vrot.slane %v598, %v604
      %v606 = vlaneseq
      %v607 = vshrl.u32 %v606, 7
      %v608 = vsub.s32 1, %v607
      %v609 = vrot.slane %v598, %v608
      %v610 = vlaneseq
      %v611 = vshrl.u32 %v610, 7
      %v612 = vsub.s32 2, %v611
      %v613 = vrot.slane %v598, %v612
      %v649 = vunpack.c.l.b16 %v550
      %v650 = vunpack.c.h.b16 %v550
      %v651 = vunpack.c.l.b16 %v551
      %v652 = vunpack.c.l.b16 %v552
      %v653 = vunpack.c.h.b16 %v552
      %v654 = vunpack.c.l.b16 %v553
      %v655 = vunpack.c.l.b16 %v554
      %v656 = vunpack.c.h.b16 %v554
      %v657 = vunpack.c.l.b16 %v555
      %v658 = vunpack.c.l.b16 %v556
      %v659 = vunpack.c.h.b16 %v556
      %v660 = vunpack.c.l.b16 %v557
      %v661 = vunpack.c.l.b16 %v558
      %v662 = vunpack.c.h.b16 %v558
      %v663 = vunpack.c.l.b16 %v559
      %v664 = vunpack.c.l.b16 %v560
      %v665 = vunpack.c.h.b16 %v560
      %v666 = vunpack.c.l.b16 %v561
      %v667 = vunpack.c.l.b16 %v562
      %v668 = vunpack.c.h.b16 %v562
      %v669 = vunpack.c.l.b16 %v563
      %v670 = vunpack.c.l.b16 %v564
      %v671 = vunpack.c.h.b16 %v564
      %v672 = vunpack.c.l.b16 %v565
      %v673 = vunpack.c.l.b16 %v566
      %v674 = vunpack.c.h.b16 %v566
      %v675 = vunpack.c.l.b16 %v567
      %v676 = vunpack.c.l.b16 %v568
      %v677 = vunpack.c.h.b16 %v568
      %v678 = vunpack.c.l.b16 %v569
      %v679 = vunpack.c.l.b16 %v570
      %v680 = vunpack.c.h.b16 %v570
      %v681 = vunpack.c.l.b16 %v571
      %v682 = vunpack.c.l.b16 %v572
      %v683 = vunpack.c.h.b16 %v572
      %v684 = vunpack.c.l.b16 %v573
      %v685 = vunpack.c.l.b16 %v574
      %v686 = vunpack.c.h.b16 %v574
      %v687 = vunpack.c.l.b16 %v575
      %v688 = vunpack.c.l.b16 %v576
      %v689 = vunpack.c.h.b16 %v576
      %v690 = vunpack.c.l.b16 %v577
      %v691 = vunpack.c.l.b16 %v578
      %v692 = vunpack.c.h.b16 %v578
      %v693 = vunpack.c.l.b16 %v579
      %v694 = vunpack.c.l.b16 %v580
      %v695 = vunpack.c.h.b16 %v580
      %v696 = vunpack.c.l.b16 %v581
      %v697 = vpack.c.b16 %v652, %v649
      %v698 = vpack.c.b16 %v653, %v650
      %v699 = vpack.c.b16 %v654, %v651
      %v700 = vpack.c.b16 %v658, %v655
      %v701 = vpack.c.b16 %v659, %v656
      %v702 = vpack.c.b16 %v660, %v657
      %v703 = vpack.c.b16 %v664, %v661
      %v704 = vpack.c.b16 %v665, %v662
      %v705 = vpack.c.b16 %v666, %v663
      %v706 = vpack.c.b16 %v670, %v667
      %v707 = vpack.c.b16 %v671, %v668
      %v708 = vpack.c.b16 %v672, %v669
      %v709 = vpack.c.b16 %v676, %v673
      %v710 = vpack.c.b16 %v677, %v674
      %v711 = vpack.c.b16 %v678, %v675
      %v712 = vpack.c.b16 %v682, %v679
      %v713 = vpack.c.b16 %v683, %v680
      %v714 = vpack.c.b16 %v684, %v681
      %v715 = vpack.c.b16 %v688, %v685
      %v716 = vpack.c.b16 %v689, %v686
      %v717 = vpack.c.b16 %v690, %v687
      %v718 = vpack.c.b16 %v694, %v691
      %v719 = vpack.c.b16 %v695, %v692
      %v720 = vpack.c.b16 %v696, %v693
      %745 = vmatprep.subr.bf16.mxu0 %v698
      %746 = vmatpush1.bf16.msra.mxu0 %v697
      %747 = vmatprep.subr.bf16.mxu0 %v701
      %748 = vmatpush1.bf16.msra.mxu0 %v700
      %749 = vmatprep.subr.bf16.mxu0 %v704
      %750 = vmatpush1.bf16.msra.mxu0 %v703
      %751 = vmatprep.subr.bf16.mxu0 %v707
      %752 = vmatpush1.bf16.msra.mxu0 %v706
      %753 = vmatprep.subr.bf16.mxu0 %v710
      %754 = vmatpush1.bf16.msra.mxu0 %v709
      %755 = vmatprep.subr.bf16.mxu0 %v713
      %756 = vmatpush1.bf16.msra.mxu0 %v712
      %757 = vmatprep.subr.bf16.mxu0 %v716
      %758 = vmatpush1.bf16.msra.mxu0 %v715
      %759 = vmatprep.subr.bf16.mxu0 %v719
      %760 = vmatpush1.bf16.msra.mxu0 %v718
      %761 = vmatprep.subr.bf16.mxu0 0
      %762 = vmatpush1.bf16.msra.mxu0 0
      %763 = vmatprep.subr.bf16.mxu0 0
      %764 = vmatpush1.bf16.msra.mxu0 0
      %765 = vmatprep.subr.bf16.mxu0 0
      %766 = vmatpush1.bf16.msra.mxu0 0
      %767 = vmatprep.subr.bf16.mxu0 0
      %768 = vmatpush1.bf16.msra.mxu0 0
      %769 = vmatprep.subr.bf16.mxu0 0
      %770 = vmatpush1.bf16.msra.mxu0 0
      %771 = vmatprep.subr.bf16.mxu0 0
      %772 = vmatpush1.bf16.msra.mxu0 0
      %773 = vmatprep.subr.bf16.mxu0 0
      %774 = vmatpush1.bf16.msra.mxu0 0
      %775 = vmatprep.subr.bf16.mxu0 0
      %776 = vmatpush1.bf16.msra.mxu0 0
      %777 = vmatprep.mubr.bf16.mxu0 0
      %778 = vmatmul.mubr.bf16.gmra.mrb[0].mxu0 %v600
      %v779 = vpop.f32.mrb[0].mxu0
      %v780 = vadd.f32 %v605, %v779
      %v781 = vpop.f32.mrb[0].mxu0
      %v782 = vadd.f32 %v609, %v781
      %v783 = vpop.f32.mrb[0].mxu0
      %v784 = vpop.f32.mrb[0].mxu0
      %785 = vdwg.mxu0
      %786 = vmatprep.subr.bf16.mxu0 0
      %787 = vmatpush1.bf16.msra.mxu0 %v699
      %788 = vmatprep.subr.bf16.mxu0 0
      %789 = vmatpush1.bf16.msra.mxu0 %v702
      %790 = vmatprep.subr.bf16.mxu0 0
      %791 = vmatpush1.bf16.msra.mxu0 %v705
      %792 = vmatprep.subr.bf16.mxu0 0
      %793 = vmatpush1.bf16.msra.mxu0 %v708
      %794 = vmatprep.subr.bf16.mxu0 0
      %795 = vmatpush1.bf16.msra.mxu0 %v711
      %796 = vmatprep.subr.bf16.mxu0 0
      %797 = vmatpush1.bf16.msra.mxu0 %v714
      %798 = vmatprep.subr.bf16.mxu0 0
      %799 = vmatpush1.bf16.msra.mxu0 %v717
      %800 = vmatprep.subr.bf16.mxu0 0
      %801 = vmatpush1.bf16.msra.mxu0 %v720
      %802 = vmatprep.subr.bf16.mxu0 0
      %803 = vmatpush1.bf16.msra.mxu0 0
      %804 = vmatprep.subr.bf16.mxu0 0
      %805 = vmatpush1.bf16.msra.mxu0 0
      %806 = vmatprep.subr.bf16.mxu0 0
      %807 = vmatpush1.bf16.msra.mxu0 0
      %808 = vmatprep.subr.bf16.mxu0 0
      %809 = vmatpush1.bf16.msra.mxu0 0
      %810 = vmatprep.subr.bf16.mxu0 0
      %811 = vmatpush1.bf16.msra.mxu0 0
      %812 = vmatprep.subr.bf16.mxu0 0
      %813 = vmatpush1.bf16.msra.mxu0 0
      %814 = vmatprep.subr.bf16.mxu0 0
      %815 = vmatpush1.bf16.msra.mxu0 0
      %816 = vmatprep.subr.bf16.mxu0 0
      %817 = vmatpush1.bf16.msra.mxu0 0
      %818 = vmatprep.mubr.bf16.mxu0 0
      %819 = vmatmul.mubr.bf16.gmra.mrb[0].mxu0 %v600
      %v820 = vpop.f32.mrb[0].mxu0
      %v821 = vadd.f32 %v613, %v820
      %v822 = vpop.f32.mrb[0].mxu0
      %v823 = vpop.f32.mrb[0].mxu0
      %v824 = vpop.f32.mrb[0].mxu0
      %825 = vdwg.mxu0
      %827 = vrot.lane.b32.xlu0 %v780, 96
      %v828 = vpop.permute.xlu0 %827
      %830 = vrot.lane.b32.xlu0 %v780, 64
      %v831 = vpop.permute.xlu0 %830
      %833 = vrot.lane.b32.xlu0 %v780, 32
      %v834 = vpop.permute.xlu0 %833
      %v836 = vcombine.low %v780, %v831
      %v837 = vcombine.high %v780, %v831
      %v839 = vunpack.c.l.s4 1983009808
      %v840 = vunpack.c.0.s8 %v839
      %v841 = vlaneseq
      %v842 = vshrl.u32 %v841, 7
      %v843 = vsub.s32 %v840, %v842
      %v844 = vrot.slane %v836, %v843
      %v846 = vunpack.c.l.s4 1983009808
      %v847 = vunpack.c.0.s8 %v846
      %v848 = vlaneseq
      %v849 = vshrl.u32 %v848, 7
      %v850 = vsub.s32 %v847, %v849
      %v851 = vrot.slane %v837, %v850
      %v852 = vcombine.low %v828, %v834
      %v853 = vcombine.high %v828, %v834
      %v855 = vunpack.c.l.s4 1983009808
      %v856 = vunpack.c.0.s8 %v855
      %v857 = vlaneseq
      %v858 = vshrl.u32 %v857, 7
      %v859 = vsub.s32 %v856, %v858
      %v860 = vrot.slane %v852, %v859
      %v862 = vunpack.c.l.s4 1983009808
      %v863 = vunpack.c.0.s8 %v862
      %v864 = vlaneseq
      %v865 = vshrl.u32 %v864, 7
      %v866 = vsub.s32 %v863, %v865
      %v867 = vrot.slane %v853, %v866
      %v868 = vcombine.low %v844, %v860
      %v869 = vcombine.high %v844, %v860
      %v871 = vunpack.c.l.s4 1934713408
      %v872 = vunpack.c.0.s8 %v871
      %v873 = vlaneseq
      %v874 = vshrl.u32 %v873, 7
      %v875 = vsub.s32 %v872, %v874
      %v876 = vrot.slane %v868, %v875
      %v878 = vunpack.c.l.s4 1934713408
      %v879 = vunpack.c.0.s8 %v878
      %v880 = vlaneseq
      %v881 = vshrl.u32 %v880, 7
      %v882 = vsub.s32 %v879, %v881
      %v883 = vrot.slane %v869, %v882
      %v884 = vcombine.low %v851, %v867
      %v885 = vcombine.high %v851, %v867
      %v887 = vunpack.c.l.s4 1934713408
      %v888 = vunpack.c.0.s8 %v887
      %v889 = vlaneseq
      %v890 = vshrl.u32 %v889, 7
      %v891 = vsub.s32 %v888, %v890
      %v892 = vrot.slane %v884, %v891
      %v894 = vunpack.c.l.s4 1934713408
      %v895 = vunpack.c.0.s8 %v894
      %v896 = vlaneseq
      %v897 = vshrl.u32 %v896, 7
      %v898 = vsub.s32 %v895, %v897
      %v899 = vrot.slane %v885, %v898
      %v900 = vcombine.high %v876, 0.0
      %v901 = vcombine.high %v883, 0.0
      %v902 = vcombine.high %v892, 0.0
      %v903 = vcombine.high %v899, 0.0
      %v904 = vcombine.low %v876, %v883
      %v906 = vunpack.c.l.s4 1983009808
      %v907 = vunpack.c.0.s8 %v906
      %v908 = vlaneseq
      %v909 = vshrl.u32 %v908, 7
      %v910 = vsub.s32 %v907, %v909
      %v911 = vrot.slane %v904, %v910
      %v912 = vcombine.low %v900, %v901
      %v914 = vunpack.c.l.s4 1983009808
      %v915 = vunpack.c.0.s8 %v914
      %v916 = vlaneseq
      %v917 = vshrl.u32 %v916, 7
      %v918 = vsub.s32 %v915, %v917
      %v919 = vrot.slane %v912, %v918
      %v920 = vcombine.low %v892, %v899
      %v922 = vunpack.c.l.s4 1983009808
      %v923 = vunpack.c.0.s8 %v922
      %v924 = vlaneseq
      %v925 = vshrl.u32 %v924, 7
      %v926 = vsub.s32 %v923, %v925
      %v927 = vrot.slane %v920, %v926
      %v928 = vcombine.low %v902, %v903
      %v930 = vunpack.c.l.s4 1983009808
      %v931 = vunpack.c.0.s8 %v930
      %v932 = vlaneseq
      %v933 = vshrl.u32 %v932, 7
      %v934 = vsub.s32 %v931, %v933
      %v935 = vrot.slane %v928, %v934
      %v936 = vcombine.low %v911, %v919
      %v937 = vcombine.high %v911, %v919
      %v939 = vunpack.c.l.s4 1934713408
      %v940 = vunpack.c.0.s8 %v939
      %v941 = vlaneseq
      %v942 = vshrl.u32 %v941, 7
      %v943 = vsub.s32 %v940, %v942
      %v944 = vrot.slane %v936, %v943
      %v946 = vunpack.c.l.s4 1934713408
      %v947 = vunpack.c.0.s8 %v946
      %v948 = vlaneseq
      %v949 = vshrl.u32 %v948, 7
      %v950 = vsub.s32 %v947, %v949
      %v951 = vrot.slane %v937, %v950
      %v952 = vcombine.low %v927, %v935
      %v953 = vcombine.high %v927, %v935
      %v955 = vunpack.c.l.s4 1934713408
      %v956 = vunpack.c.0.s8 %v955
      %v957 = vlaneseq
      %v958 = vshrl.u32 %v957, 7
      %v959 = vsub.s32 %v956, %v958
      %v960 = vrot.slane %v952, %v959
      %v962 = vunpack.c.l.s4 1934713408
      %v963 = vunpack.c.0.s8 %v962
      %v964 = vlaneseq
      %v965 = vshrl.u32 %v964, 7
      %v966 = vsub.s32 %v963, %v965
      %v967 = vrot.slane %v953, %v966
      %v968 = vcombine.low %v944, %v960
      %v969 = vcombine.high %v944, %v960
      %v970 = vcombine.low %v951, %v967
      %v971 = vcombine.high %v951, %v967
      %v972 = vpack.c.bf16 %v968, %v968
      %v973 = vpack.c.bf16 %v969, %v969
      %v974 = vpack.c.bf16 %v970, %v970
      %v975 = vpack.c.bf16 %v971, %v971
      %977 = vrot.lane.b32.xlu0 %v782, 96
      %v978 = vpop.permute.xlu0 %977
      %980 = vrot.lane.b32.xlu0 %v782, 64
      %v981 = vpop.permute.xlu0 %980
      %983 = vrot.lane.b32.xlu0 %v782, 32
      %v984 = vpop.permute.xlu0 %983
      %v986 = vcombine.low %v782, %v981
      %v987 = vcombine.high %v782, %v981
      %v989 = vunpack.c.l.s4 1983009808
      %v990 = vunpack.c.0.s8 %v989
      %v991 = vlaneseq
      %v992 = vshrl.u32 %v991, 7
      %v993 = vsub.s32 %v990, %v992
      %v994 = vrot.slane %v986, %v993
      %v996 = vunpack.c.l.s4 1983009808
      %v997 = vunpack.c.0.s8 %v996
      %v998 = vlaneseq
      %v999 = vshrl.u32 %v998, 7
      %v1000 = vsub.s32 %v997, %v999
      %v1001 = vrot.slane %v987, %v1000
      %v1002 = vcombine.low %v978, %v984
      %v1003 = vcombine.high %v978, %v984
      %v1005 = vunpack.c.l.s4 1983009808
      %v1006 = vunpack.c.0.s8 %v1005
      %v1007 = vlaneseq
      %v1008 = vshrl.u32 %v1007, 7
      %v1009 = vsub.s32 %v1006, %v1008
      %v1010 = vrot.slane %v1002, %v1009
      %v1012 = vunpack.c.l.s4 1983009808
      %v1013 = vunpack.c.0.s8 %v1012
      %v1014 = vlaneseq
      %v1015 = vshrl.u32 %v1014, 7
      %v1016 = vsub.s32 %v1013, %v1015
      %v1017 = vrot.slane %v1003, %v1016
      %v1018 = vcombine.low %v994, %v1010
      %v1019 = vcombine.high %v994, %v1010
      %v1021 = vunpack.c.l.s4 1934713408
      %v1022 = vunpack.c.0.s8 %v1021
      %v1023 = vlaneseq
      %v1024 = vshrl.u32 %v1023, 7
      %v1025 = vsub.s32 %v1022, %v1024
      %v1026 = vrot.slane %v1018, %v1025
      %v1028 = vunpack.c.l.s4 1934713408
      %v1029 = vunpack.c.0.s8 %v1028
      %v1030 = vlaneseq
      %v1031 = vshrl.u32 %v1030, 7
      %v1032 = vsub.s32 %v1029, %v1031
      %v1033 = vrot.slane %v1019, %v1032
      %v1034 = vcombine.low %v1001, %v1017
      %v1035 = vcombine.high %v1001, %v1017
      %v1037 = vunpack.c.l.s4 1934713408
      %v1038 = vunpack.c.0.s8 %v1037
      %v1039 = vlaneseq
      %v1040 = vshrl.u32 %v1039, 7
      %v1041 = vsub.s32 %v1038, %v1040
      %v1042 = vrot.slane %v1034, %v1041
      %v1044 = vunpack.c.l.s4 1934713408
      %v1045 = vunpack.c.0.s8 %v1044
      %v1046 = vlaneseq
      %v1047 = vshrl.u32 %v1046, 7
      %v1048 = vsub.s32 %v1045, %v1047
      %v1049 = vrot.slane %v1035, %v1048
      %v1050 = vcombine.high %v1026, 0.0
      %v1051 = vcombine.high %v1033, 0.0
      %v1052 = vcombine.high %v1042, 0.0
      %v1053 = vcombine.high %v1049, 0.0
      %v1054 = vcombine.low %v1026, %v1033
      %v1056 = vunpack.c.l.s4 1983009808
      %v1057 = vunpack.c.0.s8 %v1056
      %v1058 = vlaneseq
      %v1059 = vshrl.u32 %v1058, 7
      %v1060 = vsub.s32 %v1057, %v1059
      %v1061 = vrot.slane %v1054, %v1060
      %v1062 = vcombine.low %v1050, %v1051
      %v1064 = vunpack.c.l.s4 1983009808
      %v1065 = vunpack.c.0.s8 %v1064
      %v1066 = vlaneseq
      %v1067 = vshrl.u32 %v1066, 7
      %v1068 = vsub.s32 %v1065, %v1067
      %v1069 = vrot.slane %v1062, %v1068
      %v1070 = vcombine.low %v1042, %v1049
      %v1072 = vunpack.c.l.s4 1983009808
      %v1073 = vunpack.c.0.s8 %v1072
      %v1074 = vlaneseq
      %v1075 = vshrl.u32 %v1074, 7
      %v1076 = vsub.s32 %v1073, %v1075
      %v1077 = vrot.slane %v1070, %v1076
      %v1078 = vcombine.low %v1052, %v1053
      %v1080 = vunpack.c.l.s4 1983009808
      %v1081 = vunpack.c.0.s8 %v1080
      %v1082 = vlaneseq
      %v1083 = vshrl.u32 %v1082, 7
      %v1084 = vsub.s32 %v1081, %v1083
      %v1085 = vrot.slane %v1078, %v1084
      %v1086 = vcombine.low %v1061, %v1069
      %v1087 = vcombine.high %v1061, %v1069
      %v1089 = vunpack.c.l.s4 1934713408
      %v1090 = vunpack.c.0.s8 %v1089
      %v1091 = vlaneseq
      %v1092 = vshrl.u32 %v1091, 7
      %v1093 = vsub.s32 %v1090, %v1092
      %v1094 = vrot.slane %v1086, %v1093
      %v1096 = vunpack.c.l.s4 1934713408
      %v1097 = vunpack.c.0.s8 %v1096
      %v1098 = vlaneseq
      %v1099 = vshrl.u32 %v1098, 7
      %v1100 = vsub.s32 %v1097, %v1099
      %v1101 = vrot.slane %v1087, %v1100
      %v1102 = vcombine.low %v1077, %v1085
      %v1103 = vcombine.high %v1077, %v1085
      %v1105 = vunpack.c.l.s4 1934713408
      %v1106 = vunpack.c.0.s8 %v1105
      %v1107 = vlaneseq
      %v1108 = vshrl.u32 %v1107, 7
      %v1109 = vsub.s32 %v1106, %v1108
      %v1110 = vrot.slane %v1102, %v1109
      %v1112 = vunpack.c.l.s4 1934713408
      %v1113 = vunpack.c.0.s8 %v1112
      %v1114 = vlaneseq
      %v1115 = vshrl.u32 %v1114, 7
      %v1116 = vsub.s32 %v1113, %v1115
      %v1117 = vrot.slane %v1103, %v1116
      %v1118 = vcombine.low %v1094, %v1110
      %v1119 = vcombine.high %v1094, %v1110
      %v1120 = vcombine.low %v1101, %v1117
      %v1121 = vcombine.high %v1101, %v1117
      %v1122 = vpack.c.bf16 %v1118, %v1118
      %v1123 = vpack.c.bf16 %v1119, %v1119
      %v1124 = vpack.c.bf16 %v1120, %v1120
      %v1125 = vpack.c.bf16 %v1121, %v1121
      %1127 = vrot.lane.b32.xlu0 %v821, 96
      %v1128 = vpop.permute.xlu0 %1127
      %1130 = vrot.lane.b32.xlu0 %v821, 64
      %v1131 = vpop.permute.xlu0 %1130
      %1133 = vrot.lane.b32.xlu0 %v821, 32
      %v1134 = vpop.permute.xlu0 %1133
      %v1136 = vcombine.low %v821, %v1131
      %v1137 = vcombine.high %v821, %v1131
      %v1139 = vunpack.c.l.s4 1983009808
      %v1140 = vunpack.c.0.s8 %v1139
      %v1141 = vlaneseq
      %v1142 = vshrl.u32 %v1141, 7
      %v1143 = vsub.s32 %v1140, %v1142
      %v1144 = vrot.slane %v1136, %v1143
      %v1146 = vunpack.c.l.s4 1983009808
      %v1147 = vunpack.c.0.s8 %v1146
      %v1148 = vlaneseq
      %v1149 = vshrl.u32 %v1148, 7
      %v1150 = vsub.s32 %v1147, %v1149
      %v1151 = vrot.slane %v1137, %v1150
      %v1152 = vcombine.low %v1128, %v1134
      %v1153 = vcombine.high %v1128, %v1134
      %v1155 = vunpack.c.l.s4 1983009808
      %v1156 = vunpack.c.0.s8 %v1155
      %v1157 = vlaneseq
      %v1158 = vshrl.u32 %v1157, 7
      %v1159 = vsub.s32 %v1156, %v1158
      %v1160 = vrot.slane %v1152, %v1159
      %v1162 = vunpack.c.l.s4 1983009808
      %v1163 = vunpack.c.0.s8 %v1162
      %v1164 = vlaneseq
      %v1165 = vshrl.u32 %v1164, 7
      %v1166 = vsub.s32 %v1163, %v1165
      %v1167 = vrot.slane %v1153, %v1166
      %v1168 = vcombine.low %v1144, %v1160
      %v1169 = vcombine.high %v1144, %v1160
      %v1171 = vunpack.c.l.s4 1934713408
      %v1172 = vunpack.c.0.s8 %v1171
      %v1173 = vlaneseq
      %v1174 = vshrl.u32 %v1173, 7
      %v1175 = vsub.s32 %v1172, %v1174
      %v1176 = vrot.slane %v1168, %v1175
      %v1178 = vunpack.c.l.s4 1934713408
      %v1179 = vunpack.c.0.s8 %v1178
      %v1180 = vlaneseq
      %v1181 = vshrl.u32 %v1180, 7
      %v1182 = vsub.s32 %v1179, %v1181
      %v1183 = vrot.slane %v1169, %v1182
      %v1184 = vcombine.low %v1151, %v1167
      %v1185 = vcombine.high %v1151, %v1167
      %v1187 = vunpack.c.l.s4 1934713408
      %v1188 = vunpack.c.0.s8 %v1187
      %v1189 = vlaneseq
      %v1190 = vshrl.u32 %v1189, 7
      %v1191 = vsub.s32 %v1188, %v1190
      %v1192 = vrot.slane %v1184, %v1191
      %v1194 = vunpack.c.l.s4 1934713408
      %v1195 = vunpack.c.0.s8 %v1194
      %v1196 = vlaneseq
      %v1197 = vshrl.u32 %v1196, 7
      %v1198 = vsub.s32 %v1195, %v1197
      %v1199 = vrot.slane %v1185, %v1198
      %v1200 = vcombine.high %v1176, 0.0
      %v1201 = vcombine.high %v1183, 0.0
      %v1202 = vcombine.high %v1192, 0.0
      %v1203 = vcombine.high %v1199, 0.0
      %v1204 = vcombine.low %v1176, %v1183
      %v1206 = vunpack.c.l.s4 1983009808
      %v1207 = vunpack.c.0.s8 %v1206
      %v1208 = vlaneseq
      %v1209 = vshrl.u32 %v1208, 7
      %v1210 = vsub.s32 %v1207, %v1209
      %v1211 = vrot.slane %v1204, %v1210
      %v1212 = vcombine.low %v1200, %v1201
      %v1214 = vunpack.c.l.s4 1983009808
      %v1215 = vunpack.c.0.s8 %v1214
      %v1216 = vlaneseq
      %v1217 = vshrl.u32 %v1216, 7
      %v1218 = vsub.s32 %v1215, %v1217
      %v1219 = vrot.slane %v1212, %v1218
      %v1220 = vcombine.low %v1192, %v1199
      %v1222 = vunpack.c.l.s4 1983009808
      %v1223 = vunpack.c.0.s8 %v1222
      %v1224 = vlaneseq
      %v1225 = vshrl.u32 %v1224, 7
      %v1226 = vsub.s32 %v1223, %v1225
      %v1227 = vrot.slane %v1220, %v1226
      %v1228 = vcombine.low %v1202, %v1203
      %v1230 = vunpack.c.l.s4 1983009808
      %v1231 = vunpack.c.0.s8 %v1230
      %v1232 = vlaneseq
      %v1233 = vshrl.u32 %v1232, 7
      %v1234 = vsub.s32 %v1231, %v1233
      %v1235 = vrot.slane %v1228, %v1234
      %v1236 = vcombine.low %v1211, %v1219
      %v1237 = vcombine.high %v1211, %v1219
      %v1239 = vunpack.c.l.s4 1934713408
      %v1240 = vunpack.c.0.s8 %v1239
      %v1241 = vlaneseq
      %v1242 = vshrl.u32 %v1241, 7
      %v1243 = vsub.s32 %v1240, %v1242
      %v1244 = vrot.slane %v1236, %v1243
      %v1246 = vunpack.c.l.s4 1934713408
      %v1247 = vunpack.c.0.s8 %v1246
      %v1248 = vlaneseq
      %v1249 = vshrl.u32 %v1248, 7
      %v1250 = vsub.s32 %v1247, %v1249
      %v1251 = vrot.slane %v1237, %v1250
      %v1252 = vcombine.low %v1227, %v1235
      %v1253 = vcombine.high %v1227, %v1235
      %v1255 = vunpack.c.l.s4 1934713408
      %v1256 = vunpack.c.0.s8 %v1255
      %v1257 = vlaneseq
      %v1258 = vshrl.u32 %v1257, 7
      %v1259 = vsub.s32 %v1256, %v1258
      %v1260 = vrot.slane %v1252, %v1259
      %v1262 = vunpack.c.l.s4 1934713408
      %v1263 = vunpack.c.0.s8 %v1262
      %v1264 = vlaneseq
      %v1265 = vshrl.u32 %v1264, 7
      %v1266 = vsub.s32 %v1263, %v1265
      %v1267 = vrot.slane %v1253, %v1266
      %v1268 = vcombine.low %v1244, %v1260
      %v1269 = vcombine.high %v1244, %v1260
      %v1270 = vcombine.low %v1251, %v1267
      %v1271 = vcombine.high %v1251, %v1267
      %v1272 = vpack.c.bf16 %v1268, %v1268
      %v1273 = vpack.c.bf16 %v1269, %v1269
      %v1274 = vpack.c.bf16 %v1270, %v1270
      %v1275 = vpack.c.bf16 %v1271, %v1271
      %vm1276 = vcmask 261120
      %v1278 = vsel %vm1276, %v972, 0
      %v1281 = vsel %vm1276, %v1122, 0
      %1283 = vmatprep.subr.bf16.mxu0 0
      %1284 = vmatpush1.bf16.xpose.msra.mxu0 %v1281
      %1285 = vmatprep.subr.bf16.mxu0 0
      %1286 = vmatpush1.bf16.xpose.msra.mxu0 0
      %1287 = vmatprep.subr.bf16.mxu0 0
      %1288 = vmatpush1.bf16.xpose.msra.mxu0 0
      %1289 = vmatprep.subr.bf16.mxu0 0
      %1290 = vmatpush1.bf16.xpose.msra.mxu0 0
      %1291 = vmatprep.subr.bf16.mxu0 0
      %1292 = vmatpush1.bf16.xpose.msra.mxu0 0
      %1293 = vmatprep.subr.bf16.mxu0 0
      %1294 = vmatpush1.bf16.xpose.msra.mxu0 0
      %1295 = vmatprep.subr.bf16.mxu0 0
      %1296 = vmatpush1.bf16.xpose.msra.mxu0 0
      %1297 = vmatprep.subr.bf16.mxu0 0
      %1298 = vmatpush1.bf16.xpose.msra.mxu0 0
      %1299 = vmatprep.subr.bf16.mxu0 0
      %1300 = vmatpush1.bf16.xpose.msra.mxu0 0
      %1301 = vmatprep.subr.bf16.mxu0 0
      %1302 = vmatpush1.bf16.xpose.msra.mxu0 0
      %1303 = vmatprep.subr.bf16.mxu0 0
      %1304 = vmatpush1.bf16.xpose.msra.mxu0 0
      %1305 = vmatprep.subr.bf16.mxu0 0
      %1306 = vmatpush1.bf16.xpose.msra.mxu0 0
      %1307 = vmatprep.subr.bf16.mxu0 0
      %1308 = vmatpush1.bf16.xpose.msra.mxu0 0
      %1309 = vmatprep.subr.bf16.mxu0 0
      %1310 = vmatpush1.bf16.xpose.msra.mxu0 0
      %1311 = vmatprep.subr.bf16.mxu0 0
      %1312 = vmatpush1.bf16.xpose.msra.mxu0 0
      %1313 = vmatprep.subr.bf16.mxu0 0
      %1314 = vmatpush1.bf16.xpose.msra.mxu0 0
      %1315 = vmatprep.mubr.bf16.mxu0 0
      %1316 = vmatmul.mubr.bf16.gmra.mrb[0].mxu0 %v1278
      %v1317 = vpop.f32.mrb[0].mxu0
      %v1318 = vadd.f32 %v519, %v1317
      %v1319 = vpop.f32.mrb[0].mxu0
      %v1320 = vpop.f32.mrb[0].mxu0
      %v1321 = vpop.f32.mrb[0].mxu0
      %1322 = vdwg.mxu0
      %v1324 = vsel %vm1276, %v973, 0
      %v1327 = vsel %vm1276, %v1123, 0
      %1329 = vmatprep.subr.bf16.mxu0 0
      %1330 = vmatpush1.bf16.xpose.msra.mxu0 %v1327
      %1331 = vmatprep.subr.bf16.mxu0 0
      %1332 = vmatpush1.bf16.xpose.msra.mxu0 0
      %1333 = vmatprep.subr.bf16.mxu0 0
      %1334 = vmatpush1.bf16.xpose.msra.mxu0 0
      %1335 = vmatprep.subr.bf16.mxu0 0
      %1336 = vmatpush1.bf16.xpose.msra.mxu0 0
      %1337 = vmatprep.subr.bf16.mxu0 0
      %1338 = vmatpush1.bf16.xpose.msra.mxu0 0
      %1339 = vmatprep.subr.bf16.mxu0 0
      %1340 = vmatpush1.bf16.xpose.msra.mxu0 0
      %1341 = vmatprep.subr.bf16.mxu0 0
      %1342 = vmatpush1.bf16.xpose.msra.mxu0 0
      %1343 = vmatprep.subr.bf16.mxu0 0
      %1344 = vmatpush1.bf16.xpose.msra.mxu0 0
      %1345 = vmatprep.subr.bf16.mxu0 0
      %1346 = vmatpush1.bf16.xpose.msra.mxu0 0
      %1347 = vmatprep.subr.bf16.mxu0 0
      %1348 = vmatpush1.bf16.xpose.msra.mxu0 0
      %1349 = vmatprep.subr.bf16.mxu0 0
      %1350 = vmatpush1.bf16.xpose.msra.mxu0 0
      %1351 = vmatprep.subr.bf16.mxu0 0
      %1352 = vmatpush1.bf16.xpose.msra.mxu0 0
      %1353 = vmatprep.subr.bf16.mxu0 0
      %1354 = vmatpush1.bf16.xpose.msra.mxu0 0
      %1355 = vmatprep.subr.bf16.mxu0 0
      %1356 = vmatpush1.bf16.xpose.msra.mxu0 0
      %1357 = vmatprep.subr.bf16.mxu0 0
      %1358 = vmatpush1.bf16.xpose.msra.mxu0 0
      %1359 = vmatprep.subr.bf16.mxu0 0
      %1360 = vmatpush1.bf16.xpose.msra.mxu0 0
      %1361 = vmatprep.mubr.bf16.mxu0 0
      %1362 = vmatmul.mubr.bf16.gmra.mrb[0].mxu0 %v1324
      %v1363 = vpop.f32.mrb[0].mxu0
      %v1364 = vadd.f32 %v519, %v1363
      %v1365 = vpop.f32.mrb[0].mxu0
      %v1366 = vpop.f32.mrb[0].mxu0
      %v1367 = vpop.f32.mrb[0].mxu0
      %1368 = vdwg.mxu0
      %v1370 = vsel %vm1276, %v974, 0
      %v1373 = vsel %vm1276, %v1124, 0
      %1375 = vmatprep.subr.bf16.mxu0 0
      %1376 = vmatpush1.bf16.xpose.msra.mxu0 %v1373
      %1377 = vmatprep.subr.bf16.mxu0 0
      %1378 = vmatpush1.bf16.xpose.msra.mxu0 0
      %1379 = vmatprep.subr.bf16.mxu0 0
      %1380 = vmatpush1.bf16.xpose.msra.mxu0 0
      %1381 = vmatprep.subr.bf16.mxu0 0
      %1382 = vmatpush1.bf16.xpose.msra.mxu0 0
      %1383 = vmatprep.subr.bf16.mxu0 0
      %1384 = vmatpush1.bf16.xpose.msra.mxu0 0
      %1385 = vmatprep.subr.bf16.mxu0 0
      %1386 = vmatpush1.bf16.xpose.msra.mxu0 0
      %1387 = vmatprep.subr.bf16.mxu0 0
      %1388 = vmatpush1.bf16.xpose.msra.mxu0 0
      %1389 = vmatprep.subr.bf16.mxu0 0
      %1390 = vmatpush1.bf16.xpose.msra.mxu0 0
      %1391 = vmatprep.subr.bf16.mxu0 0
      %1392 = vmatpush1.bf16.xpose.msra.mxu0 0
      %1393 = vmatprep.subr.bf16.mxu0 0
      %1394 = vmatpush1.bf16.xpose.msra.mxu0 0
      %1395 = vmatprep.subr.bf16.mxu0 0
      %1396 = vmatpush1.bf16.xpose.msra.mxu0 0
      %1397 = vmatprep.subr.bf16.mxu0 0
      %1398 = vmatpush1.bf16.xpose.msra.mxu0 0
      %1399 = vmatprep.subr.bf16.mxu0 0
      %1400 = vmatpush1.bf16.xpose.msra.mxu0 0
      %1401 = vmatprep.subr.bf16.mxu0 0
      %1402 = vmatpush1.bf16.xpose.msra.mxu0 0
      %1403 = vmatprep.subr.bf16.mxu0 0
      %1404 = vmatpush1.bf16.xpose.msra.mxu0 0
      %1405 = vmatprep.subr.bf16.mxu0 0
      %1406 = vmatpush1.bf16.xpose.msra.mxu0 0
      %1407 = vmatprep.mubr.bf16.mxu0 0
      %1408 = vmatmul.mubr.bf16.gmra.mrb[0].mxu0 %v1370
      %v1409 = vpop.f32.mrb[0].mxu0
      %v1410 = vadd.f32 %v519, %v1409
      %v1411 = vpop.f32.mrb[0].mxu0
      %v1412 = vpop.f32.mrb[0].mxu0
      %v1413 = vpop.f32.mrb[0].mxu0
      %1414 = vdwg.mxu0
      %v1416 = vsel %vm1276, %v975, 0
      %v1419 = vsel %vm1276, %v1125, 0
      %1421 = vmatprep.subr.bf16.mxu0 0
      %1422 = vmatpush1.bf16.xpose.msra.mxu0 %v1419
      %1423 = vmatprep.subr.bf16.mxu0 0
      %1424 = vmatpush1.bf16.xpose.msra.mxu0 0
      %1425 = vmatprep.subr.bf16.mxu0 0
      %1426 = vmatpush1.bf16.xpose.msra.mxu0 0
      %1427 = vmatprep.subr.bf16.mxu0 0
      %1428 = vmatpush1.bf16.xpose.msra.mxu0 0
      %1429 = vmatprep.subr.bf16.mxu0 0
      %1430 = vmatpush1.bf16.xpose.msra.mxu0 0
      %1431 = vmatprep.subr.bf16.mxu0 0
      %1432 = vmatpush1.bf16.xpose.msra.mxu0 0
      %1433 = vmatprep.subr.bf16.mxu0 0
      %1434 = vmatpush1.bf16.xpose.msra.mxu0 0
      %1435 = vmatprep.subr.bf16.mxu0 0
      %1436 = vmatpush1.bf16.xpose.msra.mxu0 0
      %1437 = vmatprep.subr.bf16.mxu0 0
      %1438 = vmatpush1.bf16.xpose.msra.mxu0 0
      %1439 = vmatprep.subr.bf16.mxu0 0
      %1440 = vmatpush1.bf16.xpose.msra.mxu0 0
      %1441 = vmatprep.subr.bf16.mxu0 0
      %1442 = vmatpush1.bf16.xpose.msra.mxu0 0
      %1443 = vmatprep.subr.bf16.mxu0 0
      %1444 = vmatpush1.bf16.xpose.msra.mxu0 0
      %1445 = vmatprep.subr.bf16.mxu0 0
      %1446 = vmatpush1.bf16.xpose.msra.mxu0 0
      %1447 = vmatprep.subr.bf16.mxu0 0
      %1448 = vmatpush1.bf16.xpose.msra.mxu0 0
      %1449 = vmatprep.subr.bf16.mxu0 0
      %1450 = vmatpush1.bf16.xpose.msra.mxu0 0
      %1451 = vmatprep.subr.bf16.mxu0 0
      %1452 = vmatpush1.bf16.xpose.msra.mxu0 0
      %1453 = vmatprep.mubr.bf16.mxu0 0
      %1454 = vmatmul.mubr.bf16.gmra.mrb[0].mxu0 %v1416
      %v1455 = vpop.f32.mrb[0].mxu0
      %v1456 = vadd.f32 %v519, %v1455
      %v1457 = vpop.f32.mrb[0].mxu0
      %v1458 = vpop.f32.mrb[0].mxu0
      %v1459 = vpop.f32.mrb[0].mxu0
      %1460 = vdwg.mxu0
      %vm1461 = vcmask 64512
      %v1462 = vsel %vm1461, %v1318, -inf
      %1463 = vmax.xlane.f32.xlu0 %v1462
      %v1464 = vpop.xlane.xlu0 %1463
      %v1465 = vsel %vm1461, %v1364, -inf
      %1466 = vmax.xlane.f32.xlu0 %v1465
      %v1467 = vpop.xlane.xlu0 %1466
      %v1468 = vsel %vm1461, %v1410, -inf
      %1469 = vmax.xlane.f32.xlu0 %v1468
      %v1470 = vpop.xlane.xlu0 %1469
      %v1471 = vsel %vm1461, %v1456, -inf
      %1472 = vmax.xlane.f32.xlu0 %v1471
      %v1473 = vpop.xlane.xlu0 %1472
      %v1474 = vsub.f32 %v1318, %v1464
      %v1475 = vsub.f32 %v1364, %v1467
      %v1476 = vsub.f32 %v1410, %v1470
      %v1477 = vsub.f32 %v1456, %v1473
      %v1478 = vmul.f32 %v1474, 1.442695
      %v1479 = vpow.pop %v1478
      %v1480 = vmul.f32 %v1475, 1.442695
      %v1481 = vpow.pop %v1480
      %v1482 = vmul.f32 %v1476, 1.442695
      %v1483 = vpow.pop %v1482
      %v1484 = vmul.f32 %v1477, 1.442695
      %v1485 = vpow.pop %v1484
      %v1486 = vsel %vm1461, %v1479, 0.0
      %1487 = vadd.xlane.f32.xlu0 %v1486
      %v1488 = vpop.xlane.xlu0 %1487
      %v1489 = vsel %vm1461, %v1481, 0.0
      %1490 = vadd.xlane.f32.xlu0 %v1489
      %v1491 = vpop.xlane.xlu0 %1490
      %v1492 = vsel %vm1461, %v1483, 0.0
      %1493 = vadd.xlane.f32.xlu0 %v1492
      %v1494 = vpop.xlane.xlu0 %1493
      %v1495 = vsel %vm1461, %v1485, 0.0
      %1496 = vadd.xlane.f32.xlu0 %v1495
      %v1497 = vpop.xlane.xlu0 %1496
      %v1498 = vrcp.pop %v1488
      %v1499 = vrcp.pop %v1491
      %v1500 = vrcp.pop %v1494
      %v1501 = vrcp.pop %v1497
      %v1502 = vmul.f32 %v1479, %v1498
      %v1503 = vmul.f32 %v1481, %v1499
      %v1504 = vmul.f32 %v1483, %v1500
      %v1505 = vmul.f32 %v1485, %v1501
      %v1506 = vpack.c.bf16 %v1502, %v1502
      %v1507 = vpack.c.bf16 %v1503, %v1503
      %v1508 = vpack.c.bf16 %v1504, %v1504
      %v1509 = vpack.c.bf16 %v1505, %v1505
      %v1511 = vsel %vm1461, %v1506, 0
      %vm1513 = vcmask 1043456
      %v1515 = vsel %vm1513, %v1272, 0
      %1517 = vmatprep.subr.bf16.mxu0 0
      %1518 = vmatpush1.bf16.msra.mxu0 %v1515
      %1519 = vmatprep.subr.bf16.mxu0 0
      %1520 = vmatpush1.bf16.msra.mxu0 0
      %1521 = vmatprep.subr.bf16.mxu0 0
      %1522 = vmatpush1.bf16.msra.mxu0 0
      %1523 = vmatprep.subr.bf16.mxu0 0
      %1524 = vmatpush1.bf16.msra.mxu0 0
      %1525 = vmatprep.subr.bf16.mxu0 0
      %1526 = vmatpush1.bf16.msra.mxu0 0
      %1527 = vmatprep.subr.bf16.mxu0 0
      %1528 = vmatpush1.bf16.msra.mxu0 0
      %1529 = vmatprep.subr.bf16.mxu0 0
      %1530 = vmatpush1.bf16.msra.mxu0 0
      %1531 = vmatprep.subr.bf16.mxu0 0
      %1532 = vmatpush1.bf16.msra.mxu0 0
      %1533 = vmatprep.subr.bf16.mxu0 0
      %1534 = vmatpush1.bf16.msra.mxu0 0
      %1535 = vmatprep.subr.bf16.mxu0 0
      %1536 = vmatpush1.bf16.msra.mxu0 0
      %1537 = vmatprep.subr.bf16.mxu0 0
      %1538 = vmatpush1.bf16.msra.mxu0 0
      %1539 = vmatprep.subr.bf16.mxu0 0
      %1540 = vmatpush1.bf16.msra.mxu0 0
      %1541 = vmatprep.subr.bf16.mxu0 0
      %1542 = vmatpush1.bf16.msra.mxu0 0
      %1543 = vmatprep.subr.bf16.mxu0 0
      %1544 = vmatpush1.bf16.msra.mxu0 0
      %1545 = vmatprep.subr.bf16.mxu0 0
      %1546 = vmatpush1.bf16.msra.mxu0 0
      %1547 = vmatprep.subr.bf16.mxu0 0
      %1548 = vmatpush1.bf16.msra.mxu0 0
      %1549 = vmatprep.mubr.bf16.mxu0 0
      %1550 = vmatmul.mubr.bf16.gmra.mrb[0].mxu0 %v1511
      %v1551 = vpop.f32.mrb[0].mxu0
      %v1552 = vadd.f32 0.0, %v1551
      %v1553 = vpop.f32.mrb[0].mxu0
      %v1554 = vpop.f32.mrb[0].mxu0
      %v1555 = vpop.f32.mrb[0].mxu0
      %1556 = vdwg.mxu0
      %v1558 = vsel %vm1461, %v1507, 0
      %v1561 = vsel %vm1513, %v1273, 0
      %1563 = vmatprep.subr.bf16.mxu0 0
      %1564 = vmatpush1.bf16.msra.mxu0 %v1561
      %1565 = vmatprep.subr.bf16.mxu0 0
      %1566 = vmatpush1.bf16.msra.mxu0 0
      %1567 = vmatprep.subr.bf16.mxu0 0
      %1568 = vmatpush1.bf16.msra.mxu0 0
      %1569 = vmatprep.subr.bf16.mxu0 0
      %1570 = vmatpush1.bf16.msra.mxu0 0
      %1571 = vmatprep.subr.bf16.mxu0 0
      %1572 = vmatpush1.bf16.msra.mxu0 0
      %1573 = vmatprep.subr.bf16.mxu0 0
      %1574 = vmatpush1.bf16.msra.mxu0 0
      %1575 = vmatprep.subr.bf16.mxu0 0
      %1576 = vmatpush1.bf16.msra.mxu0 0
      %1577 = vmatprep.subr.bf16.mxu0 0
      %1578 = vmatpush1.bf16.msra.mxu0 0
      %1579 = vmatprep.subr.bf16.mxu0 0
      %1580 = vmatpush1.bf16.msra.mxu0 0
      %1581 = vmatprep.subr.bf16.mxu0 0
      %1582 = vmatpush1.bf16.msra.mxu0 0
      %1583 = vmatprep.subr.bf16.mxu0 0
      %1584 = vmatpush1.bf16.msra.mxu0 0
      %1585 = vmatprep.subr.bf16.mxu0 0
      %1586 = vmatpush1.bf16.msra.mxu0 0
      %1587 = vmatprep.subr.bf16.mxu0 0
      %1588 = vmatpush1.bf16.msra.mxu0 0
      %1589 = vmatprep.subr.bf16.mxu0 0
      %1590 = vmatpush1.bf16.msra.mxu0 0
      %1591 = vmatprep.subr.bf16.mxu0 0
      %1592 = vmatpush1.bf16.msra.mxu0 0
      %1593 = vmatprep.subr.bf16.mxu0 0
      %1594 = vmatpush1.bf16.msra.mxu0 0
      %1595 = vmatprep.mubr.bf16.mxu0 0
      %1596 = vmatmul.mubr.bf16.gmra.mrb[0].mxu0 %v1558
      %v1597 = vpop.f32.mrb[0].mxu0
      %v1598 = vadd.f32 0.0, %v1597
      %v1599 = vpop.f32.mrb[0].mxu0
      %v1600 = vpop.f32.mrb[0].mxu0
      %v1601 = vpop.f32.mrb[0].mxu0
      %1602 = vdwg.mxu0
      %v1604 = vsel %vm1461, %v1508, 0
      %v1607 = vsel %vm1513, %v1274, 0
      %1609 = vmatprep.subr.bf16.mxu0 0
      %1610 = vmatpush1.bf16.msra.mxu0 %v1607
      %1611 = vmatprep.subr.bf16.mxu0 0
      %1612 = vmatpush1.bf16.msra.mxu0 0
      %1613 = vmatprep.subr.bf16.mxu0 0
      %1614 = vmatpush1.bf16.msra.mxu0 0
      %1615 = vmatprep.subr.bf16.mxu0 0
      %1616 = vmatpush1.bf16.msra.mxu0 0
      %1617 = vmatprep.subr.bf16.mxu0 0
      %1618 = vmatpush1.bf16.msra.mxu0 0
      %1619 = vmatprep.subr.bf16.mxu0 0
      %1620 = vmatpush1.bf16.msra.mxu0 0
      %1621 = vmatprep.subr.bf16.mxu0 0
      %1622 = vmatpush1.bf16.msra.mxu0 0
      %1623 = vmatprep.subr.bf16.mxu0 0
      %1624 = vmatpush1.bf16.msra.mxu0 0
      %1625 = vmatprep.subr.bf16.mxu0 0
      %1626 = vmatpush1.bf16.msra.mxu0 0
      %1627 = vmatprep.subr.bf16.mxu0 0
      %1628 = vmatpush1.bf16.msra.mxu0 0
      %1629 = vmatprep.subr.bf16.mxu0 0
      %1630 = vmatpush1.bf16.msra.mxu0 0
      %1631 = vmatprep.subr.bf16.mxu0 0
      %1632 = vmatpush1.bf16.msra.mxu0 0
      %1633 = vmatprep.subr.bf16.mxu0 0
      %1634 = vmatpush1.bf16.msra.mxu0 0
      %1635 = vmatprep.subr.bf16.mxu0 0
      %1636 = vmatpush1.bf16.msra.mxu0 0
      %1637 = vmatprep.subr.bf16.mxu0 0
      %1638 = vmatpush1.bf16.msra.mxu0 0
      %1639 = vmatprep.subr.bf16.mxu0 0
      %1640 = vmatpush1.bf16.msra.mxu0 0
      %1641 = vmatprep.mubr.bf16.mxu0 0
      %1642 = vmatmul.mubr.bf16.gmra.mrb[0].mxu0 %v1604
      %v1643 = vpop.f32.mrb[0].mxu0
      %v1644 = vadd.f32 0.0, %v1643
      %v1645 = vpop.f32.mrb[0].mxu0
      %v1646 = vpop.f32.mrb[0].mxu0
      %v1647 = vpop.f32.mrb[0].mxu0
      %1648 = vdwg.mxu0
      %v1650 = vsel %vm1461, %v1509, 0
      %v1653 = vsel %vm1513, %v1275, 0
      %1655 = vmatprep.subr.bf16.mxu0 0
      %1656 = vmatpush1.bf16.msra.mxu0 %v1653
      %1657 = vmatprep.subr.bf16.mxu0 0
      %1658 = vmatpush1.bf16.msra.mxu0 0
      %1659 = vmatprep.subr.bf16.mxu0 0
      %1660 = vmatpush1.bf16.msra.mxu0 0
      %1661 = vmatprep.subr.bf16.mxu0 0
      %1662 = vmatpush1.bf16.msra.mxu0 0
      %1663 = vmatprep.subr.bf16.mxu0 0
      %1664 = vmatpush1.bf16.msra.mxu0 0
      %1665 = vmatprep.subr.bf16.mxu0 0
      %1666 = vmatpush1.bf16.msra.mxu0 0
      %1667 = vmatprep.subr.bf16.mxu0 0
      %1668 = vmatpush1.bf16.msra.mxu0 0
      %1669 = vmatprep.subr.bf16.mxu0 0
      %1670 = vmatpush1.bf16.msra.mxu0 0
      %1671 = vmatprep.subr.bf16.mxu0 0
      %1672 = vmatpush1.bf16.msra.mxu0 0
      %1673 = vmatprep.subr.bf16.mxu0 0
      %1674 = vmatpush1.bf16.msra.mxu0 0
      %1675 = vmatprep.subr.bf16.mxu0 0
      %1676 = vmatpush1.bf16.msra.mxu0 0
      %1677 = vmatprep.subr.bf16.mxu0 0
      %1678 = vmatpush1.bf16.msra.mxu0 0
      %1679 = vmatprep.subr.bf16.mxu0 0
      %1680 = vmatpush1.bf16.msra.mxu0 0
      %1681 = vmatprep.subr.bf16.mxu0 0
      %1682 = vmatpush1.bf16.msra.mxu0 0
      %1683 = vmatprep.subr.bf16.mxu0 0
      %1684 = vmatpush1.bf16.msra.mxu0 0
      %1685 = vmatprep.subr.bf16.mxu0 0
      %1686 = vmatpush1.bf16.msra.mxu0 0
      %1687 = vmatprep.mubr.bf16.mxu0 0
      %1688 = vmatmul.mubr.bf16.gmra.mrb[0].mxu0 %v1650
      %v1689 = vpop.f32.mrb[0].mxu0
      %v1690 = vadd.f32 0.0, %v1689
      %v1691 = vpop.f32.mrb[0].mxu0
      %v1692 = vpop.f32.mrb[0].mxu0
      %v1693 = vpop.f32.mrb[0].mxu0
      %1694 = vdwg.mxu0
      %v1695 = vcombine.low %v1552, %v1644
      %v1696 = vcombine.high %v1552, %v1644
      %v1698 = vunpack.c.l.s4 1983009808
      %v1699 = vunpack.c.0.s8 %v1698
      %v1700 = vlaneseq
      %v1701 = vshrl.u32 %v1700, 7
      %v1702 = vsub.s32 %v1699, %v1701
      %v1703 = vrot.slane %v1695, %v1702
      %v1705 = vunpack.c.l.s4 1983009808
      %v1706 = vunpack.c.0.s8 %v1705
      %v1707 = vlaneseq
      %v1708 = vshrl.u32 %v1707, 7
      %v1709 = vsub.s32 %v1706, %v1708
      %v1710 = vrot.slane %v1696, %v1709
      %v1711 = vcombine.low %v1598, %v1690
      %v1712 = vcombine.high %v1598, %v1690
      %v1714 = vunpack.c.l.s4 1983009808
      %v1715 = vunpack.c.0.s8 %v1714
      %v1716 = vlaneseq
      %v1717 = vshrl.u32 %v1716, 7
      %v1718 = vsub.s32 %v1715, %v1717
      %v1719 = vrot.slane %v1711, %v1718
      %v1721 = vunpack.c.l.s4 1983009808
      %v1722 = vunpack.c.0.s8 %v1721
      %v1723 = vlaneseq
      %v1724 = vshrl.u32 %v1723, 7
      %v1725 = vsub.s32 %v1722, %v1724
      %v1726 = vrot.slane %v1712, %v1725
      %v1727 = vcombine.low %v1703, %v1719
      %v1728 = vcombine.high %v1703, %v1719
      %v1730 = vunpack.c.l.s4 1934713408
      %v1731 = vunpack.c.0.s8 %v1730
      %v1732 = vlaneseq
      %v1733 = vshrl.u32 %v1732, 7
      %v1734 = vsub.s32 %v1731, %v1733
      %v1735 = vrot.slane %v1727, %v1734
      %v1737 = vunpack.c.l.s4 1934713408
      %v1738 = vunpack.c.0.s8 %v1737
      %v1739 = vlaneseq
      %v1740 = vshrl.u32 %v1739, 7
      %v1741 = vsub.s32 %v1738, %v1740
      %v1742 = vrot.slane %v1728, %v1741
      %v1743 = vcombine.low %v1710, %v1726
      %v1744 = vcombine.high %v1710, %v1726
      %v1746 = vunpack.c.l.s4 1934713408
      %v1747 = vunpack.c.0.s8 %v1746
      %v1748 = vlaneseq
      %v1749 = vshrl.u32 %v1748, 7
      %v1750 = vsub.s32 %v1747, %v1749
      %v1751 = vrot.slane %v1743, %v1750
      %v1753 = vunpack.c.l.s4 1934713408
      %v1754 = vunpack.c.0.s8 %v1753
      %v1755 = vlaneseq
      %v1756 = vshrl.u32 %v1755, 7
      %v1757 = vsub.s32 %v1754, %v1756
      %v1758 = vrot.slane %v1744, %v1757
      %v1759 = vcombine.high %v1735, 0.0
      %v1760 = vcombine.high %v1742, 0.0
      %v1761 = vcombine.high %v1751, 0.0
      %v1762 = vcombine.high %v1758, 0.0
      %v1763 = vcombine.low %v1735, %v1742
      %v1765 = vunpack.c.l.s4 1983009808
      %v1766 = vunpack.c.0.s8 %v1765
      %v1767 = vlaneseq
      %v1768 = vshrl.u32 %v1767, 7
      %v1769 = vsub.s32 %v1766, %v1768
      %v1770 = vrot.slane %v1763, %v1769
      %v1771 = vcombine.low %v1759, %v1760
      %v1773 = vunpack.c.l.s4 1983009808
      %v1774 = vunpack.c.0.s8 %v1773
      %v1775 = vlaneseq
      %v1776 = vshrl.u32 %v1775, 7
      %v1777 = vsub.s32 %v1774, %v1776
      %v1778 = vrot.slane %v1771, %v1777
      %v1779 = vcombine.low %v1751, %v1758
      %v1781 = vunpack.c.l.s4 1983009808
      %v1782 = vunpack.c.0.s8 %v1781
      %v1783 = vlaneseq
      %v1784 = vshrl.u32 %v1783, 7
      %v1785 = vsub.s32 %v1782, %v1784
      %v1786 = vrot.slane %v1779, %v1785
      %v1787 = vcombine.low %v1761, %v1762
      %v1789 = vunpack.c.l.s4 1983009808
      %v1790 = vunpack.c.0.s8 %v1789
      %v1791 = vlaneseq
      %v1792 = vshrl.u32 %v1791, 7
      %v1793 = vsub.s32 %v1790, %v1792
      %v1794 = vrot.slane %v1787, %v1793
      %v1795 = vcombine.low %v1770, %v1778
      %v1796 = vcombine.high %v1770, %v1778
      %v1798 = vunpack.c.l.s4 1934713408
      %v1799 = vunpack.c.0.s8 %v1798
      %v1800 = vlaneseq
      %v1801 = vshrl.u32 %v1800, 7
      %v1802 = vsub.s32 %v1799, %v1801
      %v1803 = vrot.slane %v1795, %v1802
      %v1805 = vunpack.c.l.s4 1934713408
      %v1806 = vunpack.c.0.s8 %v1805
      %v1807 = vlaneseq
      %v1808 = vshrl.u32 %v1807, 7
      %v1809 = vsub.s32 %v1806, %v1808
      %v1810 = vrot.slane %v1796, %v1809
      %v1811 = vcombine.low %v1786, %v1794
      %v1812 = vcombine.high %v1786, %v1794
      %v1814 = vunpack.c.l.s4 1934713408
      %v1815 = vunpack.c.0.s8 %v1814
      %v1816 = vlaneseq
      %v1817 = vshrl.u32 %v1816, 7
      %v1818 = vsub.s32 %v1815, %v1817
      %v1819 = vrot.slane %v1811, %v1818
      %v1821 = vunpack.c.l.s4 1934713408
      %v1822 = vunpack.c.0.s8 %v1821
      %v1823 = vlaneseq
      %v1824 = vshrl.u32 %v1823, 7
      %v1825 = vsub.s32 %v1822, %v1824
      %v1826 = vrot.slane %v1812, %v1825
      %v1827 = vcombine.low %v1803, %v1819
      %v1828 = vcombine.high %v1803, %v1819
      %v1829 = vcombine.low %v1810, %v1826
      %v1830 = vcombine.high %v1810, %v1826
      %1832 = vrot.lane.b32.xlu0 %v1828, 32
      %v1833 = vpop.permute.xlu0 %1832
      %1836 = vrot.lane.b32.xlu0 %v1829, 64
      %v1837 = vpop.permute.xlu0 %1836
      %1840 = vrot.lane.b32.xlu0 %v1830, 96
      %v1841 = vpop.permute.xlu0 %1840
      %v1843 = vsel %vm1276, %v1827, %v1833
      %vm1844 = vcmask 523264
      %v1845 = vsel %vm1844, %v1843, %v1837
      %vm1846 = vcmask 785408
      %v1847 = vsel %vm1846, %v1845, %v1841
      %v1848 = vpack.c.bf16 %v1847, %v1847
      %v1850 = vlaneseq
      %v1851 = vshrl.u32 %v1850, 7
      %v1852 = vsub.s32 0, %v1851
      %v1853 = vrot.slane %v599, %v1852
      %v1871 = vunpack.c.l.b16 %v582
      %v1872 = vunpack.c.l.b16 %v583
      %v1873 = vunpack.c.l.b16 %v584
      %v1874 = vunpack.c.l.b16 %v585
      %v1875 = vunpack.c.l.b16 %v586
      %v1876 = vunpack.c.l.b16 %v587
      %v1877 = vunpack.c.l.b16 %v588
      %v1878 = vunpack.c.l.b16 %v589
      %v1879 = vunpack.c.l.b16 %v590
      %v1880 = vunpack.c.l.b16 %v591
      %v1881 = vunpack.c.l.b16 %v592
      %v1882 = vunpack.c.l.b16 %v593
      %v1883 = vunpack.c.l.b16 %v594
      %v1884 = vunpack.c.l.b16 %v595
      %v1885 = vunpack.c.l.b16 %v596
      %v1886 = vunpack.c.l.b16 %v597
      %v1887 = vpack.c.b16 %v1872, %v1871
      %v1888 = vpack.c.b16 %v1874, %v1873
      %v1889 = vpack.c.b16 %v1876, %v1875
      %v1890 = vpack.c.b16 %v1878, %v1877
      %v1891 = vpack.c.b16 %v1880, %v1879
      %v1892 = vpack.c.b16 %v1882, %v1881
      %v1893 = vpack.c.b16 %v1884, %v1883
      %v1894 = vpack.c.b16 %v1886, %v1885
      %1903 = vmatprep.subr.bf16.mxu0 0
      %1904 = vmatpush1.bf16.msra.mxu0 %v1887
      %1905 = vmatprep.subr.bf16.mxu0 0
      %1906 = vmatpush1.bf16.msra.mxu0 %v1888
      %1907 = vmatprep.subr.bf16.mxu0 0
      %1908 = vmatpush1.bf16.msra.mxu0 %v1889
      %1909 = vmatprep.subr.bf16.mxu0 0
      %1910 = vmatpush1.bf16.msra.mxu0 %v1890
      %1911 = vmatprep.subr.bf16.mxu0 0
      %1912 = vmatpush1.bf16.msra.mxu0 %v1891
      %1913 = vmatprep.subr.bf16.mxu0 0
      %1914 = vmatpush1.bf16.msra.mxu0 %v1892
      %1915 = vmatprep.subr.bf16.mxu0 0
      %1916 = vmatpush1.bf16.msra.mxu0 %v1893
      %1917 = vmatprep.subr.bf16.mxu0 0
      %1918 = vmatpush1.bf16.msra.mxu0 %v1894
      %1919 = vmatprep.subr.bf16.mxu0 0
      %1920 = vmatpush1.bf16.msra.mxu0 0
      %1921 = vmatprep.subr.bf16.mxu0 0
      %1922 = vmatpush1.bf16.msra.mxu0 0
      %1923 = vmatprep.subr.bf16.mxu0 0
      %1924 = vmatpush1.bf16.msra.mxu0 0
      %1925 = vmatprep.subr.bf16.mxu0 0
      %1926 = vmatpush1.bf16.msra.mxu0 0
      %1927 = vmatprep.subr.bf16.mxu0 0
      %1928 = vmatpush1.bf16.msra.mxu0 0
      %1929 = vmatprep.subr.bf16.mxu0 0
      %1930 = vmatpush1.bf16.msra.mxu0 0
      %1931 = vmatprep.subr.bf16.mxu0 0
      %1932 = vmatpush1.bf16.msra.mxu0 0
      %1933 = vmatprep.subr.bf16.mxu0 0
      %1934 = vmatpush1.bf16.msra.mxu0 0
      %1935 = vmatprep.mubr.bf16.mxu0 0
      %1936 = vmatmul.mubr.bf16.gmra.mrb[0].mxu0 %v1848
      %v1937 = vpop.f32.mrb[0].mxu0
      %v1938 = vadd.f32 %v1853, %v1937
      %v1939 = vpop.f32.mrb[0].mxu0
      %v1940 = vpop.f32.mrb[0].mxu0
      %v1941 = vpop.f32.mrb[0].mxu0
      %1942 = vdwg.mxu0
      %v1943 = vadd.f32 %v518, %v1938
      %v1944 = vld [vmem:[%s8] sm:$0x1]
      %v1945 = vld [vmem:[%s9] sm:$0x1]
      %1946 = vadd.xlane.f32.xlu0 %v1943
      %v1947 = vpop.xlane.xlu0 %1946
      %v1948 = vmul.f32 %v1947, %v524
      %v1949 = vmul.f32 %v1943, %v1943
      %1950 = vadd.xlane.f32.xlu0 %v1949
      %v1951 = vpop.xlane.xlu0 %1950
      %v1952 = vmul.f32 %v1951, %v524
      %v1953 = vmul.f32 %v1948, %v1948
      %v1954 = vsub.f32 %v1952, %v1953
      %v1955 = vsub.f32 %v1943, %v1948
      %v1956 = vadd.f32 %v1954, 1e-05
      %v1957 = vrsqrt.pop %v1956
      %v1958 = vmul.f32 %v1955, %v1957
      %v1960 = vlaneseq
      %v1961 = vshrl.u32 %v1960, 7
      %v1962 = vsub.s32 0, %v1961
      %v1963 = vrot.slane %v1944, %v1962
      %v1965 = vmul.f32 %v1958, %v1963
      %v1967 = vlaneseq
      %v1968 = vshrl.u32 %v1967, 7
      %v1969 = vsub.s32 0, %v1968
      %v1970 = vrot.slane %v1945, %v1969
      %v1972 = vadd.f32 %v1965, %v1970
      %v1973 = vld [vmem:[%s10] sm:$0xff]
      %v1974 = vld [vmem:[%s10 + $0x8] sm:$0xff]
      %v1975 = vld [vmem:[%s10 + $0x10] sm:$0xff]
      %v1976 = vld [vmem:[%s10 + $0x18] sm:$0xff]
      %v1977 = vld [vmem:[%s10 + $0x20] sm:$0xff]
      %v1978 = vld [vmem:[%s10 + $0x28] sm:$0xff]
      %v1979 = vld [vmem:[%s10 + $0x30] sm:$0xff]
      %v1980 = vld [vmem:[%s10 + $0x38] sm:$0xff]
      %v1981 = vld [vmem:[%s10 + $0x40] sm:$0xff]
      %v1982 = vld [vmem:[%s10 + $0x48] sm:$0xff]
      %v1983 = vld [vmem:[%s10 + $0x50] sm:$0xff]
      %v1984 = vld [vmem:[%s10 + $0x58] sm:$0xff]
      %v1985 = vld [vmem:[%s10 + $0x60] sm:$0xff]
      %v1986 = vld [vmem:[%s10 + $0x68] sm:$0xff]
      %v1987 = vld [vmem:[%s10 + $0x70] sm:$0xff]
      %v1988 = vld [vmem:[%s10 + $0x78] sm:$0xff]
      %v1989 = vld [vmem:[%s10 + $0x80] sm:$0xff]
      %v1990 = vld [vmem:[%s10 + $0x88] sm:$0xff]
      %v1991 = vld [vmem:[%s10 + $0x90] sm:$0xff]
      %v1992 = vld [vmem:[%s10 + $0x98] sm:$0xff]
      %v1993 = vld [vmem:[%s10 + $0xa0] sm:$0xff]
      %v1994 = vld [vmem:[%s10 + $0xa8] sm:$0xff]
      %v1995 = vld [vmem:[%s10 + $0xb0] sm:$0xff]
      %v1996 = vld [vmem:[%s10 + $0xb8] sm:$0xff]
      %v1997 = vld [vmem:[%s10 + $0xc0] sm:$0xff]
      %v1998 = vld [vmem:[%s10 + $0xc8] sm:$0xff]
      %v1999 = vld [vmem:[%s10 + $0xd0] sm:$0xff]
      %v2000 = vld [vmem:[%s10 + $0xd8] sm:$0xff]
      %v2001 = vld [vmem:[%s10 + $0xe0] sm:$0xff]
      %v2002 = vld [vmem:[%s10 + $0xe8] sm:$0xff]
      %v2003 = vld [vmem:[%s10 + $0xf0] sm:$0xff]
      %v2004 = vld [vmem:[%s10 + $0xf8] sm:$0xff]
      %v2005 = vld [vmem:[%s11] sm:$0xf]
      %v2006 = vld [vmem:[%s12] sm:$0xf]
      %v2007 = vld [vmem:[%s12 + $0x4] sm:$0xf]
      %v2008 = vld [vmem:[%s12 + $0x8] sm:$0xf]
      %v2009 = vld [vmem:[%s12 + $0xc] sm:$0xf]
      %v2010 = vld [vmem:[%s12 + $0x10] sm:$0xf]
      %v2011 = vld [vmem:[%s12 + $0x14] sm:$0xf]
      %v2012 = vld [vmem:[%s12 + $0x18] sm:$0xf]
      %v2013 = vld [vmem:[%s12 + $0x1c] sm:$0xf]
      %v2014 = vld [vmem:[%s12 + $0x20] sm:$0xf]
      %v2015 = vld [vmem:[%s12 + $0x24] sm:$0xf]
      %v2016 = vld [vmem:[%s12 + $0x28] sm:$0xf]
      %v2017 = vld [vmem:[%s12 + $0x2c] sm:$0xf]
      %v2018 = vld [vmem:[%s12 + $0x30] sm:$0xf]
      %v2019 = vld [vmem:[%s12 + $0x34] sm:$0xf]
      %v2020 = vld [vmem:[%s12 + $0x38] sm:$0xf]
      %v2021 = vld [vmem:[%s12 + $0x3c] sm:$0xf]
      %v2022 = vld [vmem:[%s12 + $0x40] sm:$0xf]
      %v2023 = vld [vmem:[%s12 + $0x44] sm:$0xf]
      %v2024 = vld [vmem:[%s12 + $0x48] sm:$0xf]
      %v2025 = vld [vmem:[%s12 + $0x4c] sm:$0xf]
      %v2026 = vld [vmem:[%s12 + $0x50] sm:$0xf]
      %v2027 = vld [vmem:[%s12 + $0x54] sm:$0xf]
      %v2028 = vld [vmem:[%s12 + $0x58] sm:$0xf]
      %v2029 = vld [vmem:[%s12 + $0x5c] sm:$0xf]
      %v2030 = vld [vmem:[%s12 + $0x60] sm:$0xf]
      %v2031 = vld [vmem:[%s12 + $0x64] sm:$0xf]
      %v2032 = vld [vmem:[%s12 + $0x68] sm:$0xf]
      %v2033 = vld [vmem:[%s12 + $0x6c] sm:$0xf]
      %v2034 = vld [vmem:[%s12 + $0x70] sm:$0xf]
      %v2035 = vld [vmem:[%s12 + $0x74] sm:$0xf]
      %v2036 = vld [vmem:[%s12 + $0x78] sm:$0xf]
      %v2037 = vld [vmem:[%s12 + $0x7c] sm:$0xf]
      %v2038 = vld [vmem:[%s12 + $0x80] sm:$0xf]
      %v2039 = vld [vmem:[%s12 + $0x84] sm:$0xf]
      %v2040 = vld [vmem:[%s12 + $0x88] sm:$0xf]
      %v2041 = vld [vmem:[%s12 + $0x8c] sm:$0xf]
      %v2042 = vld [vmem:[%s12 + $0x90] sm:$0xf]
      %v2043 = vld [vmem:[%s12 + $0x94] sm:$0xf]
      %v2044 = vld [vmem:[%s12 + $0x98] sm:$0xf]
      %v2045 = vld [vmem:[%s12 + $0x9c] sm:$0xf]
      %v2046 = vld [vmem:[%s12 + $0xa0] sm:$0xf]
      %v2047 = vld [vmem:[%s12 + $0xa4] sm:$0xf]
      %v2048 = vld [vmem:[%s12 + $0xa8] sm:$0xf]
      %v2049 = vld [vmem:[%s12 + $0xac] sm:$0xf]
      %v2050 = vld [vmem:[%s12 + $0xb0] sm:$0xf]
      %v2051 = vld [vmem:[%s12 + $0xb4] sm:$0xf]
      %v2052 = vld [vmem:[%s12 + $0xb8] sm:$0xf]
      %v2053 = vld [vmem:[%s12 + $0xbc] sm:$0xf]
      %v2054 = vld [vmem:[%s12 + $0xc0] sm:$0xf]
      %v2055 = vld [vmem:[%s12 + $0xc4] sm:$0xf]
      %v2056 = vld [vmem:[%s12 + $0xc8] sm:$0xf]
      %v2057 = vld [vmem:[%s12 + $0xcc] sm:$0xf]
      %v2058 = vld [vmem:[%s12 + $0xd0] sm:$0xf]
      %v2059 = vld [vmem:[%s12 + $0xd4] sm:$0xf]
      %v2060 = vld [vmem:[%s12 + $0xd8] sm:$0xf]
      %v2061 = vld [vmem:[%s12 + $0xdc] sm:$0xf]
      %v2062 = vld [vmem:[%s12 + $0xe0] sm:$0xf]
      %v2063 = vld [vmem:[%s12 + $0xe4] sm:$0xf]
      %v2064 = vld [vmem:[%s12 + $0xe8] sm:$0xf]
      %v2065 = vld [vmem:[%s12 + $0xec] sm:$0xf]
      %v2066 = vld [vmem:[%s12 + $0xf0] sm:$0xf]
      %v2067 = vld [vmem:[%s12 + $0xf4] sm:$0xf]
      %v2068 = vld [vmem:[%s12 + $0xf8] sm:$0xf]
      %v2069 = vld [vmem:[%s12 + $0xfc] sm:$0xf]
      %v2070 = vld [vmem:[%s13] sm:$0x1]
      %v2071 = vpack.c.bf16 %v1972, %v1972
      %v2073 = vlaneseq
      %v2074 = vshrl.u32 %v2073, 7
      %v2075 = vsub.s32 0, %v2074
      %v2076 = vrot.slane %v2005, %v2075
      %v2077 = vlaneseq
      %v2078 = vshrl.u32 %v2077, 7
      %v2079 = vsub.s32 1, %v2078
      %v2080 = vrot.slane %v2005, %v2079
      %v2081 = vlaneseq
      %v2082 = vshrl.u32 %v2081, 7
      %v2083 = vsub.s32 2, %v2082
      %v2084 = vrot.slane %v2005, %v2083
      %v2085 = vlaneseq
      %v2086 = vshrl.u32 %v2085, 7
      %v2087 = vsub.s32 3, %v2086
      %v2088 = vrot.slane %v2005, %v2087
      %v2125 = vunpack.c.l.b16 %v1973
      %v2126 = vunpack.c.h.b16 %v1973
      %v2127 = vunpack.c.l.b16 %v1974
      %v2128 = vunpack.c.h.b16 %v1974
      %v2129 = vunpack.c.l.b16 %v1975
      %v2130 = vunpack.c.h.b16 %v1975
      %v2131 = vunpack.c.l.b16 %v1976
      %v2132 = vunpack.c.h.b16 %v1976
      %v2133 = vunpack.c.l.b16 %v1977
      %v2134 = vunpack.c.h.b16 %v1977
      %v2135 = vunpack.c.l.b16 %v1978
      %v2136 = vunpack.c.h.b16 %v1978
      %v2137 = vunpack.c.l.b16 %v1979
      %v2138 = vunpack.c.h.b16 %v1979
      %v2139 = vunpack.c.l.b16 %v1980
      %v2140 = vunpack.c.h.b16 %v1980
      %v2141 = vunpack.c.l.b16 %v1981
      %v2142 = vunpack.c.h.b16 %v1981
      %v2143 = vunpack.c.l.b16 %v1982
      %v2144 = vunpack.c.h.b16 %v1982
      %v2145 = vunpack.c.l.b16 %v1983
      %v2146 = vunpack.c.h.b16 %v1983
      %v2147 = vunpack.c.l.b16 %v1984
      %v2148 = vunpack.c.h.b16 %v1984
      %v2149 = vunpack.c.l.b16 %v1985
      %v2150 = vunpack.c.h.b16 %v1985
      %v2151 = vunpack.c.l.b16 %v1986
      %v2152 = vunpack.c.h.b16 %v1986
      %v2153 = vunpack.c.l.b16 %v1987
      %v2154 = vunpack.c.h.b16 %v1987
      %v2155 = vunpack.c.l.b16 %v1988
      %v2156 = vunpack.c.h.b16 %v1988
      %v2157 = vunpack.c.l.b16 %v1989
      %v2158 = vunpack.c.h.b16 %v1989
      %v2159 = vunpack.c.l.b16 %v1990
      %v2160 = vunpack.c.h.b16 %v1990
      %v2161 = vunpack.c.l.b16 %v1991
      %v2162 = vunpack.c.h.b16 %v1991
      %v2163 = vunpack.c.l.b16 %v1992
      %v2164 = vunpack.c.h.b16 %v1992
      %v2165 = vunpack.c.l.b16 %v1993
      %v2166 = vunpack.c.h.b16 %v1993
      %v2167 = vunpack.c.l.b16 %v1994
      %v2168 = vunpack.c.h.b16 %v1994
      %v2169 = vunpack.c.l.b16 %v1995
      %v2170 = vunpack.c.h.b16 %v1995
      %v2171 = vunpack.c.l.b16 %v1996
      %v2172 = vunpack.c.h.b16 %v1996
      %v2173 = vunpack.c.l.b16 %v1997
      %v2174 = vunpack.c.h.b16 %v1997
      %v2175 = vunpack.c.l.b16 %v1998
      %v2176 = vunpack.c.h.b16 %v1998
      %v2177 = vunpack.c.l.b16 %v1999
      %v2178 = vunpack.c.h.b16 %v1999
      %v2179 = vunpack.c.l.b16 %v2000
      %v2180 = vunpack.c.h.b16 %v2000
      %v2181 = vunpack.c.l.b16 %v2001
      %v2182 = vunpack.c.h.b16 %v2001
      %v2183 = vunpack.c.l.b16 %v2002
      %v2184 = vunpack.c.h.b16 %v2002
      %v2185 = vunpack.c.l.b16 %v2003
      %v2186 = vunpack.c.h.b16 %v2003
      %v2187 = vunpack.c.l.b16 %v2004
      %v2188 = vunpack.c.h.b16 %v2004
      %v2189 = vpack.c.b16 %v2129, %v2125
      %v2190 = vpack.c.b16 %v2130, %v2126
      %v2191 = vpack.c.b16 %v2131, %v2127
      %v2192 = vpack.c.b16 %v2132, %v2128
      %v2193 = vpack.c.b16 %v2137, %v2133
      %v2194 = vpack.c.b16 %v2138, %v2134
      %v2195 = vpack.c.b16 %v2139, %v2135
      %v2196 = vpack.c.b16 %v2140, %v2136
      %v2197 = vpack.c.b16 %v2145, %v2141
      %v2198 = vpack.c.b16 %v2146, %v2142
      %v2199 = vpack.c.b16 %v2147, %v2143
      %v2200 = vpack.c.b16 %v2148, %v2144
      %v2201 = vpack.c.b16 %v2153, %v2149
      %v2202 = vpack.c.b16 %v2154, %v2150
      %v2203 = vpack.c.b16 %v2155, %v2151
      %v2204 = vpack.c.b16 %v2156, %v2152
      %v2205 = vpack.c.b16 %v2161, %v2157
      %v2206 = vpack.c.b16 %v2162, %v2158
      %v2207 = vpack.c.b16 %v2163, %v2159
      %v2208 = vpack.c.b16 %v2164, %v2160
      %v2209 = vpack.c.b16 %v2169, %v2165
      %v2210 = vpack.c.b16 %v2170, %v2166
      %v2211 = vpack.c.b16 %v2171, %v2167
      %v2212 = vpack.c.b16 %v2172, %v2168
      %v2213 = vpack.c.b16 %v2177, %v2173
      %v2214 = vpack.c.b16 %v2178, %v2174
      %v2215 = vpack.c.b16 %v2179, %v2175
      %v2216 = vpack.c.b16 %v2180, %v2176
      %v2217 = vpack.c.b16 %v2185, %v2181
      %v2218 = vpack.c.b16 %v2186, %v2182
      %v2219 = vpack.c.b16 %v2187, %v2183
      %v2220 = vpack.c.b16 %v2188, %v2184
      %2253 = vmatprep.subr.bf16.mxu0 %v2190
      %2254 = vmatpush1.bf16.msra.mxu0 %v2189
      %2255 = vmatprep.subr.bf16.mxu0 %v2194
      %2256 = vmatpush1.bf16.msra.mxu0 %v2193
      %2257 = vmatprep.subr.bf16.mxu0 %v2198
      %2258 = vmatpush1.bf16.msra.mxu0 %v2197
      %2259 = vmatprep.subr.bf16.mxu0 %v2202
      %2260 = vmatpush1.bf16.msra.mxu0 %v2201
      %2261 = vmatprep.subr.bf16.mxu0 %v2206
      %2262 = vmatpush1.bf16.msra.mxu0 %v2205
      %2263 = vmatprep.subr.bf16.mxu0 %v2210
      %2264 = vmatpush1.bf16.msra.mxu0 %v2209
      %2265 = vmatprep.subr.bf16.mxu0 %v2214
      %2266 = vmatpush1.bf16.msra.mxu0 %v2213
      %2267 = vmatprep.subr.bf16.mxu0 %v2218
      %2268 = vmatpush1.bf16.msra.mxu0 %v2217
      %2269 = vmatprep.subr.bf16.mxu0 0
      %2270 = vmatpush1.bf16.msra.mxu0 0
      %2271 = vmatprep.subr.bf16.mxu0 0
      %2272 = vmatpush1.bf16.msra.mxu0 0
      %2273 = vmatprep.subr.bf16.mxu0 0
      %2274 = vmatpush1.bf16.msra.mxu0 0
      %2275 = vmatprep.subr.bf16.mxu0 0
      %2276 = vmatpush1.bf16.msra.mxu0 0
      %2277 = vmatprep.subr.bf16.mxu0 0
      %2278 = vmatpush1.bf16.msra.mxu0 0
      %2279 = vmatprep.subr.bf16.mxu0 0
      %2280 = vmatpush1.bf16.msra.mxu0 0
      %2281 = vmatprep.subr.bf16.mxu0 0
      %2282 = vmatpush1.bf16.msra.mxu0 0
      %2283 = vmatprep.subr.bf16.mxu0 0
      %2284 = vmatpush1.bf16.msra.mxu0 0
      %2285 = vmatprep.mubr.bf16.mxu0 0
      %2286 = vmatmul.mubr.bf16.gmra.mrb[0].mxu0 %v2071
      %v2287 = vpop.f32.mrb[0].mxu0
      %v2288 = vadd.f32 %v2076, %v2287
      %v2289 = vpop.f32.mrb[0].mxu0
      %v2290 = vadd.f32 %v2080, %v2289
      %v2291 = vpop.f32.mrb[0].mxu0
      %v2292 = vpop.f32.mrb[0].mxu0
      %2293 = vdwg.mxu0
      %2294 = vmatprep.subr.bf16.mxu0 %v2192
      %2295 = vmatpush1.bf16.msra.mxu0 %v2191
      %2296 = vmatprep.subr.bf16.mxu0 %v2196
      %2297 = vmatpush1.bf16.msra.mxu0 %v2195
      %2298 = vmatprep.subr.bf16.mxu0 %v2200
      %2299 = vmatpush1.bf16.msra.mxu0 %v2199
      %2300 = vmatprep.subr.bf16.mxu0 %v2204
      %2301 = vmatpush1.bf16.msra.mxu0 %v2203
      %2302 = vmatprep.subr.bf16.mxu0 %v2208
      %2303 = vmatpush1.bf16.msra.mxu0 %v2207
      %2304 = vmatprep.subr.bf16.mxu0 %v2212
      %2305 = vmatpush1.bf16.msra.mxu0 %v2211
      %2306 = vmatprep.subr.bf16.mxu0 %v2216
      %2307 = vmatpush1.bf16.msra.mxu0 %v2215
      %2308 = vmatprep.subr.bf16.mxu0 %v2220
      %2309 = vmatpush1.bf16.msra.mxu0 %v2219
      %2310 = vmatprep.subr.bf16.mxu0 0
      %2311 = vmatpush1.bf16.msra.mxu0 0
      %2312 = vmatprep.subr.bf16.mxu0 0
      %2313 = vmatpush1.bf16.msra.mxu0 0
      %2314 = vmatprep.subr.bf16.mxu0 0
      %2315 = vmatpush1.bf16.msra.mxu0 0
      %2316 = vmatprep.subr.bf16.mxu0 0
      %2317 = vmatpush1.bf16.msra.mxu0 0
      %2318 = vmatprep.subr.bf16.mxu0 0
      %2319 = vmatpush1.bf16.msra.mxu0 0
      %2320 = vmatprep.subr.bf16.mxu0 0
      %2321 = vmatpush1.bf16.msra.mxu0 0
      %2322 = vmatprep.subr.bf16.mxu0 0
      %2323 = vmatpush1.bf16.msra.mxu0 0
      %2324 = vmatprep.subr.bf16.mxu0 0
      %2325 = vmatpush1.bf16.msra.mxu0 0
      %2326 = vmatprep.mubr.bf16.mxu0 0
      %2327 = vmatmul.mubr.bf16.gmra.mrb[0].mxu0 %v2071
      %v2328 = vpop.f32.mrb[0].mxu0
      %v2329 = vadd.f32 %v2084, %v2328
      %v2330 = vpop.f32.mrb[0].mxu0
      %v2331 = vadd.f32 %v2088, %v2330
      %v2332 = vpop.f32.mrb[0].mxu0
      %v2333 = vpop.f32.mrb[0].mxu0
      %2334 = vdwg.mxu0
      %v2335 = vmul.f32 %v2288, 1.702
      %v2336 = vmul.f32 %v2290, 1.702
      %v2337 = vmul.f32 %v2329, 1.702
      %v2338 = vmul.f32 %v2331, 1.702
      %v2339 = vxor.u32 %v2335, 2147483648
      %v2340 = vxor.u32 %v2336, 2147483648
      %v2341 = vxor.u32 %v2337, 2147483648
      %v2342 = vxor.u32 %v2338, 2147483648
      %v2343 = vmul.f32 %v2339, 1.442695
      %v2344 = vpow.pop %v2343
      %v2345 = vmul.f32 %v2340, 1.442695
      %v2346 = vpow.pop %v2345
      %v2347 = vmul.f32 %v2341, 1.442695
      %v2348 = vpow.pop %v2347
      %v2349 = vmul.f32 %v2342, 1.442695
      %v2350 = vpow.pop %v2349
      %v2351 = vadd.f32 %v2344, 1.0
      %v2352 = vadd.f32 %v2346, 1.0
      %v2353 = vadd.f32 %v2348, 1.0
      %v2354 = vadd.f32 %v2350, 1.0
      %v2355 = vrcp.pop %v2351
      %v2356 = vmul.f32 1.0, %v2355
      %v2357 = vrcp.pop %v2352
      %v2358 = vmul.f32 1.0, %v2357
      %v2359 = vrcp.pop %v2353
      %v2360 = vmul.f32 1.0, %v2359
      %v2361 = vrcp.pop %v2354
      %v2362 = vmul.f32 1.0, %v2361
      %v2363 = vmul.f32 %v2288, %v2356
      %v2364 = vmul.f32 %v2290, %v2358
      %v2365 = vmul.f32 %v2329, %v2360
      %v2366 = vmul.f32 %v2331, %v2362
      %v2367 = vpack.c.bf16 %v2363, %v2363
      %v2368 = vpack.c.bf16 %v2364, %v2364
      %v2369 = vpack.c.bf16 %v2365, %v2365
      %v2370 = vpack.c.bf16 %v2366, %v2366
      %v2372 = vlaneseq
      %v2373 = vshrl.u32 %v2372, 7
      %v2374 = vsub.s32 0, %v2373
      %v2375 = vrot.slane %v2070, %v2374
      %v2441 = vunpack.c.l.b16 %v2006
      %v2442 = vunpack.c.l.b16 %v2007
      %v2443 = vunpack.c.l.b16 %v2008
      %v2444 = vunpack.c.l.b16 %v2009
      %v2445 = vunpack.c.l.b16 %v2010
      %v2446 = vunpack.c.l.b16 %v2011
      %v2447 = vunpack.c.l.b16 %v2012
      %v2448 = vunpack.c.l.b16 %v2013
      %v2449 = vunpack.c.l.b16 %v2014
      %v2450 = vunpack.c.l.b16 %v2015
      %v2451 = vunpack.c.l.b16 %v2016
      %v2452 = vunpack.c.l.b16 %v2017
      %v2453 = vunpack.c.l.b16 %v2018
      %v2454 = vunpack.c.l.b16 %v2019
      %v2455 = vunpack.c.l.b16 %v2020
      %v2456 = vunpack.c.l.b16 %v2021
      %v2457 = vunpack.c.l.b16 %v2022
      %v2458 = vunpack.c.l.b16 %v2023
      %v2459 = vunpack.c.l.b16 %v2024
      %v2460 = vunpack.c.l.b16 %v2025
      %v2461 = vunpack.c.l.b16 %v2026
      %v2462 = vunpack.c.l.b16 %v2027
      %v2463 = vunpack.c.l.b16 %v2028
      %v2464 = vunpack.c.l.b16 %v2029
      %v2465 = vunpack.c.l.b16 %v2030
      %v2466 = vunpack.c.l.b16 %v2031
      %v2467 = vunpack.c.l.b16 %v2032
      %v2468 = vunpack.c.l.b16 %v2033
      %v2469 = vunpack.c.l.b16 %v2034
      %v2470 = vunpack.c.l.b16 %v2035
      %v2471 = vunpack.c.l.b16 %v2036
      %v2472 = vunpack.c.l.b16 %v2037
      %v2473 = vunpack.c.l.b16 %v2038
      %v2474 = vunpack.c.l.b16 %v2039
      %v2475 = vunpack.c.l.b16 %v2040
      %v2476 = vunpack.c.l.b16 %v2041
      %v2477 = vunpack.c.l.b16 %v2042
      %v2478 = vunpack.c.l.b16 %v2043
      %v2479 = vunpack.c.l.b16 %v2044
      %v2480 = vunpack.c.l.b16 %v2045
      %v2481 = vunpack.c.l.b16 %v2046
      %v2482 = vunpack.c.l.b16 %v2047
      %v2483 = vunpack.c.l.b16 %v2048
      %v2484 = vunpack.c.l.b16 %v2049
      %v2485 = vunpack.c.l.b16 %v2050
      %v2486 = vunpack.c.l.b16 %v2051
      %v2487 = vunpack.c.l.b16 %v2052
      %v2488 = vunpack.c.l.b16 %v2053
      %v2489 = vunpack.c.l.b16 %v2054
      %v2490 = vunpack.c.l.b16 %v2055
      %v2491 = vunpack.c.l.b16 %v2056
      %v2492 = vunpack.c.l.b16 %v2057
      %v2493 = vunpack.c.l.b16 %v2058
      %v2494 = vunpack.c.l.b16 %v2059
      %v2495 = vunpack.c.l.b16 %v2060
      %v2496 = vunpack.c.l.b16 %v2061
      %v2497 = vunpack.c.l.b16 %v2062
      %v2498 = vunpack.c.l.b16 %v2063
      %v2499 = vunpack.c.l.b16 %v2064
      %v2500 = vunpack.c.l.b16 %v2065
      %v2501 = vunpack.c.l.b16 %v2066
      %v2502 = vunpack.c.l.b16 %v2067
      %v2503 = vunpack.c.l.b16 %v2068
      %v2504 = vunpack.c.l.b16 %v2069
      %v2505 = vpack.c.b16 %v2442, %v2441
      %v2506 = vpack.c.b16 %v2444, %v2443
      %v2507 = vpack.c.b16 %v2446, %v2445
      %v2508 = vpack.c.b16 %v2448, %v2447
      %v2509 = vpack.c.b16 %v2450, %v2449
      %v2510 = vpack.c.b16 %v2452, %v2451
      %v2511 = vpack.c.b16 %v2454, %v2453
      %v2512 = vpack.c.b16 %v2456, %v2455
      %v2513 = vpack.c.b16 %v2458, %v2457
      %v2514 = vpack.c.b16 %v2460, %v2459
      %v2515 = vpack.c.b16 %v2462, %v2461
      %v2516 = vpack.c.b16 %v2464, %v2463
      %v2517 = vpack.c.b16 %v2466, %v2465
      %v2518 = vpack.c.b16 %v2468, %v2467
      %v2519 = vpack.c.b16 %v2470, %v2469
      %v2520 = vpack.c.b16 %v2472, %v2471
      %v2521 = vpack.c.b16 %v2474, %v2473
      %v2522 = vpack.c.b16 %v2476, %v2475
      %v2523 = vpack.c.b16 %v2478, %v2477
      %v2524 = vpack.c.b16 %v2480, %v2479
      %v2525 = vpack.c.b16 %v2482, %v2481
      %v2526 = vpack.c.b16 %v2484, %v2483
      %v2527 = vpack.c.b16 %v2486, %v2485
      %v2528 = vpack.c.b16 %v2488, %v2487
      %v2529 = vpack.c.b16 %v2490, %v2489
      %v2530 = vpack.c.b16 %v2492, %v2491
      %v2531 = vpack.c.b16 %v2494, %v2493
      %v2532 = vpack.c.b16 %v2496, %v2495
      %v2533 = vpack.c.b16 %v2498, %v2497
      %v2534 = vpack.c.b16 %v2500, %v2499
      %v2535 = vpack.c.b16 %v2502, %v2501
      %v2536 = vpack.c.b16 %v2504, %v2503
      %2569 = vmatprep.subr.bf16.mxu0 0
      %2570 = vmatpush1.bf16.msra.mxu0 %v2505
      %2571 = vmatprep.subr.bf16.mxu0 0
      %2572 = vmatpush1.bf16.msra.mxu0 %v2506
      %2573 = vmatprep.subr.bf16.mxu0 0
      %2574 = vmatpush1.bf16.msra.mxu0 %v2507
      %2575 = vmatprep.subr.bf16.mxu0 0
      %2576 = vmatpush1.bf16.msra.mxu0 %v2508
      %2577 = vmatprep.subr.bf16.mxu0 0
      %2578 = vmatpush1.bf16.msra.mxu0 %v2509
      %2579 = vmatprep.subr.bf16.mxu0 0
      %2580 = vmatpush1.bf16.msra.mxu0 %v2510
      %2581 = vmatprep.subr.bf16.mxu0 0
      %2582 = vmatpush1.bf16.msra.mxu0 %v2511
      %2583 = vmatprep.subr.bf16.mxu0 0
      %2584 = vmatpush1.bf16.msra.mxu0 %v2512
      %2585 = vmatprep.subr.bf16.mxu0 0
      %2586 = vmatpush1.bf16.msra.mxu0 %v2513
      %2587 = vmatprep.subr.bf16.mxu0 0
      %2588 = vmatpush1.bf16.msra.mxu0 %v2514
      %2589 = vmatprep.subr.bf16.mxu0 0
      %2590 = vmatpush1.bf16.msra.mxu0 %v2515
      %2591 = vmatprep.subr.bf16.mxu0 0
      %2592 = vmatpush1.bf16.msra.mxu0 %v2516
      %2593 = vmatprep.subr.bf16.mxu0 0
      %2594 = vmatpush1.bf16.msra.mxu0 %v2517
      %2595 = vmatprep.subr.bf16.mxu0 0
      %2596 = vmatpush1.bf16.msra.mxu0 %v2518
      %2597 = vmatprep.subr.bf16.mxu0 0
      %2598 = vmatpush1.bf16.msra.mxu0 %v2519
      %2599 = vmatprep.subr.bf16.mxu0 0
      %2600 = vmatpush1.bf16.msra.mxu0 %v2520
      %2601 = vmatprep.mubr.bf16.mxu0 %v2368
      %2602 = vmatmul.mubr.bf16.gmra.mrb[0].mxu0 %v2367
      %v2603 = vpop.f32.mrb[0].mxu0
      %v2604 = vadd.f32 %v2375, %v2603
      %v2605 = vpop.f32.mrb[0].mxu0
      %v2606 = vpop.f32.mrb[0].mxu0
      %v2607 = vpop.f32.mrb[0].mxu0
      %2608 = vdwg.mxu0
      %2609 = vmatprep.subr.bf16.mxu0 0
      %2610 = vmatpush1.bf16.msra.mxu0 %v2521
      %2611 = vmatprep.subr.bf16.mxu0 0
      %2612 = vmatpush1.bf16.msra.mxu0 %v2522
      %2613 = vmatprep.subr.bf16.mxu0 0
      %2614 = vmatpush1.bf16.msra.mxu0 %v2523
      %2615 = vmatprep.subr.bf16.mxu0 0
      %2616 = vmatpush1.bf16.msra.mxu0 %v2524
      %2617 = vmatprep.subr.bf16.mxu0 0
      %2618 = vmatpush1.bf16.msra.mxu0 %v2525
      %2619 = vmatprep.subr.bf16.mxu0 0
      %2620 = vmatpush1.bf16.msra.mxu0 %v2526
      %2621 = vmatprep.subr.bf16.mxu0 0
      %2622 = vmatpush1.bf16.msra.mxu0 %v2527
      %2623 = vmatprep.subr.bf16.mxu0 0
      %2624 = vmatpush1.bf16.msra.mxu0 %v2528
      %2625 = vmatprep.subr.bf16.mxu0 0
      %2626 = vmatpush1.bf16.msra.mxu0 %v2529
      %2627 = vmatprep.subr.bf16.mxu0 0
      %2628 = vmatpush1.bf16.msra.mxu0 %v2530
      %2629 = vmatprep.subr.bf16.mxu0 0
      %2630 = vmatpush1.bf16.msra.mxu0 %v2531
      %2631 = vmatprep.subr.bf16.mxu0 0
      %2632 = vmatpush1.bf16.msra.mxu0 %v2532
      %2633 = vmatprep.subr.bf16.mxu0 0
      %2634 = vmatpush1.bf16.msra.mxu0 %v2533
      %2635 = vmatprep.subr.bf16.mxu0 0
      %2636 = vmatpush1.bf16.msra.mxu0 %v2534
      %2637 = vmatprep.subr.bf16.mxu0 0
      %2638 = vmatpush1.bf16.msra.mxu0 %v2535
      %2639 = vmatprep.subr.bf16.mxu0 0
      %2640 = vmatpush1.bf16.msra.mxu0 %v2536
      %2641 = vmatprep.mubr.bf16.mxu0 %v2370
      %2642 = vmatmul.mubr.bf16.gmra.mrb[0].mxu0 %v2369
      %v2643 = vpop.f32.mrb[0].mxu0
      %v2644 = vadd.f32 %v2604, %v2643
      %v2645 = vpop.f32.mrb[0].mxu0
      %v2646 = vpop.f32.mrb[0].mxu0
      %v2647 = vpop.f32.mrb[0].mxu0
      %2648 = vdwg.mxu0
      %v2649 = vadd.f32 %v1943, %v2644
      %s2650 = scalar_lea.vmem %s2, 1
      %v2651 = vld [vmem:[%s2650] sm:$0x1]
      %s2652 = scalar_lea.vmem %s3, 1
      %v2653 = vld [vmem:[%s2652] sm:$0x1]
      %2654 = vadd.xlane.f32.xlu0 %v2649
      %v2655 = vpop.xlane.xlu0 %2654
      %v2656 = vmul.f32 %v2655, %v524
      %v2657 = vmul.f32 %v2649, %v2649
      %2658 = vadd.xlane.f32.xlu0 %v2657
      %v2659 = vpop.xlane.xlu0 %2658
      %v2660 = vmul.f32 %v2659, %v524
      %v2661 = vmul.f32 %v2656, %v2656
      %v2662 = vsub.f32 %v2660, %v2661
      %v2663 = vsub.f32 %v2649, %v2656
      %v2664 = vadd.f32 %v2662, 1e-05
      %v2665 = vrsqrt.pop %v2664
      %v2666 = vmul.f32 %v2663, %v2665
      %v2668 = vlaneseq
      %v2669 = vshrl.u32 %v2668, 7
      %v2670 = vsub.s32 0, %v2669
      %v2671 = vrot.slane %v2651, %v2670
      %v2673 = vmul.f32 %v2666, %v2671
      %v2675 = vlaneseq
      %v2676 = vshrl.u32 %v2675, 7
      %v2677 = vsub.s32 0, %v2676
      %v2678 = vrot.slane %v2653, %v2677
      %v2680 = vadd.f32 %v2673, %v2678
      %s2681 = scalar_lea.vmem %s4, 192
      %v2682 = vld [vmem:[%s2681] sm:$0xff]
      %v2683 = vld [vmem:[%s2681 + $0x8] sm:$0xf]
      %v2684 = vld [vmem:[%s2681 + $0xc] sm:$0xff]
      %v2685 = vld [vmem:[%s2681 + $0x14] sm:$0xf]
      %v2686 = vld [vmem:[%s2681 + $0x18] sm:$0xff]
      %v2687 = vld [vmem:[%s2681 + $0x20] sm:$0xf]
      %v2688 = vld [vmem:[%s2681 + $0x24] sm:$0xff]
      %v2689 = vld [vmem:[%s2681 + $0x2c] sm:$0xf]
      %v2690 = vld [vmem:[%s2681 + $0x30] sm:$0xff]
      %v2691 = vld [vmem:[%s2681 + $0x38] sm:$0xf]
      %v2692 = vld [vmem:[%s2681 + $0x3c] sm:$0xff]
      %v2693 = vld [vmem:[%s2681 + $0x44] sm:$0xf]
      %v2694 = vld [vmem:[%s2681 + $0x48] sm:$0xff]
      %v2695 = vld [vmem:[%s2681 + $0x50] sm:$0xf]
      %v2696 = vld [vmem:[%s2681 + $0x54] sm:$0xff]
      %v2697 = vld [vmem:[%s2681 + $0x5c] sm:$0xf]
      %v2698 = vld [vmem:[%s2681 + $0x60] sm:$0xff]
      %v2699 = vld [vmem:[%s2681 + $0x68] sm:$0xf]
      %v2700 = vld [vmem:[%s2681 + $0x6c] sm:$0xff]
      %v2701 = vld [vmem:[%s2681 + $0x74] sm:$0xf]
      %v2702 = vld [vmem:[%s2681 + $0x78] sm:$0xff]
      %v2703 = vld [vmem:[%s2681 + $0x80] sm:$0xf]
      %v2704 = vld [vmem:[%s2681 + $0x84] sm:$0xff]
      %v2705 = vld [vmem:[%s2681 + $0x8c] sm:$0xf]
      %v2706 = vld [vmem:[%s2681 + $0x90] sm:$0xff]
      %v2707 = vld [vmem:[%s2681 + $0x98] sm:$0xf]
      %v2708 = vld [vmem:[%s2681 + $0x9c] sm:$0xff]
      %v2709 = vld [vmem:[%s2681 + $0xa4] sm:$0xf]
      %v2710 = vld [vmem:[%s2681 + $0xa8] sm:$0xff]
      %v2711 = vld [vmem:[%s2681 + $0xb0] sm:$0xf]
      %v2712 = vld [vmem:[%s2681 + $0xb4] sm:$0xff]
      %v2713 = vld [vmem:[%s2681 + $0xbc] sm:$0xf]
      %s2714 = scalar_lea.vmem %s6, 64
      %v2715 = vld [vmem:[%s2714] sm:$0xf]
      %v2716 = vld [vmem:[%s2714 + $0x4] sm:$0xf]
      %v2717 = vld [vmem:[%s2714 + $0x8] sm:$0xf]
      %v2718 = vld [vmem:[%s2714 + $0xc] sm:$0xf]
      %v2719 = vld [vmem:[%s2714 + $0x10] sm:$0xf]
      %v2720 = vld [vmem:[%s2714 + $0x14] sm:$0xf]
      %v2721 = vld [vmem:[%s2714 + $0x18] sm:$0xf]
      %v2722 = vld [vmem:[%s2714 + $0x1c] sm:$0xf]
      %v2723 = vld [vmem:[%s2714 + $0x20] sm:$0xf]
      %v2724 = vld [vmem:[%s2714 + $0x24] sm:$0xf]
      %v2725 = vld [vmem:[%s2714 + $0x28] sm:$0xf]
      %v2726 = vld [vmem:[%s2714 + $0x2c] sm:$0xf]
      %v2727 = vld [vmem:[%s2714 + $0x30] sm:$0xf]
      %v2728 = vld [vmem:[%s2714 + $0x34] sm:$0xf]
      %v2729 = vld [vmem:[%s2714 + $0x38] sm:$0xf]
      %v2730 = vld [vmem:[%s2714 + $0x3c] sm:$0xf]
      %s2731 = scalar_lea.vmem %s5, 3
      %v2732 = vld [vmem:[%s2731] sm:$0x7]
      %s2733 = scalar_lea.vmem %s7, 1
      %v2734 = vld [vmem:[%s2733] sm:$0x1]
      %v2735 = vpack.c.bf16 %v2680, %v2680
      %v2737 = vlaneseq
      %v2738 = vshrl.u32 %v2737, 7
      %v2739 = vsub.s32 0, %v2738
      %v2740 = vrot.slane %v2732, %v2739
      %v2741 = vlaneseq
      %v2742 = vshrl.u32 %v2741, 7
      %v2743 = vsub.s32 1, %v2742
      %v2744 = vrot.slane %v2732, %v2743
      %v2745 = vlaneseq
      %v2746 = vshrl.u32 %v2745, 7
      %v2747 = vsub.s32 2, %v2746
      %v2748 = vrot.slane %v2732, %v2747
      %v2784 = vunpack.c.l.b16 %v2682
      %v2785 = vunpack.c.h.b16 %v2682
      %v2786 = vunpack.c.l.b16 %v2683
      %v2787 = vunpack.c.l.b16 %v2684
      %v2788 = vunpack.c.h.b16 %v2684
      %v2789 = vunpack.c.l.b16 %v2685
      %v2790 = vunpack.c.l.b16 %v2686
      %v2791 = vunpack.c.h.b16 %v2686
      %v2792 = vunpack.c.l.b16 %v2687
      %v2793 = vunpack.c.l.b16 %v2688
      %v2794 = vunpack.c.h.b16 %v2688
      %v2795 = vunpack.c.l.b16 %v2689
      %v2796 = vunpack.c.l.b16 %v2690
      %v2797 = vunpack.c.h.b16 %v2690
      %v2798 = vunpack.c.l.b16 %v2691
      %v2799 = vunpack.c.l.b16 %v2692
      %v2800 = vunpack.c.h.b16 %v2692
      %v2801 = vunpack.c.l.b16 %v2693
      %v2802 = vunpack.c.l.b16 %v2694
      %v2803 = vunpack.c.h.b16 %v2694
      %v2804 = vunpack.c.l.b16 %v2695
      %v2805 = vunpack.c.l.b16 %v2696
      %v2806 = vunpack.c.h.b16 %v2696
      %v2807 = vunpack.c.l.b16 %v2697
      %v2808 = vunpack.c.l.b16 %v2698
      %v2809 = vunpack.c.h.b16 %v2698
      %v2810 = vunpack.c.l.b16 %v2699
      %v2811 = vunpack.c.l.b16 %v2700
      %v2812 = vunpack.c.h.b16 %v2700
      %v2813 = vunpack.c.l.b16 %v2701
      %v2814 = vunpack.c.l.b16 %v2702
      %v2815 = vunpack.c.h.b16 %v2702
      %v2816 = vunpack.c.l.b16 %v2703
      %v2817 = vunpack.c.l.b16 %v2704
      %v2818 = vunpack.c.h.b16 %v2704
      %v2819 = vunpack.c.l.b16 %v2705
      %v2820 = vunpack.c.l.b16 %v2706
      %v2821 = vunpack.c.h.b16 %v2706
      %v2822 = vunpack.c.l.b16 %v2707
      %v2823 = vunpack.c.l.b16 %v2708
      %v2824 = vunpack.c.h.b16 %v2708
      %v2825 = vunpack.c.l.b16 %v2709
      %v2826 = vunpack.c.l.b16 %v2710
      %v2827 = vunpack.c.h.b16 %v2710
      %v2828 = vunpack.c.l.b16 %v2711
      %v2829 = vunpack.c.l.b16 %v2712
      %v2830 = vunpack.c.h.b16 %v2712
      %v2831 = vunpack.c.l.b16 %v2713
      %v2832 = vpack.c.b16 %v2787, %v2784
      %v2833 = vpack.c.b16 %v2788, %v2785
      %v2834 = vpack.c.b16 %v2789, %v2786
      %v2835 = vpack.c.b16 %v2793, %v2790
      %v2836 = vpack.c.b16 %v2794, %v2791
      %v2837 = vpack.c.b16 %v2795, %v2792
      %v2838 = vpack.c.b16 %v2799, %v2796
      %v2839 = vpack.c.b16 %v2800, %v2797
      %v2840 = vpack.c.b16 %v2801, %v2798
      %v2841 = vpack.c.b16 %v2805, %v2802
      %v2842 = vpack.c.b16 %v2806, %v2803
      %v2843 = vpack.c.b16 %v2807, %v2804
      %v2844 = vpack.c.b16 %v2811, %v2808
      %v2845 = vpack.c.b16 %v2812, %v2809
      %v2846 = vpack.c.b16 %v2813, %v2810
      %v2847 = vpack.c.b16 %v2817, %v2814
      %v2848 = vpack.c.b16 %v2818, %v2815
      %v2849 = vpack.c.b16 %v2819, %v2816
      %v2850 = vpack.c.b16 %v2823, %v2820
      %v2851 = vpack.c.b16 %v2824, %v2821
      %v2852 = vpack.c.b16 %v2825, %v2822
      %v2853 = vpack.c.b16 %v2829, %v2826
      %v2854 = vpack.c.b16 %v2830, %v2827
      %v2855 = vpack.c.b16 %v2831, %v2828
      %2880 = vmatprep.subr.bf16.mxu0 %v2833
      %2881 = vmatpush1.bf16.msra.mxu0 %v2832
      %2882 = vmatprep.subr.bf16.mxu0 %v2836
      %2883 = vmatpush1.bf16.msra.mxu0 %v2835
      %2884 = vmatprep.subr.bf16.mxu0 %v2839
      %2885 = vmatpush1.bf16.msra.mxu0 %v2838
      %2886 = vmatprep.subr.bf16.mxu0 %v2842
      %2887 = vmatpush1.bf16.msra.mxu0 %v2841
      %2888 = vmatprep.subr.bf16.mxu0 %v2845
      %2889 = vmatpush1.bf16.msra.mxu0 %v2844
      %2890 = vmatprep.subr.bf16.mxu0 %v2848
      %2891 = vmatpush1.bf16.msra.mxu0 %v2847
      %2892 = vmatprep.subr.bf16.mxu0 %v2851
      %2893 = vmatpush1.bf16.msra.mxu0 %v2850
      %2894 = vmatprep.subr.bf16.mxu0 %v2854
      %2895 = vmatpush1.bf16.msra.mxu0 %v2853
      %2896 = vmatprep.subr.bf16.mxu0 0
      %2897 = vmatpush1.bf16.msra.mxu0 0
      %2898 = vmatprep.subr.bf16.mxu0 0
      %2899 = vmatpush1.bf16.msra.mxu0 0
      %2900 = vmatprep.subr.bf16.mxu0 0
      %2901 = vmatpush1.bf16.msra.mxu0 0
      %2902 = vmatprep.subr.bf16.mxu0 0
      %2903 = vmatpush1.bf16.msra.mxu0 0
      %2904 = vmatprep.subr.bf16.mxu0 0
      %2905 = vmatpush1.bf16.msra.mxu0 0
      %2906 = vmatprep.subr.bf16.mxu0 0
      %2907 = vmatpush1.bf16.msra.mxu0 0
      %2908 = vmatprep.subr.bf16.mxu0 0
      %2909 = vmatpush1.bf16.msra.mxu0 0
      %2910 = vmatprep.subr.bf16.mxu0 0
      %2911 = vmatpush1.bf16.msra.mxu0 0
      %2912 = vmatprep.mubr.bf16.mxu0 0
      %2913 = vmatmul.mubr.bf16.gmra.mrb[0].mxu0 %v2735
      %v2914 = vpop.f32.mrb[0].mxu0
      %v2915 = vadd.f32 %v2740, %v2914
      %v2916 = vpop.f32.mrb[0].mxu0
      %v2917 = vadd.f32 %v2744, %v2916
      %v2918 = vpop.f32.mrb[0].mxu0
      %v2919 = vpop.f32.mrb[0].mxu0
      %2920 = vdwg.mxu0
      %2921 = vmatprep.subr.bf16.mxu0 0
      %2922 = vmatpush1.bf16.msra.mxu0 %v2834
      %2923 = vmatprep.subr.bf16.mxu0 0
      %2924 = vmatpush1.bf16.msra.mxu0 %v2837
      %2925 = vmatprep.subr.bf16.mxu0 0
      %2926 = vmatpush1.bf16.msra.mxu0 %v2840
      %2927 = vmatprep.subr.bf16.mxu0 0
      %2928 = vmatpush1.bf16.msra.mxu0 %v2843
      %2929 = vmatprep.subr.bf16.mxu0 0
      %2930 = vmatpush1.bf16.msra.mxu0 %v2846
      %2931 = vmatprep.subr.bf16.mxu0 0
      %2932 = vmatpush1.bf16.msra.mxu0 %v2849
      %2933 = vmatprep.subr.bf16.mxu0 0
      %2934 = vmatpush1.bf16.msra.mxu0 %v2852
      %2935 = vmatprep.subr.bf16.mxu0 0
      %2936 = vmatpush1.bf16.msra.mxu0 %v2855
      %2937 = vmatprep.subr.bf16.mxu0 0
      %2938 = vmatpush1.bf16.msra.mxu0 0
      %2939 = vmatprep.subr.bf16.mxu0 0
      %2940 = vmatpush1.bf16.msra.mxu0 0
      %2941 = vmatprep.subr.bf16.mxu0 0
      %2942 = vmatpush1.bf16.msra.mxu0 0
      %2943 = vmatprep.subr.bf16.mxu0 0
      %2944 = vmatpush1.bf16.msra.mxu0 0
      %2945 = vmatprep.subr.bf16.mxu0 0
      %2946 = vmatpush1.bf16.msra.mxu0 0
      %2947 = vmatprep.subr.bf16.mxu0 0
      %2948 = vmatpush1.bf16.msra.mxu0 0
      %2949 = vmatprep.subr.bf16.mxu0 0
      %2950 = vmatpush1.bf16.msra.mxu0 0
      %2951 = vmatprep.subr.bf16.mxu0 0
      %2952 = vmatpush1.bf16.msra.mxu0 0
      %2953 = vmatprep.mubr.bf16.mxu0 0
      %2954 = vmatmul.mubr.bf16.gmra.mrb[0].mxu0 %v2735
      %v2955 = vpop.f32.mrb[0].mxu0
      %v2956 = vadd.f32 %v2748, %v2955
      %v2957 = vpop.f32.mrb[0].mxu0
      %v2958 = vpop.f32.mrb[0].mxu0
      %v2959 = vpop.f32.mrb[0].mxu0
      %2960 = vdwg.mxu0
      %2962 = vrot.lane.b32.xlu0 %v2915, 96
      %v2963 = vpop.permute.xlu0 %2962
      %2965 = vrot.lane.b32.xlu0 %v2915, 64
      %v2966 = vpop.permute.xlu0 %2965
      %2968 = vrot.lane.b32.xlu0 %v2915, 32
      %v2969 = vpop.permute.xlu0 %2968
      %v2971 = vcombine.low %v2915, %v2966
      %v2972 = vcombine.high %v2915, %v2966
      %v2974 = vunpack.c.l.s4 1983009808
      %v2975 = vunpack.c.0.s8 %v2974
      %v2976 = vlaneseq
      %v2977 = vshrl.u32 %v2976, 7
      %v2978 = vsub.s32 %v2975, %v2977
      %v2979 = vrot.slane %v2971, %v2978
      %v2981 = vunpack.c.l.s4 1983009808
      %v2982 = vunpack.c.0.s8 %v2981
      %v2983 = vlaneseq
      %v2984 = vshrl.u32 %v2983, 7
      %v2985 = vsub.s32 %v2982, %v2984
      %v2986 = vrot.slane %v2972, %v2985
      %v2987 = vcombine.low %v2963, %v2969
      %v2988 = vcombine.high %v2963, %v2969
      %v2990 = vunpack.c.l.s4 1983009808
      %v2991 = vunpack.c.0.s8 %v2990
      %v2992 = vlaneseq
      %v2993 = vshrl.u32 %v2992, 7
      %v2994 = vsub.s32 %v2991, %v2993
      %v2995 = vrot.slane %v2987, %v2994
      %v2997 = vunpack.c.l.s4 1983009808
      %v2998 = vunpack.c.0.s8 %v2997
      %v2999 = vlaneseq
      %v3000 = vshrl.u32 %v2999, 7
      %v3001 = vsub.s32 %v2998, %v3000
      %v3002 = vrot.slane %v2988, %v3001
      %v3003 = vcombine.low %v2979, %v2995
      %v3004 = vcombine.high %v2979, %v2995
      %v3006 = vunpack.c.l.s4 1934713408
      %v3007 = vunpack.c.0.s8 %v3006
      %v3008 = vlaneseq
      %v3009 = vshrl.u32 %v3008, 7
      %v3010 = vsub.s32 %v3007, %v3009
      %v3011 = vrot.slane %v3003, %v3010
      %v3013 = vunpack.c.l.s4 1934713408
      %v3014 = vunpack.c.0.s8 %v3013
      %v3015 = vlaneseq
      %v3016 = vshrl.u32 %v3015, 7
      %v3017 = vsub.s32 %v3014, %v3016
      %v3018 = vrot.slane %v3004, %v3017
      %v3019 = vcombine.low %v2986, %v3002
      %v3020 = vcombine.high %v2986, %v3002
      %v3022 = vunpack.c.l.s4 1934713408
      %v3023 = vunpack.c.0.s8 %v3022
      %v3024 = vlaneseq
      %v3025 = vshrl.u32 %v3024, 7
      %v3026 = vsub.s32 %v3023, %v3025
      %v3027 = vrot.slane %v3019, %v3026
      %v3029 = vunpack.c.l.s4 1934713408
      %v3030 = vunpack.c.0.s8 %v3029
      %v3031 = vlaneseq
      %v3032 = vshrl.u32 %v3031, 7
      %v3033 = vsub.s32 %v3030, %v3032
      %v3034 = vrot.slane %v3020, %v3033
      %v3035 = vcombine.high %v3011, 0.0
      %v3036 = vcombine.high %v3018, 0.0
      %v3037 = vcombine.high %v3027, 0.0
      %v3038 = vcombine.high %v3034, 0.0
      %v3039 = vcombine.low %v3011, %v3018
      %v3041 = vunpack.c.l.s4 1983009808
      %v3042 = vunpack.c.0.s8 %v3041
      %v3043 = vlaneseq
      %v3044 = vshrl.u32 %v3043, 7
      %v3045 = vsub.s32 %v3042, %v3044
      %v3046 = vrot.slane %v3039, %v3045
      %v3047 = vcombine.low %v3035, %v3036
      %v3049 = vunpack.c.l.s4 1983009808
      %v3050 = vunpack.c.0.s8 %v3049
      %v3051 = vlaneseq
      %v3052 = vshrl.u32 %v3051, 7
      %v3053 = vsub.s32 %v3050, %v3052
      %v3054 = vrot.slane %v3047, %v3053
      %v3055 = vcombine.low %v3027, %v3034
      %v3057 = vunpack.c.l.s4 1983009808
      %v3058 = vunpack.c.0.s8 %v3057
      %v3059 = vlaneseq
      %v3060 = vshrl.u32 %v3059, 7
      %v3061 = vsub.s32 %v3058, %v3060
      %v3062 = vrot.slane %v3055, %v3061
      %v3063 = vcombine.low %v3037, %v3038
      %v3065 = vunpack.c.l.s4 1983009808
      %v3066 = vunpack.c.0.s8 %v3065
      %v3067 = vlaneseq
      %v3068 = vshrl.u32 %v3067, 7
      %v3069 = vsub.s32 %v3066, %v3068
      %v3070 = vrot.slane %v3063, %v3069
      %v3071 = vcombine.low %v3046, %v3054
      %v3072 = vcombine.high %v3046, %v3054
      %v3074 = vunpack.c.l.s4 1934713408
      %v3075 = vunpack.c.0.s8 %v3074
      %v3076 = vlaneseq
      %v3077 = vshrl.u32 %v3076, 7
      %v3078 = vsub.s32 %v3075, %v3077
      %v3079 = vrot.slane %v3071, %v3078
      %v3081 = vunpack.c.l.s4 1934713408
      %v3082 = vunpack.c.0.s8 %v3081
      %v3083 = vlaneseq
      %v3084 = vshrl.u32 %v3083, 7
      %v3085 = vsub.s32 %v3082, %v3084
      %v3086 = vrot.slane %v3072, %v3085
      %v3087 = vcombine.low %v3062, %v3070
      %v3088 = vcombine.high %v3062, %v3070
      %v3090 = vunpack.c.l.s4 1934713408
      %v3091 = vunpack.c.0.s8 %v3090
      %v3092 = vlaneseq
      %v3093 = vshrl.u32 %v3092, 7
      %v3094 = vsub.s32 %v3091, %v3093
      %v3095 = vrot.slane %v3087, %v3094
      %v3097 = vunpack.c.l.s4 1934713408
      %v3098 = vunpack.c.0.s8 %v3097
      %v3099 = vlaneseq
      %v3100 = vshrl.u32 %v3099, 7
      %v3101 = vsub.s32 %v3098, %v3100
      %v3102 = vrot.slane %v3088, %v3101
      %v3103 = vcombine.low %v3079, %v3095
      %v3104 = vcombine.high %v3079, %v3095
      %v3105 = vcombine.low %v3086, %v3102
      %v3106 = vcombine.high %v3086, %v3102
      %v3107 = vpack.c.bf16 %v3103, %v3103
      %v3108 = vpack.c.bf16 %v3104, %v3104
      %v3109 = vpack.c.bf16 %v3105, %v3105
      %v3110 = vpack.c.bf16 %v3106, %v3106
      %3112 = vrot.lane.b32.xlu0 %v2917, 96
      %v3113 = vpop.permute.xlu0 %3112
      %3115 = vrot.lane.b32.xlu0 %v2917, 64
      %v3116 = vpop.permute.xlu0 %3115
      %3118 = vrot.lane.b32.xlu0 %v2917, 32
      %v3119 = vpop.permute.xlu0 %3118
      %v3121 = vcombine.low %v2917, %v3116
      %v3122 = vcombine.high %v2917, %v3116
      %v3124 = vunpack.c.l.s4 1983009808
      %v3125 = vunpack.c.0.s8 %v3124
      %v3126 = vlaneseq
      %v3127 = vshrl.u32 %v3126, 7
      %v3128 = vsub.s32 %v3125, %v3127
      %v3129 = vrot.slane %v3121, %v3128
      %v3131 = vunpack.c.l.s4 1983009808
      %v3132 = vunpack.c.0.s8 %v3131
      %v3133 = vlaneseq
      %v3134 = vshrl.u32 %v3133, 7
      %v3135 = vsub.s32 %v3132, %v3134
      %v3136 = vrot.slane %v3122, %v3135
      %v3137 = vcombine.low %v3113, %v3119
      %v3138 = vcombine.high %v3113, %v3119
      %v3140 = vunpack.c.l.s4 1983009808
      %v3141 = vunpack.c.0.s8 %v3140
      %v3142 = vlaneseq
      %v3143 = vshrl.u32 %v3142, 7
      %v3144 = vsub.s32 %v3141, %v3143
      %v3145 = vrot.slane %v3137, %v3144
      %v3147 = vunpack.c.l.s4 1983009808
      %v3148 = vunpack.c.0.s8 %v3147
      %v3149 = vlaneseq
      %v3150 = vshrl.u32 %v3149, 7
      %v3151 = vsub.s32 %v3148, %v3150
      %v3152 = vrot.slane %v3138, %v3151
      %v3153 = vcombine.low %v3129, %v3145
      %v3154 = vcombine.high %v3129, %v3145
      %v3156 = vunpack.c.l.s4 1934713408
      %v3157 = vunpack.c.0.s8 %v3156
      %v3158 = vlaneseq
      %v3159 = vshrl.u32 %v3158, 7
      %v3160 = vsub.s32 %v3157, %v3159
      %v3161 = vrot.slane %v3153, %v3160
      %v3163 = vunpack.c.l.s4 1934713408
      %v3164 = vunpack.c.0.s8 %v3163
      %v3165 = vlaneseq
      %v3166 = vshrl.u32 %v3165, 7
      %v3167 = vsub.s32 %v3164, %v3166
      %v3168 = vrot.slane %v3154, %v3167
      %v3169 = vcombine.low %v3136, %v3152
      %v3170 = vcombine.high %v3136, %v3152
      %v3172 = vunpack.c.l.s4 1934713408
      %v3173 = vunpack.c.0.s8 %v3172
      %v3174 = vlaneseq
      %v3175 = vshrl.u32 %v3174, 7
      %v3176 = vsub.s32 %v3173, %v3175
      %v3177 = vrot.slane %v3169, %v3176
      %v3179 = vunpack.c.l.s4 1934713408
      %v3180 = vunpack.c.0.s8 %v3179
      %v3181 = vlaneseq
      %v3182 = vshrl.u32 %v3181, 7
      %v3183 = vsub.s32 %v3180, %v3182
      %v3184 = vrot.slane %v3170, %v3183
      %v3185 = vcombine.high %v3161, 0.0
      %v3186 = vcombine.high %v3168, 0.0
      %v3187 = vcombine.high %v3177, 0.0
      %v3188 = vcombine.high %v3184, 0.0
      %v3189 = vcombine.low %v3161, %v3168
      %v3191 = vunpack.c.l.s4 1983009808
      %v3192 = vunpack.c.0.s8 %v3191
      %v3193 = vlaneseq
      %v3194 = vshrl.u32 %v3193, 7
      %v3195 = vsub.s32 %v3192, %v3194
      %v3196 = vrot.slane %v3189, %v3195
      %v3197 = vcombine.low %v3185, %v3186
      %v3199 = vunpack.c.l.s4 1983009808
      %v3200 = vunpack.c.0.s8 %v3199
      %v3201 = vlaneseq
      %v3202 = vshrl.u32 %v3201, 7
      %v3203 = vsub.s32 %v3200, %v3202
      %v3204 = vrot.slane %v3197, %v3203
      %v3205 = vcombine.low %v3177, %v3184
      %v3207 = vunpack.c.l.s4 1983009808
      %v3208 = vunpack.c.0.s8 %v3207
      %v3209 = vlaneseq
      %v3210 = vshrl.u32 %v3209, 7
      %v3211 = vsub.s32 %v3208, %v3210
      %v3212 = vrot.slane %v3205, %v3211
      %v3213 = vcombine.low %v3187, %v3188
      %v3215 = vunpack.c.l.s4 1983009808
      %v3216 = vunpack.c.0.s8 %v3215
      %v3217 = vlaneseq
      %v3218 = vshrl.u32 %v3217, 7
      %v3219 = vsub.s32 %v3216, %v3218
      %v3220 = vrot.slane %v3213, %v3219
      %v3221 = vcombine.low %v3196, %v3204
      %v3222 = vcombine.high %v3196, %v3204
      %v3224 = vunpack.c.l.s4 1934713408
      %v3225 = vunpack.c.0.s8 %v3224
      %v3226 = vlaneseq
      %v3227 = vshrl.u32 %v3226, 7
      %v3228 = vsub.s32 %v3225, %v3227
      %v3229 = vrot.slane %v3221, %v3228
      %v3231 = vunpack.c.l.s4 1934713408
      %v3232 = vunpack.c.0.s8 %v3231
      %v3233 = vlaneseq
      %v3234 = vshrl.u32 %v3233, 7
      %v3235 = vsub.s32 %v3232, %v3234
      %v3236 = vrot.slane %v3222, %v3235
      %v3237 = vcombine.low %v3212, %v3220
      %v3238 = vcombine.high %v3212, %v3220
      %v3240 = vunpack.c.l.s4 1934713408
      %v3241 = vunpack.c.0.s8 %v3240
      %v3242 = vlaneseq
      %v3243 = vshrl.u32 %v3242, 7
      %v3244 = vsub.s32 %v3241, %v3243
      %v3245 = vrot.slane %v3237, %v3244
      %v3247 = vunpack.c.l.s4 1934713408
      %v3248 = vunpack.c.0.s8 %v3247
      %v3249 = vlaneseq
      %v3250 = vshrl.u32 %v3249, 7
      %v3251 = vsub.s32 %v3248, %v3250
      %v3252 = vrot.slane %v3238, %v3251
      %v3253 = vcombine.low %v3229, %v3245
      %v3254 = vcombine.high %v3229, %v3245
      %v3255 = vcombine.low %v3236, %v3252
      %v3256 = vcombine.high %v3236, %v3252
      %v3257 = vpack.c.bf16 %v3253, %v3253
      %v3258 = vpack.c.bf16 %v3254, %v3254
      %v3259 = vpack.c.bf16 %v3255, %v3255
      %v3260 = vpack.c.bf16 %v3256, %v3256
      %3262 = vrot.lane.b32.xlu0 %v2956, 96
      %v3263 = vpop.permute.xlu0 %3262
      %3265 = vrot.lane.b32.xlu0 %v2956, 64
      %v3266 = vpop.permute.xlu0 %3265
      %3268 = vrot.lane.b32.xlu0 %v2956, 32
      %v3269 = vpop.permute.xlu0 %3268
      %v3271 = vcombine.low %v2956, %v3266
      %v3272 = vcombine.high %v2956, %v3266
      %v3274 = vunpack.c.l.s4 1983009808
      %v3275 = vunpack.c.0.s8 %v3274
      %v3276 = vlaneseq
      %v3277 = vshrl.u32 %v3276, 7
      %v3278 = vsub.s32 %v3275, %v3277
      %v3279 = vrot.slane %v3271, %v3278
      %v3281 = vunpack.c.l.s4 1983009808
      %v3282 = vunpack.c.0.s8 %v3281
      %v3283 = vlaneseq
      %v3284 = vshrl.u32 %v3283, 7
      %v3285 = vsub.s32 %v3282, %v3284
      %v3286 = vrot.slane %v3272, %v3285
      %v3287 = vcombine.low %v3263, %v3269
      %v3288 = vcombine.high %v3263, %v3269
      %v3290 = vunpack.c.l.s4 1983009808
      %v3291 = vunpack.c.0.s8 %v3290
      %v3292 = vlaneseq
      %v3293 = vshrl.u32 %v3292, 7
      %v3294 = vsub.s32 %v3291, %v3293
      %v3295 = vrot.slane %v3287, %v3294
      %v3297 = vunpack.c.l.s4 1983009808
      %v3298 = vunpack.c.0.s8 %v3297
      %v3299 = vlaneseq
      %v3300 = vshrl.u32 %v3299, 7
      %v3301 = vsub.s32 %v3298, %v3300
      %v3302 = vrot.slane %v3288, %v3301
      %v3303 = vcombine.low %v3279, %v3295
      %v3304 = vcombine.high %v3279, %v3295
      %v3306 = vunpack.c.l.s4 1934713408
      %v3307 = vunpack.c.0.s8 %v3306
      %v3308 = vlaneseq
      %v3309 = vshrl.u32 %v3308, 7
      %v3310 = vsub.s32 %v3307, %v3309
      %v3311 = vrot.slane %v3303, %v3310
      %v3313 = vunpack.c.l.s4 1934713408
      %v3314 = vunpack.c.0.s8 %v3313
      %v3315 = vlaneseq
      %v3316 = vshrl.u32 %v3315, 7
      %v3317 = vsub.s32 %v3314, %v3316
      %v3318 = vrot.slane %v3304, %v3317
      %v3319 = vcombine.low %v3286, %v3302
      %v3320 = vcombine.high %v3286, %v3302
      %v3322 = vunpack.c.l.s4 1934713408
      %v3323 = vunpack.c.0.s8 %v3322
      %v3324 = vlaneseq
      %v3325 = vshrl.u32 %v3324, 7
      %v3326 = vsub.s32 %v3323, %v3325
      %v3327 = vrot.slane %v3319, %v3326
      %v3329 = vunpack.c.l.s4 1934713408
      %v3330 = vunpack.c.0.s8 %v3329
      %v3331 = vlaneseq
      %v3332 = vshrl.u32 %v3331, 7
      %v3333 = vsub.s32 %v3330, %v3332
      %v3334 = vrot.slane %v3320, %v3333
      %v3335 = vcombine.high %v3311, 0.0
      %v3336 = vcombine.high %v3318, 0.0
      %v3337 = vcombine.high %v3327, 0.0
      %v3338 = vcombine.high %v3334, 0.0
      %v3339 = vcombine.low %v3311, %v3318
      %v3341 = vunpack.c.l.s4 1983009808
      %v3342 = vunpack.c.0.s8 %v3341
      %v3343 = vlaneseq
      %v3344 = vshrl.u32 %v3343, 7
      %v3345 = vsub.s32 %v3342, %v3344
      %v3346 = vrot.slane %v3339, %v3345
      %v3347 = vcombine.low %v3335, %v3336
      %v3349 = vunpack.c.l.s4 1983009808
      %v3350 = vunpack.c.0.s8 %v3349
      %v3351 = vlaneseq
      %v3352 = vshrl.u32 %v3351, 7
      %v3353 = vsub.s32 %v3350, %v3352
      %v3354 = vrot.slane %v3347, %v3353
      %v3355 = vcombine.low %v3327, %v3334
      %v3357 = vunpack.c.l.s4 1983009808
      %v3358 = vunpack.c.0.s8 %v3357
      %v3359 = vlaneseq
      %v3360 = vshrl.u32 %v3359, 7
      %v3361 = vsub.s32 %v3358, %v3360
      %v3362 = vrot.slane %v3355, %v3361
      %v3363 = vcombine.low %v3337, %v3338
      %v3365 = vunpack.c.l.s4 1983009808
      %v3366 = vunpack.c.0.s8 %v3365
      %v3367 = vlaneseq
      %v3368 = vshrl.u32 %v3367, 7
      %v3369 = vsub.s32 %v3366, %v3368
      %v3370 = vrot.slane %v3363, %v3369
      %v3371 = vcombine.low %v3346, %v3354
      %v3372 = vcombine.high %v3346, %v3354
      %v3374 = vunpack.c.l.s4 1934713408
      %v3375 = vunpack.c.0.s8 %v3374
      %v3376 = vlaneseq
      %v3377 = vshrl.u32 %v3376, 7
      %v3378 = vsub.s32 %v3375, %v3377
      %v3379 = vrot.slane %v3371, %v3378
      %v3381 = vunpack.c.l.s4 1934713408
      %v3382 = vunpack.c.0.s8 %v3381
      %v3383 = vlaneseq
      %v3384 = vshrl.u32 %v3383, 7
      %v3385 = vsub.s32 %v3382, %v3384
      %v3386 = vrot.slane %v3372, %v3385
      %v3387 = vcombine.low %v3362, %v3370
      %v3388 = vcombine.high %v3362, %v3370
      %v3390 = vunpack.c.l.s4 1934713408
      %v3391 = vunpack.c.0.s8 %v3390
      %v3392 = vlaneseq
      %v3393 = vshrl.u32 %v3392, 7
      %v3394 = vsub.s32 %v3391, %v3393
      %v3395 = vrot.slane %v3387, %v3394
      %v3397 = vunpack.c.l.s4 1934713408
      %v3398 = vunpack.c.0.s8 %v3397
      %v3399 = vlaneseq
      %v3400 = vshrl.u32 %v3399, 7
      %v3401 = vsub.s32 %v3398, %v3400
      %v3402 = vrot.slane %v3388, %v3401
      %v3403 = vcombine.low %v3379, %v3395
      %v3404 = vcombine.high %v3379, %v3395
      %v3405 = vcombine.low %v3386, %v3402
      %v3406 = vcombine.high %v3386, %v3402
      %v3407 = vpack.c.bf16 %v3403, %v3403
      %v3408 = vpack.c.bf16 %v3404, %v3404
      %v3409 = vpack.c.bf16 %v3405, %v3405
      %v3410 = vpack.c.bf16 %v3406, %v3406
      %v3412 = vsel %vm1276, %v3107, 0
      %v3415 = vsel %vm1276, %v3257, 0
      %3417 = vmatprep.subr.bf16.mxu0 0
      %3418 = vmatpush1.bf16.xpose.msra.mxu0 %v3415
      %3419 = vmatprep.subr.bf16.mxu0 0
      %3420 = vmatpush1.bf16.xpose.msra.mxu0 0
      %3421 = vmatprep.subr.bf16.mxu0 0
      %3422 = vmatpush1.bf16.xpose.msra.mxu0 0
      %3423 = vmatprep.subr.bf16.mxu0 0
      %3424 = vmatpush1.bf16.xpose.msra.mxu0 0
      %3425 = vmatprep.subr.bf16.mxu0 0
      %3426 = vmatpush1.bf16.xpose.msra.mxu0 0
      %3427 = vmatprep.subr.bf16.mxu0 0
      %3428 = vmatpush1.bf16.xpose.msra.mxu0 0
      %3429 = vmatprep.subr.bf16.mxu0 0
      %3430 = vmatpush1.bf16.xpose.msra.mxu0 0
      %3431 = vmatprep.subr.bf16.mxu0 0
      %3432 = vmatpush1.bf16.xpose.msra.mxu0 0
      %3433 = vmatprep.subr.bf16.mxu0 0
      %3434 = vmatpush1.bf16.xpose.msra.mxu0 0
      %3435 = vmatprep.subr.bf16.mxu0 0
      %3436 = vmatpush1.bf16.xpose.msra.mxu0 0
      %3437 = vmatprep.subr.bf16.mxu0 0
      %3438 = vmatpush1.bf16.xpose.msra.mxu0 0
      %3439 = vmatprep.subr.bf16.mxu0 0
      %3440 = vmatpush1.bf16.xpose.msra.mxu0 0
      %3441 = vmatprep.subr.bf16.mxu0 0
      %3442 = vmatpush1.bf16.xpose.msra.mxu0 0
      %3443 = vmatprep.subr.bf16.mxu0 0
      %3444 = vmatpush1.bf16.xpose.msra.mxu0 0
      %3445 = vmatprep.subr.bf16.mxu0 0
      %3446 = vmatpush1.bf16.xpose.msra.mxu0 0
      %3447 = vmatprep.subr.bf16.mxu0 0
      %3448 = vmatpush1.bf16.xpose.msra.mxu0 0
      %3449 = vmatprep.mubr.bf16.mxu0 0
      %3450 = vmatmul.mubr.bf16.gmra.mrb[0].mxu0 %v3412
      %v3451 = vpop.f32.mrb[0].mxu0
      %v3452 = vadd.f32 %v519, %v3451
      %v3453 = vpop.f32.mrb[0].mxu0
      %v3454 = vpop.f32.mrb[0].mxu0
      %v3455 = vpop.f32.mrb[0].mxu0
      %3456 = vdwg.mxu0
      %v3458 = vsel %vm1276, %v3108, 0
      %v3461 = vsel %vm1276, %v3258, 0
      %3463 = vmatprep.subr.bf16.mxu0 0
      %3464 = vmatpush1.bf16.xpose.msra.mxu0 %v3461
      %3465 = vmatprep.subr.bf16.mxu0 0
      %3466 = vmatpush1.bf16.xpose.msra.mxu0 0
      %3467 = vmatprep.subr.bf16.mxu0 0
      %3468 = vmatpush1.bf16.xpose.msra.mxu0 0
      %3469 = vmatprep.subr.bf16.mxu0 0
      %3470 = vmatpush1.bf16.xpose.msra.mxu0 0
      %3471 = vmatprep.subr.bf16.mxu0 0
      %3472 = vmatpush1.bf16.xpose.msra.mxu0 0
      %3473 = vmatprep.subr.bf16.mxu0 0
      %3474 = vmatpush1.bf16.xpose.msra.mxu0 0
      %3475 = vmatprep.subr.bf16.mxu0 0
      %3476 = vmatpush1.bf16.xpose.msra.mxu0 0
      %3477 = vmatprep.subr.bf16.mxu0 0
      %3478 = vmatpush1.bf16.xpose.msra.mxu0 0
      %3479 = vmatprep.subr.bf16.mxu0 0
      %3480 = vmatpush1.bf16.xpose.msra.mxu0 0
      %3481 = vmatprep.subr.bf16.mxu0 0
      %3482 = vmatpush1.bf16.xpose.msra.mxu0 0
      %3483 = vmatprep.subr.bf16.mxu0 0
      %3484 = vmatpush1.bf16.xpose.msra.mxu0 0
      %3485 = vmatprep.subr.bf16.mxu0 0
      %3486 = vmatpush1.bf16.xpose.msra.mxu0 0
      %3487 = vmatprep.subr.bf16.mxu0 0
      %3488 = vmatpush1.bf16.xpose.msra.mxu0 0
      %3489 = vmatprep.subr.bf16.mxu0 0
      %3490 = vmatpush1.bf16.xpose.msra.mxu0 0
      %3491 = vmatprep.subr.bf16.mxu0 0
      %3492 = vmatpush1.bf16.xpose.msra.mxu0 0
      %3493 = vmatprep.subr.bf16.mxu0 0
      %3494 = vmatpush1.bf16.xpose.msra.mxu0 0
      %3495 = vmatprep.mubr.bf16.mxu0 0
      %3496 = vmatmul.mubr.bf16.gmra.mrb[0].mxu0 %v3458
      %v3497 = vpop.f32.mrb[0].mxu0
      %v3498 = vadd.f32 %v519, %v3497
      %v3499 = vpop.f32.mrb[0].mxu0
      %v3500 = vpop.f32.mrb[0].mxu0
      %v3501 = vpop.f32.mrb[0].mxu0
      %3502 = vdwg.mxu0
      %v3504 = vsel %vm1276, %v3109, 0
      %v3507 = vsel %vm1276, %v3259, 0
      %3509 = vmatprep.subr.bf16.mxu0 0
      %3510 = vmatpush1.bf16.xpose.msra.mxu0 %v3507
      %3511 = vmatprep.subr.bf16.mxu0 0
      %3512 = vmatpush1.bf16.xpose.msra.mxu0 0
      %3513 = vmatprep.subr.bf16.mxu0 0
      %3514 = vmatpush1.bf16.xpose.msra.mxu0 0
      %3515 = vmatprep.subr.bf16.mxu0 0
      %3516 = vmatpush1.bf16.xpose.msra.mxu0 0
      %3517 = vmatprep.subr.bf16.mxu0 0
      %3518 = vmatpush1.bf16.xpose.msra.mxu0 0
      %3519 = vmatprep.subr.bf16.mxu0 0
      %3520 = vmatpush1.bf16.xpose.msra.mxu0 0
      %3521 = vmatprep.subr.bf16.mxu0 0
      %3522 = vmatpush1.bf16.xpose.msra.mxu0 0
      %3523 = vmatprep.subr.bf16.mxu0 0
      %3524 = vmatpush1.bf16.xpose.msra.mxu0 0
      %3525 = vmatprep.subr.bf16.mxu0 0
      %3526 = vmatpush1.bf16.xpose.msra.mxu0 0
      %3527 = vmatprep.subr.bf16.mxu0 0
      %3528 = vmatpush1.bf16.xpose.msra.mxu0 0
      %3529 = vmatprep.subr.bf16.mxu0 0
      %3530 = vmatpush1.bf16.xpose.msra.mxu0 0
      %3531 = vmatprep.subr.bf16.mxu0 0
      %3532 = vmatpush1.bf16.xpose.msra.mxu0 0
      %3533 = vmatprep.subr.bf16.mxu0 0
      %3534 = vmatpush1.bf16.xpose.msra.mxu0 0
      %3535 = vmatprep.subr.bf16.mxu0 0
      %3536 = vmatpush1.bf16.xpose.msra.mxu0 0
      %3537 = vmatprep.subr.bf16.mxu0 0
      %3538 = vmatpush1.bf16.xpose.msra.mxu0 0
      %3539 = vmatprep.subr.bf16.mxu0 0
      %3540 = vmatpush1.bf16.xpose.msra.mxu0 0
      %3541 = vmatprep.mubr.bf16.mxu0 0
      %3542 = vmatmul.mubr.bf16.gmra.mrb[0].mxu0 %v3504
      %v3543 = vpop.f32.mrb[0].mxu0
      %v3544 = vadd.f32 %v519, %v3543
      %v3545 = vpop.f32.mrb[0].mxu0
      %v3546 = vpop.f32.mrb[0].mxu0
      %v3547 = vpop.f32.mrb[0].mxu0
      %3548 = vdwg.mxu0
      %v3550 = vsel %vm1276, %v3110, 0
      %v3553 = vsel %vm1276, %v3260, 0
      %3555 = vmatprep.subr.bf16.mxu0 0
      %3556 = vmatpush1.bf16.xpose.msra.mxu0 %v3553
      %3557 = vmatprep.subr.bf16.mxu0 0
      %3558 = vmatpush1.bf16.xpose.msra.mxu0 0
      %3559 = vmatprep.subr.bf16.mxu0 0
      %3560 = vmatpush1.bf16.xpose.msra.mxu0 0
      %3561 = vmatprep.subr.bf16.mxu0 0
      %3562 = vmatpush1.bf16.xpose.msra.mxu0 0
      %3563 = vmatprep.subr.bf16.mxu0 0
      %3564 = vmatpush1.bf16.xpose.msra.mxu0 0
      %3565 = vmatprep.subr.bf16.mxu0 0
      %3566 = vmatpush1.bf16.xpose.msra.mxu0 0
      %3567 = vmatprep.subr.bf16.mxu0 0
      %3568 = vmatpush1.bf16.xpose.msra.mxu0 0
      %3569 = vmatprep.subr.bf16.mxu0 0
      %3570 = vmatpush1.bf16.xpose.msra.mxu0 0
      %3571 = vmatprep.subr.bf16.mxu0 0
      %3572 = vmatpush1.bf16.xpose.msra.mxu0 0
      %3573 = vmatprep.subr.bf16.mxu0 0
      %3574 = vmatpush1.bf16.xpose.msra.mxu0 0
      %3575 = vmatprep.subr.bf16.mxu0 0
      %3576 = vmatpush1.bf16.xpose.msra.mxu0 0
      %3577 = vmatprep.subr.bf16.mxu0 0
      %3578 = vmatpush1.bf16.xpose.msra.mxu0 0
      %3579 = vmatprep.subr.bf16.mxu0 0
      %3580 = vmatpush1.bf16.xpose.msra.mxu0 0
      %3581 = vmatprep.subr.bf16.mxu0 0
      %3582 = vmatpush1.bf16.xpose.msra.mxu0 0
      %3583 = vmatprep.subr.bf16.mxu0 0
      %3584 = vmatpush1.bf16.xpose.msra.mxu0 0
      %3585 = vmatprep.subr.bf16.mxu0 0
      %3586 = vmatpush1.bf16.xpose.msra.mxu0 0
      %3587 = vmatprep.mubr.bf16.mxu0 0
      %3588 = vmatmul.mubr.bf16.gmra.mrb[0].mxu0 %v3550
      %v3589 = vpop.f32.mrb[0].mxu0
      %v3590 = vadd.f32 %v519, %v3589
      %v3591 = vpop.f32.mrb[0].mxu0
      %v3592 = vpop.f32.mrb[0].mxu0
      %v3593 = vpop.f32.mrb[0].mxu0
      %3594 = vdwg.mxu0
      %v3595 = vsel %vm1461, %v3452, -inf
      %3596 = vmax.xlane.f32.xlu0 %v3595
      %v3597 = vpop.xlane.xlu0 %3596
      %v3598 = vsel %vm1461, %v3498, -inf
      %3599 = vmax.xlane.f32.xlu0 %v3598
      %v3600 = vpop.xlane.xlu0 %3599
      %v3601 = vsel %vm1461, %v3544, -inf
      %3602 = vmax.xlane.f32.xlu0 %v3601
      %v3603 = vpop.xlane.xlu0 %3602
      %v3604 = vsel %vm1461, %v3590, -inf
      %3605 = vmax.xlane.f32.xlu0 %v3604
      %v3606 = vpop.xlane.xlu0 %3605
      %v3607 = vsub.f32 %v3452, %v3597
      %v3608 = vsub.f32 %v3498, %v3600
      %v3609 = vsub.f32 %v3544, %v3603
      %v3610 = vsub.f32 %v3590, %v3606
      %v3611 = vmul.f32 %v3607, 1.442695
      %v3612 = vpow.pop %v3611
      %v3613 = vmul.f32 %v3608, 1.442695
      %v3614 = vpow.pop %v3613
      %v3615 = vmul.f32 %v3609, 1.442695
      %v3616 = vpow.pop %v3615
      %v3617 = vmul.f32 %v3610, 1.442695
      %v3618 = vpow.pop %v3617
      %v3619 = vsel %vm1461, %v3612, 0.0
      %3620 = vadd.xlane.f32.xlu0 %v3619
      %v3621 = vpop.xlane.xlu0 %3620
      %v3622 = vsel %vm1461, %v3614, 0.0
      %3623 = vadd.xlane.f32.xlu0 %v3622
      %v3624 = vpop.xlane.xlu0 %3623
      %v3625 = vsel %vm1461, %v3616, 0.0
      %3626 = vadd.xlane.f32.xlu0 %v3625
      %v3627 = vpop.xlane.xlu0 %3626
      %v3628 = vsel %vm1461, %v3618, 0.0
      %3629 = vadd.xlane.f32.xlu0 %v3628
      %v3630 = vpop.xlane.xlu0 %3629
      %v3631 = vrcp.pop %v3621
      %v3632 = vrcp.pop %v3624
      %v3633 = vrcp.pop %v3627
      %v3634 = vrcp.pop %v3630
      %v3635 = vmul.f32 %v3612, %v3631
      %v3636 = vmul.f32 %v3614, %v3632
      %v3637 = vmul.f32 %v3616, %v3633
      %v3638 = vmul.f32 %v3618, %v3634
      %v3639 = vpack.c.bf16 %v3635, %v3635
      %v3640 = vpack.c.bf16 %v3636, %v3636
      %v3641 = vpack.c.bf16 %v3637, %v3637
      %v3642 = vpack.c.bf16 %v3638, %v3638
      %v3644 = vsel %vm1461, %v3639, 0
      %v3647 = vsel %vm1513, %v3407, 0
      %3649 = vmatprep.subr.bf16.mxu0 0
      %3650 = vmatpush1.bf16.msra.mxu0 %v3647
      %3651 = vmatprep.subr.bf16.mxu0 0
      %3652 = vmatpush1.bf16.msra.mxu0 0
      %3653 = vmatprep.subr.bf16.mxu0 0
      %3654 = vmatpush1.bf16.msra.mxu0 0
      %3655 = vmatprep.subr.bf16.mxu0 0
      %3656 = vmatpush1.bf16.msra.mxu0 0
      %3657 = vmatprep.subr.bf16.mxu0 0
      %3658 = vmatpush1.bf16.msra.mxu0 0
      %3659 = vmatprep.subr.bf16.mxu0 0
      %3660 = vmatpush1.bf16.msra.mxu0 0
      %3661 = vmatprep.subr.bf16.mxu0 0
      %3662 = vmatpush1.bf16.msra.mxu0 0
      %3663 = vmatprep.subr.bf16.mxu0 0
      %3664 = vmatpush1.bf16.msra.mxu0 0
      %3665 = vmatprep.subr.bf16.mxu0 0
      %3666 = vmatpush1.bf16.msra.mxu0 0
      %3667 = vmatprep.subr.bf16.mxu0 0
      %3668 = vmatpush1.bf16.msra.mxu0 0
      %3669 = vmatprep.subr.bf16.mxu0 0
      %3670 = vmatpush1.bf16.msra.mxu0 0
      %3671 = vmatprep.subr.bf16.mxu0 0
      %3672 = vmatpush1.bf16.msra.mxu0 0
      %3673 = vmatprep.subr.bf16.mxu0 0
      %3674 = vmatpush1.bf16.msra.mxu0 0
      %3675 = vmatprep.subr.bf16.mxu0 0
      %3676 = vmatpush1.bf16.msra.mxu0 0
      %3677 = vmatprep.subr.bf16.mxu0 0
      %3678 = vmatpush1.bf16.msra.mxu0 0
      %3679 = vmatprep.subr.bf16.mxu0 0
      %3680 = vmatpush1.bf16.msra.mxu0 0
      %3681 = vmatprep.mubr.bf16.mxu0 0
      %3682 = vmatmul.mubr.bf16.gmra.mrb[0].mxu0 %v3644
      %v3683 = vpop.f32.mrb[0].mxu0
      %v3684 = vadd.f32 0.0, %v3683
      %v3685 = vpop.f32.mrb[0].mxu0
      %v3686 = vpop.f32.mrb[0].mxu0
      %v3687 = vpop.f32.mrb[0].mxu0
      %3688 = vdwg.mxu0
      %v3690 = vsel %vm1461, %v3640, 0
      %v3693 = vsel %vm1513, %v3408, 0
      %3695 = vmatprep.subr.bf16.mxu0 0
      %3696 = vmatpush1.bf16.msra.mxu0 %v3693
      %3697 = vmatprep.subr.bf16.mxu0 0
      %3698 = vmatpush1.bf16.msra.mxu0 0
      %3699 = vmatprep.subr.bf16.mxu0 0
      %3700 = vmatpush1.bf16.msra.mxu0 0
      %3701 = vmatprep.subr.bf16.mxu0 0
      %3702 = vmatpush1.bf16.msra.mxu0 0
      %3703 = vmatprep.subr.bf16.mxu0 0
      %3704 = vmatpush1.bf16.msra.mxu0 0
      %3705 = vmatprep.subr.bf16.mxu0 0
      %3706 = vmatpush1.bf16.msra.mxu0 0
      %3707 = vmatprep.subr.bf16.mxu0 0
      %3708 = vmatpush1.bf16.msra.mxu0 0
      %3709 = vmatprep.subr.bf16.mxu0 0
      %3710 = vmatpush1.bf16.msra.mxu0 0
      %3711 = vmatprep.subr.bf16.mxu0 0
      %3712 = vmatpush1.bf16.msra.mxu0 0
      %3713 = vmatprep.subr.bf16.mxu0 0
      %3714 = vmatpush1.bf16.msra.mxu0 0
      %3715 = vmatprep.subr.bf16.mxu0 0
      %3716 = vmatpush1.bf16.msra.mxu0 0
      %3717 = vmatprep.subr.bf16.mxu0 0
      %3718 = vmatpush1.bf16.msra.mxu0 0
      %3719 = vmatprep.subr.bf16.mxu0 0
      %3720 = vmatpush1.bf16.msra.mxu0 0
      %3721 = vmatprep.subr.bf16.mxu0 0
      %3722 = vmatpush1.bf16.msra.mxu0 0
      %3723 = vmatprep.subr.bf16.mxu0 0
      %3724 = vmatpush1.bf16.msra.mxu0 0
      %3725 = vmatprep.subr.bf16.mxu0 0
      %3726 = vmatpush1.bf16.msra.mxu0 0
      %3727 = vmatprep.mubr.bf16.mxu0 0
      %3728 = vmatmul.mubr.bf16.gmra.mrb[0].mxu0 %v3690
      %v3729 = vpop.f32.mrb[0].mxu0
      %v3730 = vadd.f32 0.0, %v3729
      %v3731 = vpop.f32.mrb[0].mxu0
      %v3732 = vpop.f32.mrb[0].mxu0
      %v3733 = vpop.f32.mrb[0].mxu0
      %3734 = vdwg.mxu0
      %v3736 = vsel %vm1461, %v3641, 0
      %v3739 = vsel %vm1513, %v3409, 0
      %3741 = vmatprep.subr.bf16.mxu0 0
      %3742 = vmatpush1.bf16.msra.mxu0 %v3739
      %3743 = vmatprep.subr.bf16.mxu0 0
      %3744 = vmatpush1.bf16.msra.mxu0 0
      %3745 = vmatprep.subr.bf16.mxu0 0
      %3746 = vmatpush1.bf16.msra.mxu0 0
      %3747 = vmatprep.subr.bf16.mxu0 0
      %3748 = vmatpush1.bf16.msra.mxu0 0
      %3749 = vmatprep.subr.bf16.mxu0 0
      %3750 = vmatpush1.bf16.msra.mxu0 0
      %3751 = vmatprep.subr.bf16.mxu0 0
      %3752 = vmatpush1.bf16.msra.mxu0 0
      %3753 = vmatprep.subr.bf16.mxu0 0
      %3754 = vmatpush1.bf16.msra.mxu0 0
      %3755 = vmatprep.subr.bf16.mxu0 0
      %3756 = vmatpush1.bf16.msra.mxu0 0
      %3757 = vmatprep.subr.bf16.mxu0 0
      %3758 = vmatpush1.bf16.msra.mxu0 0
      %3759 = vmatprep.subr.bf16.mxu0 0
      %3760 = vmatpush1.bf16.msra.mxu0 0
      %3761 = vmatprep.subr.bf16.mxu0 0
      %3762 = vmatpush1.bf16.msra.mxu0 0
      %3763 = vmatprep.subr.bf16.mxu0 0
      %3764 = vmatpush1.bf16.msra.mxu0 0
      %3765 = vmatprep.subr.bf16.mxu0 0
      %3766 = vmatpush1.bf16.msra.mxu0 0
      %3767 = vmatprep.subr.bf16.mxu0 0
      %3768 = vmatpush1.bf16.msra.mxu0 0
      %3769 = vmatprep.subr.bf16.mxu0 0
      %3770 = vmatpush1.bf16.msra.mxu0 0
      %3771 = vmatprep.subr.bf16.mxu0 0
      %3772 = vmatpush1.bf16.msra.mxu0 0
      %3773 = vmatprep.mubr.bf16.mxu0 0
      %3774 = vmatmul.mubr.bf16.gmra.mrb[0].mxu0 %v3736
      %v3775 = vpop.f32.mrb[0].mxu0
      %v3776 = vadd.f32 0.0, %v3775
      %v3777 = vpop.f32.mrb[0].mxu0
      %v3778 = vpop.f32.mrb[0].mxu0
      %v3779 = vpop.f32.mrb[0].mxu0
      %3780 = vdwg.mxu0
      %v3782 = vsel %vm1461, %v3642, 0
      %v3785 = vsel %vm1513, %v3410, 0
      %3787 = vmatprep.subr.bf16.mxu0 0
      %3788 = vmatpush1.bf16.msra.mxu0 %v3785
      %3789 = vmatprep.subr.bf16.mxu0 0
      %3790 = vmatpush1.bf16.msra.mxu0 0
      %3791 = vmatprep.subr.bf16.mxu0 0
      %3792 = vmatpush1.bf16.msra.mxu0 0
      %3793 = vmatprep.subr.bf16.mxu0 0
      %3794 = vmatpush1.bf16.msra.mxu0 0
      %3795 = vmatprep.subr.bf16.mxu0 0
      %3796 = vmatpush1.bf16.msra.mxu0 0
      %3797 = vmatprep.subr.bf16.mxu0 0
      %3798 = vmatpush1.bf16.msra.mxu0 0
      %3799 = vmatprep.subr.bf16.mxu0 0
      %3800 = vmatpush1.bf16.msra.mxu0 0
      %3801 = vmatprep.subr.bf16.mxu0 0
      %3802 = vmatpush1.bf16.msra.mxu0 0
      %3803 = vmatprep.subr.bf16.mxu0 0
      %3804 = vmatpush1.bf16.msra.mxu0 0
      %3805 = vmatprep.subr.bf16.mxu0 0
      %3806 = vmatpush1.bf16.msra.mxu0 0
      %3807 = vmatprep.subr.bf16.mxu0 0
      %3808 = vmatpush1.bf16.msra.mxu0 0
      %3809 = vmatprep.subr.bf16.mxu0 0
      %3810 = vmatpush1.bf16.msra.mxu0 0
      %3811 = vmatprep.subr.bf16.mxu0 0
      %3812 = vmatpush1.bf16.msra.mxu0 0
      %3813 = vmatprep.subr.bf16.mxu0 0
      %3814 = vmatpush1.bf16.msra.mxu0 0
      %3815 = vmatprep.subr.bf16.mxu0 0
      %3816 = vmatpush1.bf16.msra.mxu0 0
      %3817 = vmatprep.subr.bf16.mxu0 0
      %3818 = vmatpush1.bf16.msra.mxu0 0
      %3819 = vmatprep.mubr.bf16.mxu0 0
      %3820 = vmatmul.mubr.bf16.gmra.mrb[0].mxu0 %v3782
      %v3821 = vpop.f32.mrb[0].mxu0
      %v3822 = vadd.f32 0.0, %v3821
      %v3823 = vpop.f32.mrb[0].mxu0
      %v3824 = vpop.f32.mrb[0].mxu0
      %v3825 = vpop.f32.mrb[0].mxu0
      %3826 = vdwg.mxu0
      %v3827 = vcombine.low %v3684, %v3776
      %v3828 = vcombine.high %v3684, %v3776
      %v3830 = vunpack.c.l.s4 1983009808
      %v3831 = vunpack.c.0.s8 %v3830
      %v3832 = vlaneseq
      %v3833 = vshrl.u32 %v3832, 7
      %v3834 = vsub.s32 %v3831, %v3833
      %v3835 = vrot.slane %v3827, %v3834
      %v3837 = vunpack.c.l.s4 1983009808
      %v3838 = vunpack.c.0.s8 %v3837
      %v3839 = vlaneseq
      %v3840 = vshrl.u32 %v3839, 7
      %v3841 = vsub.s32 %v3838, %v3840
      %v3842 = vrot.slane %v3828, %v3841
      %v3843 = vcombine.low %v3730, %v3822
      %v3844 = vcombine.high %v3730, %v3822
      %v3846 = vunpack.c.l.s4 1983009808
      %v3847 = vunpack.c.0.s8 %v3846
      %v3848 = vlaneseq
      %v3849 = vshrl.u32 %v3848, 7
      %v3850 = vsub.s32 %v3847, %v3849
      %v3851 = vrot.slane %v3843, %v3850
      %v3853 = vunpack.c.l.s4 1983009808
      %v3854 = vunpack.c.0.s8 %v3853
      %v3855 = vlaneseq
      %v3856 = vshrl.u32 %v3855, 7
      %v3857 = vsub.s32 %v3854, %v3856
      %v3858 = vrot.slane %v3844, %v3857
      %v3859 = vcombine.low %v3835, %v3851
      %v3860 = vcombine.high %v3835, %v3851
      %v3862 = vunpack.c.l.s4 1934713408
      %v3863 = vunpack.c.0.s8 %v3862
      %v3864 = vlaneseq
      %v3865 = vshrl.u32 %v3864, 7
      %v3866 = vsub.s32 %v3863, %v3865
      %v3867 = vrot.slane %v3859, %v3866
      %v3869 = vunpack.c.l.s4 1934713408
      %v3870 = vunpack.c.0.s8 %v3869
      %v3871 = vlaneseq
      %v3872 = vshrl.u32 %v3871, 7
      %v3873 = vsub.s32 %v3870, %v3872
      %v3874 = vrot.slane %v3860, %v3873
      %v3875 = vcombine.low %v3842, %v3858
      %v3876 = vcombine.high %v3842, %v3858
      %v3878 = vunpack.c.l.s4 1934713408
      %v3879 = vunpack.c.0.s8 %v3878
      %v3880 = vlaneseq
      %v3881 = vshrl.u32 %v3880, 7
      %v3882 = vsub.s32 %v3879, %v3881
      %v3883 = vrot.slane %v3875, %v3882
      %v3885 = vunpack.c.l.s4 1934713408
      %v3886 = vunpack.c.0.s8 %v3885
      %v3887 = vlaneseq
      %v3888 = vshrl.u32 %v3887, 7
      %v3889 = vsub.s32 %v3886, %v3888
      %v3890 = vrot.slane %v3876, %v3889
      %v3891 = vcombine.high %v3867, 0.0
      %v3892 = vcombine.high %v3874, 0.0
      %v3893 = vcombine.high %v3883, 0.0
      %v3894 = vcombine.high %v3890, 0.0
      %v3895 = vcombine.low %v3867, %v3874
      %v3897 = vunpack.c.l.s4 1983009808
      %v3898 = vunpack.c.0.s8 %v3897
      %v3899 = vlaneseq
      %v3900 = vshrl.u32 %v3899, 7
      %v3901 = vsub.s32 %v3898, %v3900
      %v3902 = vrot.slane %v3895, %v3901
      %v3903 = vcombine.low %v3891, %v3892
      %v3905 = vunpack.c.l.s4 1983009808
      %v3906 = vunpack.c.0.s8 %v3905
      %v3907 = vlaneseq
      %v3908 = vshrl.u32 %v3907, 7
      %v3909 = vsub.s32 %v3906, %v3908
      %v3910 = vrot.slane %v3903, %v3909
      %v3911 = vcombine.low %v3883, %v3890
      %v3913 = vunpack.c.l.s4 1983009808
      %v3914 = vunpack.c.0.s8 %v3913
      %v3915 = vlaneseq
      %v3916 = vshrl.u32 %v3915, 7
      %v3917 = vsub.s32 %v3914, %v3916
      %v3918 = vrot.slane %v3911, %v3917
      %v3919 = vcombine.low %v3893, %v3894
      %v3921 = vunpack.c.l.s4 1983009808
      %v3922 = vunpack.c.0.s8 %v3921
      %v3923 = vlaneseq
      %v3924 = vshrl.u32 %v3923, 7
      %v3925 = vsub.s32 %v3922, %v3924
      %v3926 = vrot.slane %v3919, %v3925
      %v3927 = vcombine.low %v3902, %v3910
      %v3928 = vcombine.high %v3902, %v3910
      %v3930 = vunpack.c.l.s4 1934713408
      %v3931 = vunpack.c.0.s8 %v3930
      %v3932 = vlaneseq
      %v3933 = vshrl.u32 %v3932, 7
      %v3934 = vsub.s32 %v3931, %v3933
      %v3935 = vrot.slane %v3927, %v3934
      %v3937 = vunpack.c.l.s4 1934713408
      %v3938 = vunpack.c.0.s8 %v3937
      %v3939 = vlaneseq
      %v3940 = vshrl.u32 %v3939, 7
      %v3941 = vsub.s32 %v3938, %v3940
      %v3942 = vrot.slane %v3928, %v3941
      %v3943 = vcombine.low %v3918, %v3926
      %v3944 = vcombine.high %v3918, %v3926
      %v3946 = vunpack.c.l.s4 1934713408
      %v3947 = vunpack.c.0.s8 %v3946
      %v3948 = vlaneseq
      %v3949 = vshrl.u32 %v3948, 7
      %v3950 = vsub.s32 %v3947, %v3949
      %v3951 = vrot.slane %v3943, %v3950
      %v3953 = vunpack.c.l.s4 1934713408
      %v3954 = vunpack.c.0.s8 %v3953
      %v3955 = vlaneseq
      %v3956 = vshrl.u32 %v3955, 7
      %v3957 = vsub.s32 %v3954, %v3956
      %v3958 = vrot.slane %v3944, %v3957
      %v3959 = vcombine.low %v3935, %v3951
      %v3960 = vcombine.high %v3935, %v3951
      %v3961 = vcombine.low %v3942, %v3958
      %v3962 = vcombine.high %v3942, %v3958
      %3964 = vrot.lane.b32.xlu0 %v3960, 32
      %v3965 = vpop.permute.xlu0 %3964
      %3968 = vrot.lane.b32.xlu0 %v3961, 64
      %v3969 = vpop.permute.xlu0 %3968
      %3972 = vrot.lane.b32.xlu0 %v3962, 96
      %v3973 = vpop.permute.xlu0 %3972
      %v3975 = vsel %vm1276, %v3959, %v3965
      %v3976 = vsel %vm1844, %v3975, %v3969
      %v3977 = vsel %vm1846, %v3976, %v3973
      %v3978 = vpack.c.bf16 %v3977, %v3977
      %v3980 = vlaneseq
      %v3981 = vshrl.u32 %v3980, 7
      %v3982 = vsub.s32 0, %v3981
      %v3983 = vrot.slane %v2734, %v3982
      %v4001 = vunpack.c.l.b16 %v2715
      %v4002 = vunpack.c.l.b16 %v2716
      %v4003 = vunpack.c.l.b16 %v2717
      %v4004 = vunpack.c.l.b16 %v2718
      %v4005 = vunpack.c.l.b16 %v2719
      %v4006 = vunpack.c.l.b16 %v2720
      %v4007 = vunpack.c.l.b16 %v2721
      %v4008 = vunpack.c.l.b16 %v2722
      %v4009 = vunpack.c.l.b16 %v2723
      %v4010 = vunpack.c.l.b16 %v2724
      %v4011 = vunpack.c.l.b16 %v2725
      %v4012 = vunpack.c.l.b16 %v2726
      %v4013 = vunpack.c.l.b16 %v2727
      %v4014 = vunpack.c.l.b16 %v2728
      %v4015 = vunpack.c.l.b16 %v2729
      %v4016 = vunpack.c.l.b16 %v2730
      %v4017 = vpack.c.b16 %v4002, %v4001
      %v4018 = vpack.c.b16 %v4004, %v4003
      %v4019 = vpack.c.b16 %v4006, %v4005
      %v4020 = vpack.c.b16 %v4008, %v4007
      %v4021 = vpack.c.b16 %v4010, %v4009
      %v4022 = vpack.c.b16 %v4012, %v4011
      %v4023 = vpack.c.b16 %v4014, %v4013
      %v4024 = vpack.c.b16 %v4016, %v4015
      %4033 = vmatprep.subr.bf16.mxu0 0
      %4034 = vmatpush1.bf16.msra.mxu0 %v4017
      %4035 = vmatprep.subr.bf16.mxu0 0
      %4036 = vmatpush1.bf16.msra.mxu0 %v4018
      %4037 = vmatprep.subr.bf16.mxu0 0
      %4038 = vmatpush1.bf16.msra.mxu0 %v4019
      %4039 = vmatprep.subr.bf16.mxu0 0
      %4040 = vmatpush1.bf16.msra.mxu0 %v4020
      %4041 = vmatprep.subr.bf16.mxu0 0
      %4042 = vmatpush1.bf16.msra.mxu0 %v4021
      %4043 = vmatprep.subr.bf16.mxu0 0
      %4044 = vmatpush1.bf16.msra.mxu0 %v4022
      %4045 = vmatprep.subr.bf16.mxu0 0
      %4046 = vmatpush1.bf16.msra.mxu0 %v4023
      %4047 = vmatprep.subr.bf16.mxu0 0
      %4048 = vmatpush1.bf16.msra.mxu0 %v4024
      %4049 = vmatprep.subr.bf16.mxu0 0
      %4050 = vmatpush1.bf16.msra.mxu0 0
      %4051 = vmatprep.subr.bf16.mxu0 0
      %4052 = vmatpush1.bf16.msra.mxu0 0
      %4053 = vmatprep.subr.bf16.mxu0 0
      %4054 = vmatpush1.bf16.msra.mxu0 0
      %4055 = vmatprep.subr.bf16.mxu0 0
      %4056 = vmatpush1.bf16.msra.mxu0 0
      %4057 = vmatprep.subr.bf16.mxu0 0
      %4058 = vmatpush1.bf16.msra.mxu0 0
      %4059 = vmatprep.subr.bf16.mxu0 0
      %4060 = vmatpush1.bf16.msra.mxu0 0
      %4061 = vmatprep.subr.bf16.mxu0 0
      %4062 = vmatpush1.bf16.msra.mxu0 0
      %4063 = vmatprep.subr.bf16.mxu0 0
      %4064 = vmatpush1.bf16.msra.mxu0 0
      %4065 = vmatprep.mubr.bf16.mxu0 0
      %4066 = vmatmul.mubr.bf16.gmra.mrb[0].mxu0 %v3978
      %v4067 = vpop.f32.mrb[0].mxu0
      %v4068 = vadd.f32 %v3983, %v4067
      %v4069 = vpop.f32.mrb[0].mxu0
      %v4070 = vpop.f32.mrb[0].mxu0
      %v4071 = vpop.f32.mrb[0].mxu0
      %4072 = vdwg.mxu0
      %v4073 = vadd.f32 %v2649, %v4068
      %s4074 = scalar_lea.vmem %s8, 1
      %v4075 = vld [vmem:[%s4074] sm:$0x1]
      %s4076 = scalar_lea.vmem %s9, 1
      %v4077 = vld [vmem:[%s4076] sm:$0x1]
      %4078 = vadd.xlane.f32.xlu0 %v4073
      %v4079 = vpop.xlane.xlu0 %4078
      %v4080 = vmul.f32 %v4079, %v524
      %v4081 = vmul.f32 %v4073, %v4073
      %4082 = vadd.xlane.f32.xlu0 %v4081
      %v4083 = vpop.xlane.xlu0 %4082
      %v4084 = vmul.f32 %v4083, %v524
      %v4085 = vmul.f32 %v4080, %v4080
      %v4086 = vsub.f32 %v4084, %v4085
      %v4087 = vsub.f32 %v4073, %v4080
      %v4088 = vadd.f32 %v4086, 1e-05
      %v4089 = vrsqrt.pop %v4088
      %v4090 = vmul.f32 %v4087, %v4089
      %v4092 = vlaneseq
      %v4093 = vshrl.u32 %v4092, 7
      %v4094 = vsub.s32 0, %v4093
      %v4095 = vrot.slane %v4075, %v4094
      %v4097 = vmul.f32 %v4090, %v4095
      %v4099 = vlaneseq
      %v4100 = vshrl.u32 %v4099, 7
      %v4101 = vsub.s32 0, %v4100
      %v4102 = vrot.slane %v4077, %v4101
      %v4104 = vadd.f32 %v4097, %v4102
      %s4105 = scalar_lea.vmem %s10, 256
      %v4106 = vld [vmem:[%s4105] sm:$0xff]
      %v4107 = vld [vmem:[%s4105 + $0x8] sm:$0xff]
      %v4108 = vld [vmem:[%s4105 + $0x10] sm:$0xff]
      %v4109 = vld [vmem:[%s4105 + $0x18] sm:$0xff]
      %v4110 = vld [vmem:[%s4105 + $0x20] sm:$0xff]
      %v4111 = vld [vmem:[%s4105 + $0x28] sm:$0xff]
      %v4112 = vld [vmem:[%s4105 + $0x30] sm:$0xff]
      %v4113 = vld [vmem:[%s4105 + $0x38] sm:$0xff]
      %v4114 = vld [vmem:[%s4105 + $0x40] sm:$0xff]
      %v4115 = vld [vmem:[%s4105 + $0x48] sm:$0xff]
      %v4116 = vld [vmem:[%s4105 + $0x50] sm:$0xff]
      %v4117 = vld [vmem:[%s4105 + $0x58] sm:$0xff]
      %v4118 = vld [vmem:[%s4105 + $0x60] sm:$0xff]
      %v4119 = vld [vmem:[%s4105 + $0x68] sm:$0xff]
      %v4120 = vld [vmem:[%s4105 + $0x70] sm:$0xff]
      %v4121 = vld [vmem:[%s4105 + $0x78] sm:$0xff]
      %v4122 = vld [vmem:[%s4105 + $0x80] sm:$0xff]
      %v4123 = vld [vmem:[%s4105 + $0x88] sm:$0xff]
      %v4124 = vld [vmem:[%s4105 + $0x90] sm:$0xff]
      %v4125 = vld [vmem:[%s4105 + $0x98] sm:$0xff]
      %v4126 = vld [vmem:[%s4105 + $0xa0] sm:$0xff]
      %v4127 = vld [vmem:[%s4105 + $0xa8] sm:$0xff]
      %v4128 = vld [vmem:[%s4105 + $0xb0] sm:$0xff]
      %v4129 = vld [vmem:[%s4105 + $0xb8] sm:$0xff]
      %v4130 = vld [vmem:[%s4105 + $0xc0] sm:$0xff]
      %v4131 = vld [vmem:[%s4105 + $0xc8] sm:$0xff]
      %v4132 = vld [vmem:[%s4105 + $0xd0] sm:$0xff]
      %v4133 = vld [vmem:[%s4105 + $0xd8] sm:$0xff]
      %v4134 = vld [vmem:[%s4105 + $0xe0] sm:$0xff]
      %v4135 = vld [vmem:[%s4105 + $0xe8] sm:$0xff]
      %v4136 = vld [vmem:[%s4105 + $0xf0] sm:$0xff]
      %v4137 = vld [vmem:[%s4105 + $0xf8] sm:$0xff]
      %s4138 = scalar_lea.vmem %s11, 4
      %v4139 = vld [vmem:[%s4138] sm:$0xf]
      %s4140 = scalar_lea.vmem %s12, 256
      %v4141 = vld [vmem:[%s4140] sm:$0xf]
      %v4142 = vld [vmem:[%s4140 + $0x4] sm:$0xf]
      %v4143 = vld [vmem:[%s4140 + $0x8] sm:$0xf]
      %v4144 = vld [vmem:[%s4140 + $0xc] sm:$0xf]
      %v4145 = vld [vmem:[%s4140 + $0x10] sm:$0xf]
      %v4146 = vld [vmem:[%s4140 + $0x14] sm:$0xf]
      %v4147 = vld [vmem:[%s4140 + $0x18] sm:$0xf]
      %v4148 = vld [vmem:[%s4140 + $0x1c] sm:$0xf]
      %v4149 = vld [vmem:[%s4140 + $0x20] sm:$0xf]
      %v4150 = vld [vmem:[%s4140 + $0x24] sm:$0xf]
      %v4151 = vld [vmem:[%s4140 + $0x28] sm:$0xf]
      %v4152 = vld [vmem:[%s4140 + $0x2c] sm:$0xf]
      %v4153 = vld [vmem:[%s4140 + $0x30] sm:$0xf]
      %v4154 = vld [vmem:[%s4140 + $0x34] sm:$0xf]
      %v4155 = vld [vmem:[%s4140 + $0x38] sm:$0xf]
      %v4156 = vld [vmem:[%s4140 + $0x3c] sm:$0xf]
      %v4157 = vld [vmem:[%s4140 + $0x40] sm:$0xf]
      %v4158 = vld [vmem:[%s4140 + $0x44] sm:$0xf]
      %v4159 = vld [vmem:[%s4140 + $0x48] sm:$0xf]
      %v4160 = vld [vmem:[%s4140 + $0x4c] sm:$0xf]
      %v4161 = vld [vmem:[%s4140 + $0x50] sm:$0xf]
      %v4162 = vld [vmem:[%s4140 + $0x54] sm:$0xf]
      %v4163 = vld [vmem:[%s4140 + $0x58] sm:$0xf]
      %v4164 = vld [vmem:[%s4140 + $0x5c] sm:$0xf]
      %v4165 = vld [vmem:[%s4140 + $0x60] sm:$0xf]
      %v4166 = vld [vmem:[%s4140 + $0x64] sm:$0xf]
      %v4167 = vld [vmem:[%s4140 + $0x68] sm:$0xf]
      %v4168 = vld [vmem:[%s4140 + $0x6c] sm:$0xf]
      %v4169 = vld [vmem:[%s4140 + $0x70] sm:$0xf]
      %v4170 = vld [vmem:[%s4140 + $0x74] sm:$0xf]
      %v4171 = vld [vmem:[%s4140 + $0x78] sm:$0xf]
      %v4172 = vld [vmem:[%s4140 + $0x7c] sm:$0xf]
      %v4173 = vld [vmem:[%s4140 + $0x80] sm:$0xf]
      %v4174 = vld [vmem:[%s4140 + $0x84] sm:$0xf]
      %v4175 = vld [vmem:[%s4140 + $0x88] sm:$0xf]
      %v4176 = vld [vmem:[%s4140 + $0x8c] sm:$0xf]
      %v4177 = vld [vmem:[%s4140 + $0x90] sm:$0xf]
      %v4178 = vld [vmem:[%s4140 + $0x94] sm:$0xf]
      %v4179 = vld [vmem:[%s4140 + $0x98] sm:$0xf]
      %v4180 = vld [vmem:[%s4140 + $0x9c] sm:$0xf]
      %v4181 = vld [vmem:[%s4140 + $0xa0] sm:$0xf]
      %v4182 = vld [vmem:[%s4140 + $0xa4] sm:$0xf]
      %v4183 = vld [vmem:[%s4140 + $0xa8] sm:$0xf]
      %v4184 = vld [vmem:[%s4140 + $0xac] sm:$0xf]
      %v4185 = vld [vmem:[%s4140 + $0xb0] sm:$0xf]
      %v4186 = vld [vmem:[%s4140 + $0xb4] sm:$0xf]
      %v4187 = vld [vmem:[%s4140 + $0xb8] sm:$0xf]
      %v4188 = vld [vmem:[%s4140 + $0xbc] sm:$0xf]
      %v4189 = vld [vmem:[%s4140 + $0xc0] sm:$0xf]
      %v4190 = vld [vmem:[%s4140 + $0xc4] sm:$0xf]
      %v4191 = vld [vmem:[%s4140 + $0xc8] sm:$0xf]
      %v4192 = vld [vmem:[%s4140 + $0xcc] sm:$0xf]
      %v4193 = vld [vmem:[%s4140 + $0xd0] sm:$0xf]
      %v4194 = vld [vmem:[%s4140 + $0xd4] sm:$0xf]
      %v4195 = vld [vmem:[%s4140 + $0xd8] sm:$0xf]
      %v4196 = vld [vmem:[%s4140 + $0xdc] sm:$0xf]
      %v4197 = vld [vmem:[%s4140 + $0xe0] sm:$0xf]
      %v4198 = vld [vmem:[%s4140 + $0xe4] sm:$0xf]
      %v4199 = vld [vmem:[%s4140 + $0xe8] sm:$0xf]
      %v4200 = vld [vmem:[%s4140 + $0xec] sm:$0xf]
      %v4201 = vld [vmem:[%s4140 + $0xf0] sm:$0xf]
      %v4202 = vld [vmem:[%s4140 + $0xf4] sm:$0xf]
      %v4203 = vld [vmem:[%s4140 + $0xf8] sm:$0xf]
      %v4204 = vld [vmem:[%s4140 + $0xfc] sm:$0xf]
      %s4205 = scalar_lea.vmem %s13, 1
      %v4206 = vld [vmem:[%s4205] sm:$0x1]
      %v4207 = vpack.c.bf16 %v4104, %v4104
      %v4209 = vlaneseq
      %v4210 = vshrl.u32 %v4209, 7
      %v4211 = vsub.s32 0, %v4210
      %v4212 = vrot.slane %v4139, %v4211
      %v4213 = vlaneseq
      %v4214 = vshrl.u32 %v4213, 7
      %v4215 = vsub.s32 1, %v4214
      %v4216 = vrot.slane %v4139, %v4215
      %v4217 = vlaneseq
      %v4218 = vshrl.u32 %v4217, 7
      %v4219 = vsub.s32 2, %v4218
      %v4220 = vrot.slane %v4139, %v4219
      %v4221 = vlaneseq
      %v4222 = vshrl.u32 %v4221, 7
      %v4223 = vsub.s32 3, %v4222
      %v4224 = vrot.slane %v4139, %v4223
      %v4261 = vunpack.c.l.b16 %v4106
      %v4262 = vunpack.c.h.b16 %v4106
      %v4263 = vunpack.c.l.b16 %v4107
      %v4264 = vunpack.c.h.b16 %v4107
      %v4265 = vunpack.c.l.b16 %v4108
      %v4266 = vunpack.c.h.b16 %v4108
      %v4267 = vunpack.c.l.b16 %v4109
      %v4268 = vunpack.c.h.b16 %v4109
      %v4269 = vunpack.c.l.b16 %v4110
      %v4270 = vunpack.c.h.b16 %v4110
      %v4271 = vunpack.c.l.b16 %v4111
      %v4272 = vunpack.c.h.b16 %v4111
      %v4273 = vunpack.c.l.b16 %v4112
      %v4274 = vunpack.c.h.b16 %v4112
      %v4275 = vunpack.c.l.b16 %v4113
      %v4276 = vunpack.c.h.b16 %v4113
      %v4277 = vunpack.c.l.b16 %v4114
      %v4278 = vunpack.c.h.b16 %v4114
      %v4279 = vunpack.c.l.b16 %v4115
      %v4280 = vunpack.c.h.b16 %v4115
      %v4281 = vunpack.c.l.b16 %v4116
      %v4282 = vunpack.c.h.b16 %v4116
      %v4283 = vunpack.c.l.b16 %v4117
      %v4284 = vunpack.c.h.b16 %v4117
      %v4285 = vunpack.c.l.b16 %v4118
      %v4286 = vunpack.c.h.b16 %v4118
      %v4287 = vunpack.c.l.b16 %v4119
      %v4288 = vunpack.c.h.b16 %v4119
      %v4289 = vunpack.c.l.b16 %v4120
      %v4290 = vunpack.c.h.b16 %v4120
      %v4291 = vunpack.c.l.b16 %v4121
      %v4292 = vunpack.c.h.b16 %v4121
      %v4293 = vunpack.c.l.b16 %v4122
      %v4294 = vunpack.c.h.b16 %v4122
      %v4295 = vunpack.c.l.b16 %v4123
      %v4296 = vunpack.c.h.b16 %v4123
      %v4297 = vunpack.c.l.b16 %v4124
      %v4298 = vunpack.c.h.b16 %v4124
      %v4299 = vunpack.c.l.b16 %v4125
      %v4300 = vunpack.c.h.b16 %v4125
      %v4301 = vunpack.c.l.b16 %v4126
      %v4302 = vunpack.c.h.b16 %v4126
      %v4303 = vunpack.c.l.b16 %v4127
      %v4304 = vunpack.c.h.b16 %v4127
      %v4305 = vunpack.c.l.b16 %v4128
      %v4306 = vunpack.c.h.b16 %v4128
      %v4307 = vunpack.c.l.b16 %v4129
      %v4308 = vunpack.c.h.b16 %v4129
      %v4309 = vunpack.c.l.b16 %v4130
      %v4310 = vunpack.c.h.b16 %v4130
      %v4311 = vunpack.c.l.b16 %v4131
      %v4312 = vunpack.c.h.b16 %v4131
      %v4313 = vunpack.c.l.b16 %v4132
      %v4314 = vunpack.c.h.b16 %v4132
      %v4315 = vunpack.c.l.b16 %v4133
      %v4316 = vunpack.c.h.b16 %v4133
      %v4317 = vunpack.c.l.b16 %v4134
      %v4318 = vunpack.c.h.b16 %v4134
      %v4319 = vunpack.c.l.b16 %v4135
      %v4320 = vunpack.c.h.b16 %v4135
      %v4321 = vunpack.c.l.b16 %v4136
      %v4322 = vunpack.c.h.b16 %v4136
      %v4323 = vunpack.c.l.b16 %v4137
      %v4324 = vunpack.c.h.b16 %v4137
      %v4325 = vpack.c.b16 %v4265, %v4261
      %v4326 = vpack.c.b16 %v4266, %v4262
      %v4327 = vpack.c.b16 %v4267, %v4263
      %v4328 = vpack.c.b16 %v4268, %v4264
      %v4329 = vpack.c.b16 %v4273, %v4269
      %v4330 = vpack.c.b16 %v4274, %v4270
      %v4331 = vpack.c.b16 %v4275, %v4271
      %v4332 = vpack.c.b16 %v4276, %v4272
      %v4333 = vpack.c.b16 %v4281, %v4277
      %v4334 = vpack.c.b16 %v4282, %v4278
      %v4335 = vpack.c.b16 %v4283, %v4279
      %v4336 = vpack.c.b16 %v4284, %v4280
      %v4337 = vpack.c.b16 %v4289, %v4285
      %v4338 = vpack.c.b16 %v4290, %v4286
      %v4339 = vpack.c.b16 %v4291, %v4287
      %v4340 = vpack.c.b16 %v4292, %v4288
      %v4341 = vpack.c.b16 %v4297, %v4293
      %v4342 = vpack.c.b16 %v4298, %v4294
      %v4343 = vpack.c.b16 %v4299, %v4295
      %v4344 = vpack.c.b16 %v4300, %v4296
      %v4345 = vpack.c.b16 %v4305, %v4301
      %v4346 = vpack.c.b16 %v4306, %v4302
      %v4347 = vpack.c.b16 %v4307, %v4303
      %v4348 = vpack.c.b16 %v4308, %v4304
      %v4349 = vpack.c.b16 %v4313, %v4309
      %v4350 = vpack.c.b16 %v4314, %v4310
      %v4351 = vpack.c.b16 %v4315, %v4311
      %v4352 = vpack.c.b16 %v4316, %v4312
      %v4353 = vpack.c.b16 %v4321, %v4317
      %v4354 = vpack.c.b16 %v4322, %v4318
      %v4355 = vpack.c.b16 %v4323, %v4319
      %v4356 = vpack.c.b16 %v4324, %v4320
      %4389 = vmatprep.subr.bf16.mxu0 %v4326
      %4390 = vmatpush1.bf16.msra.mxu0 %v4325
      %4391 = vmatprep.subr.bf16.mxu0 %v4330
      %4392 = vmatpush1.bf16.msra.mxu0 %v4329
      %4393 = vmatprep.subr.bf16.mxu0 %v4334
      %4394 = vmatpush1.bf16.msra.mxu0 %v4333
      %4395 = vmatprep.subr.bf16.mxu0 %v4338
      %4396 = vmatpush1.bf16.msra.mxu0 %v4337
      %4397 = vmatprep.subr.bf16.mxu0 %v4342
      %4398 = vmatpush1.bf16.msra.mxu0 %v4341
      %4399 = vmatprep.subr.bf16.mxu0 %v4346
      %4400 = vmatpush1.bf16.msra.mxu0 %v4345
      %4401 = vmatprep.subr.bf16.mxu0 %v4350
      %4402 = vmatpush1.bf16.msra.mxu0 %v4349
      %4403 = vmatprep.subr.bf16.mxu0 %v4354
      %4404 = vmatpush1.bf16.msra.mxu0 %v4353
      %4405 = vmatprep.subr.bf16.mxu0 0
      %4406 = vmatpush1.bf16.msra.mxu0 0
      %4407 = vmatprep.subr.bf16.mxu0 0
      %4408 = vmatpush1.bf16.msra.mxu0 0
      %4409 = vmatprep.subr.bf16.mxu0 0
      %4410 = vmatpush1.bf16.msra.mxu0 0
      %4411 = vmatprep.subr.bf16.mxu0 0
      %4412 = vmatpush1.bf16.msra.mxu0 0
      %4413 = vmatprep.subr.bf16.mxu0 0
      %4414 = vmatpush1.bf16.msra.mxu0 0
      %4415 = vmatprep.subr.bf16.mxu0 0
      %4416 = vmatpush1.bf16.msra.mxu0 0
      %4417 = vmatprep.subr.bf16.mxu0 0
      %4418 = vmatpush1.bf16.msra.mxu0 0
      %4419 = vmatprep.subr.bf16.mxu0 0
      %4420 = vmatpush1.bf16.msra.mxu0 0
      %4421 = vmatprep.mubr.bf16.mxu0 0
      %4422 = vmatmul.mubr.bf16.gmra.mrb[0].mxu0 %v4207
      %v4423 = vpop.f32.mrb[0].mxu0
      %v4424 = vadd.f32 %v4212, %v4423
      %v4425 = vpop.f32.mrb[0].mxu0
      %v4426 = vadd.f32 %v4216, %v4425
      %v4427 = vpop.f32.mrb[0].mxu0
      %v4428 = vpop.f32.mrb[0].mxu0
      %4429 = vdwg.mxu0
      %4430 = vmatprep.subr.bf16.mxu0 %v4328
      %4431 = vmatpush1.bf16.msra.mxu0 %v4327
      %4432 = vmatprep.subr.bf16.mxu0 %v4332
      %4433 = vmatpush1.bf16.msra.mxu0 %v4331
      %4434 = vmatprep.subr.bf16.mxu0 %v4336
      %4435 = vmatpush1.bf16.msra.mxu0 %v4335
      %4436 = vmatprep.subr.bf16.mxu0 %v4340
      %4437 = vmatpush1.bf16.msra.mxu0 %v4339
      %4438 = vmatprep.subr.bf16.mxu0 %v4344
      %4439 = vmatpush1.bf16.msra.mxu0 %v4343
      %4440 = vmatprep.subr.bf16.mxu0 %v4348
      %4441 = vmatpush1.bf16.msra.mxu0 %v4347
      %4442 = vmatprep.subr.bf16.mxu0 %v4352
      %4443 = vmatpush1.bf16.msra.mxu0 %v4351
      %4444 = vmatprep.subr.bf16.mxu0 %v4356
      %4445 = vmatpush1.bf16.msra.mxu0 %v4355
      %4446 = vmatprep.subr.bf16.mxu0 0
      %4447 = vmatpush1.bf16.msra.mxu0 0
      %4448 = vmatprep.subr.bf16.mxu0 0
      %4449 = vmatpush1.bf16.msra.mxu0 0
      %4450 = vmatprep.subr.bf16.mxu0 0
      %4451 = vmatpush1.bf16.msra.mxu0 0
      %4452 = vmatprep.subr.bf16.mxu0 0
      %4453 = vmatpush1.bf16.msra.mxu0 0
      %4454 = vmatprep.subr.bf16.mxu0 0
      %4455 = vmatpush1.bf16.msra.mxu0 0
      %4456 = vmatprep.subr.bf16.mxu0 0
      %4457 = vmatpush1.bf16.msra.mxu0 0
      %4458 = vmatprep.subr.bf16.mxu0 0
      %4459 = vmatpush1.bf16.msra.mxu0 0
      %4460 = vmatprep.subr.bf16.mxu0 0
      %4461 = vmatpush1.bf16.msra.mxu0 0
      %4462 = vmatprep.mubr.bf16.mxu0 0
      %4463 = vmatmul.mubr.bf16.gmra.mrb[0].mxu0 %v4207
      %v4464 = vpop.f32.mrb[0].mxu0
      %v4465 = vadd.f32 %v4220, %v4464
      %v4466 = vpop.f32.mrb[0].mxu0
      %v4467 = vadd.f32 %v4224, %v4466
      %v4468 = vpop.f32.mrb[0].mxu0
      %v4469 = vpop.f32.mrb[0].mxu0
      %4470 = vdwg.mxu0
      %v4471 = vmul.f32 %v4424, 1.702
      %v4472 = vmul.f32 %v4426, 1.702
      %v4473 = vmul.f32 %v4465, 1.702
      %v4474 = vmul.f32 %v4467, 1.702
      %v4475 = vxor.u32 %v4471, 2147483648
      %v4476 = vxor.u32 %v4472, 2147483648
      %v4477 = vxor.u32 %v4473, 2147483648
      %v4478 = vxor.u32 %v4474, 2147483648
      %v4479 = vmul.f32 %v4475, 1.442695
      %v4480 = vpow.pop %v4479
      %v4481 = vmul.f32 %v4476, 1.442695
      %v4482 = vpow.pop %v4481
      %v4483 = vmul.f32 %v4477, 1.442695
      %v4484 = vpow.pop %v4483
      %v4485 = vmul.f32 %v4478, 1.442695
      %v4486 = vpow.pop %v4485
      %v4487 = vadd.f32 %v4480, 1.0
      %v4488 = vadd.f32 %v4482, 1.0
      %v4489 = vadd.f32 %v4484, 1.0
      %v4490 = vadd.f32 %v4486, 1.0
      %v4491 = vrcp.pop %v4487
      %v4492 = vmul.f32 1.0, %v4491
      %v4493 = vrcp.pop %v4488
      %v4494 = vmul.f32 1.0, %v4493
      %v4495 = vrcp.pop %v4489
      %v4496 = vmul.f32 1.0, %v4495
      %v4497 = vrcp.pop %v4490
      %v4498 = vmul.f32 1.0, %v4497
      %v4499 = vmul.f32 %v4424, %v4492
      %v4500 = vmul.f32 %v4426, %v4494
      %v4501 = vmul.f32 %v4465, %v4496
      %v4502 = vmul.f32 %v4467, %v4498
      %v4503 = vpack.c.bf16 %v4499, %v4499
      %v4504 = vpack.c.bf16 %v4500, %v4500
      %v4505 = vpack.c.bf16 %v4501, %v4501
      %v4506 = vpack.c.bf16 %v4502, %v4502
      %v4508 = vlaneseq
      %v4509 = vshrl.u32 %v4508, 7
      %v4510 = vsub.s32 0, %v4509
      %v4511 = vrot.slane %v4206, %v4510
      %v4577 = vunpack.c.l.b16 %v4141
      %v4578 = vunpack.c.l.b16 %v4142
      %v4579 = vunpack.c.l.b16 %v4143
      %v4580 = vunpack.c.l.b16 %v4144
      %v4581 = vunpack.c.l.b16 %v4145
      %v4582 = vunpack.c.l.b16 %v4146
      %v4583 = vunpack.c.l.b16 %v4147
      %v4584 = vunpack.c.l.b16 %v4148
      %v4585 = vunpack.c.l.b16 %v4149
      %v4586 = vunpack.c.l.b16 %v4150
      %v4587 = vunpack.c.l.b16 %v4151
      %v4588 = vunpack.c.l.b16 %v4152
      %v4589 = vunpack.c.l.b16 %v4153
      %v4590 = vunpack.c.l.b16 %v4154
      %v4591 = vunpack.c.l.b16 %v4155
      %v4592 = vunpack.c.l.b16 %v4156
      %v4593 = vunpack.c.l.b16 %v4157
      %v4594 = vunpack.c.l.b16 %v4158
      %v4595 = vunpack.c.l.b16 %v4159
      %v4596 = vunpack.c.l.b16 %v4160
      %v4597 = vunpack.c.l.b16 %v4161
      %v4598 = vunpack.c.l.b16 %v4162
      %v4599 = vunpack.c.l.b16 %v4163
      %v4600 = vunpack.c.l.b16 %v4164
      %v4601 = vunpack.c.l.b16 %v4165
      %v4602 = vunpack.c.l.b16 %v4166
      %v4603 = vunpack.c.l.b16 %v4167
      %v4604 = vunpack.c.l.b16 %v4168
      %v4605 = vunpack.c.l.b16 %v4169
      %v4606 = vunpack.c.l.b16 %v4170
      %v4607 = vunpack.c.l.b16 %v4171
      %v4608 = vunpack.c.l.b16 %v4172
      %v4609 = vunpack.c.l.b16 %v4173
      %v4610 = vunpack.c.l.b16 %v4174
      %v4611 = vunpack.c.l.b16 %v4175
      %v4612 = vunpack.c.l.b16 %v4176
      %v4613 = vunpack.c.l.b16 %v4177
      %v4614 = vunpack.c.l.b16 %v4178
      %v4615 = vunpack.c.l.b16 %v4179
      %v4616 = vunpack.c.l.b16 %v4180
      %v4617 = vunpack.c.l.b16 %v4181
      %v4618 = vunpack.c.l.b16 %v4182
      %v4619 = vunpack.c.l.b16 %v4183
      %v4620 = vunpack.c.l.b16 %v4184
      %v4621 = vunpack.c.l.b16 %v4185
      %v4622 = vunpack.c.l.b16 %v4186
      %v4623 = vunpack.c.l.b16 %v4187
      %v4624 = vunpack.c.l.b16 %v4188
      %v4625 = vunpack.c.l.b16 %v4189
      %v4626 = vunpack.c.l.b16 %v4190
      %v4627 = vunpack.c.l.b16 %v4191
      %v4628 = vunpack.c.l.b16 %v4192
      %v4629 = vunpack.c.l.b16 %v4193
      %v4630 = vunpack.c.l.b16 %v4194
      %v4631 = vunpack.c.l.b16 %v4195
      %v4632 = vunpack.c.l.b16 %v4196
      %v4633 = vunpack.c.l.b16 %v4197
      %v4634 = vunpack.c.l.b16 %v4198
      %v4635 = vunpack.c.l.b16 %v4199
      %v4636 = vunpack.c.l.b16 %v4200
      %v4637 = vunpack.c.l.b16 %v4201
      %v4638 = vunpack.c.l.b16 %v4202
      %v4639 = vunpack.c.l.b16 %v4203
      %v4640 = vunpack.c.l.b16 %v4204
      %v4641 = vpack.c.b16 %v4578, %v4577
      %v4642 = vpack.c.b16 %v4580, %v4579
      %v4643 = vpack.c.b16 %v4582, %v4581
      %v4644 = vpack.c.b16 %v4584, %v4583
      %v4645 = vpack.c.b16 %v4586, %v4585
      %v4646 = vpack.c.b16 %v4588, %v4587
      %v4647 = vpack.c.b16 %v4590, %v4589
      %v4648 = vpack.c.b16 %v4592, %v4591
      %v4649 = vpack.c.b16 %v4594, %v4593
      %v4650 = vpack.c.b16 %v4596, %v4595
      %v4651 = vpack.c.b16 %v4598, %v4597
      %v4652 = vpack.c.b16 %v4600, %v4599
      %v4653 = vpack.c.b16 %v4602, %v4601
      %v4654 = vpack.c.b16 %v4604, %v4603
      %v4655 = vpack.c.b16 %v4606, %v4605
      %v4656 = vpack.c.b16 %v4608, %v4607
      %v4657 = vpack.c.b16 %v4610, %v4609
      %v4658 = vpack.c.b16 %v4612, %v4611
      %v4659 = vpack.c.b16 %v4614, %v4613
      %v4660 = vpack.c.b16 %v4616, %v4615
      %v4661 = vpack.c.b16 %v4618, %v4617
      %v4662 = vpack.c.b16 %v4620, %v4619
      %v4663 = vpack.c.b16 %v4622, %v4621
      %v4664 = vpack.c.b16 %v4624, %v4623
      %v4665 = vpack.c.b16 %v4626, %v4625
      %v4666 = vpack.c.b16 %v4628, %v4627
      %v4667 = vpack.c.b16 %v4630, %v4629
      %v4668 = vpack.c.b16 %v4632, %v4631
      %v4669 = vpack.c.b16 %v4634, %v4633
      %v4670 = vpack.c.b16 %v4636, %v4635
      %v4671 = vpack.c.b16 %v4638, %v4637
      %v4672 = vpack.c.b16 %v4640, %v4639
      %4705 = vmatprep.subr.bf16.mxu0 0
      %4706 = vmatpush1.bf16.msra.mxu0 %v4641
      %4707 = vmatprep.subr.bf16.mxu0 0
      %4708 = vmatpush1.bf16.msra.mxu0 %v4642
      %4709 = vmatprep.subr.bf16.mxu0 0
      %4710 = vmatpush1.bf16.msra.mxu0 %v4643
      %4711 = vmatprep.subr.bf16.mxu0 0
      %4712 = vmatpush1.bf16.msra.mxu0 %v4644
      %4713 = vmatprep.subr.bf16.mxu0 0
      %4714 = vmatpush1.bf16.msra.mxu0 %v4645
      %4715 = vmatprep.subr.bf16.mxu0 0
      %4716 = vmatpush1.bf16.msra.mxu0 %v4646
      %4717 = vmatprep.subr.bf16.mxu0 0
      %4718 = vmatpush1.bf16.msra.mxu0 %v4647
      %4719 = vmatprep.subr.bf16.mxu0 0
      %4720 = vmatpush1.bf16.msra.mxu0 %v4648
      %4721 = vmatprep.subr.bf16.mxu0 0
      %4722 = vmatpush1.bf16.msra.mxu0 %v4649
      %4723 = vmatprep.subr.bf16.mxu0 0
      %4724 = vmatpush1.bf16.msra.mxu0 %v4650
      %4725 = vmatprep.subr.bf16.mxu0 0
      %4726 = vmatpush1.bf16.msra.mxu0 %v4651
      %4727 = vmatprep.subr.bf16.mxu0 0
      %4728 = vmatpush1.bf16.msra.mxu0 %v4652
      %4729 = vmatprep.subr.bf16.mxu0 0
      %4730 = vmatpush1.bf16.msra.mxu0 %v4653
      %4731 = vmatprep.subr.bf16.mxu0 0
      %4732 = vmatpush1.bf16.msra.mxu0 %v4654
      %4733 = vmatprep.subr.bf16.mxu0 0
      %4734 = vmatpush1.bf16.msra.mxu0 %v4655
      %4735 = vmatprep.subr.bf16.mxu0 0
      %4736 = vmatpush1.bf16.msra.mxu0 %v4656
      %4737 = vmatprep.mubr.bf16.mxu0 %v4504
      %4738 = vmatmul.mubr.bf16.gmra.mrb[0].mxu0 %v4503
      %v4739 = vpop.f32.mrb[0].mxu0
      %v4740 = vadd.f32 %v4511, %v4739
      %v4741 = vpop.f32.mrb[0].mxu0
      %v4742 = vpop.f32.mrb[0].mxu0
      %v4743 = vpop.f32.mrb[0].mxu0
      %4744 = vdwg.mxu0
      %4745 = vmatprep.subr.bf16.mxu0 0
      %4746 = vmatpush1.bf16.msra.mxu0 %v4657
      %4747 = vmatprep.subr.bf16.mxu0 0
      %4748 = vmatpush1.bf16.msra.mxu0 %v4658
      %4749 = vmatprep.subr.bf16.mxu0 0
      %4750 = vmatpush1.bf16.msra.mxu0 %v4659
      %4751 = vmatprep.subr.bf16.mxu0 0
      %4752 = vmatpush1.bf16.msra.mxu0 %v4660
      %4753 = vmatprep.subr.bf16.mxu0 0
      %4754 = vmatpush1.bf16.msra.mxu0 %v4661
      %4755 = vmatprep.subr.bf16.mxu0 0
      %4756 = vmatpush1.bf16.msra.mxu0 %v4662
      %4757 = vmatprep.subr.bf16.mxu0 0
      %4758 = vmatpush1.bf16.msra.mxu0 %v4663
      %4759 = vmatprep.subr.bf16.mxu0 0
      %4760 = vmatpush1.bf16.msra.mxu0 %v4664
      %4761 = vmatprep.subr.bf16.mxu0 0
      %4762 = vmatpush1.bf16.msra.mxu0 %v4665
      %4763 = vmatprep.subr.bf16.mxu0 0
      %4764 = vmatpush1.bf16.msra.mxu0 %v4666
      %4765 = vmatprep.subr.bf16.mxu0 0
      %4766 = vmatpush1.bf16.msra.mxu0 %v4667
      %4767 = vmatprep.subr.bf16.mxu0 0
      %4768 = vmatpush1.bf16.msra.mxu0 %v4668
      %4769 = vmatprep.subr.bf16.mxu0 0
      %4770 = vmatpush1.bf16.msra.mxu0 %v4669
      %4771 = vmatprep.subr.bf16.mxu0 0
      %4772 = vmatpush1.bf16.msra.mxu0 %v4670
      %4773 = vmatprep.subr.bf16.mxu0 0
      %4774 = vmatpush1.bf16.msra.mxu0 %v4671
      %4775 = vmatprep.subr.bf16.mxu0 0
      %4776 = vmatpush1.bf16.msra.mxu0 %v4672
      %4777 = vmatprep.mubr.bf16.mxu0 %v4506
      %4778 = vmatmul.mubr.bf16.gmra.mrb[0].mxu0 %v4505
      %v4779 = vpop.f32.mrb[0].mxu0
      %v4780 = vadd.f32 %v4740, %v4779
      %v4781 = vpop.f32.mrb[0].mxu0
      %v4782 = vpop.f32.mrb[0].mxu0
      %v4783 = vpop.f32.mrb[0].mxu0
      %4784 = vdwg.mxu0
      %v4785 = vadd.f32 %v4073, %v4780
      %v4786 = vld [vmem:[%s14] sm:$0x1]
      %v4787 = vld [vmem:[%s15] sm:$0x1]
      %4788 = vadd.xlane.f32.xlu0 %v4785
      %v4789 = vpop.xlane.xlu0 %4788
      %v4790 = vmul.f32 %v4789, %v524
      %v4791 = vmul.f32 %v4785, %v4785
      %4792 = vadd.xlane.f32.xlu0 %v4791
      %v4793 = vpop.xlane.xlu0 %4792
      %v4794 = vmul.f32 %v4793, %v524
      %v4795 = vmul.f32 %v4790, %v4790
      %v4796 = vsub.f32 %v4794, %v4795
      %v4797 = vsub.f32 %v4785, %v4790
      %v4798 = vadd.f32 %v4796, 1e-05
      %v4799 = vrsqrt.pop %v4798
      %v4800 = vmul.f32 %v4797, %v4799
      %v4802 = vlaneseq
      %v4803 = vshrl.u32 %v4802, 7
      %v4804 = vsub.s32 0, %v4803
      %v4805 = vrot.slane %v4786, %v4804
      %v4807 = vmul.f32 %v4800, %v4805
      %v4809 = vlaneseq
      %v4810 = vshrl.u32 %v4809, 7
      %v4811 = vsub.s32 0, %v4810
      %v4812 = vrot.slane %v4787, %v4811
      %v4814 = vadd.f32 %v4807, %v4812
      %4815 = vst [vmem:[%s516] sm:$0xff] %v4814
      %p4816 = scmp.lt.s32.totalorder %s27, 1
      %s4817 = scalar_select %p4816, %s27, 1
      %s4818 = smul.addr %s4817, 8
      %s4819 = scalar_lea.vmem %s16, %s4818
      // Predicated region
      $region85: #{flux_text_forward.2} parent=83 // pred_check
        %p4820 = pneg %p386
      $region86: #{flux_text_forward.2} parent=83 // pred_check_branch
        %4822 = sbr.rel (%p4820) target = $region88
      $region87: #{flux_text_forward.2} parent=83 // pred_region
        _
      $region88: #{flux_text_forward.2} parent=83 // pred_fallthru
        _
    $region84: #{flux_text_forward.2} parent=5 // pred_fallthru
      _
    %p4823 = scmp.le.s32.totalorder 2, %s22
    // Predicated region
    $region89: #{flux_text_forward.2} parent=5 // pred_check
      %p4824 = pneg %p4823
    $region90: #{flux_text_forward.2} parent=5 // pred_check_branch
      %4826 = sbr.rel (%p4824) target = $region92
    $region91: #{flux_text_forward.2} parent=5 // pred_region
      %s4827 = ssub.s32 %s22, 2
      // Predicated region
      $region93: #{flux_text_forward.2} parent=91 // pred_check
        %p4828 = pneg %p392
      $region94: #{flux_text_forward.2} parent=91 // pred_check_branch
        %4830 = sbr.rel (%p4828) target = $region96
      $region95: #{flux_text_forward.2} parent=91 // pred_region
        %p4831 = scmp.lt.s32.totalorder %s28, 1
        %s4832 = scalar_select %p4831, %s28, 1
        %s4833 = smul.addr %s4832, 8
        %s4834 = scalar_lea.vmem %s16, %s4833
      $region96: #{flux_text_forward.2} parent=91 // pred_fallthru
        _
    $region92: #{flux_text_forward.2} parent=5 // pred_fallthru
      _
  $region6: #{flux_text_forward.2} parent=0 // loop_footer
    %s26 = sadd.s32 1, %s22
  $region7: #{flux_text_forward.2} parent=0 // loop_footer_branch
    %21 = sbr.rel target = $region3
  $region8: #{flux_text_forward.2} parent=0 // loop_exit
    _

</llo_original>
